<compile_context>
chip_gen: v7x
topology: tpu7x:2x2x1
jax: 0.10.0
libtpu: 0.0.40
codegen_flags: <defaults>
</compile_context>

<pallas_src>
import functools

import jax
import jax.numpy as jnp
from jax import lax
from jax.experimental import pallas as pl
from jax.experimental.pallas import tpu as pltpu


def _full_spec(shape):
    """BlockSpec covering the whole array (no grid)."""
    nd = len(shape)
    return pl.BlockSpec(shape, lambda *_, _nd=nd: (0,) * _nd)


def _fused_cnn_kernel(*refs, N, geo, n_fc):
    """Entire CNN forward in one kernel invocation (no grid).

    refs layout:
      inputs : x, (w, b) per conv layer, w_t per fc layer
      outputs: pre-activation output of every fc layer (hooks; last = logits)
      scratch: (padded-input buf, im2col patch buf) per conv layer, flat-feature buf
    """
    n_conv = len(geo)
    i = 0
    x_ref = refs[i]; i += 1
    conv_w, conv_b = [], []
    for _ in range(n_conv):
        conv_w.append(refs[i]); conv_b.append(refs[i + 1]); i += 2
    fc_w = list(refs[i:i + n_fc]); i += n_fc
    fc_out = list(refs[i:i + n_fc]); i += n_fc
    pad_buf, patch_buf = [], []
    for _ in range(n_conv):
        pad_buf.append(refs[i]); patch_buf.append(refs[i + 1]); i += 2
    feat_buf = refs[i]

    x = x_ref[...]                                   # (N, H, W, C0) f32, NHWC
    for li, (cin, cout, k, pad, h, w, hp, wp, ho, wo) in enumerate(geo):
        # ---- zero-padded input lives only in VMEM scratch -------------------
        xp = pad_buf[li]
        if pad > 0:
            xp[...] = jnp.zeros_like(xp)
        xp[:, pad:pad + h, pad:pad + w, :] = x
        # ---- im2col: build (N*Ho*Wo, K*K*Cin) patch matrix, one MXU dot ------
        pb = patch_buf[li]
        for kh in range(k):
            for kw in range(k):
                c0 = (kh * k + kw) * cin
                pb[:, c0:c0 + cin] = xp[:, kh:kh + ho, kw:kw + wo, :].reshape(
                    N * ho * wo, cin)
        y = jnp.dot(pb[...], conv_w[li][...],
                    preferred_element_type=jnp.float32)
        y = jnp.maximum(y + conv_b[li][...], 0.0)          # bias + ReLU
        # ---- 2x2 max-pool, stride 2 (batch folded into the row axis) --------
        y = y.reshape(N * ho, wo, cout)
        y = jnp.max(y.reshape(N * ho // 2, 2, wo, cout), axis=1)
        y = jnp.max(y.reshape(N * ho // 2, wo // 2, 2, cout), axis=2)
        x = y.reshape(N, ho // 2, wo // 2, cout)           # next layer's input

    # ---- flatten (HWC order; fc1 weight rows were pre-permuted to match) ----
    h_f, w_f, c_f = x.shape[1], x.shape[2], x.shape[3]
    xf = x.reshape(N, h_f * w_f, c_f)
    for p in range(h_f * w_f):
        feat_buf[:, p * c_f:(p + 1) * c_f] = xf[:, p, :]
    feat = feat_buf[...]                                   # (N, feat_dim)

    # ---- fully connected stack (activations stay in registers/VMEM) ---------
    for j in range(n_fc):
        pre = jnp.dot(feat, fc_w[j][...], preferred_element_type=jnp.float32)
        fc_out[j][...] = pre.astype(fc_out[j].dtype)       # forward-hook output
        if j != n_fc - 1:
            feat = jnp.maximum(pre, 0.0)                   # ReLU, never hits HBM


def _build_forward(N, H, W, C0, conv_meta, layer_dims):
    n_conv = len(conv_meta)
    n_fc = len(layer_dims) - 1

    geo = []
    scratch_shapes = []
    h, w, c = H, W, C0
    for (cin, cout, k, stride, pad) in conv_meta:
        assert cin == c, "conv_dims channel chain mismatch"
        # TODO(synk): only stride=1 convolutions are implemented in the fused kernel.
        assert stride == 1, "fused kernel supports stride=1 convolutions"
        hp, wp = h + 2 * pad, w + 2 * pad
        ho, wo = hp - k + 1, wp - k + 1
        assert ho % 2 == 0 and wo % 2 == 0, "2x2 max-pool needs even conv output"
        geo.append((cin, cout, k, pad, h, w, hp, wp, ho, wo))
        scratch_shapes.append(pltpu.VMEM((N, hp, wp, cin), jnp.float32))
        scratch_shapes.append(pltpu.VMEM((N * ho * wo, k * k * cin), jnp.float32))
        h, w, c = ho // 2, wo // 2, cout
    feat_dim = h * w * c
    assert feat_dim == layer_dims[0], (feat_dim, layer_dims[0])
    scratch_shapes.append(pltpu.VMEM((N, feat_dim), jnp.float32))

    in_specs = [_full_spec((N, H, W, C0))]
    for (cin, cout, k, *_rest) in geo:
        in_specs.append(_full_spec((k * k * cin, cout)))   # conv weight (flattened)
        in_specs.append(_full_spec((1, cout)))             # conv bias
    for j in range(n_fc):
        in_specs.append(_full_spec((layer_dims[j], layer_dims[j + 1])))

    out_shape = tuple(jax.ShapeDtypeStruct((N, layer_dims[j + 1]), jnp.float32)
                      for j in range(n_fc))
    out_specs = tuple(_full_spec((N, layer_dims[j + 1])) for j in range(n_fc))

    kernel = functools.partial(_fused_cnn_kernel, N=N, geo=tuple(geo), n_fc=n_fc)

    call = pl.pallas_call(
        kernel,
        out_shape=out_shape,
        in_specs=in_specs,
        out_specs=out_specs,
        scratch_shapes=scratch_shapes,
    )

    def fwd(x_nchw, *params):
        # NCHW (PyTorch) -> NHWC (channels on the TPU lane axis).  This is the
        # only op outside the single fused pallas_call.
        x = jnp.transpose(x_nchw, (0, 2, 3, 1)).astype(jnp.float32)
        return call(x, *params)

    return jax.jit(fwd)


class PallasCNN:
    """Pallas/TPU forward-pass equivalent of the PyTorch CNN module."""

    def __init__(self, layer_dims, conv_dims, key):
        self.layer_dims = list(layer_dims)
        self.conv_meta = [tuple(cd) for cd in conv_dims]  # (cin, cout, k, stride, pad)
        self.conv_w = []        # (k*k*cin, cout)
        self.conv_b = []        # (1, cout)
        self.fc_weights_t = []  # (in, out) == torch weight.T, rows in CHW-flatten order
        self.activation_values = {}
        self._fc1_hwc = None
        self._fwd_cache = {}

        for (cin, cout, k, stride, pad) in self.conv_meta:
            key, kw_, kb_ = jax.random.split(key, 3)
            fan_in = cin * k * k
            bound = 1.0 / (fan_in ** 0.5)
            w = jax.random.uniform(kw_, (k, k, cin, cout),
                                   minval=-bound, maxval=bound, dtype=jnp.float32)
            b = jax.random.uniform(kb_, (1, cout),
                                   minval=-bound, maxval=bound, dtype=jnp.float32)
            self.conv_w.append(w.reshape(k * k * cin, cout))
            self.conv_b.append(b)

        for i in range(1, len(layer_dims)):
            key, kw_ = jax.random.split(key)
            bound = 1.0 / (layer_dims[i - 1] ** 0.5)
            w_t = jax.random.uniform(kw_, (layer_dims[i - 1], layer_dims[i]),
                                     minval=-bound, maxval=bound, dtype=jnp.float32)
            self.fc_weights_t.append(w_t)

        # TODO(synk): prune_model_from_rankings / reinit_model are host-side
        # weight-surgery utilities with no kernel compute; not translated.

    def _conv_out_shape(self, H, W):
        h, w, c = H, W, self.conv_meta[0][0]
        for (cin, cout, k, stride, pad) in self.conv_meta:
            ho = (h + 2 * pad - k) // stride + 1
            wo = (w + 2 * pad - k) // stride + 1
            h, w, c = ho // 2, wo // 2, cout
        return h, w, c

    def __call__(self, x_nchw):
        N, C0, H, W = x_nchw.shape
        h_f, w_f, c_f = self._conv_out_shape(H, W)

        # Pre-permute fc1's rows ONCE (host side) from torch's CHW flatten order
        # to the kernel's HWC flatten order (no in-kernel activation transpose).
        if self._fc1_hwc is None:
            w0 = self.fc_weights_t[0]
            out_dim = w0.shape[1]
            assert w0.shape[0] == c_f * h_f * w_f
            self._fc1_hwc = jnp.transpose(
                w0.reshape(c_f, h_f, w_f, out_dim), (1, 2, 0, 3)
            ).reshape(c_f * h_f * w_f, out_dim)

        cache_key = (int(N), int(H), int(W), int(C0))
        if cache_key not in self._fwd_cache:
            self._fwd_cache[cache_key] = _build_forward(
                N, H, W, C0, tuple(self.conv_meta), tuple(self.layer_dims))
        fwd = self._fwd_cache[cache_key]

        params = []
        for w, b in zip(self.conv_w, self.conv_b):
            params += [w, b]
        params.append(self._fc1_hwc)
        params += list(self.fc_weights_t[1:])

        outs = fwd(x_nchw, *params)
        for i, o in enumerate(outs):
            self.activation_values[f"fc_layers[{2 * i}]"] = o
        return outs[-1]


def _reference_forward(x_nchw, model):
    """Pure-JAX (XLA) reference of the same forward, used as a numerical check."""
    x = jnp.transpose(x_nchw, (0, 2, 3, 1)).astype(jnp.float32)
    for (w_flat, b, (cin, cout, k, stride, pad)) in zip(model.conv_w, model.conv_b,
                                                        model.conv_meta):
        w4 = w_flat.reshape(k, k, cin, cout)
        y = lax.conv_general_dilated(
            x, w4, window_strides=(stride, stride),
            padding=[(pad, pad), (pad, pad)],
            dimension_numbers=("NHWC", "HWIO", "NHWC"))
        y = jnp.maximum(y + b.reshape(1, 1, 1, cout), 0.0)
        y = lax.reduce_window(y, -jnp.inf, lax.max,
                              (1, 2, 2, 1), (1, 2, 2, 1), "VALID")
        x = y
    feat = x.reshape(x.shape[0], -1)                     # HWC flatten
    fc_ws = [model._fc1_hwc] + list(model.fc_weights_t[1:])
    pres = []
    for j, w_t in enumerate(fc_ws):
        pre = feat @ w_t
        pres.append(pre)
        if j != len(fc_ws) - 1:
            feat = jnp.maximum(pre, 0.0)
    return pres


if __name__ == "__main__":
    key = jax.random.PRNGKey(0)
    key, kx, kp = jax.random.split(key, 3)

    # NCHW input [2, 4, 16, 16]; conv stack -> (16, 4, 4) -> flatten 256
    conv_dims = [(4, 8, 3, 1, 1), (8, 16, 3, 1, 1)]
    layer_dims = [256, 64, 32, 10]

    x = jax.random.normal(kx, (2, 4, 16, 16), dtype=jnp.float32)

    model = PallasCNN(layer_dims, conv_dims, kp)
    out = model(x)
    out = jax.block_until_ready(out)

    assert out.shape == (2, 10), out.shape
    assert set(model.activation_values.keys()) == {
        "fc_layers[0]", "fc_layers[2]", "fc_layers[4]"
    }

    # Numerical check against the pure-JAX reference.
    ref_pres = _reference_forward(x, model)
    assert jnp.allclose(out, ref_pres[-1], atol=1e-4, rtol=1e-4)
    assert jnp.allclose(model.activation_values["fc_layers[0]"], ref_pres[0],
                        atol=1e-4, rtol=1e-4)
    assert jnp.allclose(model.activation_values["fc_layers[2]"], ref_pres[1],
                        atol=1e-4, rtol=1e-4)

    print("KERNEL_OK")
</pallas_src>

<mosaic_0001>
module attributes {stable_mosaic.version = 11 : i64} {
  func.func @_fused_cnn_kernel(%arg0: memref<2x16x16x4xf32, #tpu.memory_space<vmem>>, %arg1: memref<36x8xf32, #tpu.memory_space<vmem>>, %arg2: memref<1x8xf32, #tpu.memory_space<vmem>>, %arg3: memref<72x16xf32, #tpu.memory_space<vmem>>, %arg4: memref<1x16xf32, #tpu.memory_space<vmem>>, %arg5: memref<256x64xf32, #tpu.memory_space<vmem>>, %arg6: memref<64x32xf32, #tpu.memory_space<vmem>>, %arg7: memref<32x10xf32, #tpu.memory_space<vmem>>, %arg8: memref<2x64xf32, #tpu.memory_space<vmem>>, %arg9: memref<2x32xf32, #tpu.memory_space<vmem>>, %arg10: memref<2x10xf32, #tpu.memory_space<vmem>>, %arg11: memref<2x18x18x4xf32, #tpu.memory_space<vmem>>, %arg12: memref<512x36xf32, #tpu.memory_space<vmem>>, %arg13: memref<2x10x10x8xf32, #tpu.memory_space<vmem>>, %arg14: memref<128x72xf32, #tpu.memory_space<vmem>>, %arg15: memref<2x256xf32, #tpu.memory_space<vmem>>) attributes {dimension_semantics = [], scalar_prefetch = 0 : i64, scratch_operands = 5 : i64, tpu.core_type = #tpu.core_type<tc>} {
    %c0 = arith.constant 0 : index
    %c0_0 = arith.constant 0 : index
    %c0_1 = arith.constant 0 : index
    %c0_2 = arith.constant 0 : index
    %0 = vector.load %arg0[%c0, %c0_0, %c0_1, %c0_2] : memref<2x16x16x4xf32, #tpu.memory_space<vmem>>, vector<2x16x16x4xf32>
    %cst = arith.constant 0.000000e+00 : f32
    %1 = vector.broadcast %cst : f32 to vector<2x18x18x4xf32>
    %c0_3 = arith.constant 0 : index
    %c0_4 = arith.constant 0 : index
    %c0_5 = arith.constant 0 : index
    %c0_6 = arith.constant 0 : index
    %2 = vector.load %arg11[%c0_3, %c0_4, %c0_5, %c0_6] : memref<2x18x18x4xf32, #tpu.memory_space<vmem>>, vector<2x18x18x4xf32>
    tpu.vector_store %arg11[%c0_3, %c0_4, %c0_5, %c0_6], %1 {strides = array<i32>} : memref<2x18x18x4xf32, #tpu.memory_space<vmem>>, vector<2x18x18x4xf32>,
    %c0_7 = arith.constant 0 : index
    %c1 = arith.constant 1 : index
    %c1_8 = arith.constant 1 : index
    %c0_9 = arith.constant 0 : index
    %3 = vector.load %arg11[%c0_7, %c1, %c1_8, %c0_9] : memref<2x18x18x4xf32, #tpu.memory_space<vmem>>, vector<2x16x16x4xf32>
    tpu.vector_store %arg11[%c0_7, %c1, %c1_8, %c0_9], %0 {strides = array<i32>} : memref<2x18x18x4xf32, #tpu.memory_space<vmem>>, vector<2x16x16x4xf32>,
    %c0_10 = arith.constant 0 : index
    %c0_11 = arith.constant 0 : index
    %c0_12 = arith.constant 0 : index
    %c0_13 = arith.constant 0 : index
    %4 = vector.load %arg11[%c0_10, %c0_11, %c0_12, %c0_13] : memref<2x18x18x4xf32, #tpu.memory_space<vmem>>, vector<2x16x16x4xf32>
    %5 = vector.shape_cast %4 : vector<2x16x16x4xf32> to vector<512x4xf32>
    %c0_14 = arith.constant 0 : index
    %c0_15 = arith.constant 0 : index
    %6 = vector.load %arg12[%c0_14, %c0_15] : memref<512x36xf32, #tpu.memory_space<vmem>>, vector<512x4xf32>
    tpu.vector_store %arg12[%c0_14, %c0_15], %5 {strides = array<i32>} : memref<512x36xf32, #tpu.memory_space<vmem>>, vector<512x4xf32>,
    %c0_16 = arith.constant 0 : index
    %c0_17 = arith.constant 0 : index
    %c1_18 = arith.constant 1 : index
    %c0_19 = arith.constant 0 : index
    %7 = vector.load %arg11[%c0_16, %c0_17, %c1_18, %c0_19] : memref<2x18x18x4xf32, #tpu.memory_space<vmem>>, vector<2x16x16x4xf32>
    %8 = vector.shape_cast %7 : vector<2x16x16x4xf32> to vector<512x4xf32>
    %c0_20 = arith.constant 0 : index
    %c4 = arith.constant 4 : index
    %9 = vector.load %arg12[%c0_20, %c4] : memref<512x36xf32, #tpu.memory_space<vmem>>, vector<512x4xf32>
    tpu.vector_store %arg12[%c0_20, %c4], %8 {strides = array<i32>} : memref<512x36xf32, #tpu.memory_space<vmem>>, vector<512x4xf32>,
    %c0_21 = arith.constant 0 : index
    %c0_22 = arith.constant 0 : index
    %c2 = arith.constant 2 : index
    %c0_23 = arith.constant 0 : index
    %10 = vector.load %arg11[%c0_21, %c0_22, %c2, %c0_23] : memref<2x18x18x4xf32, #tpu.memory_space<vmem>>, vector<2x16x16x4xf32>
    %11 = vector.shape_cast %10 : vector<2x16x16x4xf32> to vector<512x4xf32>
    %c0_24 = arith.constant 0 : index
    %c8 = arith.constant 8 : index
    %12 = vector.load %arg12[%c0_24, %c8] : memref<512x36xf32, #tpu.memory_space<vmem>>, vector<512x4xf32>
    tpu.vector_store %arg12[%c0_24, %c8], %11 {strides = array<i32>} : memref<512x36xf32, #tpu.memory_space<vmem>>, vector<512x4xf32>,
    %c0_25 = arith.constant 0 : index
    %c1_26 = arith.constant 1 : index
    %c0_27 = arith.constant 0 : index
    %c0_28 = arith.constant 0 : index
    %13 = vector.load %arg11[%c0_25, %c1_26, %c0_27, %c0_28] : memref<2x18x18x4xf32, #tpu.memory_space<vmem>>, vector<2x16x16x4xf32>
    %14 = vector.shape_cast %13 : vector<2x16x16x4xf32> to vector<512x4xf32>
    %c0_29 = arith.constant 0 : index
    %c12 = arith.constant 12 : index
    %15 = vector.load %arg12[%c0_29, %c12] : memref<512x36xf32, #tpu.memory_space<vmem>>, vector<512x4xf32>
    tpu.vector_store %arg12[%c0_29, %c12], %14 {strides = array<i32>} : memref<512x36xf32, #tpu.memory_space<vmem>>, vector<512x4xf32>,
    %c0_30 = arith.constant 0 : index
    %c1_31 = arith.constant 1 : index
    %c1_32 = arith.constant 1 : index
    %c0_33 = arith.constant 0 : index
    %16 = vector.load %arg11[%c0_30, %c1_31, %c1_32, %c0_33] : memref<2x18x18x4xf32, #tpu.memory_space<vmem>>, vector<2x16x16x4xf32>
    %17 = vector.shape_cast %16 : vector<2x16x16x4xf32> to vector<512x4xf32>
    %c0_34 = arith.constant 0 : index
    %c16 = arith.constant 16 : index
    %18 = vector.load %arg12[%c0_34, %c16] : memref<512x36xf32, #tpu.memory_space<vmem>>, vector<512x4xf32>
    tpu.vector_store %arg12[%c0_34, %c16], %17 {strides = array<i32>} : memref<512x36xf32, #tpu.memory_space<vmem>>, vector<512x4xf32>,
    %c0_35 = arith.constant 0 : index
    %c1_36 = arith.constant 1 : index
    %c2_37 = arith.constant 2 : index
    %c0_38 = arith.constant 0 : index
    %19 = vector.load %arg11[%c0_35, %c1_36, %c2_37, %c0_38] : memref<2x18x18x4xf32, #tpu.memory_space<vmem>>, vector<2x16x16x4xf32>
    %20 = vector.shape_cast %19 : vector<2x16x16x4xf32> to vector<512x4xf32>
    %c0_39 = arith.constant 0 : index
    %c20 = arith.constant 20 : index
    %21 = vector.load %arg12[%c0_39, %c20] : memref<512x36xf32, #tpu.memory_space<vmem>>, vector<512x4xf32>
    tpu.vector_store %arg12[%c0_39, %c20], %20 {strides = array<i32>} : memref<512x36xf32, #tpu.memory_space<vmem>>, vector<512x4xf32>,
    %c0_40 = arith.constant 0 : index
    %c2_41 = arith.constant 2 : index
    %c0_42 = arith.constant 0 : index
    %c0_43 = arith.constant 0 : index
    %22 = vector.load %arg11[%c0_40, %c2_41, %c0_42, %c0_43] : memref<2x18x18x4xf32, #tpu.memory_space<vmem>>, vector<2x16x16x4xf32>
    %23 = vector.shape_cast %22 : vector<2x16x16x4xf32> to vector<512x4xf32>
    %c0_44 = arith.constant 0 : index
    %c24 = arith.constant 24 : index
    %24 = vector.load %arg12[%c0_44, %c24] : memref<512x36xf32, #tpu.memory_space<vmem>>, vector<512x4xf32>
    tpu.vector_store %arg12[%c0_44, %c24], %23 {strides = array<i32>} : memref<512x36xf32, #tpu.memory_space<vmem>>, vector<512x4xf32>,
    %c0_45 = arith.constant 0 : index
    %c2_46 = arith.constant 2 : index
    %c1_47 = arith.constant 1 : index
    %c0_48 = arith.constant 0 : index
    %25 = vector.load %arg11[%c0_45, %c2_46, %c1_47, %c0_48] : memref<2x18x18x4xf32, #tpu.memory_space<vmem>>, vector<2x16x16x4xf32>
    %26 = vector.shape_cast %25 : vector<2x16x16x4xf32> to vector<512x4xf32>
    %c0_49 = arith.constant 0 : index
    %c28 = arith.constant 28 : index
    %27 = vector.load %arg12[%c0_49, %c28] : memref<512x36xf32, #tpu.memory_space<vmem>>, vector<512x4xf32>
    tpu.vector_store %arg12[%c0_49, %c28], %26 {strides = array<i32>} : memref<512x36xf32, #tpu.memory_space<vmem>>, vector<512x4xf32>,
    %c0_50 = arith.constant 0 : index
    %c2_51 = arith.constant 2 : index
    %c2_52 = arith.constant 2 : index
    %c0_53 = arith.constant 0 : index
    %28 = vector.load %arg11[%c0_50, %c2_51, %c2_52, %c0_53] : memref<2x18x18x4xf32, #tpu.memory_space<vmem>>, vector<2x16x16x4xf32>
    %29 = vector.shape_cast %28 : vector<2x16x16x4xf32> to vector<512x4xf32>
    %c0_54 = arith.constant 0 : index
    %c32 = arith.constant 32 : index
    %30 = vector.load %arg12[%c0_54, %c32] : memref<512x36xf32, #tpu.memory_space<vmem>>, vector<512x4xf32>
    tpu.vector_store %arg12[%c0_54, %c32], %29 {strides = array<i32>} : memref<512x36xf32, #tpu.memory_space<vmem>>, vector<512x4xf32>,
    %c0_55 = arith.constant 0 : index
    %c0_56 = arith.constant 0 : index
    %31 = vector.load %arg12[%c0_55, %c0_56] : memref<512x36xf32, #tpu.memory_space<vmem>>, vector<512x36xf32>
    %c0_57 = arith.constant 0 : index
    %c0_58 = arith.constant 0 : index
    %32 = vector.load %arg1[%c0_57, %c0_58] : memref<36x8xf32, #tpu.memory_space<vmem>>, vector<36x8xf32>
    %cst_59 = arith.constant dense<0.000000e+00> : vector<512x8xf32>
    %33 = tpu.matmul %31, %32, %cst_59 {dimension_numbers = #tpu.dot_dimension_numbers<[1], [0], [0], [1], [0, 0, 1, 1], [], []>} : vector<512x36xf32>, vector<36x8xf32>, vector<512x8xf32> -> vector<512x8xf32>
    %c0_60 = arith.constant 0 : index
    %c0_61 = arith.constant 0 : index
    %34 = vector.load %arg2[%c0_60, %c0_61] : memref<1x8xf32, #tpu.memory_space<vmem>>, vector<1x8xf32>
    %35 = vector.broadcast %34 : vector<1x8xf32> to vector<512x8xf32>
    %36 = arith.addf %33, %35 : vector<512x8xf32>
    %cst_62 = arith.constant 0.000000e+00 : f32
    %37 = vector.broadcast %cst_62 : f32 to vector<512x8xf32>
    %38 = arith.maximumf %36, %37 : vector<512x8xf32>
    %39 = vector.shape_cast %38 : vector<512x8xf32> to vector<32x16x8xf32>
    %40 = vector.shape_cast %39 : vector<32x16x8xf32> to vector<16x2x16x8xf32>
    %cst_63 = arith.constant dense<0xFF800000> : vector<16x16x8xf32>
    %41 = vector.multi_reduction <maximumf>, %40, %cst_63 [1] : vector<16x2x16x8xf32> to vector<16x16x8xf32>
    %42 = vector.shape_cast %41 : vector<16x16x8xf32> to vector<16x8x2x8xf32>
    %cst_64 = arith.constant dense<0xFF800000> : vector<16x8x8xf32>
    %43 = vector.multi_reduction <maximumf>, %42, %cst_64 [2] : vector<16x8x2x8xf32> to vector<16x8x8xf32>
    %44 = vector.shape_cast %43 : vector<16x8x8xf32> to vector<2x8x8x8xf32>
    %cst_65 = arith.constant 0.000000e+00 : f32
    %45 = vector.broadcast %cst_65 : f32 to vector<2x10x10x8xf32>
    %c0_66 = arith.constant 0 : index
    %c0_67 = arith.constant 0 : index
    %c0_68 = arith.constant 0 : index
    %c0_69 = arith.constant 0 : index
    %46 = vector.load %arg13[%c0_66, %c0_67, %c0_68, %c0_69] : memref<2x10x10x8xf32, #tpu.memory_space<vmem>>, vector<2x10x10x8xf32>
    tpu.vector_store %arg13[%c0_66, %c0_67, %c0_68, %c0_69], %45 {strides = array<i32>} : memref<2x10x10x8xf32, #tpu.memory_space<vmem>>, vector<2x10x10x8xf32>,
    %c0_70 = arith.constant 0 : index
    %c1_71 = arith.constant 1 : index
    %c1_72 = arith.constant 1 : index
    %c0_73 = arith.constant 0 : index
    %47 = vector.load %arg13[%c0_70, %c1_71, %c1_72, %c0_73] : memref<2x10x10x8xf32, #tpu.memory_space<vmem>>, vector<2x8x8x8xf32>
    tpu.vector_store %arg13[%c0_70, %c1_71, %c1_72, %c0_73], %44 {strides = array<i32>} : memref<2x10x10x8xf32, #tpu.memory_space<vmem>>, vector<2x8x8x8xf32>,
    %c0_74 = arith.constant 0 : index
    %c0_75 = arith.constant 0 : index
    %c0_76 = arith.constant 0 : index
    %c0_77 = arith.constant 0 : index
    %48 = vector.load %arg13[%c0_74, %c0_75, %c0_76, %c0_77] : memref<2x10x10x8xf32, #tpu.memory_space<vmem>>, vector<2x8x8x8xf32>
    %49 = vector.shape_cast %48 : vector<2x8x8x8xf32> to vector<128x8xf32>
    %c0_78 = arith.constant 0 : index
    %c0_79 = arith.constant 0 : index
    %50 = vector.load %arg14[%c0_78, %c0_79] : memref<128x72xf32, #tpu.memory_space<vmem>>, vector<128x8xf32>
    tpu.vector_store %arg14[%c0_78, %c0_79], %49 {strides = array<i32>} : memref<128x72xf32, #tpu.memory_space<vmem>>, vector<128x8xf32>,
    %c0_80 = arith.constant 0 : index
    %c0_81 = arith.constant 0 : index
    %c1_82 = arith.constant 1 : index
    %c0_83 = arith.constant 0 : index
    %51 = vector.load %arg13[%c0_80, %c0_81, %c1_82, %c0_83] : memref<2x10x10x8xf32, #tpu.memory_space<vmem>>, vector<2x8x8x8xf32>
    %52 = vector.shape_cast %51 : vector<2x8x8x8xf32> to vector<128x8xf32>
    %c0_84 = arith.constant 0 : index
    %c8_85 = arith.constant 8 : index
    %53 = vector.load %arg14[%c0_84, %c8_85] : memref<128x72xf32, #tpu.memory_space<vmem>>, vector<128x8xf32>
    tpu.vector_store %arg14[%c0_84, %c8_85], %52 {strides = array<i32>} : memref<128x72xf32, #tpu.memory_space<vmem>>, vector<128x8xf32>,
    %c0_86 = arith.constant 0 : index
    %c0_87 = arith.constant 0 : index
    %c2_88 = arith.constant 2 : index
    %c0_89 = arith.constant 0 : index
    %54 = vector.load %arg13[%c0_86, %c0_87, %c2_88, %c0_89] : memref<2x10x10x8xf32, #tpu.memory_space<vmem>>, vector<2x8x8x8xf32>
    %55 = vector.shape_cast %54 : vector<2x8x8x8xf32> to vector<128x8xf32>
    %c0_90 = arith.constant 0 : index
    %c16_91 = arith.constant 16 : index
    %56 = vector.load %arg14[%c0_90, %c16_91] : memref<128x72xf32, #tpu.memory_space<vmem>>, vector<128x8xf32>
    tpu.vector_store %arg14[%c0_90, %c16_91], %55 {strides = array<i32>} : memref<128x72xf32, #tpu.memory_space<vmem>>, vector<128x8xf32>,
    %c0_92 = arith.constant 0 : index
    %c1_93 = arith.constant 1 : index
    %c0_94 = arith.constant 0 : index
    %c0_95 = arith.constant 0 : index
    %57 = vector.load %arg13[%c0_92, %c1_93, %c0_94, %c0_95] : memref<2x10x10x8xf32, #tpu.memory_space<vmem>>, vector<2x8x8x8xf32>
    %58 = vector.shape_cast %57 : vector<2x8x8x8xf32> to vector<128x8xf32>
    %c0_96 = arith.constant 0 : index
    %c24_97 = arith.constant 24 : index
    %59 = vector.load %arg14[%c0_96, %c24_97] : memref<128x72xf32, #tpu.memory_space<vmem>>, vector<128x8xf32>
    tpu.vector_store %arg14[%c0_96, %c24_97], %58 {strides = array<i32>} : memref<128x72xf32, #tpu.memory_space<vmem>>, vector<128x8xf32>,
    %c0_98 = arith.constant 0 : index
    %c1_99 = arith.constant 1 : index
    %c1_100 = arith.constant 1 : index
    %c0_101 = arith.constant 0 : index
    %60 = vector.load %arg13[%c0_98, %c1_99, %c1_100, %c0_101] : memref<2x10x10x8xf32, #tpu.memory_space<vmem>>, vector<2x8x8x8xf32>
    %61 = vector.shape_cast %60 : vector<2x8x8x8xf32> to vector<128x8xf32>
    %c0_102 = arith.constant 0 : index
    %c32_103 = arith.constant 32 : index
    %62 = vector.load %arg14[%c0_102, %c32_103] : memref<128x72xf32, #tpu.memory_space<vmem>>, vector<128x8xf32>
    tpu.vector_store %arg14[%c0_102, %c32_103], %61 {strides = array<i32>} : memref<128x72xf32, #tpu.memory_space<vmem>>, vector<128x8xf32>,
    %c0_104 = arith.constant 0 : index
    %c1_105 = arith.constant 1 : index
    %c2_106 = arith.constant 2 : index
    %c0_107 = arith.constant 0 : index
    %63 = vector.load %arg13[%c0_104, %c1_105, %c2_106, %c0_107] : memref<2x10x10x8xf32, #tpu.memory_space<vmem>>, vector<2x8x8x8xf32>
    %64 = vector.shape_cast %63 : vector<2x8x8x8xf32> to vector<128x8xf32>
    %c0_108 = arith.constant 0 : index
    %c40 = arith.constant 40 : index
    %65 = vector.load %arg14[%c0_108, %c40] : memref<128x72xf32, #tpu.memory_space<vmem>>, vector<128x8xf32>
    tpu.vector_store %arg14[%c0_108, %c40], %64 {strides = array<i32>} : memref<128x72xf32, #tpu.memory_space<vmem>>, vector<128x8xf32>,
    %c0_109 = arith.constant 0 : index
    %c2_110 = arith.constant 2 : index
    %c0_111 = arith.constant 0 : index
    %c0_112 = arith.constant 0 : index
    %66 = vector.load %arg13[%c0_109, %c2_110, %c0_111, %c0_112] : memref<2x10x10x8xf32, #tpu.memory_space<vmem>>, vector<2x8x8x8xf32>
    %67 = vector.shape_cast %66 : vector<2x8x8x8xf32> to vector<128x8xf32>
    %c0_113 = arith.constant 0 : index
    %c48 = arith.constant 48 : index
    %68 = vector.load %arg14[%c0_113, %c48] : memref<128x72xf32, #tpu.memory_space<vmem>>, vector<128x8xf32>
    tpu.vector_store %arg14[%c0_113, %c48], %67 {strides = array<i32>} : memref<128x72xf32, #tpu.memory_space<vmem>>, vector<128x8xf32>,
    %c0_114 = arith.constant 0 : index
    %c2_115 = arith.constant 2 : index
    %c1_116 = arith.constant 1 : index
    %c0_117 = arith.constant 0 : index
    %69 = vector.load %arg13[%c0_114, %c2_115, %c1_116, %c0_117] : memref<2x10x10x8xf32, #tpu.memory_space<vmem>>, vector<2x8x8x8xf32>
    %70 = vector.shape_cast %69 : vector<2x8x8x8xf32> to vector<128x8xf32>
    %c0_118 = arith.constant 0 : index
    %c56 = arith.constant 56 : index
    %71 = vector.load %arg14[%c0_118, %c56] : memref<128x72xf32, #tpu.memory_space<vmem>>, vector<128x8xf32>
    tpu.vector_store %arg14[%c0_118, %c56], %70 {strides = array<i32>} : memref<128x72xf32, #tpu.memory_space<vmem>>, vector<128x8xf32>,
    %c0_119 = arith.constant 0 : index
    %c2_120 = arith.constant 2 : index
    %c2_121 = arith.constant 2 : index
    %c0_122 = arith.constant 0 : index
    %72 = vector.load %arg13[%c0_119, %c2_120, %c2_121, %c0_122] : memref<2x10x10x8xf32, #tpu.memory_space<vmem>>, vector<2x8x8x8xf32>
    %73 = vector.shape_cast %72 : vector<2x8x8x8xf32> to vector<128x8xf32>
    %c0_123 = arith.constant 0 : index
    %c64 = arith.constant 64 : index
    %74 = vector.load %arg14[%c0_123, %c64] : memref<128x72xf32, #tpu.memory_space<vmem>>, vector<128x8xf32>
    tpu.vector_store %arg14[%c0_123, %c64], %73 {strides = array<i32>} : memref<128x72xf32, #tpu.memory_space<vmem>>, vector<128x8xf32>,
    %c0_124 = arith.constant 0 : index
    %c0_125 = arith.constant 0 : index
    %75 = vector.load %arg14[%c0_124, %c0_125] : memref<128x72xf32, #tpu.memory_space<vmem>>, vector<128x72xf32>
    %c0_126 = arith.constant 0 : index
    %c0_127 = arith.constant 0 : index
    %76 = vector.load %arg3[%c0_126, %c0_127] : memref<72x16xf32, #tpu.memory_space<vmem>>, vector<72x16xf32>
    %cst_128 = arith.constant dense<0.000000e+00> : vector<128x16xf32>
    %77 = tpu.matmul %75, %76, %cst_128 {dimension_numbers = #tpu.dot_dimension_numbers<[1], [0], [0], [1], [0, 0, 1, 1], [], []>} : vector<128x72xf32>, vector<72x16xf32>, vector<128x16xf32> -> vector<128x16xf32>
    %c0_129 = arith.constant 0 : index
    %c0_130 = arith.constant 0 : index
    %78 = vector.load %arg4[%c0_129, %c0_130] : memref<1x16xf32, #tpu.memory_space<vmem>>, vector<1x16xf32>
    %79 = vector.broadcast %78 : vector<1x16xf32> to vector<128x16xf32>
    %80 = arith.addf %77, %79 : vector<128x16xf32>
    %cst_131 = arith.constant 0.000000e+00 : f32
    %81 = vector.broadcast %cst_131 : f32 to vector<128x16xf32>
    %82 = arith.maximumf %80, %81 : vector<128x16xf32>
    %83 = vector.shape_cast %82 : vector<128x16xf32> to vector<16x8x16xf32>
    %84 = vector.shape_cast %83 : vector<16x8x16xf32> to vector<8x2x8x16xf32>
    %cst_132 = arith.constant dense<0xFF800000> : vector<8x8x16xf32>
    %85 = vector.multi_reduction <maximumf>, %84, %cst_132 [1] : vector<8x2x8x16xf32> to vector<8x8x16xf32>
    %86 = vector.shape_cast %85 : vector<8x8x16xf32> to vector<8x4x2x16xf32>
    %cst_133 = arith.constant dense<0xFF800000> : vector<8x4x16xf32>
    %87 = vector.multi_reduction <maximumf>, %86, %cst_133 [2] : vector<8x4x2x16xf32> to vector<8x4x16xf32>
    %88 = vector.shape_cast %87 : vector<8x4x16xf32> to vector<2x4x4x16xf32>
    %89 = vector.shape_cast %88 : vector<2x4x4x16xf32> to vector<2x16x16xf32>
    %90 = vector.extract_strided_slice %89 {offsets = [0, 0, 0], sizes = [2, 1, 16], strides = [1, 1, 1]} : vector<2x16x16xf32> to vector<2x1x16xf32>
    %91 = vector.shape_cast %90 : vector<2x1x16xf32> to vector<2x16xf32>
    %c0_134 = arith.constant 0 : index
    %c0_135 = arith.constant 0 : index
    %92 = vector.load %arg15[%c0_134, %c0_135] : memref<2x256xf32, #tpu.memory_space<vmem>>, vector<2x16xf32>
    tpu.vector_store %arg15[%c0_134, %c0_135], %91 {strides = array<i32>} : memref<2x256xf32, #tpu.memory_space<vmem>>, vector<2x16xf32>,
    %93 = vector.extract_strided_slice %89 {offsets = [0, 1, 0], sizes = [2, 1, 16], strides = [1, 1, 1]} : vector<2x16x16xf32> to vector<2x1x16xf32>
    %94 = vector.shape_cast %93 : vector<2x1x16xf32> to vector<2x16xf32>
    %c0_136 = arith.constant 0 : index
    %c16_137 = arith.constant 16 : index
    %95 = vector.load %arg15[%c0_136, %c16_137] : memref<2x256xf32, #tpu.memory_space<vmem>>, vector<2x16xf32>
    tpu.vector_store %arg15[%c0_136, %c16_137], %94 {strides = array<i32>} : memref<2x256xf32, #tpu.memory_space<vmem>>, vector<2x16xf32>,
    %96 = vector.extract_strided_slice %89 {offsets = [0, 2, 0], sizes = [2, 1, 16], strides = [1, 1, 1]} : vector<2x16x16xf32> to vector<2x1x16xf32>
    %97 = vector.shape_cast %96 : vector<2x1x16xf32> to vector<2x16xf32>
    %c0_138 = arith.constant 0 : index
    %c32_139 = arith.constant 32 : index
    %98 = vector.load %arg15[%c0_138, %c32_139] : memref<2x256xf32, #tpu.memory_space<vmem>>, vector<2x16xf32>
    tpu.vector_store %arg15[%c0_138, %c32_139], %97 {strides = array<i32>} : memref<2x256xf32, #tpu.memory_space<vmem>>, vector<2x16xf32>,
    %99 = vector.extract_strided_slice %89 {offsets = [0, 3, 0], sizes = [2, 1, 16], strides = [1, 1, 1]} : vector<2x16x16xf32> to vector<2x1x16xf32>
    %100 = vector.shape_cast %99 : vector<2x1x16xf32> to vector<2x16xf32>
    %c0_140 = arith.constant 0 : index
    %c48_141 = arith.constant 48 : index
    %101 = vector.load %arg15[%c0_140, %c48_141] : memref<2x256xf32, #tpu.memory_space<vmem>>, vector<2x16xf32>
    tpu.vector_store %arg15[%c0_140, %c48_141], %100 {strides = array<i32>} : memref<2x256xf32, #tpu.memory_space<vmem>>, vector<2x16xf32>,
    %102 = vector.extract_strided_slice %89 {offsets = [0, 4, 0], sizes = [2, 1, 16], strides = [1, 1, 1]} : vector<2x16x16xf32> to vector<2x1x16xf32>
    %103 = vector.shape_cast %102 : vector<2x1x16xf32> to vector<2x16xf32>
    %c0_142 = arith.constant 0 : index
    %c64_143 = arith.constant 64 : index
    %104 = vector.load %arg15[%c0_142, %c64_143] : memref<2x256xf32, #tpu.memory_space<vmem>>, vector<2x16xf32>
    tpu.vector_store %arg15[%c0_142, %c64_143], %103 {strides = array<i32>} : memref<2x256xf32, #tpu.memory_space<vmem>>, vector<2x16xf32>,
    %105 = vector.extract_strided_slice %89 {offsets = [0, 5, 0], sizes = [2, 1, 16], strides = [1, 1, 1]} : vector<2x16x16xf32> to vector<2x1x16xf32>
    %106 = vector.shape_cast %105 : vector<2x1x16xf32> to vector<2x16xf32>
    %c0_144 = arith.constant 0 : index
    %c80 = arith.constant 80 : index
    %107 = vector.load %arg15[%c0_144, %c80] : memref<2x256xf32, #tpu.memory_space<vmem>>, vector<2x16xf32>
    tpu.vector_store %arg15[%c0_144, %c80], %106 {strides = array<i32>} : memref<2x256xf32, #tpu.memory_space<vmem>>, vector<2x16xf32>,
    %108 = vector.extract_strided_slice %89 {offsets = [0, 6, 0], sizes = [2, 1, 16], strides = [1, 1, 1]} : vector<2x16x16xf32> to vector<2x1x16xf32>
    %109 = vector.shape_cast %108 : vector<2x1x16xf32> to vector<2x16xf32>
    %c0_145 = arith.constant 0 : index
    %c96 = arith.constant 96 : index
    %110 = vector.load %arg15[%c0_145, %c96] : memref<2x256xf32, #tpu.memory_space<vmem>>, vector<2x16xf32>
    tpu.vector_store %arg15[%c0_145, %c96], %109 {strides = array<i32>} : memref<2x256xf32, #tpu.memory_space<vmem>>, vector<2x16xf32>,
    %111 = vector.extract_strided_slice %89 {offsets = [0, 7, 0], sizes = [2, 1, 16], strides = [1, 1, 1]} : vector<2x16x16xf32> to vector<2x1x16xf32>
    %112 = vector.shape_cast %111 : vector<2x1x16xf32> to vector<2x16xf32>
    %c0_146 = arith.constant 0 : index
    %c112 = arith.constant 112 : index
    %113 = vector.load %arg15[%c0_146, %c112] : memref<2x256xf32, #tpu.memory_space<vmem>>, vector<2x16xf32>
    tpu.vector_store %arg15[%c0_146, %c112], %112 {strides = array<i32>} : memref<2x256xf32, #tpu.memory_space<vmem>>, vector<2x16xf32>,
    %114 = vector.extract_strided_slice %89 {offsets = [0, 8, 0], sizes = [2, 1, 16], strides = [1, 1, 1]} : vector<2x16x16xf32> to vector<2x1x16xf32>
    %115 = vector.shape_cast %114 : vector<2x1x16xf32> to vector<2x16xf32>
    %c0_147 = arith.constant 0 : index
    %c128 = arith.constant 128 : index
    %116 = vector.load %arg15[%c0_147, %c128] : memref<2x256xf32, #tpu.memory_space<vmem>>, vector<2x16xf32>
    tpu.vector_store %arg15[%c0_147, %c128], %115 {strides = array<i32>} : memref<2x256xf32, #tpu.memory_space<vmem>>, vector<2x16xf32>,
    %117 = vector.extract_strided_slice %89 {offsets = [0, 9, 0], sizes = [2, 1, 16], strides = [1, 1, 1]} : vector<2x16x16xf32> to vector<2x1x16xf32>
    %118 = vector.shape_cast %117 : vector<2x1x16xf32> to vector<2x16xf32>
    %c0_148 = arith.constant 0 : index
    %c144 = arith.constant 144 : index
    %119 = vector.load %arg15[%c0_148, %c144] : memref<2x256xf32, #tpu.memory_space<vmem>>, vector<2x16xf32>
    tpu.vector_store %arg15[%c0_148, %c144], %118 {strides = array<i32>} : memref<2x256xf32, #tpu.memory_space<vmem>>, vector<2x16xf32>,
    %120 = vector.extract_strided_slice %89 {offsets = [0, 10, 0], sizes = [2, 1, 16], strides = [1, 1, 1]} : vector<2x16x16xf32> to vector<2x1x16xf32>
    %121 = vector.shape_cast %120 : vector<2x1x16xf32> to vector<2x16xf32>
    %c0_149 = arith.constant 0 : index
    %c160 = arith.constant 160 : index
    %122 = vector.load %arg15[%c0_149, %c160] : memref<2x256xf32, #tpu.memory_space<vmem>>, vector<2x16xf32>
    tpu.vector_store %arg15[%c0_149, %c160], %121 {strides = array<i32>} : memref<2x256xf32, #tpu.memory_space<vmem>>, vector<2x16xf32>,
    %123 = vector.extract_strided_slice %89 {offsets = [0, 11, 0], sizes = [2, 1, 16], strides = [1, 1, 1]} : vector<2x16x16xf32> to vector<2x1x16xf32>
    %124 = vector.shape_cast %123 : vector<2x1x16xf32> to vector<2x16xf32>
    %c0_150 = arith.constant 0 : index
    %c176 = arith.constant 176 : index
    %125 = vector.load %arg15[%c0_150, %c176] : memref<2x256xf32, #tpu.memory_space<vmem>>, vector<2x16xf32>
    tpu.vector_store %arg15[%c0_150, %c176], %124 {strides = array<i32>} : memref<2x256xf32, #tpu.memory_space<vmem>>, vector<2x16xf32>,
    %126 = vector.extract_strided_slice %89 {offsets = [0, 12, 0], sizes = [2, 1, 16], strides = [1, 1, 1]} : vector<2x16x16xf32> to vector<2x1x16xf32>
    %127 = vector.shape_cast %126 : vector<2x1x16xf32> to vector<2x16xf32>
    %c0_151 = arith.constant 0 : index
    %c192 = arith.constant 192 : index
    %128 = vector.load %arg15[%c0_151, %c192] : memref<2x256xf32, #tpu.memory_space<vmem>>, vector<2x16xf32>
    tpu.vector_store %arg15[%c0_151, %c192], %127 {strides = array<i32>} : memref<2x256xf32, #tpu.memory_space<vmem>>, vector<2x16xf32>,
    %129 = vector.extract_strided_slice %89 {offsets = [0, 13, 0], sizes = [2, 1, 16], strides = [1, 1, 1]} : vector<2x16x16xf32> to vector<2x1x16xf32>
    %130 = vector.shape_cast %129 : vector<2x1x16xf32> to vector<2x16xf32>
    %c0_152 = arith.constant 0 : index
    %c208 = arith.constant 208 : index
    %131 = vector.load %arg15[%c0_152, %c208] : memref<2x256xf32, #tpu.memory_space<vmem>>, vector<2x16xf32>
    tpu.vector_store %arg15[%c0_152, %c208], %130 {strides = array<i32>} : memref<2x256xf32, #tpu.memory_space<vmem>>, vector<2x16xf32>,
    %132 = vector.extract_strided_slice %89 {offsets = [0, 14, 0], sizes = [2, 1, 16], strides = [1, 1, 1]} : vector<2x16x16xf32> to vector<2x1x16xf32>
    %133 = vector.shape_cast %132 : vector<2x1x16xf32> to vector<2x16xf32>
    %c0_153 = arith.constant 0 : index
    %c224 = arith.constant 224 : index
    %134 = vector.load %arg15[%c0_153, %c224] : memref<2x256xf32, #tpu.memory_space<vmem>>, vector<2x16xf32>
    tpu.vector_store %arg15[%c0_153, %c224], %133 {strides = array<i32>} : memref<2x256xf32, #tpu.memory_space<vmem>>, vector<2x16xf32>,
    %135 = vector.extract_strided_slice %89 {offsets = [0, 15, 0], sizes = [2, 1, 16], strides = [1, 1, 1]} : vector<2x16x16xf32> to vector<2x1x16xf32>
    %136 = vector.shape_cast %135 : vector<2x1x16xf32> to vector<2x16xf32>
    %c0_154 = arith.constant 0 : index
    %c240 = arith.constant 240 : index
    %137 = vector.load %arg15[%c0_154, %c240] : memref<2x256xf32, #tpu.memory_space<vmem>>, vector<2x16xf32>
    tpu.vector_store %arg15[%c0_154, %c240], %136 {strides = array<i32>} : memref<2x256xf32, #tpu.memory_space<vmem>>, vector<2x16xf32>,
    %c0_155 = arith.constant 0 : index
    %c0_156 = arith.constant 0 : index
    %138 = vector.load %arg15[%c0_155, %c0_156] : memref<2x256xf32, #tpu.memory_space<vmem>>, vector<2x256xf32>
    %c0_157 = arith.constant 0 : index
    %c0_158 = arith.constant 0 : index
    %139 = vector.load %arg5[%c0_157, %c0_158] : memref<256x64xf32, #tpu.memory_space<vmem>>, vector<256x64xf32>
    %cst_159 = arith.constant dense<0.000000e+00> : vector<2x64xf32>
    %140 = tpu.matmul %138, %139, %cst_159 {dimension_numbers = #tpu.dot_dimension_numbers<[1], [0], [0], [1], [0, 0, 1, 1], [], []>} : vector<2x256xf32>, vector<256x64xf32>, vector<2x64xf32> -> vector<2x64xf32>
    %c0_160 = arith.constant 0 : index
    %c0_161 = arith.constant 0 : index
    %141 = vector.load %arg8[%c0_160, %c0_161] : memref<2x64xf32, #tpu.memory_space<vmem>>, vector<2x64xf32>
    tpu.vector_store %arg8[%c0_160, %c0_161], %140 {strides = array<i32>} : memref<2x64xf32, #tpu.memory_space<vmem>>, vector<2x64xf32>,
    %cst_162 = arith.constant 0.000000e+00 : f32
    %142 = vector.broadcast %cst_162 : f32 to vector<2x64xf32>
    %143 = arith.maximumf %140, %142 : vector<2x64xf32>
    %c0_163 = arith.constant 0 : index
    %c0_164 = arith.constant 0 : index
    %144 = vector.load %arg6[%c0_163, %c0_164] : memref<64x32xf32, #tpu.memory_space<vmem>>, vector<64x32xf32>
    %cst_165 = arith.constant dense<0.000000e+00> : vector<2x32xf32>
    %145 = tpu.matmul %143, %144, %cst_165 {dimension_numbers = #tpu.dot_dimension_numbers<[1], [0], [0], [1], [0, 0, 1, 1], [], []>} : vector<2x64xf32>, vector<64x32xf32>, vector<2x32xf32> -> vector<2x32xf32>
    %c0_166 = arith.constant 0 : index
    %c0_167 = arith.constant 0 : index
    %146 = vector.load %arg9[%c0_166, %c0_167] : memref<2x32xf32, #tpu.memory_space<vmem>>, vector<2x32xf32>
    tpu.vector_store %arg9[%c0_166, %c0_167], %145 {strides = array<i32>} : memref<2x32xf32, #tpu.memory_space<vmem>>, vector<2x32xf32>,
    %cst_168 = arith.constant 0.000000e+00 : f32
    %147 = vector.broadcast %cst_168 : f32 to vector<2x32xf32>
    %148 = arith.maximumf %145, %147 : vector<2x32xf32>
    %c0_169 = arith.constant 0 : index
    %c0_170 = arith.constant 0 : index
    %149 = vector.load %arg7[%c0_169, %c0_170] : memref<32x10xf32, #tpu.memory_space<vmem>>, vector<32x10xf32>
    %cst_171 = arith.constant dense<0.000000e+00> : vector<2x10xf32>
    %150 = tpu.matmul %148, %149, %cst_171 {dimension_numbers = #tpu.dot_dimension_numbers<[1], [0], [0], [1], [0, 0, 1, 1], [], []>} : vector<2x32xf32>, vector<32x10xf32>, vector<2x10xf32> -> vector<2x10xf32>
    %c0_172 = arith.constant 0 : index
    %c0_173 = arith.constant 0 : index
    %151 = vector.load %arg10[%c0_172, %c0_173] : memref<2x10xf32, #tpu.memory_space<vmem>>, vector<2x10xf32>
    tpu.vector_store %arg10[%c0_172, %c0_173], %150 {strides = array<i32>} : memref<2x10xf32, #tpu.memory_space<vmem>>, vector<2x10xf32>,
    return
  }
}

</mosaic_0001>

<llo_original>
// kernel: fwd.1
$region0: #{fwd.1}
  #allocation0 [shape = 'u32[]', space=smem, size = 0x4, offset = 0x4, fixed_abs, tag = 'smem constant byte address 0x4 - core index']
  #allocation1 [shape = 'u32[144,128]{1,0:T(1,128)}', space=vmem, size = 0x12000, scoped, tag = 'internal scratch']
  #allocation2 [shape = 'f32[2,18,18,4]{3,2,1,0:T(8,128)}', space=vmem, size = 0x6c000, scoped, tag = 'scratch operand']
  #allocation3 [shape = 'f32[512,36]{1,0:T(8,128)}', space=vmem, size = 0x40000, scoped, tag = 'scratch operand']
  #allocation4 [shape = 'f32[2,10,10,8]{3,2,1,0:T(8,128)}', space=vmem, size = 0x28000, scoped, tag = 'scratch operand']
  #allocation5 [shape = 'f32[128,72]{1,0:T(8,128)}', space=vmem, size = 0x10000, scoped, tag = 'scratch operand']
  #allocation6 [shape = 'f32[2,256]{1,0:T(2,128)}', space=vmem, size = 0x800, scoped, tag = 'scratch operand']
  %s0 = inlined_call_operand.vmem [shape: f32[2,16,16,4], index: 0, kind: input, shape index: {}]
  %s1 = inlined_call_operand.vmem [shape: f32[36,8], index: 1, kind: input, shape index: {}]
  %s2 = inlined_call_operand.vmem [shape: f32[1,8], index: 2, kind: input, shape index: {}]
  %s3 = inlined_call_operand.vmem [shape: f32[72,16], index: 3, kind: input, shape index: {}]
  %s4 = inlined_call_operand.vmem [shape: f32[1,16], index: 4, kind: input, shape index: {}]
  %s5 = inlined_call_operand.vmem [shape: f32[256,64], index: 5, kind: input, shape index: {}]
  %s6 = inlined_call_operand.vmem [shape: f32[64,32], index: 6, kind: input, shape index: {}]
  %s7 = inlined_call_operand.vmem [shape: f32[32,10], index: 7, kind: input, shape index: {}]
  %s8 = inlined_call_operand.hbm [shape: f32[2,64], index: 8, kind: output, shape index: {0}]
  %s9 = inlined_call_operand.hbm [shape: f32[2,32], index: 9, kind: output, shape index: {1}]
  %s10 = inlined_call_operand.hbm [shape: f32[2,10], index: 10, kind: output, shape index: {2}]
  %11 = xla_tuple %s8, %s9, %s10
  %s12 = sld [smem:[#allocation0]]
  $region58: #{fwd.1} parent=0
    _
  %s14 = ssub.s32 1, %s12
  %s15 = scalar_select 0, %s14, %s12
  $region1: #{fwd.1} parent=0
    #allocation7 [shape = 'u8[1024]{0}', space=vmem, size = 0x400, scoped, tag = 'output window, operand 0, single buffered']
    #allocation8 [shape = 's32[1]{0}', space=sflag, size = 0x4, scoped, tag = 'scoped memory for fwd.1']
    #allocation9 [shape = 'u8[1024]{0}', space=vmem, size = 0x400, scoped, tag = 'output window, operand 1, single buffered']
    #allocation10 [shape = 's32[1]{0}', space=sflag, size = 0x4, scoped, tag = 'scoped memory for fwd.1']
    #allocation11 [shape = 'u8[1024]{0}', space=vmem, size = 0x400, scoped, tag = 'output window, operand 2, single buffered']
    %16 = vsyncpa [#allocation8], 0
    %17 = vsyncpa [#allocation10], 0
    // Predicated region
    $region2: #{fwd.1} parent=1 // pred_check
      _
    $region3: #{fwd.1} parent=1 // pred_check_branch
      %19 = sbr.rel (0) target = $region5
    $region4: #{fwd.1} parent=1 // pred_region
      _
    $region5: #{fwd.1} parent=1 // pred_fallthru
      _
    // Predicated region
    $region6: #{fwd.1} parent=1 // pred_check
      _
    $region7: #{fwd.1} parent=1 // pred_check_branch
      %21 = sbr.rel (0) target = $region9
    $region8: #{fwd.1} parent=1 // pred_region
      _
    $region9: #{fwd.1} parent=1 // pred_fallthru
      _
    // Predicated region
    $region10: #{fwd.1} parent=1 // pred_check
      _
    $region11: #{fwd.1} parent=1 // pred_check_branch
      %23 = sbr.rel (0) target = $region13
    $region12: #{fwd.1} parent=1 // pred_region
      _
    $region13: #{fwd.1} parent=1 // pred_fallthru
      _
    // Predicated region
    $region14: #{fwd.1} parent=1 // pred_check
      _
    $region15: #{fwd.1} parent=1 // pred_check_branch
      %25 = sbr.rel (0) target = $region17
    $region16: #{fwd.1} parent=1 // pred_region
      _
    $region17: #{fwd.1} parent=1 // pred_fallthru
      _
    // Predicated region
    $region18: #{fwd.1} parent=1 // pred_check
      _
    $region19: #{fwd.1} parent=1 // pred_check_branch
      %27 = sbr.rel (0) target = $region21
    $region20: #{fwd.1} parent=1 // pred_region
      _
    $region21: #{fwd.1} parent=1 // pred_fallthru
      _
    // Predicated region
    $region22: #{fwd.1} parent=1 // pred_check
      _
    $region23: #{fwd.1} parent=1 // pred_check_branch
      %29 = sbr.rel (0) target = $region25
    $region24: #{fwd.1} parent=1 // pred_region
      _
    $region25: #{fwd.1} parent=1 // pred_fallthru
      _
    // Predicated region
    $region26: #{fwd.1} parent=1 // pred_check
      _
    $region27: #{fwd.1} parent=1 // pred_check_branch
      %31 = sbr.rel (0) target = $region29
    $region28: #{fwd.1} parent=1 // pred_region
      _
    $region29: #{fwd.1} parent=1 // pred_fallthru
      _
    // Predicated region
    $region30: #{fwd.1} parent=1 // pred_check
      _
    $region31: #{fwd.1} parent=1 // pred_check_branch
      %33 = sbr.rel (0) target = $region33
    $region32: #{fwd.1} parent=1 // pred_region
      _
    $region33: #{fwd.1} parent=1 // pred_fallthru
      _
    %v34 = vld [vmem:[%s0] sm:$0xff]
    %v35 = vld [vmem:[%s0 + $0x8] sm:$0xff]
    %v36 = vld [vmem:[%s0 + $0x10] sm:$0xff]
    %v37 = vld [vmem:[%s0 + $0x18] sm:$0xff]
    %v38 = vld [vmem:[%s0 + $0x20] sm:$0xff]
    %v39 = vld [vmem:[%s0 + $0x28] sm:$0xff]
    %v40 = vld [vmem:[%s0 + $0x30] sm:$0xff]
    %v41 = vld [vmem:[%s0 + $0x38] sm:$0xff]
    %v42 = vld [vmem:[%s0 + $0x40] sm:$0xff]
    %v43 = vld [vmem:[%s0 + $0x48] sm:$0xff]
    %v44 = vld [vmem:[%s0 + $0x50] sm:$0xff]
    %v45 = vld [vmem:[%s0 + $0x58] sm:$0xff]
    %v46 = vld [vmem:[%s0 + $0x60] sm:$0xff]
    %v47 = vld [vmem:[%s0 + $0x68] sm:$0xff]
    %v48 = vld [vmem:[%s0 + $0x70] sm:$0xff]
    %v49 = vld [vmem:[%s0 + $0x78] sm:$0xff]
    %v50 = vld [vmem:[%s0 + $0x80] sm:$0xff]
    %v51 = vld [vmem:[%s0 + $0x88] sm:$0xff]
    %v52 = vld [vmem:[%s0 + $0x90] sm:$0xff]
    %v53 = vld [vmem:[%s0 + $0x98] sm:$0xff]
    %v54 = vld [vmem:[%s0 + $0xa0] sm:$0xff]
    %v55 = vld [vmem:[%s0 + $0xa8] sm:$0xff]
    %v56 = vld [vmem:[%s0 + $0xb0] sm:$0xff]
    %v57 = vld [vmem:[%s0 + $0xb8] sm:$0xff]
    %v58 = vld [vmem:[%s0 + $0xc0] sm:$0xff]
    %v59 = vld [vmem:[%s0 + $0xc8] sm:$0xff]
    %v60 = vld [vmem:[%s0 + $0xd0] sm:$0xff]
    %v61 = vld [vmem:[%s0 + $0xd8] sm:$0xff]
    %v62 = vld [vmem:[%s0 + $0xe0] sm:$0xff]
    %v63 = vld [vmem:[%s0 + $0xe8] sm:$0xff]
    %v64 = vld [vmem:[%s0 + $0xf0] sm:$0xff]
    %v65 = vld [vmem:[%s0 + $0xf8] sm:$0xff]
    %v66 = vld [vmem:[%s0 + $0x100] sm:$0xff]
    %v67 = vld [vmem:[%s0 + $0x108] sm:$0xff]
    %v68 = vld [vmem:[%s0 + $0x110] sm:$0xff]
    %v69 = vld [vmem:[%s0 + $0x118] sm:$0xff]
    %v70 = vld [vmem:[%s0 + $0x120] sm:$0xff]
    %v71 = vld [vmem:[%s0 + $0x128] sm:$0xff]
    %v72 = vld [vmem:[%s0 + $0x130] sm:$0xff]
    %v73 = vld [vmem:[%s0 + $0x138] sm:$0xff]
    %v74 = vld [vmem:[%s0 + $0x140] sm:$0xff]
    %v75 = vld [vmem:[%s0 + $0x148] sm:$0xff]
    %v76 = vld [vmem:[%s0 + $0x150] sm:$0xff]
    %v77 = vld [vmem:[%s0 + $0x158] sm:$0xff]
    %v78 = vld [vmem:[%s0 + $0x160] sm:$0xff]
    %v79 = vld [vmem:[%s0 + $0x168] sm:$0xff]
    %v80 = vld [vmem:[%s0 + $0x170] sm:$0xff]
    %v81 = vld [vmem:[%s0 + $0x178] sm:$0xff]
    %v82 = vld [vmem:[%s0 + $0x180] sm:$0xff]
    %v83 = vld [vmem:[%s0 + $0x188] sm:$0xff]
    %v84 = vld [vmem:[%s0 + $0x190] sm:$0xff]
    %v85 = vld [vmem:[%s0 + $0x198] sm:$0xff]
    %v86 = vld [vmem:[%s0 + $0x1a0] sm:$0xff]
    %v87 = vld [vmem:[%s0 + $0x1a8] sm:$0xff]
    %v88 = vld [vmem:[%s0 + $0x1b0] sm:$0xff]
    %v89 = vld [vmem:[%s0 + $0x1b8] sm:$0xff]
    %v90 = vld [vmem:[%s0 + $0x1c0] sm:$0xff]
    %v91 = vld [vmem:[%s0 + $0x1c8] sm:$0xff]
    %v92 = vld [vmem:[%s0 + $0x1d0] sm:$0xff]
    %v93 = vld [vmem:[%s0 + $0x1d8] sm:$0xff]
    %v94 = vld [vmem:[%s0 + $0x1e0] sm:$0xff]
    %v95 = vld [vmem:[%s0 + $0x1e8] sm:$0xff]
    %v96 = vld [vmem:[%s0 + $0x1f0] sm:$0xff]
    %v97 = vld [vmem:[%s0 + $0x1f8] sm:$0xff]
    %vm98 = vcmask 31744
    %99 = vst.msk [vmem:[#allocation2] sm:$0xff] %vm98, 0.0
    %100 = vst.msk [vmem:[#allocation2 + $0x8] sm:$0xff] %vm98, 0.0
    %vm101 = vcmask 25600
    %102 = vst.msk [vmem:[#allocation2 + $0x10] sm:$0x3] %vm101, 0.0
    %103 = vst.msk [vmem:[#allocation2 + $0x18] sm:$0xff] %vm98, 0.0
    %104 = vst.msk [vmem:[#allocation2 + $0x20] sm:$0xff] %vm98, 0.0
    %105 = vst.msk [vmem:[#allocation2 + $0x28] sm:$0x3] %vm101, 0.0
    %106 = vst.msk [vmem:[#allocation2 + $0x30] sm:$0xff] %vm98, 0.0
    %107 = vst.msk [vmem:[#allocation2 + $0x38] sm:$0xff] %vm98, 0.0
    %108 = vst.msk [vmem:[#allocation2 + $0x40] sm:$0x3] %vm101, 0.0
    %109 = vst.msk [vmem:[#allocation2 + $0x48] sm:$0xff] %vm98, 0.0
    %110 = vst.msk [vmem:[#allocation2 + $0x50] sm:$0xff] %vm98, 0.0
    %111 = vst.msk [vmem:[#allocation2 + $0x58] sm:$0x3] %vm101, 0.0
    %112 = vst.msk [vmem:[#allocation2 + $0x60] sm:$0xff] %vm98, 0.0
    %113 = vst.msk [vmem:[#allocation2 + $0x68] sm:$0xff] %vm98, 0.0
    %114 = vst.msk [vmem:[#allocation2 + $0x70] sm:$0x3] %vm101, 0.0
    %115 = vst.msk [vmem:[#allocation2 + $0x78] sm:$0xff] %vm98, 0.0
    %116 = vst.msk [vmem:[#allocation2 + $0x80] sm:$0xff] %vm98, 0.0
    %117 = vst.msk [vmem:[#allocation2 + $0x88] sm:$0x3] %vm101, 0.0
    %118 = vst.msk [vmem:[#allocation2 + $0x90] sm:$0xff] %vm98, 0.0
    %119 = vst.msk [vmem:[#allocation2 + $0x98] sm:$0xff] %vm98, 0.0
    %120 = vst.msk [vmem:[#allocation2 + $0xa0] sm:$0x3] %vm101, 0.0
    %121 = vst.msk [vmem:[#allocation2 + $0xa8] sm:$0xff] %vm98, 0.0
    %122 = vst.msk [vmem:[#allocation2 + $0xb0] sm:$0xff] %vm98, 0.0
    %123 = vst.msk [vmem:[#allocation2 + $0xb8] sm:$0x3] %vm101, 0.0
    %124 = vst.msk [vmem:[#allocation2 + $0xc0] sm:$0xff] %vm98, 0.0
    %125 = vst.msk [vmem:[#allocation2 + $0xc8] sm:$0xff] %vm98, 0.0
    %126 = vst.msk [vmem:[#allocation2 + $0xd0] sm:$0x3] %vm101, 0.0
    %127 = vst.msk [vmem:[#allocation2 + $0xd8] sm:$0xff] %vm98, 0.0
    %128 = vst.msk [vmem:[#allocation2 + $0xe0] sm:$0xff] %vm98, 0.0
    %129 = vst.msk [vmem:[#allocation2 + $0xe8] sm:$0x3] %vm101, 0.0
    %130 = vst.msk [vmem:[#allocation2 + $0xf0] sm:$0xff] %vm98, 0.0
    %131 = vst.msk [vmem:[#allocation2 + $0xf8] sm:$0xff] %vm98, 0.0
    %132 = vst.msk [vmem:[#allocation2 + $0x100] sm:$0x3] %vm101, 0.0
    %133 = vst.msk [vmem:[#allocation2 + $0x108] sm:$0xff] %vm98, 0.0
    %134 = vst.msk [vmem:[#allocation2 + $0x110] sm:$0xff] %vm98, 0.0
    %135 = vst.msk [vmem:[#allocation2 + $0x118] sm:$0x3] %vm101, 0.0
    %136 = vst.msk [vmem:[#allocation2 + $0x120] sm:$0xff] %vm98, 0.0
    %137 = vst.msk [vmem:[#allocation2 + $0x128] sm:$0xff] %vm98, 0.0
    %138 = vst.msk [vmem:[#allocation2 + $0x130] sm:$0x3] %vm101, 0.0
    %139 = vst.msk [vmem:[#allocation2 + $0x138] sm:$0xff] %vm98, 0.0
    %140 = vst.msk [vmem:[#allocation2 + $0x140] sm:$0xff] %vm98, 0.0
    %141 = vst.msk [vmem:[#allocation2 + $0x148] sm:$0x3] %vm101, 0.0
    %142 = vst.msk [vmem:[#allocation2 + $0x150] sm:$0xff] %vm98, 0.0
    %143 = vst.msk [vmem:[#allocation2 + $0x158] sm:$0xff] %vm98, 0.0
    %144 = vst.msk [vmem:[#allocation2 + $0x160] sm:$0x3] %vm101, 0.0
    %145 = vst.msk [vmem:[#allocation2 + $0x168] sm:$0xff] %vm98, 0.0
    %146 = vst.msk [vmem:[#allocation2 + $0x170] sm:$0xff] %vm98, 0.0
    %147 = vst.msk [vmem:[#allocation2 + $0x178] sm:$0x3] %vm101, 0.0
    %148 = vst.msk [vmem:[#allocation2 + $0x180] sm:$0xff] %vm98, 0.0
    %149 = vst.msk [vmem:[#allocation2 + $0x188] sm:$0xff] %vm98, 0.0
    %150 = vst.msk [vmem:[#allocation2 + $0x190] sm:$0x3] %vm101, 0.0
    %151 = vst.msk [vmem:[#allocation2 + $0x198] sm:$0xff] %vm98, 0.0
    %152 = vst.msk [vmem:[#allocation2 + $0x1a0] sm:$0xff] %vm98, 0.0
    %153 = vst.msk [vmem:[#allocation2 + $0x1a8] sm:$0x3] %vm101, 0.0
    %154 = vst.msk [vmem:[#allocation2 + $0x1b0] sm:$0xff] %vm98, 0.0
    %155 = vst.msk [vmem:[#allocation2 + $0x1b8] sm:$0xff] %vm98, 0.0
    %156 = vst.msk [vmem:[#allocation2 + $0x1c0] sm:$0x3] %vm101, 0.0
    %157 = vst.msk [vmem:[#allocation2 + $0x1c8] sm:$0xff] %vm98, 0.0
    %158 = vst.msk [vmem:[#allocation2 + $0x1d0] sm:$0xff] %vm98, 0.0
    %159 = vst.msk [vmem:[#allocation2 + $0x1d8] sm:$0x3] %vm101, 0.0
    %160 = vst.msk [vmem:[#allocation2 + $0x1e0] sm:$0xff] %vm98, 0.0
    %161 = vst.msk [vmem:[#allocation2 + $0x1e8] sm:$0xff] %vm98, 0.0
    %162 = vst.msk [vmem:[#allocation2 + $0x1f0] sm:$0x3] %vm101, 0.0
    %163 = vst.msk [vmem:[#allocation2 + $0x1f8] sm:$0xff] %vm98, 0.0
    %164 = vst.msk [vmem:[#allocation2 + $0x200] sm:$0xff] %vm98, 0.0
    %165 = vst.msk [vmem:[#allocation2 + $0x208] sm:$0x3] %vm101, 0.0
    %166 = vst.msk [vmem:[#allocation2 + $0x210] sm:$0xff] %vm98, 0.0
    %167 = vst.msk [vmem:[#allocation2 + $0x218] sm:$0xff] %vm98, 0.0
    %168 = vst.msk [vmem:[#allocation2 + $0x220] sm:$0x3] %vm101, 0.0
    %169 = vst.msk [vmem:[#allocation2 + $0x228] sm:$0xff] %vm98, 0.0
    %170 = vst.msk [vmem:[#allocation2 + $0x230] sm:$0xff] %vm98, 0.0
    %171 = vst.msk [vmem:[#allocation2 + $0x238] sm:$0x3] %vm101, 0.0
    %172 = vst.msk [vmem:[#allocation2 + $0x240] sm:$0xff] %vm98, 0.0
    %173 = vst.msk [vmem:[#allocation2 + $0x248] sm:$0xff] %vm98, 0.0
    %174 = vst.msk [vmem:[#allocation2 + $0x250] sm:$0x3] %vm101, 0.0
    %175 = vst.msk [vmem:[#allocation2 + $0x258] sm:$0xff] %vm98, 0.0
    %176 = vst.msk [vmem:[#allocation2 + $0x260] sm:$0xff] %vm98, 0.0
    %177 = vst.msk [vmem:[#allocation2 + $0x268] sm:$0x3] %vm101, 0.0
    %178 = vst.msk [vmem:[#allocation2 + $0x270] sm:$0xff] %vm98, 0.0
    %179 = vst.msk [vmem:[#allocation2 + $0x278] sm:$0xff] %vm98, 0.0
    %180 = vst.msk [vmem:[#allocation2 + $0x280] sm:$0x3] %vm101, 0.0
    %181 = vst.msk [vmem:[#allocation2 + $0x288] sm:$0xff] %vm98, 0.0
    %182 = vst.msk [vmem:[#allocation2 + $0x290] sm:$0xff] %vm98, 0.0
    %183 = vst.msk [vmem:[#allocation2 + $0x298] sm:$0x3] %vm101, 0.0
    %184 = vst.msk [vmem:[#allocation2 + $0x2a0] sm:$0xff] %vm98, 0.0
    %185 = vst.msk [vmem:[#allocation2 + $0x2a8] sm:$0xff] %vm98, 0.0
    %186 = vst.msk [vmem:[#allocation2 + $0x2b0] sm:$0x3] %vm101, 0.0
    %187 = vst.msk [vmem:[#allocation2 + $0x2b8] sm:$0xff] %vm98, 0.0
    %188 = vst.msk [vmem:[#allocation2 + $0x2c0] sm:$0xff] %vm98, 0.0
    %189 = vst.msk [vmem:[#allocation2 + $0x2c8] sm:$0x3] %vm101, 0.0
    %190 = vst.msk [vmem:[#allocation2 + $0x2d0] sm:$0xff] %vm98, 0.0
    %191 = vst.msk [vmem:[#allocation2 + $0x2d8] sm:$0xff] %vm98, 0.0
    %192 = vst.msk [vmem:[#allocation2 + $0x2e0] sm:$0x3] %vm101, 0.0
    %193 = vst.msk [vmem:[#allocation2 + $0x2e8] sm:$0xff] %vm98, 0.0
    %194 = vst.msk [vmem:[#allocation2 + $0x2f0] sm:$0xff] %vm98, 0.0
    %195 = vst.msk [vmem:[#allocation2 + $0x2f8] sm:$0x3] %vm101, 0.0
    %196 = vst.msk [vmem:[#allocation2 + $0x300] sm:$0xff] %vm98, 0.0
    %197 = vst.msk [vmem:[#allocation2 + $0x308] sm:$0xff] %vm98, 0.0
    %198 = vst.msk [vmem:[#allocation2 + $0x310] sm:$0x3] %vm101, 0.0
    %199 = vst.msk [vmem:[#allocation2 + $0x318] sm:$0xff] %vm98, 0.0
    %200 = vst.msk [vmem:[#allocation2 + $0x320] sm:$0xff] %vm98, 0.0
    %201 = vst.msk [vmem:[#allocation2 + $0x328] sm:$0x3] %vm101, 0.0
    %202 = vst.msk [vmem:[#allocation2 + $0x330] sm:$0xff] %vm98, 0.0
    %203 = vst.msk [vmem:[#allocation2 + $0x338] sm:$0xff] %vm98, 0.0
    %204 = vst.msk [vmem:[#allocation2 + $0x340] sm:$0x3] %vm101, 0.0
    %205 = vst.msk [vmem:[#allocation2 + $0x348] sm:$0xff] %vm98, 0.0
    %206 = vst.msk [vmem:[#allocation2 + $0x350] sm:$0xff] %vm98, 0.0
    %207 = vst.msk [vmem:[#allocation2 + $0x358] sm:$0x3] %vm101, 0.0
    %s208 = scalar_lea.vmem [#allocation2], 24
    %209 = vst.msk [vmem:[%s208 + $0x1] sm:$0xff] %vm98, %v34
    %210 = vst.msk [vmem:[%s208 + $0x9] sm:$0xff] %vm98, %v35
    %211 = vst.msk [vmem:[%s208 + $0x19] sm:$0xff] %vm98, %v36
    %212 = vst.msk [vmem:[%s208 + $0x21] sm:$0xff] %vm98, %v37
    %213 = vst.msk [vmem:[%s208 + $0x31] sm:$0xff] %vm98, %v38
    %214 = vst.msk [vmem:[%s208 + $0x39] sm:$0xff] %vm98, %v39
    %215 = vst.msk [vmem:[%s208 + $0x49] sm:$0xff] %vm98, %v40
    %216 = vst.msk [vmem:[%s208 + $0x51] sm:$0xff] %vm98, %v41
    %217 = vst.msk [vmem:[%s208 + $0x61] sm:$0xff] %vm98, %v42
    %218 = vst.msk [vmem:[%s208 + $0x69] sm:$0xff] %vm98, %v43
    %219 = vst.msk [vmem:[%s208 + $0x79] sm:$0xff] %vm98, %v44
    %220 = vst.msk [vmem:[%s208 + $0x81] sm:$0xff] %vm98, %v45
    %221 = vst.msk [vmem:[%s208 + $0x91] sm:$0xff] %vm98, %v46
    %222 = vst.msk [vmem:[%s208 + $0x99] sm:$0xff] %vm98, %v47
    %223 = vst.msk [vmem:[%s208 + $0xa9] sm:$0xff] %vm98, %v48
    %224 = vst.msk [vmem:[%s208 + $0xb1] sm:$0xff] %vm98, %v49
    %225 = vst.msk [vmem:[%s208 + $0xc1] sm:$0xff] %vm98, %v50
    %226 = vst.msk [vmem:[%s208 + $0xc9] sm:$0xff] %vm98, %v51
    %227 = vst.msk [vmem:[%s208 + $0xd9] sm:$0xff] %vm98, %v52
    %228 = vst.msk [vmem:[%s208 + $0xe1] sm:$0xff] %vm98, %v53
    %229 = vst.msk [vmem:[%s208 + $0xf1] sm:$0xff] %vm98, %v54
    %230 = vst.msk [vmem:[%s208 + $0xf9] sm:$0xff] %vm98, %v55
    %231 = vst.msk [vmem:[%s208 + $0x109] sm:$0xff] %vm98, %v56
    %232 = vst.msk [vmem:[%s208 + $0x111] sm:$0xff] %vm98, %v57
    %233 = vst.msk [vmem:[%s208 + $0x121] sm:$0xff] %vm98, %v58
    %234 = vst.msk [vmem:[%s208 + $0x129] sm:$0xff] %vm98, %v59
    %235 = vst.msk [vmem:[%s208 + $0x139] sm:$0xff] %vm98, %v60
    %236 = vst.msk [vmem:[%s208 + $0x141] sm:$0xff] %vm98, %v61
    %237 = vst.msk [vmem:[%s208 + $0x151] sm:$0xff] %vm98, %v62
    %238 = vst.msk [vmem:[%s208 + $0x159] sm:$0xff] %vm98, %v63
    %239 = vst.msk [vmem:[%s208 + $0x169] sm:$0xff] %vm98, %v64
    %240 = vst.msk [vmem:[%s208 + $0x171] sm:$0xff] %vm98, %v65
    %241 = vst.msk [vmem:[%s208 + $0x1b1] sm:$0xff] %vm98, %v66
    %242 = vst.msk [vmem:[%s208 + $0x1b9] sm:$0xff] %vm98, %v67
    %243 = vst.msk [vmem:[%s208 + $0x1c9] sm:$0xff] %vm98, %v68
    %244 = vst.msk [vmem:[%s208 + $0x1d1] sm:$0xff] %vm98, %v69
    %245 = vst.msk [vmem:[%s208 + $0x1e1] sm:$0xff] %vm98, %v70
    %246 = vst.msk [vmem:[%s208 + $0x1e9] sm:$0xff] %vm98, %v71
    %247 = vst.msk [vmem:[%s208 + $0x1f9] sm:$0xff] %vm98, %v72
    %248 = vst.msk [vmem:[%s208 + $0x201] sm:$0xff] %vm98, %v73
    %249 = vst.msk [vmem:[%s208 + $0x211] sm:$0xff] %vm98, %v74
    %250 = vst.msk [vmem:[%s208 + $0x219] sm:$0xff] %vm98, %v75
    %251 = vst.msk [vmem:[%s208 + $0x229] sm:$0xff] %vm98, %v76
    %252 = vst.msk [vmem:[%s208 + $0x231] sm:$0xff] %vm98, %v77
    %253 = vst.msk [vmem:[%s208 + $0x241] sm:$0xff] %vm98, %v78
    %254 = vst.msk [vmem:[%s208 + $0x249] sm:$0xff] %vm98, %v79
    %255 = vst.msk [vmem:[%s208 + $0x259] sm:$0xff] %vm98, %v80
    %256 = vst.msk [vmem:[%s208 + $0x261] sm:$0xff] %vm98, %v81
    %257 = vst.msk [vmem:[%s208 + $0x271] sm:$0xff] %vm98, %v82
    %258 = vst.msk [vmem:[%s208 + $0x279] sm:$0xff] %vm98, %v83
    %259 = vst.msk [vmem:[%s208 + $0x289] sm:$0xff] %vm98, %v84
    %260 = vst.msk [vmem:[%s208 + $0x291] sm:$0xff] %vm98, %v85
    %261 = vst.msk [vmem:[%s208 + $0x2a1] sm:$0xff] %vm98, %v86
    %262 = vst.msk [vmem:[%s208 + $0x2a9] sm:$0xff] %vm98, %v87
    %263 = vst.msk [vmem:[%s208 + $0x2b9] sm:$0xff] %vm98, %v88
    %264 = vst.msk [vmem:[%s208 + $0x2c1] sm:$0xff] %vm98, %v89
    %265 = vst.msk [vmem:[%s208 + $0x2d1] sm:$0xff] %vm98, %v90
    %266 = vst.msk [vmem:[%s208 + $0x2d9] sm:$0xff] %vm98, %v91
    %267 = vst.msk [vmem:[%s208 + $0x2e9] sm:$0xff] %vm98, %v92
    %268 = vst.msk [vmem:[%s208 + $0x2f1] sm:$0xff] %vm98, %v93
    %269 = vst.msk [vmem:[%s208 + $0x301] sm:$0xff] %vm98, %v94
    %270 = vst.msk [vmem:[%s208 + $0x309] sm:$0xff] %vm98, %v95
    %271 = vst.msk [vmem:[%s208 + $0x319] sm:$0xff] %vm98, %v96
    %272 = vst.msk [vmem:[%s208 + $0x321] sm:$0xff] %vm98, %v97
    %v273 = vld [vmem:[#allocation2] sm:$0xff]
    %v274 = vld [vmem:[#allocation2 + $0x8] sm:$0xff]
    %v275 = vld [vmem:[#allocation2 + $0x18] sm:$0xff]
    %v276 = vld [vmem:[#allocation2 + $0x20] sm:$0xff]
    %v277 = vld [vmem:[#allocation2 + $0x30] sm:$0xff]
    %v278 = vld [vmem:[#allocation2 + $0x38] sm:$0xff]
    %v279 = vld [vmem:[#allocation2 + $0x48] sm:$0xff]
    %v280 = vld [vmem:[#allocation2 + $0x50] sm:$0xff]
    %v281 = vld [vmem:[#allocation2 + $0x60] sm:$0xff]
    %v282 = vld [vmem:[#allocation2 + $0x68] sm:$0xff]
    %v283 = vld [vmem:[#allocation2 + $0x78] sm:$0xff]
    %v284 = vld [vmem:[#allocation2 + $0x80] sm:$0xff]
    %v285 = vld [vmem:[#allocation2 + $0x90] sm:$0xff]
    %v286 = vld [vmem:[#allocation2 + $0x98] sm:$0xff]
    %v287 = vld [vmem:[#allocation2 + $0xa8] sm:$0xff]
    %v288 = vld [vmem:[#allocation2 + $0xb0] sm:$0xff]
    %v289 = vld [vmem:[#allocation2 + $0xc0] sm:$0xff]
    %v290 = vld [vmem:[#allocation2 + $0xc8] sm:$0xff]
    %v291 = vld [vmem:[#allocation2 + $0xd8] sm:$0xff]
    %v292 = vld [vmem:[#allocation2 + $0xe0] sm:$0xff]
    %v293 = vld [vmem:[#allocation2 + $0xf0] sm:$0xff]
    %v294 = vld [vmem:[#allocation2 + $0xf8] sm:$0xff]
    %v295 = vld [vmem:[#allocation2 + $0x108] sm:$0xff]
    %v296 = vld [vmem:[#allocation2 + $0x110] sm:$0xff]
    %v297 = vld [vmem:[#allocation2 + $0x120] sm:$0xff]
    %v298 = vld [vmem:[#allocation2 + $0x128] sm:$0xff]
    %v299 = vld [vmem:[#allocation2 + $0x138] sm:$0xff]
    %v300 = vld [vmem:[#allocation2 + $0x140] sm:$0xff]
    %v301 = vld [vmem:[#allocation2 + $0x150] sm:$0xff]
    %v302 = vld [vmem:[#allocation2 + $0x158] sm:$0xff]
    %v303 = vld [vmem:[#allocation2 + $0x168] sm:$0xff]
    %v304 = vld [vmem:[#allocation2 + $0x170] sm:$0xff]
    %v305 = vld [vmem:[#allocation2 + $0x1b0] sm:$0xff]
    %v306 = vld [vmem:[#allocation2 + $0x1b8] sm:$0xff]
    %v307 = vld [vmem:[#allocation2 + $0x1c8] sm:$0xff]
    %v308 = vld [vmem:[#allocation2 + $0x1d0] sm:$0xff]
    %v309 = vld [vmem:[#allocation2 + $0x1e0] sm:$0xff]
    %v310 = vld [vmem:[#allocation2 + $0x1e8] sm:$0xff]
    %v311 = vld [vmem:[#allocation2 + $0x1f8] sm:$0xff]
    %v312 = vld [vmem:[#allocation2 + $0x200] sm:$0xff]
    %v313 = vld [vmem:[#allocation2 + $0x210] sm:$0xff]
    %v314 = vld [vmem:[#allocation2 + $0x218] sm:$0xff]
    %v315 = vld [vmem:[#allocation2 + $0x228] sm:$0xff]
    %v316 = vld [vmem:[#allocation2 + $0x230] sm:$0xff]
    %v317 = vld [vmem:[#allocation2 + $0x240] sm:$0xff]
    %v318 = vld [vmem:[#allocation2 + $0x248] sm:$0xff]
    %v319 = vld [vmem:[#allocation2 + $0x258] sm:$0xff]
    %v320 = vld [vmem:[#allocation2 + $0x260] sm:$0xff]
    %v321 = vld [vmem:[#allocation2 + $0x270] sm:$0xff]
    %v322 = vld [vmem:[#allocation2 + $0x278] sm:$0xff]
    %v323 = vld [vmem:[#allocation2 + $0x288] sm:$0xff]
    %v324 = vld [vmem:[#allocation2 + $0x290] sm:$0xff]
    %v325 = vld [vmem:[#allocation2 + $0x2a0] sm:$0xff]
    %v326 = vld [vmem:[#allocation2 + $0x2a8] sm:$0xff]
    %v327 = vld [vmem:[#allocation2 + $0x2b8] sm:$0xff]
    %v328 = vld [vmem:[#allocation2 + $0x2c0] sm:$0xff]
    %v329 = vld [vmem:[#allocation2 + $0x2d0] sm:$0xff]
    %v330 = vld [vmem:[#allocation2 + $0x2d8] sm:$0xff]
    %v331 = vld [vmem:[#allocation2 + $0x2e8] sm:$0xff]
    %v332 = vld [vmem:[#allocation2 + $0x2f0] sm:$0xff]
    %v333 = vld [vmem:[#allocation2 + $0x300] sm:$0xff]
    %v334 = vld [vmem:[#allocation2 + $0x308] sm:$0xff]
    %v335 = vld [vmem:[#allocation2 + $0x318] sm:$0xff]
    %v336 = vld [vmem:[#allocation2 + $0x320] sm:$0xff]
    %337 = vst.msk [vmem:[#allocation3] sm:$0xff] %vm98, %v273
    %338 = vst.msk [vmem:[#allocation3 + $0x8] sm:$0xff] %vm98, %v274
    %339 = vst.msk [vmem:[#allocation3 + $0x10] sm:$0xff] %vm98, %v275
    %340 = vst.msk [vmem:[#allocation3 + $0x18] sm:$0xff] %vm98, %v276
    %341 = vst.msk [vmem:[#allocation3 + $0x20] sm:$0xff] %vm98, %v277
    %342 = vst.msk [vmem:[#allocation3 + $0x28] sm:$0xff] %vm98, %v278
    %343 = vst.msk [vmem:[#allocation3 + $0x30] sm:$0xff] %vm98, %v279
    %344 = vst.msk [vmem:[#allocation3 + $0x38] sm:$0xff] %vm98, %v280
    %345 = vst.msk [vmem:[#allocation3 + $0x40] sm:$0xff] %vm98, %v281
    %346 = vst.msk [vmem:[#allocation3 + $0x48] sm:$0xff] %vm98, %v282
    %347 = vst.msk [vmem:[#allocation3 + $0x50] sm:$0xff] %vm98, %v283
    %348 = vst.msk [vmem:[#allocation3 + $0x58] sm:$0xff] %vm98, %v284
    %349 = vst.msk [vmem:[#allocation3 + $0x60] sm:$0xff] %vm98, %v285
    %350 = vst.msk [vmem:[#allocation3 + $0x68] sm:$0xff] %vm98, %v286
    %351 = vst.msk [vmem:[#allocation3 + $0x70] sm:$0xff] %vm98, %v287
    %352 = vst.msk [vmem:[#allocation3 + $0x78] sm:$0xff] %vm98, %v288
    %353 = vst.msk [vmem:[#allocation3 + $0x80] sm:$0xff] %vm98, %v289
    %354 = vst.msk [vmem:[#allocation3 + $0x88] sm:$0xff] %vm98, %v290
    %355 = vst.msk [vmem:[#allocation3 + $0x90] sm:$0xff] %vm98, %v291
    %356 = vst.msk [vmem:[#allocation3 + $0x98] sm:$0xff] %vm98, %v292
    %357 = vst.msk [vmem:[#allocation3 + $0xa0] sm:$0xff] %vm98, %v293
    %358 = vst.msk [vmem:[#allocation3 + $0xa8] sm:$0xff] %vm98, %v294
    %359 = vst.msk [vmem:[#allocation3 + $0xb0] sm:$0xff] %vm98, %v295
    %360 = vst.msk [vmem:[#allocation3 + $0xb8] sm:$0xff] %vm98, %v296
    %361 = vst.msk [vmem:[#allocation3 + $0xc0] sm:$0xff] %vm98, %v297
    %362 = vst.msk [vmem:[#allocation3 + $0xc8] sm:$0xff] %vm98, %v298
    %363 = vst.msk [vmem:[#allocation3 + $0xd0] sm:$0xff] %vm98, %v299
    %364 = vst.msk [vmem:[#allocation3 + $0xd8] sm:$0xff] %vm98, %v300
    %365 = vst.msk [vmem:[#allocation3 + $0xe0] sm:$0xff] %vm98, %v301
    %366 = vst.msk [vmem:[#allocation3 + $0xe8] sm:$0xff] %vm98, %v302
    %367 = vst.msk [vmem:[#allocation3 + $0xf0] sm:$0xff] %vm98, %v303
    %368 = vst.msk [vmem:[#allocation3 + $0xf8] sm:$0xff] %vm98, %v304
    %369 = vst.msk [vmem:[#allocation3 + $0x100] sm:$0xff] %vm98, %v305
    %370 = vst.msk [vmem:[#allocation3 + $0x108] sm:$0xff] %vm98, %v306
    %371 = vst.msk [vmem:[#allocation3 + $0x110] sm:$0xff] %vm98, %v307
    %372 = vst.msk [vmem:[#allocation3 + $0x118] sm:$0xff] %vm98, %v308
    %373 = vst.msk [vmem:[#allocation3 + $0x120] sm:$0xff] %vm98, %v309
    %374 = vst.msk [vmem:[#allocation3 + $0x128] sm:$0xff] %vm98, %v310
    %375 = vst.msk [vmem:[#allocation3 + $0x130] sm:$0xff] %vm98, %v311
    %376 = vst.msk [vmem:[#allocation3 + $0x138] sm:$0xff] %vm98, %v312
    %377 = vst.msk [vmem:[#allocation3 + $0x140] sm:$0xff] %vm98, %v313
    %378 = vst.msk [vmem:[#allocation3 + $0x148] sm:$0xff] %vm98, %v314
    %379 = vst.msk [vmem:[#allocation3 + $0x150] sm:$0xff] %vm98, %v315
    %380 = vst.msk [vmem:[#allocation3 + $0x158] sm:$0xff] %vm98, %v316
    %381 = vst.msk [vmem:[#allocation3 + $0x160] sm:$0xff] %vm98, %v317
    %382 = vst.msk [vmem:[#allocation3 + $0x168] sm:$0xff] %vm98, %v318
    %383 = vst.msk [vmem:[#allocation3 + $0x170] sm:$0xff] %vm98, %v319
    %384 = vst.msk [vmem:[#allocation3 + $0x178] sm:$0xff] %vm98, %v320
    %385 = vst.msk [vmem:[#allocation3 + $0x180] sm:$0xff] %vm98, %v321
    %386 = vst.msk [vmem:[#allocation3 + $0x188] sm:$0xff] %vm98, %v322
    %387 = vst.msk [vmem:[#allocation3 + $0x190] sm:$0xff] %vm98, %v323
    %388 = vst.msk [vmem:[#allocation3 + $0x198] sm:$0xff] %vm98, %v324
    %389 = vst.msk [vmem:[#allocation3 + $0x1a0] sm:$0xff] %vm98, %v325
    %390 = vst.msk [vmem:[#allocation3 + $0x1a8] sm:$0xff] %vm98, %v326
    %391 = vst.msk [vmem:[#allocation3 + $0x1b0] sm:$0xff] %vm98, %v327
    %392 = vst.msk [vmem:[#allocation3 + $0x1b8] sm:$0xff] %vm98, %v328
    %393 = vst.msk [vmem:[#allocation3 + $0x1c0] sm:$0xff] %vm98, %v329
    %394 = vst.msk [vmem:[#allocation3 + $0x1c8] sm:$0xff] %vm98, %v330
    %395 = vst.msk [vmem:[#allocation3 + $0x1d0] sm:$0xff] %vm98, %v331
    %396 = vst.msk [vmem:[#allocation3 + $0x1d8] sm:$0xff] %vm98, %v332
    %397 = vst.msk [vmem:[#allocation3 + $0x1e0] sm:$0xff] %vm98, %v333
    %398 = vst.msk [vmem:[#allocation3 + $0x1e8] sm:$0xff] %vm98, %v334
    %399 = vst.msk [vmem:[#allocation3 + $0x1f0] sm:$0xff] %vm98, %v335
    %400 = vst.msk [vmem:[#allocation3 + $0x1f8] sm:$0xff] %vm98, %v336
    %v401 = vld [vmem:[#allocation2 + $0x1] sm:$0xff]
    %v402 = vld [vmem:[#allocation2 + $0x9] sm:$0xff]
    %v403 = vld [vmem:[#allocation2 + $0x19] sm:$0xff]
    %v404 = vld [vmem:[#allocation2 + $0x21] sm:$0xff]
    %v405 = vld [vmem:[#allocation2 + $0x31] sm:$0xff]
    %v406 = vld [vmem:[#allocation2 + $0x39] sm:$0xff]
    %v407 = vld [vmem:[#allocation2 + $0x49] sm:$0xff]
    %v408 = vld [vmem:[#allocation2 + $0x51] sm:$0xff]
    %v409 = vld [vmem:[#allocation2 + $0x61] sm:$0xff]
    %v410 = vld [vmem:[#allocation2 + $0x69] sm:$0xff]
    %v411 = vld [vmem:[#allocation2 + $0x79] sm:$0xff]
    %v412 = vld [vmem:[#allocation2 + $0x81] sm:$0xff]
    %v413 = vld [vmem:[#allocation2 + $0x91] sm:$0xff]
    %v414 = vld [vmem:[#allocation2 + $0x99] sm:$0xff]
    %v415 = vld [vmem:[#allocation2 + $0xa9] sm:$0xff]
    %v416 = vld [vmem:[#allocation2 + $0xb1] sm:$0xff]
    %v417 = vld [vmem:[#allocation2 + $0xc1] sm:$0xff]
    %v418 = vld [vmem:[#allocation2 + $0xc9] sm:$0xff]
    %v419 = vld [vmem:[#allocation2 + $0xd9] sm:$0xff]
    %v420 = vld [vmem:[#allocation2 + $0xe1] sm:$0xff]
    %v421 = vld [vmem:[#allocation2 + $0xf1] sm:$0xff]
    %v422 = vld [vmem:[#allocation2 + $0xf9] sm:$0xff]
    %v423 = vld [vmem:[#allocation2 + $0x109] sm:$0xff]
    %v424 = vld [vmem:[#allocation2 + $0x111] sm:$0xff]
    %v425 = vld [vmem:[#allocation2 + $0x121] sm:$0xff]
    %v426 = vld [vmem:[#allocation2 + $0x129] sm:$0xff]
    %v427 = vld [vmem:[#allocation2 + $0x139] sm:$0xff]
    %v428 = vld [vmem:[#allocation2 + $0x141] sm:$0xff]
    %v429 = vld [vmem:[#allocation2 + $0x151] sm:$0xff]
    %v430 = vld [vmem:[#allocation2 + $0x159] sm:$0xff]
    %v431 = vld [vmem:[#allocation2 + $0x169] sm:$0xff]
    %v432 = vld [vmem:[#allocation2 + $0x171] sm:$0xff]
    %v433 = vld [vmem:[#allocation2 + $0x1b1] sm:$0xff]
    %v434 = vld [vmem:[#allocation2 + $0x1b9] sm:$0xff]
    %v435 = vld [vmem:[#allocation2 + $0x1c9] sm:$0xff]
    %v436 = vld [vmem:[#allocation2 + $0x1d1] sm:$0xff]
    %v437 = vld [vmem:[#allocation2 + $0x1e1] sm:$0xff]
    %v438 = vld [vmem:[#allocation2 + $0x1e9] sm:$0xff]
    %v439 = vld [vmem:[#allocation2 + $0x1f9] sm:$0xff]
    %v440 = vld [vmem:[#allocation2 + $0x201] sm:$0xff]
    %v441 = vld [vmem:[#allocation2 + $0x211] sm:$0xff]
    %v442 = vld [vmem:[#allocation2 + $0x219] sm:$0xff]
    %v443 = vld [vmem:[#allocation2 + $0x229] sm:$0xff]
    %v444 = vld [vmem:[#allocation2 + $0x231] sm:$0xff]
    %v445 = vld [vmem:[#allocation2 + $0x241] sm:$0xff]
    %v446 = vld [vmem:[#allocation2 + $0x249] sm:$0xff]
    %v447 = vld [vmem:[#allocation2 + $0x259] sm:$0xff]
    %v448 = vld [vmem:[#allocation2 + $0x261] sm:$0xff]
    %v449 = vld [vmem:[#allocation2 + $0x271] sm:$0xff]
    %v450 = vld [vmem:[#allocation2 + $0x279] sm:$0xff]
    %v451 = vld [vmem:[#allocation2 + $0x289] sm:$0xff]
    %v452 = vld [vmem:[#allocation2 + $0x291] sm:$0xff]
    %v453 = vld [vmem:[#allocation2 + $0x2a1] sm:$0xff]
    %v454 = vld [vmem:[#allocation2 + $0x2a9] sm:$0xff]
    %v455 = vld [vmem:[#allocation2 + $0x2b9] sm:$0xff]
    %v456 = vld [vmem:[#allocation2 + $0x2c1] sm:$0xff]
    %v457 = vld [vmem:[#allocation2 + $0x2d1] sm:$0xff]
    %v458 = vld [vmem:[#allocation2 + $0x2d9] sm:$0xff]
    %v459 = vld [vmem:[#allocation2 + $0x2e9] sm:$0xff]
    %v460 = vld [vmem:[#allocation2 + $0x2f1] sm:$0xff]
    %v461 = vld [vmem:[#allocation2 + $0x301] sm:$0xff]
    %v462 = vld [vmem:[#allocation2 + $0x309] sm:$0xff]
    %v463 = vld [vmem:[#allocation2 + $0x319] sm:$0xff]
    %v464 = vld [vmem:[#allocation2 + $0x321] sm:$0xff]
    %529 = vrot.lane.b32.xlu0 %v401, 4
    %v530 = vpop.permute.xlu0 %529
    %531 = vrot.lane.b32.xlu0 %v402, 4
    %v532 = vpop.permute.xlu0 %531
    %533 = vrot.lane.b32.xlu0 %v403, 4
    %v534 = vpop.permute.xlu0 %533
    %535 = vrot.lane.b32.xlu0 %v404, 4
    %v536 = vpop.permute.xlu0 %535
    %537 = vrot.lane.b32.xlu0 %v405, 4
    %v538 = vpop.permute.xlu0 %537
    %539 = vrot.lane.b32.xlu0 %v406, 4
    %v540 = vpop.permute.xlu0 %539
    %541 = vrot.lane.b32.xlu0 %v407, 4
    %v542 = vpop.permute.xlu0 %541
    %543 = vrot.lane.b32.xlu0 %v408, 4
    %v544 = vpop.permute.xlu0 %543
    %545 = vrot.lane.b32.xlu0 %v409, 4
    %v546 = vpop.permute.xlu0 %545
    %547 = vrot.lane.b32.xlu0 %v410, 4
    %v548 = vpop.permute.xlu0 %547
    %549 = vrot.lane.b32.xlu0 %v411, 4
    %v550 = vpop.permute.xlu0 %549
    %551 = vrot.lane.b32.xlu0 %v412, 4
    %v552 = vpop.permute.xlu0 %551
    %553 = vrot.lane.b32.xlu0 %v413, 4
    %v554 = vpop.permute.xlu0 %553
    %555 = vrot.lane.b32.xlu0 %v414, 4
    %v556 = vpop.permute.xlu0 %555
    %557 = vrot.lane.b32.xlu0 %v415, 4
    %v558 = vpop.permute.xlu0 %557
    %559 = vrot.lane.b32.xlu0 %v416, 4
    %v560 = vpop.permute.xlu0 %559
    %561 = vrot.lane.b32.xlu0 %v417, 4
    %v562 = vpop.permute.xlu0 %561
    %563 = vrot.lane.b32.xlu0 %v418, 4
    %v564 = vpop.permute.xlu0 %563
    %565 = vrot.lane.b32.xlu0 %v419, 4
    %v566 = vpop.permute.xlu0 %565
    %567 = vrot.lane.b32.xlu0 %v420, 4
    %v568 = vpop.permute.xlu0 %567
    %569 = vrot.lane.b32.xlu0 %v421, 4
    %v570 = vpop.permute.xlu0 %569
    %571 = vrot.lane.b32.xlu0 %v422, 4
    %v572 = vpop.permute.xlu0 %571
    %573 = vrot.lane.b32.xlu0 %v423, 4
    %v574 = vpop.permute.xlu0 %573
    %575 = vrot.lane.b32.xlu0 %v424, 4
    %v576 = vpop.permute.xlu0 %575
    %577 = vrot.lane.b32.xlu0 %v425, 4
    %v578 = vpop.permute.xlu0 %577
    %579 = vrot.lane.b32.xlu0 %v426, 4
    %v580 = vpop.permute.xlu0 %579
    %581 = vrot.lane.b32.xlu0 %v427, 4
    %v582 = vpop.permute.xlu0 %581
    %583 = vrot.lane.b32.xlu0 %v428, 4
    %v584 = vpop.permute.xlu0 %583
    %585 = vrot.lane.b32.xlu0 %v429, 4
    %v586 = vpop.permute.xlu0 %585
    %587 = vrot.lane.b32.xlu0 %v430, 4
    %v588 = vpop.permute.xlu0 %587
    %589 = vrot.lane.b32.xlu0 %v431, 4
    %v590 = vpop.permute.xlu0 %589
    %591 = vrot.lane.b32.xlu0 %v432, 4
    %v592 = vpop.permute.xlu0 %591
    %593 = vrot.lane.b32.xlu0 %v433, 4
    %v594 = vpop.permute.xlu0 %593
    %595 = vrot.lane.b32.xlu0 %v434, 4
    %v596 = vpop.permute.xlu0 %595
    %597 = vrot.lane.b32.xlu0 %v435, 4
    %v598 = vpop.permute.xlu0 %597
    %599 = vrot.lane.b32.xlu0 %v436, 4
    %v600 = vpop.permute.xlu0 %599
    %601 = vrot.lane.b32.xlu0 %v437, 4
    %v602 = vpop.permute.xlu0 %601
    %603 = vrot.lane.b32.xlu0 %v438, 4
    %v604 = vpop.permute.xlu0 %603
    %605 = vrot.lane.b32.xlu0 %v439, 4
    %v606 = vpop.permute.xlu0 %605
    %607 = vrot.lane.b32.xlu0 %v440, 4
    %v608 = vpop.permute.xlu0 %607
    %609 = vrot.lane.b32.xlu0 %v441, 4
    %v610 = vpop.permute.xlu0 %609
    %611 = vrot.lane.b32.xlu0 %v442, 4
    %v612 = vpop.permute.xlu0 %611
    %613 = vrot.lane.b32.xlu0 %v443, 4
    %v614 = vpop.permute.xlu0 %613
    %615 = vrot.lane.b32.xlu0 %v444, 4
    %v616 = vpop.permute.xlu0 %615
    %617 = vrot.lane.b32.xlu0 %v445, 4
    %v618 = vpop.permute.xlu0 %617
    %619 = vrot.lane.b32.xlu0 %v446, 4
    %v620 = vpop.permute.xlu0 %619
    %621 = vrot.lane.b32.xlu0 %v447, 4
    %v622 = vpop.permute.xlu0 %621
    %623 = vrot.lane.b32.xlu0 %v448, 4
    %v624 = vpop.permute.xlu0 %623
    %625 = vrot.lane.b32.xlu0 %v449, 4
    %v626 = vpop.permute.xlu0 %625
    %627 = vrot.lane.b32.xlu0 %v450, 4
    %v628 = vpop.permute.xlu0 %627
    %629 = vrot.lane.b32.xlu0 %v451, 4
    %v630 = vpop.permute.xlu0 %629
    %631 = vrot.lane.b32.xlu0 %v452, 4
    %v632 = vpop.permute.xlu0 %631
    %633 = vrot.lane.b32.xlu0 %v453, 4
    %v634 = vpop.permute.xlu0 %633
    %635 = vrot.lane.b32.xlu0 %v454, 4
    %v636 = vpop.permute.xlu0 %635
    %637 = vrot.lane.b32.xlu0 %v455, 4
    %v638 = vpop.permute.xlu0 %637
    %639 = vrot.lane.b32.xlu0 %v456, 4
    %v640 = vpop.permute.xlu0 %639
    %641 = vrot.lane.b32.xlu0 %v457, 4
    %v642 = vpop.permute.xlu0 %641
    %643 = vrot.lane.b32.xlu0 %v458, 4
    %v644 = vpop.permute.xlu0 %643
    %645 = vrot.lane.b32.xlu0 %v459, 4
    %v646 = vpop.permute.xlu0 %645
    %647 = vrot.lane.b32.xlu0 %v460, 4
    %v648 = vpop.permute.xlu0 %647
    %649 = vrot.lane.b32.xlu0 %v461, 4
    %v650 = vpop.permute.xlu0 %649
    %651 = vrot.lane.b32.xlu0 %v462, 4
    %v652 = vpop.permute.xlu0 %651
    %653 = vrot.lane.b32.xlu0 %v463, 4
    %v654 = vpop.permute.xlu0 %653
    %655 = vrot.lane.b32.xlu0 %v464, 4
    %v656 = vpop.permute.xlu0 %655
    %vm721 = vcmask 64544
    %722 = vst.msk [vmem:[#allocation3] sm:$0xff] %vm721, %v530
    %723 = vst.msk [vmem:[#allocation3 + $0x8] sm:$0xff] %vm721, %v532
    %724 = vst.msk [vmem:[#allocation3 + $0x10] sm:$0xff] %vm721, %v534
    %725 = vst.msk [vmem:[#allocation3 + $0x18] sm:$0xff] %vm721, %v536
    %726 = vst.msk [vmem:[#allocation3 + $0x20] sm:$0xff] %vm721, %v538
    %727 = vst.msk [vmem:[#allocation3 + $0x28] sm:$0xff] %vm721, %v540
    %728 = vst.msk [vmem:[#allocation3 + $0x30] sm:$0xff] %vm721, %v542
    %729 = vst.msk [vmem:[#allocation3 + $0x38] sm:$0xff] %vm721, %v544
    %730 = vst.msk [vmem:[#allocation3 + $0x40] sm:$0xff] %vm721, %v546
    %731 = vst.msk [vmem:[#allocation3 + $0x48] sm:$0xff] %vm721, %v548
    %732 = vst.msk [vmem:[#allocation3 + $0x50] sm:$0xff] %vm721, %v550
    %733 = vst.msk [vmem:[#allocation3 + $0x58] sm:$0xff] %vm721, %v552
    %734 = vst.msk [vmem:[#allocation3 + $0x60] sm:$0xff] %vm721, %v554
    %735 = vst.msk [vmem:[#allocation3 + $0x68] sm:$0xff] %vm721, %v556
    %736 = vst.msk [vmem:[#allocation3 + $0x70] sm:$0xff] %vm721, %v558
    %737 = vst.msk [vmem:[#allocation3 + $0x78] sm:$0xff] %vm721, %v560
    %738 = vst.msk [vmem:[#allocation3 + $0x80] sm:$0xff] %vm721, %v562
    %739 = vst.msk [vmem:[#allocation3 + $0x88] sm:$0xff] %vm721, %v564
    %740 = vst.msk [vmem:[#allocation3 + $0x90] sm:$0xff] %vm721, %v566
    %741 = vst.msk [vmem:[#allocation3 + $0x98] sm:$0xff] %vm721, %v568
    %742 = vst.msk [vmem:[#allocation3 + $0xa0] sm:$0xff] %vm721, %v570
    %743 = vst.msk [vmem:[#allocation3 + $0xa8] sm:$0xff] %vm721, %v572
    %744 = vst.msk [vmem:[#allocation3 + $0xb0] sm:$0xff] %vm721, %v574
    %745 = vst.msk [vmem:[#allocation3 + $0xb8] sm:$0xff] %vm721, %v576
    %746 = vst.msk [vmem:[#allocation3 + $0xc0] sm:$0xff] %vm721, %v578
    %747 = vst.msk [vmem:[#allocation3 + $0xc8] sm:$0xff] %vm721, %v580
    %748 = vst.msk [vmem:[#allocation3 + $0xd0] sm:$0xff] %vm721, %v582
    %749 = vst.msk [vmem:[#allocation3 + $0xd8] sm:$0xff] %vm721, %v584
    %750 = vst.msk [vmem:[#allocation3 + $0xe0] sm:$0xff] %vm721, %v586
    %751 = vst.msk [vmem:[#allocation3 + $0xe8] sm:$0xff] %vm721, %v588
    %752 = vst.msk [vmem:[#allocation3 + $0xf0] sm:$0xff] %vm721, %v590
    %753 = vst.msk [vmem:[#allocation3 + $0xf8] sm:$0xff] %vm721, %v592
    %754 = vst.msk [vmem:[#allocation3 + $0x100] sm:$0xff] %vm721, %v594
    %755 = vst.msk [vmem:[#allocation3 + $0x108] sm:$0xff] %vm721, %v596
    %756 = vst.msk [vmem:[#allocation3 + $0x110] sm:$0xff] %vm721, %v598
    %757 = vst.msk [vmem:[#allocation3 + $0x118] sm:$0xff] %vm721, %v600
    %758 = vst.msk [vmem:[#allocation3 + $0x120] sm:$0xff] %vm721, %v602
    %759 = vst.msk [vmem:[#allocation3 + $0x128] sm:$0xff] %vm721, %v604
    %760 = vst.msk [vmem:[#allocation3 + $0x130] sm:$0xff] %vm721, %v606
    %761 = vst.msk [vmem:[#allocation3 + $0x138] sm:$0xff] %vm721, %v608
    %762 = vst.msk [vmem:[#allocation3 + $0x140] sm:$0xff] %vm721, %v610
    %763 = vst.msk [vmem:[#allocation3 + $0x148] sm:$0xff] %vm721, %v612
    %764 = vst.msk [vmem:[#allocation3 + $0x150] sm:$0xff] %vm721, %v614
    %765 = vst.msk [vmem:[#allocation3 + $0x158] sm:$0xff] %vm721, %v616
    %766 = vst.msk [vmem:[#allocation3 + $0x160] sm:$0xff] %vm721, %v618
    %767 = vst.msk [vmem:[#allocation3 + $0x168] sm:$0xff] %vm721, %v620
    %768 = vst.msk [vmem:[#allocation3 + $0x170] sm:$0xff] %vm721, %v622
    %769 = vst.msk [vmem:[#allocation3 + $0x178] sm:$0xff] %vm721, %v624
    %770 = vst.msk [vmem:[#allocation3 + $0x180] sm:$0xff] %vm721, %v626
    %771 = vst.msk [vmem:[#allocation3 + $0x188] sm:$0xff] %vm721, %v628
    %772 = vst.msk [vmem:[#allocation3 + $0x190] sm:$0xff] %vm721, %v630
    %773 = vst.msk [vmem:[#allocation3 + $0x198] sm:$0xff] %vm721, %v632
    %774 = vst.msk [vmem:[#allocation3 + $0x1a0] sm:$0xff] %vm721, %v634
    %775 = vst.msk [vmem:[#allocation3 + $0x1a8] sm:$0xff] %vm721, %v636
    %776 = vst.msk [vmem:[#allocation3 + $0x1b0] sm:$0xff] %vm721, %v638
    %777 = vst.msk [vmem:[#allocation3 + $0x1b8] sm:$0xff] %vm721, %v640
    %778 = vst.msk [vmem:[#allocation3 + $0x1c0] sm:$0xff] %vm721, %v642
    %779 = vst.msk [vmem:[#allocation3 + $0x1c8] sm:$0xff] %vm721, %v644
    %780 = vst.msk [vmem:[#allocation3 + $0x1d0] sm:$0xff] %vm721, %v646
    %781 = vst.msk [vmem:[#allocation3 + $0x1d8] sm:$0xff] %vm721, %v648
    %782 = vst.msk [vmem:[#allocation3 + $0x1e0] sm:$0xff] %vm721, %v650
    %783 = vst.msk [vmem:[#allocation3 + $0x1e8] sm:$0xff] %vm721, %v652
    %784 = vst.msk [vmem:[#allocation3 + $0x1f0] sm:$0xff] %vm721, %v654
    %785 = vst.msk [vmem:[#allocation3 + $0x1f8] sm:$0xff] %vm721, %v656
    %v786 = vld [vmem:[#allocation2 + $0x2] sm:$0xff]
    %v787 = vld [vmem:[#allocation2 + $0xa] sm:$0xff]
    %v788 = vld [vmem:[#allocation2 + $0x1a] sm:$0xff]
    %v789 = vld [vmem:[#allocation2 + $0x22] sm:$0xff]
    %v790 = vld [vmem:[#allocation2 + $0x32] sm:$0xff]
    %v791 = vld [vmem:[#allocation2 + $0x3a] sm:$0xff]
    %v792 = vld [vmem:[#allocation2 + $0x4a] sm:$0xff]
    %v793 = vld [vmem:[#allocation2 + $0x52] sm:$0xff]
    %v794 = vld [vmem:[#allocation2 + $0x62] sm:$0xff]
    %v795 = vld [vmem:[#allocation2 + $0x6a] sm:$0xff]
    %v796 = vld [vmem:[#allocation2 + $0x7a] sm:$0xff]
    %v797 = vld [vmem:[#allocation2 + $0x82] sm:$0xff]
    %v798 = vld [vmem:[#allocation2 + $0x92] sm:$0xff]
    %v799 = vld [vmem:[#allocation2 + $0x9a] sm:$0xff]
    %v800 = vld [vmem:[#allocation2 + $0xaa] sm:$0xff]
    %v801 = vld [vmem:[#allocation2 + $0xb2] sm:$0xff]
    %v802 = vld [vmem:[#allocation2 + $0xc2] sm:$0xff]
    %v803 = vld [vmem:[#allocation2 + $0xca] sm:$0xff]
    %v804 = vld [vmem:[#allocation2 + $0xda] sm:$0xff]
    %v805 = vld [vmem:[#allocation2 + $0xe2] sm:$0xff]
    %v806 = vld [vmem:[#allocation2 + $0xf2] sm:$0xff]
    %v807 = vld [vmem:[#allocation2 + $0xfa] sm:$0xff]
    %v808 = vld [vmem:[#allocation2 + $0x10a] sm:$0xff]
    %v809 = vld [vmem:[#allocation2 + $0x112] sm:$0xff]
    %v810 = vld [vmem:[#allocation2 + $0x122] sm:$0xff]
    %v811 = vld [vmem:[#allocation2 + $0x12a] sm:$0xff]
    %v812 = vld [vmem:[#allocation2 + $0x13a] sm:$0xff]
    %v813 = vld [vmem:[#allocation2 + $0x142] sm:$0xff]
    %v814 = vld [vmem:[#allocation2 + $0x152] sm:$0xff]
    %v815 = vld [vmem:[#allocation2 + $0x15a] sm:$0xff]
    %v816 = vld [vmem:[#allocation2 + $0x16a] sm:$0xff]
    %v817 = vld [vmem:[#allocation2 + $0x172] sm:$0xff]
    %v818 = vld [vmem:[#allocation2 + $0x1b2] sm:$0xff]
    %v819 = vld [vmem:[#allocation2 + $0x1ba] sm:$0xff]
    %v820 = vld [vmem:[#allocation2 + $0x1ca] sm:$0xff]
    %v821 = vld [vmem:[#allocation2 + $0x1d2] sm:$0xff]
    %v822 = vld [vmem:[#allocation2 + $0x1e2] sm:$0xff]
    %v823 = vld [vmem:[#allocation2 + $0x1ea] sm:$0xff]
    %v824 = vld [vmem:[#allocation2 + $0x1fa] sm:$0xff]
    %v825 = vld [vmem:[#allocation2 + $0x202] sm:$0xff]
    %v826 = vld [vmem:[#allocation2 + $0x212] sm:$0xff]
    %v827 = vld [vmem:[#allocation2 + $0x21a] sm:$0xff]
    %v828 = vld [vmem:[#allocation2 + $0x22a] sm:$0xff]
    %v829 = vld [vmem:[#allocation2 + $0x232] sm:$0xff]
    %v830 = vld [vmem:[#allocation2 + $0x242] sm:$0xff]
    %v831 = vld [vmem:[#allocation2 + $0x24a] sm:$0xff]
    %v832 = vld [vmem:[#allocation2 + $0x25a] sm:$0xff]
    %v833 = vld [vmem:[#allocation2 + $0x262] sm:$0xff]
    %v834 = vld [vmem:[#allocation2 + $0x272] sm:$0xff]
    %v835 = vld [vmem:[#allocation2 + $0x27a] sm:$0xff]
    %v836 = vld [vmem:[#allocation2 + $0x28a] sm:$0xff]
    %v837 = vld [vmem:[#allocation2 + $0x292] sm:$0xff]
    %v838 = vld [vmem:[#allocation2 + $0x2a2] sm:$0xff]
    %v839 = vld [vmem:[#allocation2 + $0x2aa] sm:$0xff]
    %v840 = vld [vmem:[#allocation2 + $0x2ba] sm:$0xff]
    %v841 = vld [vmem:[#allocation2 + $0x2c2] sm:$0xff]
    %v842 = vld [vmem:[#allocation2 + $0x2d2] sm:$0xff]
    %v843 = vld [vmem:[#allocation2 + $0x2da] sm:$0xff]
    %v844 = vld [vmem:[#allocation2 + $0x2ea] sm:$0xff]
    %v845 = vld [vmem:[#allocation2 + $0x2f2] sm:$0xff]
    %v846 = vld [vmem:[#allocation2 + $0x302] sm:$0xff]
    %v847 = vld [vmem:[#allocation2 + $0x30a] sm:$0xff]
    %v848 = vld [vmem:[#allocation2 + $0x31a] sm:$0xff]
    %v849 = vld [vmem:[#allocation2 + $0x322] sm:$0xff]
    %914 = vrot.lane.b32.xlu0 %v786, 8
    %v915 = vpop.permute.xlu0 %914
    %916 = vrot.lane.b32.xlu0 %v787, 8
    %v917 = vpop.permute.xlu0 %916
    %918 = vrot.lane.b32.xlu0 %v788, 8
    %v919 = vpop.permute.xlu0 %918
    %920 = vrot.lane.b32.xlu0 %v789, 8
    %v921 = vpop.permute.xlu0 %920
    %922 = vrot.lane.b32.xlu0 %v790, 8
    %v923 = vpop.permute.xlu0 %922
    %924 = vrot.lane.b32.xlu0 %v791, 8
    %v925 = vpop.permute.xlu0 %924
    %926 = vrot.lane.b32.xlu0 %v792, 8
    %v927 = vpop.permute.xlu0 %926
    %928 = vrot.lane.b32.xlu0 %v793, 8
    %v929 = vpop.permute.xlu0 %928
    %930 = vrot.lane.b32.xlu0 %v794, 8
    %v931 = vpop.permute.xlu0 %930
    %932 = vrot.lane.b32.xlu0 %v795, 8
    %v933 = vpop.permute.xlu0 %932
    %934 = vrot.lane.b32.xlu0 %v796, 8
    %v935 = vpop.permute.xlu0 %934
    %936 = vrot.lane.b32.xlu0 %v797, 8
    %v937 = vpop.permute.xlu0 %936
    %938 = vrot.lane.b32.xlu0 %v798, 8
    %v939 = vpop.permute.xlu0 %938
    %940 = vrot.lane.b32.xlu0 %v799, 8
    %v941 = vpop.permute.xlu0 %940
    %942 = vrot.lane.b32.xlu0 %v800, 8
    %v943 = vpop.permute.xlu0 %942
    %944 = vrot.lane.b32.xlu0 %v801, 8
    %v945 = vpop.permute.xlu0 %944
    %946 = vrot.lane.b32.xlu0 %v802, 8
    %v947 = vpop.permute.xlu0 %946
    %948 = vrot.lane.b32.xlu0 %v803, 8
    %v949 = vpop.permute.xlu0 %948
    %950 = vrot.lane.b32.xlu0 %v804, 8
    %v951 = vpop.permute.xlu0 %950
    %952 = vrot.lane.b32.xlu0 %v805, 8
    %v953 = vpop.permute.xlu0 %952
    %954 = vrot.lane.b32.xlu0 %v806, 8
    %v955 = vpop.permute.xlu0 %954
    %956 = vrot.lane.b32.xlu0 %v807, 8
    %v957 = vpop.permute.xlu0 %956
    %958 = vrot.lane.b32.xlu0 %v808, 8
    %v959 = vpop.permute.xlu0 %958
    %960 = vrot.lane.b32.xlu0 %v809, 8
    %v961 = vpop.permute.xlu0 %960
    %962 = vrot.lane.b32.xlu0 %v810, 8
    %v963 = vpop.permute.xlu0 %962
    %964 = vrot.lane.b32.xlu0 %v811, 8
    %v965 = vpop.permute.xlu0 %964
    %966 = vrot.lane.b32.xlu0 %v812, 8
    %v967 = vpop.permute.xlu0 %966
    %968 = vrot.lane.b32.xlu0 %v813, 8
    %v969 = vpop.permute.xlu0 %968
    %970 = vrot.lane.b32.xlu0 %v814, 8
    %v971 = vpop.permute.xlu0 %970
    %972 = vrot.lane.b32.xlu0 %v815, 8
    %v973 = vpop.permute.xlu0 %972
    %974 = vrot.lane.b32.xlu0 %v816, 8
    %v975 = vpop.permute.xlu0 %974
    %976 = vrot.lane.b32.xlu0 %v817, 8
    %v977 = vpop.permute.xlu0 %976
    %978 = vrot.lane.b32.xlu0 %v818, 8
    %v979 = vpop.permute.xlu0 %978
    %980 = vrot.lane.b32.xlu0 %v819, 8
    %v981 = vpop.permute.xlu0 %980
    %982 = vrot.lane.b32.xlu0 %v820, 8
    %v983 = vpop.permute.xlu0 %982
    %984 = vrot.lane.b32.xlu0 %v821, 8
    %v985 = vpop.permute.xlu0 %984
    %986 = vrot.lane.b32.xlu0 %v822, 8
    %v987 = vpop.permute.xlu0 %986
    %988 = vrot.lane.b32.xlu0 %v823, 8
    %v989 = vpop.permute.xlu0 %988
    %990 = vrot.lane.b32.xlu0 %v824, 8
    %v991 = vpop.permute.xlu0 %990
    %992 = vrot.lane.b32.xlu0 %v825, 8
    %v993 = vpop.permute.xlu0 %992
    %994 = vrot.lane.b32.xlu0 %v826, 8
    %v995 = vpop.permute.xlu0 %994
    %996 = vrot.lane.b32.xlu0 %v827, 8
    %v997 = vpop.permute.xlu0 %996
    %998 = vrot.lane.b32.xlu0 %v828, 8
    %v999 = vpop.permute.xlu0 %998
    %1000 = vrot.lane.b32.xlu0 %v829, 8
    %v1001 = vpop.permute.xlu0 %1000
    %1002 = vrot.lane.b32.xlu0 %v830, 8
    %v1003 = vpop.permute.xlu0 %1002
    %1004 = vrot.lane.b32.xlu0 %v831, 8
    %v1005 = vpop.permute.xlu0 %1004
    %1006 = vrot.lane.b32.xlu0 %v832, 8
    %v1007 = vpop.permute.xlu0 %1006
    %1008 = vrot.lane.b32.xlu0 %v833, 8
    %v1009 = vpop.permute.xlu0 %1008
    %1010 = vrot.lane.b32.xlu0 %v834, 8
    %v1011 = vpop.permute.xlu0 %1010
    %1012 = vrot.lane.b32.xlu0 %v835, 8
    %v1013 = vpop.permute.xlu0 %1012
    %1014 = vrot.lane.b32.xlu0 %v836, 8
    %v1015 = vpop.permute.xlu0 %1014
    %1016 = vrot.lane.b32.xlu0 %v837, 8
    %v1017 = vpop.permute.xlu0 %1016
    %1018 = vrot.lane.b32.xlu0 %v838, 8
    %v1019 = vpop.permute.xlu0 %1018
    %1020 = vrot.lane.b32.xlu0 %v839, 8
    %v1021 = vpop.permute.xlu0 %1020
    %1022 = vrot.lane.b32.xlu0 %v840, 8
    %v1023 = vpop.permute.xlu0 %1022
    %1024 = vrot.lane.b32.xlu0 %v841, 8
    %v1025 = vpop.permute.xlu0 %1024
    %1026 = vrot.lane.b32.xlu0 %v842, 8
    %v1027 = vpop.permute.xlu0 %1026
    %1028 = vrot.lane.b32.xlu0 %v843, 8
    %v1029 = vpop.permute.xlu0 %1028
    %1030 = vrot.lane.b32.xlu0 %v844, 8
    %v1031 = vpop.permute.xlu0 %1030
    %1032 = vrot.lane.b32.xlu0 %v845, 8
    %v1033 = vpop.permute.xlu0 %1032
    %1034 = vrot.lane.b32.xlu0 %v846, 8
    %v1035 = vpop.permute.xlu0 %1034
    %1036 = vrot.lane.b32.xlu0 %v847, 8
    %v1037 = vpop.permute.xlu0 %1036
    %1038 = vrot.lane.b32.xlu0 %v848, 8
    %v1039 = vpop.permute.xlu0 %1038
    %1040 = vrot.lane.b32.xlu0 %v849, 8
    %v1041 = vpop.permute.xlu0 %1040
    %vm1106 = vcmask 97344
    %1107 = vst.msk [vmem:[#allocation3] sm:$0xff] %vm1106, %v915
    %1108 = vst.msk [vmem:[#allocation3 + $0x8] sm:$0xff] %vm1106, %v917
    %1109 = vst.msk [vmem:[#allocation3 + $0x10] sm:$0xff] %vm1106, %v919
    %1110 = vst.msk [vmem:[#allocation3 + $0x18] sm:$0xff] %vm1106, %v921
    %1111 = vst.msk [vmem:[#allocation3 + $0x20] sm:$0xff] %vm1106, %v923
    %1112 = vst.msk [vmem:[#allocation3 + $0x28] sm:$0xff] %vm1106, %v925
    %1113 = vst.msk [vmem:[#allocation3 + $0x30] sm:$0xff] %vm1106, %v927
    %1114 = vst.msk [vmem:[#allocation3 + $0x38] sm:$0xff] %vm1106, %v929
    %1115 = vst.msk [vmem:[#allocation3 + $0x40] sm:$0xff] %vm1106, %v931
    %1116 = vst.msk [vmem:[#allocation3 + $0x48] sm:$0xff] %vm1106, %v933
    %1117 = vst.msk [vmem:[#allocation3 + $0x50] sm:$0xff] %vm1106, %v935
    %1118 = vst.msk [vmem:[#allocation3 + $0x58] sm:$0xff] %vm1106, %v937
    %1119 = vst.msk [vmem:[#allocation3 + $0x60] sm:$0xff] %vm1106, %v939
    %1120 = vst.msk [vmem:[#allocation3 + $0x68] sm:$0xff] %vm1106, %v941
    %1121 = vst.msk [vmem:[#allocation3 + $0x70] sm:$0xff] %vm1106, %v943
    %1122 = vst.msk [vmem:[#allocation3 + $0x78] sm:$0xff] %vm1106, %v945
    %1123 = vst.msk [vmem:[#allocation3 + $0x80] sm:$0xff] %vm1106, %v947
    %1124 = vst.msk [vmem:[#allocation3 + $0x88] sm:$0xff] %vm1106, %v949
    %1125 = vst.msk [vmem:[#allocation3 + $0x90] sm:$0xff] %vm1106, %v951
    %1126 = vst.msk [vmem:[#allocation3 + $0x98] sm:$0xff] %vm1106, %v953
    %1127 = vst.msk [vmem:[#allocation3 + $0xa0] sm:$0xff] %vm1106, %v955
    %1128 = vst.msk [vmem:[#allocation3 + $0xa8] sm:$0xff] %vm1106, %v957
    %1129 = vst.msk [vmem:[#allocation3 + $0xb0] sm:$0xff] %vm1106, %v959
    %1130 = vst.msk [vmem:[#allocation3 + $0xb8] sm:$0xff] %vm1106, %v961
    %1131 = vst.msk [vmem:[#allocation3 + $0xc0] sm:$0xff] %vm1106, %v963
    %1132 = vst.msk [vmem:[#allocation3 + $0xc8] sm:$0xff] %vm1106, %v965
    %1133 = vst.msk [vmem:[#allocation3 + $0xd0] sm:$0xff] %vm1106, %v967
    %1134 = vst.msk [vmem:[#allocation3 + $0xd8] sm:$0xff] %vm1106, %v969
    %1135 = vst.msk [vmem:[#allocation3 + $0xe0] sm:$0xff] %vm1106, %v971
    %1136 = vst.msk [vmem:[#allocation3 + $0xe8] sm:$0xff] %vm1106, %v973
    %1137 = vst.msk [vmem:[#allocation3 + $0xf0] sm:$0xff] %vm1106, %v975
    %1138 = vst.msk [vmem:[#allocation3 + $0xf8] sm:$0xff] %vm1106, %v977
    %1139 = vst.msk [vmem:[#allocation3 + $0x100] sm:$0xff] %vm1106, %v979
    %1140 = vst.msk [vmem:[#allocation3 + $0x108] sm:$0xff] %vm1106, %v981
    %1141 = vst.msk [vmem:[#allocation3 + $0x110] sm:$0xff] %vm1106, %v983
    %1142 = vst.msk [vmem:[#allocation3 + $0x118] sm:$0xff] %vm1106, %v985
    %1143 = vst.msk [vmem:[#allocation3 + $0x120] sm:$0xff] %vm1106, %v987
    %1144 = vst.msk [vmem:[#allocation3 + $0x128] sm:$0xff] %vm1106, %v989
    %1145 = vst.msk [vmem:[#allocation3 + $0x130] sm:$0xff] %vm1106, %v991
    %1146 = vst.msk [vmem:[#allocation3 + $0x138] sm:$0xff] %vm1106, %v993
    %1147 = vst.msk [vmem:[#allocation3 + $0x140] sm:$0xff] %vm1106, %v995
    %1148 = vst.msk [vmem:[#allocation3 + $0x148] sm:$0xff] %vm1106, %v997
    %1149 = vst.msk [vmem:[#allocation3 + $0x150] sm:$0xff] %vm1106, %v999
    %1150 = vst.msk [vmem:[#allocation3 + $0x158] sm:$0xff] %vm1106, %v1001
    %1151 = vst.msk [vmem:[#allocation3 + $0x160] sm:$0xff] %vm1106, %v1003
    %1152 = vst.msk [vmem:[#allocation3 + $0x168] sm:$0xff] %vm1106, %v1005
    %1153 = vst.msk [vmem:[#allocation3 + $0x170] sm:$0xff] %vm1106, %v1007
    %1154 = vst.msk [vmem:[#allocation3 + $0x178] sm:$0xff] %vm1106, %v1009
    %1155 = vst.msk [vmem:[#allocation3 + $0x180] sm:$0xff] %vm1106, %v1011
    %1156 = vst.msk [vmem:[#allocation3 + $0x188] sm:$0xff] %vm1106, %v1013
    %1157 = vst.msk [vmem:[#allocation3 + $0x190] sm:$0xff] %vm1106, %v1015
    %1158 = vst.msk [vmem:[#allocation3 + $0x198] sm:$0xff] %vm1106, %v1017
    %1159 = vst.msk [vmem:[#allocation3 + $0x1a0] sm:$0xff] %vm1106, %v1019
    %1160 = vst.msk [vmem:[#allocation3 + $0x1a8] sm:$0xff] %vm1106, %v1021
    %1161 = vst.msk [vmem:[#allocation3 + $0x1b0] sm:$0xff] %vm1106, %v1023
    %1162 = vst.msk [vmem:[#allocation3 + $0x1b8] sm:$0xff] %vm1106, %v1025
    %1163 = vst.msk [vmem:[#allocation3 + $0x1c0] sm:$0xff] %vm1106, %v1027
    %1164 = vst.msk [vmem:[#allocation3 + $0x1c8] sm:$0xff] %vm1106, %v1029
    %1165 = vst.msk [vmem:[#allocation3 + $0x1d0] sm:$0xff] %vm1106, %v1031
    %1166 = vst.msk [vmem:[#allocation3 + $0x1d8] sm:$0xff] %vm1106, %v1033
    %1167 = vst.msk [vmem:[#allocation3 + $0x1e0] sm:$0xff] %vm1106, %v1035
    %1168 = vst.msk [vmem:[#allocation3 + $0x1e8] sm:$0xff] %vm1106, %v1037
    %1169 = vst.msk [vmem:[#allocation3 + $0x1f0] sm:$0xff] %vm1106, %v1039
    %1170 = vst.msk [vmem:[#allocation3 + $0x1f8] sm:$0xff] %vm1106, %v1041
    %v1171 = vld [vmem:[%s208] sm:$0xff]
    %v1172 = vld [vmem:[%s208 + $0x8] sm:$0xff]
    %v1173 = vld [vmem:[%s208 + $0x18] sm:$0xff]
    %v1174 = vld [vmem:[%s208 + $0x20] sm:$0xff]
    %v1175 = vld [vmem:[%s208 + $0x30] sm:$0xff]
    %v1176 = vld [vmem:[%s208 + $0x38] sm:$0xff]
    %v1177 = vld [vmem:[%s208 + $0x48] sm:$0xff]
    %v1178 = vld [vmem:[%s208 + $0x50] sm:$0xff]
    %v1179 = vld [vmem:[%s208 + $0x60] sm:$0xff]
    %v1180 = vld [vmem:[%s208 + $0x68] sm:$0xff]
    %v1181 = vld [vmem:[%s208 + $0x78] sm:$0xff]
    %v1182 = vld [vmem:[%s208 + $0x80] sm:$0xff]
    %v1183 = vld [vmem:[%s208 + $0x90] sm:$0xff]
    %v1184 = vld [vmem:[%s208 + $0x98] sm:$0xff]
    %v1185 = vld [vmem:[%s208 + $0xa8] sm:$0xff]
    %v1186 = vld [vmem:[%s208 + $0xb0] sm:$0xff]
    %v1187 = vld [vmem:[%s208 + $0xc0] sm:$0xff]
    %v1188 = vld [vmem:[%s208 + $0xc8] sm:$0xff]
    %v1189 = vld [vmem:[%s208 + $0xd8] sm:$0xff]
    %v1190 = vld [vmem:[%s208 + $0xe0] sm:$0xff]
    %v1191 = vld [vmem:[%s208 + $0xf0] sm:$0xff]
    %v1192 = vld [vmem:[%s208 + $0xf8] sm:$0xff]
    %v1193 = vld [vmem:[%s208 + $0x108] sm:$0xff]
    %v1194 = vld [vmem:[%s208 + $0x110] sm:$0xff]
    %v1195 = vld [vmem:[%s208 + $0x120] sm:$0xff]
    %v1196 = vld [vmem:[%s208 + $0x128] sm:$0xff]
    %v1197 = vld [vmem:[%s208 + $0x138] sm:$0xff]
    %v1198 = vld [vmem:[%s208 + $0x140] sm:$0xff]
    %v1199 = vld [vmem:[%s208 + $0x150] sm:$0xff]
    %v1200 = vld [vmem:[%s208 + $0x158] sm:$0xff]
    %v1201 = vld [vmem:[%s208 + $0x168] sm:$0xff]
    %v1202 = vld [vmem:[%s208 + $0x170] sm:$0xff]
    %v1203 = vld [vmem:[%s208 + $0x1b0] sm:$0xff]
    %v1204 = vld [vmem:[%s208 + $0x1b8] sm:$0xff]
    %v1205 = vld [vmem:[%s208 + $0x1c8] sm:$0xff]
    %v1206 = vld [vmem:[%s208 + $0x1d0] sm:$0xff]
    %v1207 = vld [vmem:[%s208 + $0x1e0] sm:$0xff]
    %v1208 = vld [vmem:[%s208 + $0x1e8] sm:$0xff]
    %v1209 = vld [vmem:[%s208 + $0x1f8] sm:$0xff]
    %v1210 = vld [vmem:[%s208 + $0x200] sm:$0xff]
    %v1211 = vld [vmem:[%s208 + $0x210] sm:$0xff]
    %v1212 = vld [vmem:[%s208 + $0x218] sm:$0xff]
    %v1213 = vld [vmem:[%s208 + $0x228] sm:$0xff]
    %v1214 = vld [vmem:[%s208 + $0x230] sm:$0xff]
    %v1215 = vld [vmem:[%s208 + $0x240] sm:$0xff]
    %v1216 = vld [vmem:[%s208 + $0x248] sm:$0xff]
    %v1217 = vld [vmem:[%s208 + $0x258] sm:$0xff]
    %v1218 = vld [vmem:[%s208 + $0x260] sm:$0xff]
    %v1219 = vld [vmem:[%s208 + $0x270] sm:$0xff]
    %v1220 = vld [vmem:[%s208 + $0x278] sm:$0xff]
    %v1221 = vld [vmem:[%s208 + $0x288] sm:$0xff]
    %v1222 = vld [vmem:[%s208 + $0x290] sm:$0xff]
    %v1223 = vld [vmem:[%s208 + $0x2a0] sm:$0xff]
    %v1224 = vld [vmem:[%s208 + $0x2a8] sm:$0xff]
    %v1225 = vld [vmem:[%s208 + $0x2b8] sm:$0xff]
    %v1226 = vld [vmem:[%s208 + $0x2c0] sm:$0xff]
    %v1227 = vld [vmem:[%s208 + $0x2d0] sm:$0xff]
    %v1228 = vld [vmem:[%s208 + $0x2d8] sm:$0xff]
    %v1229 = vld [vmem:[%s208 + $0x2e8] sm:$0xff]
    %v1230 = vld [vmem:[%s208 + $0x2f0] sm:$0xff]
    %v1231 = vld [vmem:[%s208 + $0x300] sm:$0xff]
    %v1232 = vld [vmem:[%s208 + $0x308] sm:$0xff]
    %v1233 = vld [vmem:[%s208 + $0x318] sm:$0xff]
    %v1234 = vld [vmem:[%s208 + $0x320] sm:$0xff]
    %1299 = vrot.lane.b32.xlu0 %v1171, 12
    %v1300 = vpop.permute.xlu0 %1299
    %1301 = vrot.lane.b32.xlu0 %v1172, 12
    %v1302 = vpop.permute.xlu0 %1301
    %1303 = vrot.lane.b32.xlu0 %v1173, 12
    %v1304 = vpop.permute.xlu0 %1303
    %1305 = vrot.lane.b32.xlu0 %v1174, 12
    %v1306 = vpop.permute.xlu0 %1305
    %1307 = vrot.lane.b32.xlu0 %v1175, 12
    %v1308 = vpop.permute.xlu0 %1307
    %1309 = vrot.lane.b32.xlu0 %v1176, 12
    %v1310 = vpop.permute.xlu0 %1309
    %1311 = vrot.lane.b32.xlu0 %v1177, 12
    %v1312 = vpop.permute.xlu0 %1311
    %1313 = vrot.lane.b32.xlu0 %v1178, 12
    %v1314 = vpop.permute.xlu0 %1313
    %1315 = vrot.lane.b32.xlu0 %v1179, 12
    %v1316 = vpop.permute.xlu0 %1315
    %1317 = vrot.lane.b32.xlu0 %v1180, 12
    %v1318 = vpop.permute.xlu0 %1317
    %1319 = vrot.lane.b32.xlu0 %v1181, 12
    %v1320 = vpop.permute.xlu0 %1319
    %1321 = vrot.lane.b32.xlu0 %v1182, 12
    %v1322 = vpop.permute.xlu0 %1321
    %1323 = vrot.lane.b32.xlu0 %v1183, 12
    %v1324 = vpop.permute.xlu0 %1323
    %1325 = vrot.lane.b32.xlu0 %v1184, 12
    %v1326 = vpop.permute.xlu0 %1325
    %1327 = vrot.lane.b32.xlu0 %v1185, 12
    %v1328 = vpop.permute.xlu0 %1327
    %1329 = vrot.lane.b32.xlu0 %v1186, 12
    %v1330 = vpop.permute.xlu0 %1329
    %1331 = vrot.lane.b32.xlu0 %v1187, 12
    %v1332 = vpop.permute.xlu0 %1331
    %1333 = vrot.lane.b32.xlu0 %v1188, 12
    %v1334 = vpop.permute.xlu0 %1333
    %1335 = vrot.lane.b32.xlu0 %v1189, 12
    %v1336 = vpop.permute.xlu0 %1335
    %1337 = vrot.lane.b32.xlu0 %v1190, 12
    %v1338 = vpop.permute.xlu0 %1337
    %1339 = vrot.lane.b32.xlu0 %v1191, 12
    %v1340 = vpop.permute.xlu0 %1339
    %1341 = vrot.lane.b32.xlu0 %v1192, 12
    %v1342 = vpop.permute.xlu0 %1341
    %1343 = vrot.lane.b32.xlu0 %v1193, 12
    %v1344 = vpop.permute.xlu0 %1343
    %1345 = vrot.lane.b32.xlu0 %v1194, 12
    %v1346 = vpop.permute.xlu0 %1345
    %1347 = vrot.lane.b32.xlu0 %v1195, 12
    %v1348 = vpop.permute.xlu0 %1347
    %1349 = vrot.lane.b32.xlu0 %v1196, 12
    %v1350 = vpop.permute.xlu0 %1349
    %1351 = vrot.lane.b32.xlu0 %v1197, 12
    %v1352 = vpop.permute.xlu0 %1351
    %1353 = vrot.lane.b32.xlu0 %v1198, 12
    %v1354 = vpop.permute.xlu0 %1353
    %1355 = vrot.lane.b32.xlu0 %v1199, 12
    %v1356 = vpop.permute.xlu0 %1355
    %1357 = vrot.lane.b32.xlu0 %v1200, 12
    %v1358 = vpop.permute.xlu0 %1357
    %1359 = vrot.lane.b32.xlu0 %v1201, 12
    %v1360 = vpop.permute.xlu0 %1359
    %1361 = vrot.lane.b32.xlu0 %v1202, 12
    %v1362 = vpop.permute.xlu0 %1361
    %1363 = vrot.lane.b32.xlu0 %v1203, 12
    %v1364 = vpop.permute.xlu0 %1363
    %1365 = vrot.lane.b32.xlu0 %v1204, 12
    %v1366 = vpop.permute.xlu0 %1365
    %1367 = vrot.lane.b32.xlu0 %v1205, 12
    %v1368 = vpop.permute.xlu0 %1367
    %1369 = vrot.lane.b32.xlu0 %v1206, 12
    %v1370 = vpop.permute.xlu0 %1369
    %1371 = vrot.lane.b32.xlu0 %v1207, 12
    %v1372 = vpop.permute.xlu0 %1371
    %1373 = vrot.lane.b32.xlu0 %v1208, 12
    %v1374 = vpop.permute.xlu0 %1373
    %1375 = vrot.lane.b32.xlu0 %v1209, 12
    %v1376 = vpop.permute.xlu0 %1375
    %1377 = vrot.lane.b32.xlu0 %v1210, 12
    %v1378 = vpop.permute.xlu0 %1377
    %1379 = vrot.lane.b32.xlu0 %v1211, 12
    %v1380 = vpop.permute.xlu0 %1379
    %1381 = vrot.lane.b32.xlu0 %v1212, 12
    %v1382 = vpop.permute.xlu0 %1381
    %1383 = vrot.lane.b32.xlu0 %v1213, 12
    %v1384 = vpop.permute.xlu0 %1383
    %1385 = vrot.lane.b32.xlu0 %v1214, 12
    %v1386 = vpop.permute.xlu0 %1385
    %1387 = vrot.lane.b32.xlu0 %v1215, 12
    %v1388 = vpop.permute.xlu0 %1387
    %1389 = vrot.lane.b32.xlu0 %v1216, 12
    %v1390 = vpop.permute.xlu0 %1389
    %1391 = vrot.lane.b32.xlu0 %v1217, 12
    %v1392 = vpop.permute.xlu0 %1391
    %1393 = vrot.lane.b32.xlu0 %v1218, 12
    %v1394 = vpop.permute.xlu0 %1393
    %1395 = vrot.lane.b32.xlu0 %v1219, 12
    %v1396 = vpop.permute.xlu0 %1395
    %1397 = vrot.lane.b32.xlu0 %v1220, 12
    %v1398 = vpop.permute.xlu0 %1397
    %1399 = vrot.lane.b32.xlu0 %v1221, 12
    %v1400 = vpop.permute.xlu0 %1399
    %1401 = vrot.lane.b32.xlu0 %v1222, 12
    %v1402 = vpop.permute.xlu0 %1401
    %1403 = vrot.lane.b32.xlu0 %v1223, 12
    %v1404 = vpop.permute.xlu0 %1403
    %1405 = vrot.lane.b32.xlu0 %v1224, 12
    %v1406 = vpop.permute.xlu0 %1405
    %1407 = vrot.lane.b32.xlu0 %v1225, 12
    %v1408 = vpop.permute.xlu0 %1407
    %1409 = vrot.lane.b32.xlu0 %v1226, 12
    %v1410 = vpop.permute.xlu0 %1409
    %1411 = vrot.lane.b32.xlu0 %v1227, 12
    %v1412 = vpop.permute.xlu0 %1411
    %1413 = vrot.lane.b32.xlu0 %v1228, 12
    %v1414 = vpop.permute.xlu0 %1413
    %1415 = vrot.lane.b32.xlu0 %v1229, 12
    %v1416 = vpop.permute.xlu0 %1415
    %1417 = vrot.lane.b32.xlu0 %v1230, 12
    %v1418 = vpop.permute.xlu0 %1417
    %1419 = vrot.lane.b32.xlu0 %v1231, 12
    %v1420 = vpop.permute.xlu0 %1419
    %1421 = vrot.lane.b32.xlu0 %v1232, 12
    %v1422 = vpop.permute.xlu0 %1421
    %1423 = vrot.lane.b32.xlu0 %v1233, 12
    %v1424 = vpop.permute.xlu0 %1423
    %1425 = vrot.lane.b32.xlu0 %v1234, 12
    %v1426 = vpop.permute.xlu0 %1425
    %vm1491 = vcmask 130144
    %1492 = vst.msk [vmem:[#allocation3] sm:$0xff] %vm1491, %v1300
    %1493 = vst.msk [vmem:[#allocation3 + $0x8] sm:$0xff] %vm1491, %v1302
    %1494 = vst.msk [vmem:[#allocation3 + $0x10] sm:$0xff] %vm1491, %v1304
    %1495 = vst.msk [vmem:[#allocation3 + $0x18] sm:$0xff] %vm1491, %v1306
    %1496 = vst.msk [vmem:[#allocation3 + $0x20] sm:$0xff] %vm1491, %v1308
    %1497 = vst.msk [vmem:[#allocation3 + $0x28] sm:$0xff] %vm1491, %v1310
    %1498 = vst.msk [vmem:[#allocation3 + $0x30] sm:$0xff] %vm1491, %v1312
    %1499 = vst.msk [vmem:[#allocation3 + $0x38] sm:$0xff] %vm1491, %v1314
    %1500 = vst.msk [vmem:[#allocation3 + $0x40] sm:$0xff] %vm1491, %v1316
    %1501 = vst.msk [vmem:[#allocation3 + $0x48] sm:$0xff] %vm1491, %v1318
    %1502 = vst.msk [vmem:[#allocation3 + $0x50] sm:$0xff] %vm1491, %v1320
    %1503 = vst.msk [vmem:[#allocation3 + $0x58] sm:$0xff] %vm1491, %v1322
    %1504 = vst.msk [vmem:[#allocation3 + $0x60] sm:$0xff] %vm1491, %v1324
    %1505 = vst.msk [vmem:[#allocation3 + $0x68] sm:$0xff] %vm1491, %v1326
    %1506 = vst.msk [vmem:[#allocation3 + $0x70] sm:$0xff] %vm1491, %v1328
    %1507 = vst.msk [vmem:[#allocation3 + $0x78] sm:$0xff] %vm1491, %v1330
    %1508 = vst.msk [vmem:[#allocation3 + $0x80] sm:$0xff] %vm1491, %v1332
    %1509 = vst.msk [vmem:[#allocation3 + $0x88] sm:$0xff] %vm1491, %v1334
    %1510 = vst.msk [vmem:[#allocation3 + $0x90] sm:$0xff] %vm1491, %v1336
    %1511 = vst.msk [vmem:[#allocation3 + $0x98] sm:$0xff] %vm1491, %v1338
    %1512 = vst.msk [vmem:[#allocation3 + $0xa0] sm:$0xff] %vm1491, %v1340
    %1513 = vst.msk [vmem:[#allocation3 + $0xa8] sm:$0xff] %vm1491, %v1342
    %1514 = vst.msk [vmem:[#allocation3 + $0xb0] sm:$0xff] %vm1491, %v1344
    %1515 = vst.msk [vmem:[#allocation3 + $0xb8] sm:$0xff] %vm1491, %v1346
    %1516 = vst.msk [vmem:[#allocation3 + $0xc0] sm:$0xff] %vm1491, %v1348
    %1517 = vst.msk [vmem:[#allocation3 + $0xc8] sm:$0xff] %vm1491, %v1350
    %1518 = vst.msk [vmem:[#allocation3 + $0xd0] sm:$0xff] %vm1491, %v1352
    %1519 = vst.msk [vmem:[#allocation3 + $0xd8] sm:$0xff] %vm1491, %v1354
    %1520 = vst.msk [vmem:[#allocation3 + $0xe0] sm:$0xff] %vm1491, %v1356
    %1521 = vst.msk [vmem:[#allocation3 + $0xe8] sm:$0xff] %vm1491, %v1358
    %1522 = vst.msk [vmem:[#allocation3 + $0xf0] sm:$0xff] %vm1491, %v1360
    %1523 = vst.msk [vmem:[#allocation3 + $0xf8] sm:$0xff] %vm1491, %v1362
    %1524 = vst.msk [vmem:[#allocation3 + $0x100] sm:$0xff] %vm1491, %v1364
    %1525 = vst.msk [vmem:[#allocation3 + $0x108] sm:$0xff] %vm1491, %v1366
    %1526 = vst.msk [vmem:[#allocation3 + $0x110] sm:$0xff] %vm1491, %v1368
    %1527 = vst.msk [vmem:[#allocation3 + $0x118] sm:$0xff] %vm1491, %v1370
    %1528 = vst.msk [vmem:[#allocation3 + $0x120] sm:$0xff] %vm1491, %v1372
    %1529 = vst.msk [vmem:[#allocation3 + $0x128] sm:$0xff] %vm1491, %v1374
    %1530 = vst.msk [vmem:[#allocation3 + $0x130] sm:$0xff] %vm1491, %v1376
    %1531 = vst.msk [vmem:[#allocation3 + $0x138] sm:$0xff] %vm1491, %v1378
    %1532 = vst.msk [vmem:[#allocation3 + $0x140] sm:$0xff] %vm1491, %v1380
    %1533 = vst.msk [vmem:[#allocation3 + $0x148] sm:$0xff] %vm1491, %v1382
    %1534 = vst.msk [vmem:[#allocation3 + $0x150] sm:$0xff] %vm1491, %v1384
    %1535 = vst.msk [vmem:[#allocation3 + $0x158] sm:$0xff] %vm1491, %v1386
    %1536 = vst.msk [vmem:[#allocation3 + $0x160] sm:$0xff] %vm1491, %v1388
    %1537 = vst.msk [vmem:[#allocation3 + $0x168] sm:$0xff] %vm1491, %v1390
    %1538 = vst.msk [vmem:[#allocation3 + $0x170] sm:$0xff] %vm1491, %v1392
    %1539 = vst.msk [vmem:[#allocation3 + $0x178] sm:$0xff] %vm1491, %v1394
    %1540 = vst.msk [vmem:[#allocation3 + $0x180] sm:$0xff] %vm1491, %v1396
    %1541 = vst.msk [vmem:[#allocation3 + $0x188] sm:$0xff] %vm1491, %v1398
    %1542 = vst.msk [vmem:[#allocation3 + $0x190] sm:$0xff] %vm1491, %v1400
    %1543 = vst.msk [vmem:[#allocation3 + $0x198] sm:$0xff] %vm1491, %v1402
    %1544 = vst.msk [vmem:[#allocation3 + $0x1a0] sm:$0xff] %vm1491, %v1404
    %1545 = vst.msk [vmem:[#allocation3 + $0x1a8] sm:$0xff] %vm1491, %v1406
    %1546 = vst.msk [vmem:[#allocation3 + $0x1b0] sm:$0xff] %vm1491, %v1408
    %1547 = vst.msk [vmem:[#allocation3 + $0x1b8] sm:$0xff] %vm1491, %v1410
    %1548 = vst.msk [vmem:[#allocation3 + $0x1c0] sm:$0xff] %vm1491, %v1412
    %1549 = vst.msk [vmem:[#allocation3 + $0x1c8] sm:$0xff] %vm1491, %v1414
    %1550 = vst.msk [vmem:[#allocation3 + $0x1d0] sm:$0xff] %vm1491, %v1416
    %1551 = vst.msk [vmem:[#allocation3 + $0x1d8] sm:$0xff] %vm1491, %v1418
    %1552 = vst.msk [vmem:[#allocation3 + $0x1e0] sm:$0xff] %vm1491, %v1420
    %1553 = vst.msk [vmem:[#allocation3 + $0x1e8] sm:$0xff] %vm1491, %v1422
    %1554 = vst.msk [vmem:[#allocation3 + $0x1f0] sm:$0xff] %vm1491, %v1424
    %1555 = vst.msk [vmem:[#allocation3 + $0x1f8] sm:$0xff] %vm1491, %v1426
    %v1556 = vld [vmem:[%s208 + $0x1] sm:$0xff]
    %v1557 = vld [vmem:[%s208 + $0x9] sm:$0xff]
    %v1558 = vld [vmem:[%s208 + $0x19] sm:$0xff]
    %v1559 = vld [vmem:[%s208 + $0x21] sm:$0xff]
    %v1560 = vld [vmem:[%s208 + $0x31] sm:$0xff]
    %v1561 = vld [vmem:[%s208 + $0x39] sm:$0xff]
    %v1562 = vld [vmem:[%s208 + $0x49] sm:$0xff]
    %v1563 = vld [vmem:[%s208 + $0x51] sm:$0xff]
    %v1564 = vld [vmem:[%s208 + $0x61] sm:$0xff]
    %v1565 = vld [vmem:[%s208 + $0x69] sm:$0xff]
    %v1566 = vld [vmem:[%s208 + $0x79] sm:$0xff]
    %v1567 = vld [vmem:[%s208 + $0x81] sm:$0xff]
    %v1568 = vld [vmem:[%s208 + $0x91] sm:$0xff]
    %v1569 = vld [vmem:[%s208 + $0x99] sm:$0xff]
    %v1570 = vld [vmem:[%s208 + $0xa9] sm:$0xff]
    %v1571 = vld [vmem:[%s208 + $0xb1] sm:$0xff]
    %v1572 = vld [vmem:[%s208 + $0xc1] sm:$0xff]
    %v1573 = vld [vmem:[%s208 + $0xc9] sm:$0xff]
    %v1574 = vld [vmem:[%s208 + $0xd9] sm:$0xff]
    %v1575 = vld [vmem:[%s208 + $0xe1] sm:$0xff]
    %v1576 = vld [vmem:[%s208 + $0xf1] sm:$0xff]
    %v1577 = vld [vmem:[%s208 + $0xf9] sm:$0xff]
    %v1578 = vld [vmem:[%s208 + $0x109] sm:$0xff]
    %v1579 = vld [vmem:[%s208 + $0x111] sm:$0xff]
    %v1580 = vld [vmem:[%s208 + $0x121] sm:$0xff]
    %v1581 = vld [vmem:[%s208 + $0x129] sm:$0xff]
    %v1582 = vld [vmem:[%s208 + $0x139] sm:$0xff]
    %v1583 = vld [vmem:[%s208 + $0x141] sm:$0xff]
    %v1584 = vld [vmem:[%s208 + $0x151] sm:$0xff]
    %v1585 = vld [vmem:[%s208 + $0x159] sm:$0xff]
    %v1586 = vld [vmem:[%s208 + $0x169] sm:$0xff]
    %v1587 = vld [vmem:[%s208 + $0x171] sm:$0xff]
    %v1588 = vld [vmem:[%s208 + $0x1b1] sm:$0xff]
    %v1589 = vld [vmem:[%s208 + $0x1b9] sm:$0xff]
    %v1590 = vld [vmem:[%s208 + $0x1c9] sm:$0xff]
    %v1591 = vld [vmem:[%s208 + $0x1d1] sm:$0xff]
    %v1592 = vld [vmem:[%s208 + $0x1e1] sm:$0xff]
    %v1593 = vld [vmem:[%s208 + $0x1e9] sm:$0xff]
    %v1594 = vld [vmem:[%s208 + $0x1f9] sm:$0xff]
    %v1595 = vld [vmem:[%s208 + $0x201] sm:$0xff]
    %v1596 = vld [vmem:[%s208 + $0x211] sm:$0xff]
    %v1597 = vld [vmem:[%s208 + $0x219] sm:$0xff]
    %v1598 = vld [vmem:[%s208 + $0x229] sm:$0xff]
    %v1599 = vld [vmem:[%s208 + $0x231] sm:$0xff]
    %v1600 = vld [vmem:[%s208 + $0x241] sm:$0xff]
    %v1601 = vld [vmem:[%s208 + $0x249] sm:$0xff]
    %v1602 = vld [vmem:[%s208 + $0x259] sm:$0xff]
    %v1603 = vld [vmem:[%s208 + $0x261] sm:$0xff]
    %v1604 = vld [vmem:[%s208 + $0x271] sm:$0xff]
    %v1605 = vld [vmem:[%s208 + $0x279] sm:$0xff]
    %v1606 = vld [vmem:[%s208 + $0x289] sm:$0xff]
    %v1607 = vld [vmem:[%s208 + $0x291] sm:$0xff]
    %v1608 = vld [vmem:[%s208 + $0x2a1] sm:$0xff]
    %v1609 = vld [vmem:[%s208 + $0x2a9] sm:$0xff]
    %v1610 = vld [vmem:[%s208 + $0x2b9] sm:$0xff]
    %v1611 = vld [vmem:[%s208 + $0x2c1] sm:$0xff]
    %v1612 = vld [vmem:[%s208 + $0x2d1] sm:$0xff]
    %v1613 = vld [vmem:[%s208 + $0x2d9] sm:$0xff]
    %v1614 = vld [vmem:[%s208 + $0x2e9] sm:$0xff]
    %v1615 = vld [vmem:[%s208 + $0x2f1] sm:$0xff]
    %v1616 = vld [vmem:[%s208 + $0x301] sm:$0xff]
    %v1617 = vld [vmem:[%s208 + $0x309] sm:$0xff]
    %v1618 = vld [vmem:[%s208 + $0x319] sm:$0xff]
    %v1619 = vld [vmem:[%s208 + $0x321] sm:$0xff]
    %1684 = vrot.lane.b32.xlu0 %v1556, 16
    %v1685 = vpop.permute.xlu0 %1684
    %1686 = vrot.lane.b32.xlu0 %v1557, 16
    %v1687 = vpop.permute.xlu0 %1686
    %1688 = vrot.lane.b32.xlu0 %v1558, 16
    %v1689 = vpop.permute.xlu0 %1688
    %1690 = vrot.lane.b32.xlu0 %v1559, 16
    %v1691 = vpop.permute.xlu0 %1690
    %1692 = vrot.lane.b32.xlu0 %v1560, 16
    %v1693 = vpop.permute.xlu0 %1692
    %1694 = vrot.lane.b32.xlu0 %v1561, 16
    %v1695 = vpop.permute.xlu0 %1694
    %1696 = vrot.lane.b32.xlu0 %v1562, 16
    %v1697 = vpop.permute.xlu0 %1696
    %1698 = vrot.lane.b32.xlu0 %v1563, 16
    %v1699 = vpop.permute.xlu0 %1698
    %1700 = vrot.lane.b32.xlu0 %v1564, 16
    %v1701 = vpop.permute.xlu0 %1700
    %1702 = vrot.lane.b32.xlu0 %v1565, 16
    %v1703 = vpop.permute.xlu0 %1702
    %1704 = vrot.lane.b32.xlu0 %v1566, 16
    %v1705 = vpop.permute.xlu0 %1704
    %1706 = vrot.lane.b32.xlu0 %v1567, 16
    %v1707 = vpop.permute.xlu0 %1706
    %1708 = vrot.lane.b32.xlu0 %v1568, 16
    %v1709 = vpop.permute.xlu0 %1708
    %1710 = vrot.lane.b32.xlu0 %v1569, 16
    %v1711 = vpop.permute.xlu0 %1710
    %1712 = vrot.lane.b32.xlu0 %v1570, 16
    %v1713 = vpop.permute.xlu0 %1712
    %1714 = vrot.lane.b32.xlu0 %v1571, 16
    %v1715 = vpop.permute.xlu0 %1714
    %1716 = vrot.lane.b32.xlu0 %v1572, 16
    %v1717 = vpop.permute.xlu0 %1716
    %1718 = vrot.lane.b32.xlu0 %v1573, 16
    %v1719 = vpop.permute.xlu0 %1718
    %1720 = vrot.lane.b32.xlu0 %v1574, 16
    %v1721 = vpop.permute.xlu0 %1720
    %1722 = vrot.lane.b32.xlu0 %v1575, 16
    %v1723 = vpop.permute.xlu0 %1722
    %1724 = vrot.lane.b32.xlu0 %v1576, 16
    %v1725 = vpop.permute.xlu0 %1724
    %1726 = vrot.lane.b32.xlu0 %v1577, 16
    %v1727 = vpop.permute.xlu0 %1726
    %1728 = vrot.lane.b32.xlu0 %v1578, 16
    %v1729 = vpop.permute.xlu0 %1728
    %1730 = vrot.lane.b32.xlu0 %v1579, 16
    %v1731 = vpop.permute.xlu0 %1730
    %1732 = vrot.lane.b32.xlu0 %v1580, 16
    %v1733 = vpop.permute.xlu0 %1732
    %1734 = vrot.lane.b32.xlu0 %v1581, 16
    %v1735 = vpop.permute.xlu0 %1734
    %1736 = vrot.lane.b32.xlu0 %v1582, 16
    %v1737 = vpop.permute.xlu0 %1736
    %1738 = vrot.lane.b32.xlu0 %v1583, 16
    %v1739 = vpop.permute.xlu0 %1738
    %1740 = vrot.lane.b32.xlu0 %v1584, 16
    %v1741 = vpop.permute.xlu0 %1740
    %1742 = vrot.lane.b32.xlu0 %v1585, 16
    %v1743 = vpop.permute.xlu0 %1742
    %1744 = vrot.lane.b32.xlu0 %v1586, 16
    %v1745 = vpop.permute.xlu0 %1744
    %1746 = vrot.lane.b32.xlu0 %v1587, 16
    %v1747 = vpop.permute.xlu0 %1746
    %1748 = vrot.lane.b32.xlu0 %v1588, 16
    %v1749 = vpop.permute.xlu0 %1748
    %1750 = vrot.lane.b32.xlu0 %v1589, 16
    %v1751 = vpop.permute.xlu0 %1750
    %1752 = vrot.lane.b32.xlu0 %v1590, 16
    %v1753 = vpop.permute.xlu0 %1752
    %1754 = vrot.lane.b32.xlu0 %v1591, 16
    %v1755 = vpop.permute.xlu0 %1754
    %1756 = vrot.lane.b32.xlu0 %v1592, 16
    %v1757 = vpop.permute.xlu0 %1756
    %1758 = vrot.lane.b32.xlu0 %v1593, 16
    %v1759 = vpop.permute.xlu0 %1758
    %1760 = vrot.lane.b32.xlu0 %v1594, 16
    %v1761 = vpop.permute.xlu0 %1760
    %1762 = vrot.lane.b32.xlu0 %v1595, 16
    %v1763 = vpop.permute.xlu0 %1762
    %1764 = vrot.lane.b32.xlu0 %v1596, 16
    %v1765 = vpop.permute.xlu0 %1764
    %1766 = vrot.lane.b32.xlu0 %v1597, 16
    %v1767 = vpop.permute.xlu0 %1766
    %1768 = vrot.lane.b32.xlu0 %v1598, 16
    %v1769 = vpop.permute.xlu0 %1768
    %1770 = vrot.lane.b32.xlu0 %v1599, 16
    %v1771 = vpop.permute.xlu0 %1770
    %1772 = vrot.lane.b32.xlu0 %v1600, 16
    %v1773 = vpop.permute.xlu0 %1772
    %1774 = vrot.lane.b32.xlu0 %v1601, 16
    %v1775 = vpop.permute.xlu0 %1774
    %1776 = vrot.lane.b32.xlu0 %v1602, 16
    %v1777 = vpop.permute.xlu0 %1776
    %1778 = vrot.lane.b32.xlu0 %v1603, 16
    %v1779 = vpop.permute.xlu0 %1778
    %1780 = vrot.lane.b32.xlu0 %v1604, 16
    %v1781 = vpop.permute.xlu0 %1780
    %1782 = vrot.lane.b32.xlu0 %v1605, 16
    %v1783 = vpop.permute.xlu0 %1782
    %1784 = vrot.lane.b32.xlu0 %v1606, 16
    %v1785 = vpop.permute.xlu0 %1784
    %1786 = vrot.lane.b32.xlu0 %v1607, 16
    %v1787 = vpop.permute.xlu0 %1786
    %1788 = vrot.lane.b32.xlu0 %v1608, 16
    %v1789 = vpop.permute.xlu0 %1788
    %1790 = vrot.lane.b32.xlu0 %v1609, 16
    %v1791 = vpop.permute.xlu0 %1790
    %1792 = vrot.lane.b32.xlu0 %v1610, 16
    %v1793 = vpop.permute.xlu0 %1792
    %1794 = vrot.lane.b32.xlu0 %v1611, 16
    %v1795 = vpop.permute.xlu0 %1794
    %1796 = vrot.lane.b32.xlu0 %v1612, 16
    %v1797 = vpop.permute.xlu0 %1796
    %1798 = vrot.lane.b32.xlu0 %v1613, 16
    %v1799 = vpop.permute.xlu0 %1798
    %1800 = vrot.lane.b32.xlu0 %v1614, 16
    %v1801 = vpop.permute.xlu0 %1800
    %1802 = vrot.lane.b32.xlu0 %v1615, 16
    %v1803 = vpop.permute.xlu0 %1802
    %1804 = vrot.lane.b32.xlu0 %v1616, 16
    %v1805 = vpop.permute.xlu0 %1804
    %1806 = vrot.lane.b32.xlu0 %v1617, 16
    %v1807 = vpop.permute.xlu0 %1806
    %1808 = vrot.lane.b32.xlu0 %v1618, 16
    %v1809 = vpop.permute.xlu0 %1808
    %1810 = vrot.lane.b32.xlu0 %v1619, 16
    %v1811 = vpop.permute.xlu0 %1810
    %vm1876 = vcmask 162944
    %1877 = vst.msk [vmem:[#allocation3] sm:$0xff] %vm1876, %v1685
    %1878 = vst.msk [vmem:[#allocation3 + $0x8] sm:$0xff] %vm1876, %v1687
    %1879 = vst.msk [vmem:[#allocation3 + $0x10] sm:$0xff] %vm1876, %v1689
    %1880 = vst.msk [vmem:[#allocation3 + $0x18] sm:$0xff] %vm1876, %v1691
    %1881 = vst.msk [vmem:[#allocation3 + $0x20] sm:$0xff] %vm1876, %v1693
    %1882 = vst.msk [vmem:[#allocation3 + $0x28] sm:$0xff] %vm1876, %v1695
    %1883 = vst.msk [vmem:[#allocation3 + $0x30] sm:$0xff] %vm1876, %v1697
    %1884 = vst.msk [vmem:[#allocation3 + $0x38] sm:$0xff] %vm1876, %v1699
    %1885 = vst.msk [vmem:[#allocation3 + $0x40] sm:$0xff] %vm1876, %v1701
    %1886 = vst.msk [vmem:[#allocation3 + $0x48] sm:$0xff] %vm1876, %v1703
    %1887 = vst.msk [vmem:[#allocation3 + $0x50] sm:$0xff] %vm1876, %v1705
    %1888 = vst.msk [vmem:[#allocation3 + $0x58] sm:$0xff] %vm1876, %v1707
    %1889 = vst.msk [vmem:[#allocation3 + $0x60] sm:$0xff] %vm1876, %v1709
    %1890 = vst.msk [vmem:[#allocation3 + $0x68] sm:$0xff] %vm1876, %v1711
    %1891 = vst.msk [vmem:[#allocation3 + $0x70] sm:$0xff] %vm1876, %v1713
    %1892 = vst.msk [vmem:[#allocation3 + $0x78] sm:$0xff] %vm1876, %v1715
    %1893 = vst.msk [vmem:[#allocation3 + $0x80] sm:$0xff] %vm1876, %v1717
    %1894 = vst.msk [vmem:[#allocation3 + $0x88] sm:$0xff] %vm1876, %v1719
    %1895 = vst.msk [vmem:[#allocation3 + $0x90] sm:$0xff] %vm1876, %v1721
    %1896 = vst.msk [vmem:[#allocation3 + $0x98] sm:$0xff] %vm1876, %v1723
    %1897 = vst.msk [vmem:[#allocation3 + $0xa0] sm:$0xff] %vm1876, %v1725
    %1898 = vst.msk [vmem:[#allocation3 + $0xa8] sm:$0xff] %vm1876, %v1727
    %1899 = vst.msk [vmem:[#allocation3 + $0xb0] sm:$0xff] %vm1876, %v1729
    %1900 = vst.msk [vmem:[#allocation3 + $0xb8] sm:$0xff] %vm1876, %v1731
    %1901 = vst.msk [vmem:[#allocation3 + $0xc0] sm:$0xff] %vm1876, %v1733
    %1902 = vst.msk [vmem:[#allocation3 + $0xc8] sm:$0xff] %vm1876, %v1735
    %1903 = vst.msk [vmem:[#allocation3 + $0xd0] sm:$0xff] %vm1876, %v1737
    %1904 = vst.msk [vmem:[#allocation3 + $0xd8] sm:$0xff] %vm1876, %v1739
    %1905 = vst.msk [vmem:[#allocation3 + $0xe0] sm:$0xff] %vm1876, %v1741
    %1906 = vst.msk [vmem:[#allocation3 + $0xe8] sm:$0xff] %vm1876, %v1743
    %1907 = vst.msk [vmem:[#allocation3 + $0xf0] sm:$0xff] %vm1876, %v1745
    %1908 = vst.msk [vmem:[#allocation3 + $0xf8] sm:$0xff] %vm1876, %v1747
    %1909 = vst.msk [vmem:[#allocation3 + $0x100] sm:$0xff] %vm1876, %v1749
    %1910 = vst.msk [vmem:[#allocation3 + $0x108] sm:$0xff] %vm1876, %v1751
    %1911 = vst.msk [vmem:[#allocation3 + $0x110] sm:$0xff] %vm1876, %v1753
    %1912 = vst.msk [vmem:[#allocation3 + $0x118] sm:$0xff] %vm1876, %v1755
    %1913 = vst.msk [vmem:[#allocation3 + $0x120] sm:$0xff] %vm1876, %v1757
    %1914 = vst.msk [vmem:[#allocation3 + $0x128] sm:$0xff] %vm1876, %v1759
    %1915 = vst.msk [vmem:[#allocation3 + $0x130] sm:$0xff] %vm1876, %v1761
    %1916 = vst.msk [vmem:[#allocation3 + $0x138] sm:$0xff] %vm1876, %v1763
    %1917 = vst.msk [vmem:[#allocation3 + $0x140] sm:$0xff] %vm1876, %v1765
    %1918 = vst.msk [vmem:[#allocation3 + $0x148] sm:$0xff] %vm1876, %v1767
    %1919 = vst.msk [vmem:[#allocation3 + $0x150] sm:$0xff] %vm1876, %v1769
    %1920 = vst.msk [vmem:[#allocation3 + $0x158] sm:$0xff] %vm1876, %v1771
    %1921 = vst.msk [vmem:[#allocation3 + $0x160] sm:$0xff] %vm1876, %v1773
    %1922 = vst.msk [vmem:[#allocation3 + $0x168] sm:$0xff] %vm1876, %v1775
    %1923 = vst.msk [vmem:[#allocation3 + $0x170] sm:$0xff] %vm1876, %v1777
    %1924 = vst.msk [vmem:[#allocation3 + $0x178] sm:$0xff] %vm1876, %v1779
    %1925 = vst.msk [vmem:[#allocation3 + $0x180] sm:$0xff] %vm1876, %v1781
    %1926 = vst.msk [vmem:[#allocation3 + $0x188] sm:$0xff] %vm1876, %v1783
    %1927 = vst.msk [vmem:[#allocation3 + $0x190] sm:$0xff] %vm1876, %v1785
    %1928 = vst.msk [vmem:[#allocation3 + $0x198] sm:$0xff] %vm1876, %v1787
    %1929 = vst.msk [vmem:[#allocation3 + $0x1a0] sm:$0xff] %vm1876, %v1789
    %1930 = vst.msk [vmem:[#allocation3 + $0x1a8] sm:$0xff] %vm1876, %v1791
    %1931 = vst.msk [vmem:[#allocation3 + $0x1b0] sm:$0xff] %vm1876, %v1793
    %1932 = vst.msk [vmem:[#allocation3 + $0x1b8] sm:$0xff] %vm1876, %v1795
    %1933 = vst.msk [vmem:[#allocation3 + $0x1c0] sm:$0xff] %vm1876, %v1797
    %1934 = vst.msk [vmem:[#allocation3 + $0x1c8] sm:$0xff] %vm1876, %v1799
    %1935 = vst.msk [vmem:[#allocation3 + $0x1d0] sm:$0xff] %vm1876, %v1801
    %1936 = vst.msk [vmem:[#allocation3 + $0x1d8] sm:$0xff] %vm1876, %v1803
    %1937 = vst.msk [vmem:[#allocation3 + $0x1e0] sm:$0xff] %vm1876, %v1805
    %1938 = vst.msk [vmem:[#allocation3 + $0x1e8] sm:$0xff] %vm1876, %v1807
    %1939 = vst.msk [vmem:[#allocation3 + $0x1f0] sm:$0xff] %vm1876, %v1809
    %1940 = vst.msk [vmem:[#allocation3 + $0x1f8] sm:$0xff] %vm1876, %v1811
    %v1941 = vld [vmem:[%s208 + $0x2] sm:$0xff]
    %v1942 = vld [vmem:[%s208 + $0xa] sm:$0xff]
    %v1943 = vld [vmem:[%s208 + $0x1a] sm:$0xff]
    %v1944 = vld [vmem:[%s208 + $0x22] sm:$0xff]
    %v1945 = vld [vmem:[%s208 + $0x32] sm:$0xff]
    %v1946 = vld [vmem:[%s208 + $0x3a] sm:$0xff]
    %v1947 = vld [vmem:[%s208 + $0x4a] sm:$0xff]
    %v1948 = vld [vmem:[%s208 + $0x52] sm:$0xff]
    %v1949 = vld [vmem:[%s208 + $0x62] sm:$0xff]
    %v1950 = vld [vmem:[%s208 + $0x6a] sm:$0xff]
    %v1951 = vld [vmem:[%s208 + $0x7a] sm:$0xff]
    %v1952 = vld [vmem:[%s208 + $0x82] sm:$0xff]
    %v1953 = vld [vmem:[%s208 + $0x92] sm:$0xff]
    %v1954 = vld [vmem:[%s208 + $0x9a] sm:$0xff]
    %v1955 = vld [vmem:[%s208 + $0xaa] sm:$0xff]
    %v1956 = vld [vmem:[%s208 + $0xb2] sm:$0xff]
    %v1957 = vld [vmem:[%s208 + $0xc2] sm:$0xff]
    %v1958 = vld [vmem:[%s208 + $0xca] sm:$0xff]
    %v1959 = vld [vmem:[%s208 + $0xda] sm:$0xff]
    %v1960 = vld [vmem:[%s208 + $0xe2] sm:$0xff]
    %v1961 = vld [vmem:[%s208 + $0xf2] sm:$0xff]
    %v1962 = vld [vmem:[%s208 + $0xfa] sm:$0xff]
    %v1963 = vld [vmem:[%s208 + $0x10a] sm:$0xff]
    %v1964 = vld [vmem:[%s208 + $0x112] sm:$0xff]
    %v1965 = vld [vmem:[%s208 + $0x122] sm:$0xff]
    %v1966 = vld [vmem:[%s208 + $0x12a] sm:$0xff]
    %v1967 = vld [vmem:[%s208 + $0x13a] sm:$0xff]
    %v1968 = vld [vmem:[%s208 + $0x142] sm:$0xff]
    %v1969 = vld [vmem:[%s208 + $0x152] sm:$0xff]
    %v1970 = vld [vmem:[%s208 + $0x15a] sm:$0xff]
    %v1971 = vld [vmem:[%s208 + $0x16a] sm:$0xff]
    %v1972 = vld [vmem:[%s208 + $0x172] sm:$0xff]
    %v1973 = vld [vmem:[%s208 + $0x1b2] sm:$0xff]
    %v1974 = vld [vmem:[%s208 + $0x1ba] sm:$0xff]
    %v1975 = vld [vmem:[%s208 + $0x1ca] sm:$0xff]
    %v1976 = vld [vmem:[%s208 + $0x1d2] sm:$0xff]
    %v1977 = vld [vmem:[%s208 + $0x1e2] sm:$0xff]
    %v1978 = vld [vmem:[%s208 + $0x1ea] sm:$0xff]
    %v1979 = vld [vmem:[%s208 + $0x1fa] sm:$0xff]
    %v1980 = vld [vmem:[%s208 + $0x202] sm:$0xff]
    %v1981 = vld [vmem:[%s208 + $0x212] sm:$0xff]
    %v1982 = vld [vmem:[%s208 + $0x21a] sm:$0xff]
    %v1983 = vld [vmem:[%s208 + $0x22a] sm:$0xff]
    %v1984 = vld [vmem:[%s208 + $0x232] sm:$0xff]
    %v1985 = vld [vmem:[%s208 + $0x242] sm:$0xff]
    %v1986 = vld [vmem:[%s208 + $0x24a] sm:$0xff]
    %v1987 = vld [vmem:[%s208 + $0x25a] sm:$0xff]
    %v1988 = vld [vmem:[%s208 + $0x262] sm:$0xff]
    %v1989 = vld [vmem:[%s208 + $0x272] sm:$0xff]
    %v1990 = vld [vmem:[%s208 + $0x27a] sm:$0xff]
    %v1991 = vld [vmem:[%s208 + $0x28a] sm:$0xff]
    %v1992 = vld [vmem:[%s208 + $0x292] sm:$0xff]
    %v1993 = vld [vmem:[%s208 + $0x2a2] sm:$0xff]
    %v1994 = vld [vmem:[%s208 + $0x2aa] sm:$0xff]
    %v1995 = vld [vmem:[%s208 + $0x2ba] sm:$0xff]
    %v1996 = vld [vmem:[%s208 + $0x2c2] sm:$0xff]
    %v1997 = vld [vmem:[%s208 + $0x2d2] sm:$0xff]
    %v1998 = vld [vmem:[%s208 + $0x2da] sm:$0xff]
    %v1999 = vld [vmem:[%s208 + $0x2ea] sm:$0xff]
    %v2000 = vld [vmem:[%s208 + $0x2f2] sm:$0xff]
    %v2001 = vld [vmem:[%s208 + $0x302] sm:$0xff]
    %v2002 = vld [vmem:[%s208 + $0x30a] sm:$0xff]
    %v2003 = vld [vmem:[%s208 + $0x31a] sm:$0xff]
    %v2004 = vld [vmem:[%s208 + $0x322] sm:$0xff]
    %2069 = vrot.lane.b32.xlu0 %v1941, 20
    %v2070 = vpop.permute.xlu0 %2069
    %2071 = vrot.lane.b32.xlu0 %v1942, 20
    %v2072 = vpop.permute.xlu0 %2071
    %2073 = vrot.lane.b32.xlu0 %v1943, 20
    %v2074 = vpop.permute.xlu0 %2073
    %2075 = vrot.lane.b32.xlu0 %v1944, 20
    %v2076 = vpop.permute.xlu0 %2075
    %2077 = vrot.lane.b32.xlu0 %v1945, 20
    %v2078 = vpop.permute.xlu0 %2077
    %2079 = vrot.lane.b32.xlu0 %v1946, 20
    %v2080 = vpop.permute.xlu0 %2079
    %2081 = vrot.lane.b32.xlu0 %v1947, 20
    %v2082 = vpop.permute.xlu0 %2081
    %2083 = vrot.lane.b32.xlu0 %v1948, 20
    %v2084 = vpop.permute.xlu0 %2083
    %2085 = vrot.lane.b32.xlu0 %v1949, 20
    %v2086 = vpop.permute.xlu0 %2085
    %2087 = vrot.lane.b32.xlu0 %v1950, 20
    %v2088 = vpop.permute.xlu0 %2087
    %2089 = vrot.lane.b32.xlu0 %v1951, 20
    %v2090 = vpop.permute.xlu0 %2089
    %2091 = vrot.lane.b32.xlu0 %v1952, 20
    %v2092 = vpop.permute.xlu0 %2091
    %2093 = vrot.lane.b32.xlu0 %v1953, 20
    %v2094 = vpop.permute.xlu0 %2093
    %2095 = vrot.lane.b32.xlu0 %v1954, 20
    %v2096 = vpop.permute.xlu0 %2095
    %2097 = vrot.lane.b32.xlu0 %v1955, 20
    %v2098 = vpop.permute.xlu0 %2097
    %2099 = vrot.lane.b32.xlu0 %v1956, 20
    %v2100 = vpop.permute.xlu0 %2099
    %2101 = vrot.lane.b32.xlu0 %v1957, 20
    %v2102 = vpop.permute.xlu0 %2101
    %2103 = vrot.lane.b32.xlu0 %v1958, 20
    %v2104 = vpop.permute.xlu0 %2103
    %2105 = vrot.lane.b32.xlu0 %v1959, 20
    %v2106 = vpop.permute.xlu0 %2105
    %2107 = vrot.lane.b32.xlu0 %v1960, 20
    %v2108 = vpop.permute.xlu0 %2107
    %2109 = vrot.lane.b32.xlu0 %v1961, 20
    %v2110 = vpop.permute.xlu0 %2109
    %2111 = vrot.lane.b32.xlu0 %v1962, 20
    %v2112 = vpop.permute.xlu0 %2111
    %2113 = vrot.lane.b32.xlu0 %v1963, 20
    %v2114 = vpop.permute.xlu0 %2113
    %2115 = vrot.lane.b32.xlu0 %v1964, 20
    %v2116 = vpop.permute.xlu0 %2115
    %2117 = vrot.lane.b32.xlu0 %v1965, 20
    %v2118 = vpop.permute.xlu0 %2117
    %2119 = vrot.lane.b32.xlu0 %v1966, 20
    %v2120 = vpop.permute.xlu0 %2119
    %2121 = vrot.lane.b32.xlu0 %v1967, 20
    %v2122 = vpop.permute.xlu0 %2121
    %2123 = vrot.lane.b32.xlu0 %v1968, 20
    %v2124 = vpop.permute.xlu0 %2123
    %2125 = vrot.lane.b32.xlu0 %v1969, 20
    %v2126 = vpop.permute.xlu0 %2125
    %2127 = vrot.lane.b32.xlu0 %v1970, 20
    %v2128 = vpop.permute.xlu0 %2127
    %2129 = vrot.lane.b32.xlu0 %v1971, 20
    %v2130 = vpop.permute.xlu0 %2129
    %2131 = vrot.lane.b32.xlu0 %v1972, 20
    %v2132 = vpop.permute.xlu0 %2131
    %2133 = vrot.lane.b32.xlu0 %v1973, 20
    %v2134 = vpop.permute.xlu0 %2133
    %2135 = vrot.lane.b32.xlu0 %v1974, 20
    %v2136 = vpop.permute.xlu0 %2135
    %2137 = vrot.lane.b32.xlu0 %v1975, 20
    %v2138 = vpop.permute.xlu0 %2137
    %2139 = vrot.lane.b32.xlu0 %v1976, 20
    %v2140 = vpop.permute.xlu0 %2139
    %2141 = vrot.lane.b32.xlu0 %v1977, 20
    %v2142 = vpop.permute.xlu0 %2141
    %2143 = vrot.lane.b32.xlu0 %v1978, 20
    %v2144 = vpop.permute.xlu0 %2143
    %2145 = vrot.lane.b32.xlu0 %v1979, 20
    %v2146 = vpop.permute.xlu0 %2145
    %2147 = vrot.lane.b32.xlu0 %v1980, 20
    %v2148 = vpop.permute.xlu0 %2147
    %2149 = vrot.lane.b32.xlu0 %v1981, 20
    %v2150 = vpop.permute.xlu0 %2149
    %2151 = vrot.lane.b32.xlu0 %v1982, 20
    %v2152 = vpop.permute.xlu0 %2151
    %2153 = vrot.lane.b32.xlu0 %v1983, 20
    %v2154 = vpop.permute.xlu0 %2153
    %2155 = vrot.lane.b32.xlu0 %v1984, 20
    %v2156 = vpop.permute.xlu0 %2155
    %2157 = vrot.lane.b32.xlu0 %v1985, 20
    %v2158 = vpop.permute.xlu0 %2157
    %2159 = vrot.lane.b32.xlu0 %v1986, 20
    %v2160 = vpop.permute.xlu0 %2159
    %2161 = vrot.lane.b32.xlu0 %v1987, 20
    %v2162 = vpop.permute.xlu0 %2161
    %2163 = vrot.lane.b32.xlu0 %v1988, 20
    %v2164 = vpop.permute.xlu0 %2163
    %2165 = vrot.lane.b32.xlu0 %v1989, 20
    %v2166 = vpop.permute.xlu0 %2165
    %2167 = vrot.lane.b32.xlu0 %v1990, 20
    %v2168 = vpop.permute.xlu0 %2167
    %2169 = vrot.lane.b32.xlu0 %v1991, 20
    %v2170 = vpop.permute.xlu0 %2169
    %2171 = vrot.lane.b32.xlu0 %v1992, 20
    %v2172 = vpop.permute.xlu0 %2171
    %2173 = vrot.lane.b32.xlu0 %v1993, 20
    %v2174 = vpop.permute.xlu0 %2173
    %2175 = vrot.lane.b32.xlu0 %v1994, 20
    %v2176 = vpop.permute.xlu0 %2175
    %2177 = vrot.lane.b32.xlu0 %v1995, 20
    %v2178 = vpop.permute.xlu0 %2177
    %2179 = vrot.lane.b32.xlu0 %v1996, 20
    %v2180 = vpop.permute.xlu0 %2179
    %2181 = vrot.lane.b32.xlu0 %v1997, 20
    %v2182 = vpop.permute.xlu0 %2181
    %2183 = vrot.lane.b32.xlu0 %v1998, 20
    %v2184 = vpop.permute.xlu0 %2183
    %2185 = vrot.lane.b32.xlu0 %v1999, 20
    %v2186 = vpop.permute.xlu0 %2185
    %2187 = vrot.lane.b32.xlu0 %v2000, 20
    %v2188 = vpop.permute.xlu0 %2187
    %2189 = vrot.lane.b32.xlu0 %v2001, 20
    %v2190 = vpop.permute.xlu0 %2189
    %2191 = vrot.lane.b32.xlu0 %v2002, 20
    %v2192 = vpop.permute.xlu0 %2191
    %2193 = vrot.lane.b32.xlu0 %v2003, 20
    %v2194 = vpop.permute.xlu0 %2193
    %2195 = vrot.lane.b32.xlu0 %v2004, 20
    %v2196 = vpop.permute.xlu0 %2195
    %vm2261 = vcmask 195744
    %2262 = vst.msk [vmem:[#allocation3] sm:$0xff] %vm2261, %v2070
    %2263 = vst.msk [vmem:[#allocation3 + $0x8] sm:$0xff] %vm2261, %v2072
    %2264 = vst.msk [vmem:[#allocation3 + $0x10] sm:$0xff] %vm2261, %v2074
    %2265 = vst.msk [vmem:[#allocation3 + $0x18] sm:$0xff] %vm2261, %v2076
    %2266 = vst.msk [vmem:[#allocation3 + $0x20] sm:$0xff] %vm2261, %v2078
    %2267 = vst.msk [vmem:[#allocation3 + $0x28] sm:$0xff] %vm2261, %v2080
    %2268 = vst.msk [vmem:[#allocation3 + $0x30] sm:$0xff] %vm2261, %v2082
    %2269 = vst.msk [vmem:[#allocation3 + $0x38] sm:$0xff] %vm2261, %v2084
    %2270 = vst.msk [vmem:[#allocation3 + $0x40] sm:$0xff] %vm2261, %v2086
    %2271 = vst.msk [vmem:[#allocation3 + $0x48] sm:$0xff] %vm2261, %v2088
    %2272 = vst.msk [vmem:[#allocation3 + $0x50] sm:$0xff] %vm2261, %v2090
    %2273 = vst.msk [vmem:[#allocation3 + $0x58] sm:$0xff] %vm2261, %v2092
    %2274 = vst.msk [vmem:[#allocation3 + $0x60] sm:$0xff] %vm2261, %v2094
    %2275 = vst.msk [vmem:[#allocation3 + $0x68] sm:$0xff] %vm2261, %v2096
    %2276 = vst.msk [vmem:[#allocation3 + $0x70] sm:$0xff] %vm2261, %v2098
    %2277 = vst.msk [vmem:[#allocation3 + $0x78] sm:$0xff] %vm2261, %v2100
    %2278 = vst.msk [vmem:[#allocation3 + $0x80] sm:$0xff] %vm2261, %v2102
    %2279 = vst.msk [vmem:[#allocation3 + $0x88] sm:$0xff] %vm2261, %v2104
    %2280 = vst.msk [vmem:[#allocation3 + $0x90] sm:$0xff] %vm2261, %v2106
    %2281 = vst.msk [vmem:[#allocation3 + $0x98] sm:$0xff] %vm2261, %v2108
    %2282 = vst.msk [vmem:[#allocation3 + $0xa0] sm:$0xff] %vm2261, %v2110
    %2283 = vst.msk [vmem:[#allocation3 + $0xa8] sm:$0xff] %vm2261, %v2112
    %2284 = vst.msk [vmem:[#allocation3 + $0xb0] sm:$0xff] %vm2261, %v2114
    %2285 = vst.msk [vmem:[#allocation3 + $0xb8] sm:$0xff] %vm2261, %v2116
    %2286 = vst.msk [vmem:[#allocation3 + $0xc0] sm:$0xff] %vm2261, %v2118
    %2287 = vst.msk [vmem:[#allocation3 + $0xc8] sm:$0xff] %vm2261, %v2120
    %2288 = vst.msk [vmem:[#allocation3 + $0xd0] sm:$0xff] %vm2261, %v2122
    %2289 = vst.msk [vmem:[#allocation3 + $0xd8] sm:$0xff] %vm2261, %v2124
    %2290 = vst.msk [vmem:[#allocation3 + $0xe0] sm:$0xff] %vm2261, %v2126
    %2291 = vst.msk [vmem:[#allocation3 + $0xe8] sm:$0xff] %vm2261, %v2128
    %2292 = vst.msk [vmem:[#allocation3 + $0xf0] sm:$0xff] %vm2261, %v2130
    %2293 = vst.msk [vmem:[#allocation3 + $0xf8] sm:$0xff] %vm2261, %v2132
    %2294 = vst.msk [vmem:[#allocation3 + $0x100] sm:$0xff] %vm2261, %v2134
    %2295 = vst.msk [vmem:[#allocation3 + $0x108] sm:$0xff] %vm2261, %v2136
    %2296 = vst.msk [vmem:[#allocation3 + $0x110] sm:$0xff] %vm2261, %v2138
    %2297 = vst.msk [vmem:[#allocation3 + $0x118] sm:$0xff] %vm2261, %v2140
    %2298 = vst.msk [vmem:[#allocation3 + $0x120] sm:$0xff] %vm2261, %v2142
    %2299 = vst.msk [vmem:[#allocation3 + $0x128] sm:$0xff] %vm2261, %v2144
    %2300 = vst.msk [vmem:[#allocation3 + $0x130] sm:$0xff] %vm2261, %v2146
    %2301 = vst.msk [vmem:[#allocation3 + $0x138] sm:$0xff] %vm2261, %v2148
    %2302 = vst.msk [vmem:[#allocation3 + $0x140] sm:$0xff] %vm2261, %v2150
    %2303 = vst.msk [vmem:[#allocation3 + $0x148] sm:$0xff] %vm2261, %v2152
    %2304 = vst.msk [vmem:[#allocation3 + $0x150] sm:$0xff] %vm2261, %v2154
    %2305 = vst.msk [vmem:[#allocation3 + $0x158] sm:$0xff] %vm2261, %v2156
    %2306 = vst.msk [vmem:[#allocation3 + $0x160] sm:$0xff] %vm2261, %v2158
    %2307 = vst.msk [vmem:[#allocation3 + $0x168] sm:$0xff] %vm2261, %v2160
    %2308 = vst.msk [vmem:[#allocation3 + $0x170] sm:$0xff] %vm2261, %v2162
    %2309 = vst.msk [vmem:[#allocation3 + $0x178] sm:$0xff] %vm2261, %v2164
    %2310 = vst.msk [vmem:[#allocation3 + $0x180] sm:$0xff] %vm2261, %v2166
    %2311 = vst.msk [vmem:[#allocation3 + $0x188] sm:$0xff] %vm2261, %v2168
    %2312 = vst.msk [vmem:[#allocation3 + $0x190] sm:$0xff] %vm2261, %v2170
    %2313 = vst.msk [vmem:[#allocation3 + $0x198] sm:$0xff] %vm2261, %v2172
    %2314 = vst.msk [vmem:[#allocation3 + $0x1a0] sm:$0xff] %vm2261, %v2174
    %2315 = vst.msk [vmem:[#allocation3 + $0x1a8] sm:$0xff] %vm2261, %v2176
    %2316 = vst.msk [vmem:[#allocation3 + $0x1b0] sm:$0xff] %vm2261, %v2178
    %2317 = vst.msk [vmem:[#allocation3 + $0x1b8] sm:$0xff] %vm2261, %v2180
    %2318 = vst.msk [vmem:[#allocation3 + $0x1c0] sm:$0xff] %vm2261, %v2182
    %2319 = vst.msk [vmem:[#allocation3 + $0x1c8] sm:$0xff] %vm2261, %v2184
    %2320 = vst.msk [vmem:[#allocation3 + $0x1d0] sm:$0xff] %vm2261, %v2186
    %2321 = vst.msk [vmem:[#allocation3 + $0x1d8] sm:$0xff] %vm2261, %v2188
    %2322 = vst.msk [vmem:[#allocation3 + $0x1e0] sm:$0xff] %vm2261, %v2190
    %2323 = vst.msk [vmem:[#allocation3 + $0x1e8] sm:$0xff] %vm2261, %v2192
    %2324 = vst.msk [vmem:[#allocation3 + $0x1f0] sm:$0xff] %vm2261, %v2194
    %2325 = vst.msk [vmem:[#allocation3 + $0x1f8] sm:$0xff] %vm2261, %v2196
    %s2326 = scalar_lea.vmem [#allocation2], 48
    %v2327 = vld [vmem:[%s2326] sm:$0xff]
    %v2328 = vld [vmem:[%s2326 + $0x8] sm:$0xff]
    %v2329 = vld [vmem:[%s2326 + $0x18] sm:$0xff]
    %v2330 = vld [vmem:[%s2326 + $0x20] sm:$0xff]
    %v2331 = vld [vmem:[%s2326 + $0x30] sm:$0xff]
    %v2332 = vld [vmem:[%s2326 + $0x38] sm:$0xff]
    %v2333 = vld [vmem:[%s2326 + $0x48] sm:$0xff]
    %v2334 = vld [vmem:[%s2326 + $0x50] sm:$0xff]
    %v2335 = vld [vmem:[%s2326 + $0x60] sm:$0xff]
    %v2336 = vld [vmem:[%s2326 + $0x68] sm:$0xff]
    %v2337 = vld [vmem:[%s2326 + $0x78] sm:$0xff]
    %v2338 = vld [vmem:[%s2326 + $0x80] sm:$0xff]
    %v2339 = vld [vmem:[%s2326 + $0x90] sm:$0xff]
    %v2340 = vld [vmem:[%s2326 + $0x98] sm:$0xff]
    %v2341 = vld [vmem:[%s2326 + $0xa8] sm:$0xff]
    %v2342 = vld [vmem:[%s2326 + $0xb0] sm:$0xff]
    %v2343 = vld [vmem:[%s2326 + $0xc0] sm:$0xff]
    %v2344 = vld [vmem:[%s2326 + $0xc8] sm:$0xff]
    %v2345 = vld [vmem:[%s2326 + $0xd8] sm:$0xff]
    %v2346 = vld [vmem:[%s2326 + $0xe0] sm:$0xff]
    %v2347 = vld [vmem:[%s2326 + $0xf0] sm:$0xff]
    %v2348 = vld [vmem:[%s2326 + $0xf8] sm:$0xff]
    %v2349 = vld [vmem:[%s2326 + $0x108] sm:$0xff]
    %v2350 = vld [vmem:[%s2326 + $0x110] sm:$0xff]
    %v2351 = vld [vmem:[%s2326 + $0x120] sm:$0xff]
    %v2352 = vld [vmem:[%s2326 + $0x128] sm:$0xff]
    %v2353 = vld [vmem:[%s2326 + $0x138] sm:$0xff]
    %v2354 = vld [vmem:[%s2326 + $0x140] sm:$0xff]
    %v2355 = vld [vmem:[%s2326 + $0x150] sm:$0xff]
    %v2356 = vld [vmem:[%s2326 + $0x158] sm:$0xff]
    %v2357 = vld [vmem:[%s2326 + $0x168] sm:$0xff]
    %v2358 = vld [vmem:[%s2326 + $0x170] sm:$0xff]
    %v2359 = vld [vmem:[%s2326 + $0x1b0] sm:$0xff]
    %v2360 = vld [vmem:[%s2326 + $0x1b8] sm:$0xff]
    %v2361 = vld [vmem:[%s2326 + $0x1c8] sm:$0xff]
    %v2362 = vld [vmem:[%s2326 + $0x1d0] sm:$0xff]
    %v2363 = vld [vmem:[%s2326 + $0x1e0] sm:$0xff]
    %v2364 = vld [vmem:[%s2326 + $0x1e8] sm:$0xff]
    %v2365 = vld [vmem:[%s2326 + $0x1f8] sm:$0xff]
    %v2366 = vld [vmem:[%s2326 + $0x200] sm:$0xff]
    %v2367 = vld [vmem:[%s2326 + $0x210] sm:$0xff]
    %v2368 = vld [vmem:[%s2326 + $0x218] sm:$0xff]
    %v2369 = vld [vmem:[%s2326 + $0x228] sm:$0xff]
    %v2370 = vld [vmem:[%s2326 + $0x230] sm:$0xff]
    %v2371 = vld [vmem:[%s2326 + $0x240] sm:$0xff]
    %v2372 = vld [vmem:[%s2326 + $0x248] sm:$0xff]
    %v2373 = vld [vmem:[%s2326 + $0x258] sm:$0xff]
    %v2374 = vld [vmem:[%s2326 + $0x260] sm:$0xff]
    %v2375 = vld [vmem:[%s2326 + $0x270] sm:$0xff]
    %v2376 = vld [vmem:[%s2326 + $0x278] sm:$0xff]
    %v2377 = vld [vmem:[%s2326 + $0x288] sm:$0xff]
    %v2378 = vld [vmem:[%s2326 + $0x290] sm:$0xff]
    %v2379 = vld [vmem:[%s2326 + $0x2a0] sm:$0xff]
    %v2380 = vld [vmem:[%s2326 + $0x2a8] sm:$0xff]
    %v2381 = vld [vmem:[%s2326 + $0x2b8] sm:$0xff]
    %v2382 = vld [vmem:[%s2326 + $0x2c0] sm:$0xff]
    %v2383 = vld [vmem:[%s2326 + $0x2d0] sm:$0xff]
    %v2384 = vld [vmem:[%s2326 + $0x2d8] sm:$0xff]
    %v2385 = vld [vmem:[%s2326 + $0x2e8] sm:$0xff]
    %v2386 = vld [vmem:[%s2326 + $0x2f0] sm:$0xff]
    %v2387 = vld [vmem:[%s2326 + $0x300] sm:$0xff]
    %v2388 = vld [vmem:[%s2326 + $0x308] sm:$0xff]
    %v2389 = vld [vmem:[%s2326 + $0x318] sm:$0xff]
    %v2390 = vld [vmem:[%s2326 + $0x320] sm:$0xff]
    %2455 = vrot.lane.b32.xlu0 %v2327, 24
    %v2456 = vpop.permute.xlu0 %2455
    %2457 = vrot.lane.b32.xlu0 %v2328, 24
    %v2458 = vpop.permute.xlu0 %2457
    %2459 = vrot.lane.b32.xlu0 %v2329, 24
    %v2460 = vpop.permute.xlu0 %2459
    %2461 = vrot.lane.b32.xlu0 %v2330, 24
    %v2462 = vpop.permute.xlu0 %2461
    %2463 = vrot.lane.b32.xlu0 %v2331, 24
    %v2464 = vpop.permute.xlu0 %2463
    %2465 = vrot.lane.b32.xlu0 %v2332, 24
    %v2466 = vpop.permute.xlu0 %2465
    %2467 = vrot.lane.b32.xlu0 %v2333, 24
    %v2468 = vpop.permute.xlu0 %2467
    %2469 = vrot.lane.b32.xlu0 %v2334, 24
    %v2470 = vpop.permute.xlu0 %2469
    %2471 = vrot.lane.b32.xlu0 %v2335, 24
    %v2472 = vpop.permute.xlu0 %2471
    %2473 = vrot.lane.b32.xlu0 %v2336, 24
    %v2474 = vpop.permute.xlu0 %2473
    %2475 = vrot.lane.b32.xlu0 %v2337, 24
    %v2476 = vpop.permute.xlu0 %2475
    %2477 = vrot.lane.b32.xlu0 %v2338, 24
    %v2478 = vpop.permute.xlu0 %2477
    %2479 = vrot.lane.b32.xlu0 %v2339, 24
    %v2480 = vpop.permute.xlu0 %2479
    %2481 = vrot.lane.b32.xlu0 %v2340, 24
    %v2482 = vpop.permute.xlu0 %2481
    %2483 = vrot.lane.b32.xlu0 %v2341, 24
    %v2484 = vpop.permute.xlu0 %2483
    %2485 = vrot.lane.b32.xlu0 %v2342, 24
    %v2486 = vpop.permute.xlu0 %2485
    %2487 = vrot.lane.b32.xlu0 %v2343, 24
    %v2488 = vpop.permute.xlu0 %2487
    %2489 = vrot.lane.b32.xlu0 %v2344, 24
    %v2490 = vpop.permute.xlu0 %2489
    %2491 = vrot.lane.b32.xlu0 %v2345, 24
    %v2492 = vpop.permute.xlu0 %2491
    %2493 = vrot.lane.b32.xlu0 %v2346, 24
    %v2494 = vpop.permute.xlu0 %2493
    %2495 = vrot.lane.b32.xlu0 %v2347, 24
    %v2496 = vpop.permute.xlu0 %2495
    %2497 = vrot.lane.b32.xlu0 %v2348, 24
    %v2498 = vpop.permute.xlu0 %2497
    %2499 = vrot.lane.b32.xlu0 %v2349, 24
    %v2500 = vpop.permute.xlu0 %2499
    %2501 = vrot.lane.b32.xlu0 %v2350, 24
    %v2502 = vpop.permute.xlu0 %2501
    %2503 = vrot.lane.b32.xlu0 %v2351, 24
    %v2504 = vpop.permute.xlu0 %2503
    %2505 = vrot.lane.b32.xlu0 %v2352, 24
    %v2506 = vpop.permute.xlu0 %2505
    %2507 = vrot.lane.b32.xlu0 %v2353, 24
    %v2508 = vpop.permute.xlu0 %2507
    %2509 = vrot.lane.b32.xlu0 %v2354, 24
    %v2510 = vpop.permute.xlu0 %2509
    %2511 = vrot.lane.b32.xlu0 %v2355, 24
    %v2512 = vpop.permute.xlu0 %2511
    %2513 = vrot.lane.b32.xlu0 %v2356, 24
    %v2514 = vpop.permute.xlu0 %2513
    %2515 = vrot.lane.b32.xlu0 %v2357, 24
    %v2516 = vpop.permute.xlu0 %2515
    %2517 = vrot.lane.b32.xlu0 %v2358, 24
    %v2518 = vpop.permute.xlu0 %2517
    %2519 = vrot.lane.b32.xlu0 %v2359, 24
    %v2520 = vpop.permute.xlu0 %2519
    %2521 = vrot.lane.b32.xlu0 %v2360, 24
    %v2522 = vpop.permute.xlu0 %2521
    %2523 = vrot.lane.b32.xlu0 %v2361, 24
    %v2524 = vpop.permute.xlu0 %2523
    %2525 = vrot.lane.b32.xlu0 %v2362, 24
    %v2526 = vpop.permute.xlu0 %2525
    %2527 = vrot.lane.b32.xlu0 %v2363, 24
    %v2528 = vpop.permute.xlu0 %2527
    %2529 = vrot.lane.b32.xlu0 %v2364, 24
    %v2530 = vpop.permute.xlu0 %2529
    %2531 = vrot.lane.b32.xlu0 %v2365, 24
    %v2532 = vpop.permute.xlu0 %2531
    %2533 = vrot.lane.b32.xlu0 %v2366, 24
    %v2534 = vpop.permute.xlu0 %2533
    %2535 = vrot.lane.b32.xlu0 %v2367, 24
    %v2536 = vpop.permute.xlu0 %2535
    %2537 = vrot.lane.b32.xlu0 %v2368, 24
    %v2538 = vpop.permute.xlu0 %2537
    %2539 = vrot.lane.b32.xlu0 %v2369, 24
    %v2540 = vpop.permute.xlu0 %2539
    %2541 = vrot.lane.b32.xlu0 %v2370, 24
    %v2542 = vpop.permute.xlu0 %2541
    %2543 = vrot.lane.b32.xlu0 %v2371, 24
    %v2544 = vpop.permute.xlu0 %2543
    %2545 = vrot.lane.b32.xlu0 %v2372, 24
    %v2546 = vpop.permute.xlu0 %2545
    %2547 = vrot.lane.b32.xlu0 %v2373, 24
    %v2548 = vpop.permute.xlu0 %2547
    %2549 = vrot.lane.b32.xlu0 %v2374, 24
    %v2550 = vpop.permute.xlu0 %2549
    %2551 = vrot.lane.b32.xlu0 %v2375, 24
    %v2552 = vpop.permute.xlu0 %2551
    %2553 = vrot.lane.b32.xlu0 %v2376, 24
    %v2554 = vpop.permute.xlu0 %2553
    %2555 = vrot.lane.b32.xlu0 %v2377, 24
    %v2556 = vpop.permute.xlu0 %2555
    %2557 = vrot.lane.b32.xlu0 %v2378, 24
    %v2558 = vpop.permute.xlu0 %2557
    %2559 = vrot.lane.b32.xlu0 %v2379, 24
    %v2560 = vpop.permute.xlu0 %2559
    %2561 = vrot.lane.b32.xlu0 %v2380, 24
    %v2562 = vpop.permute.xlu0 %2561
    %2563 = vrot.lane.b32.xlu0 %v2381, 24
    %v2564 = vpop.permute.xlu0 %2563
    %2565 = vrot.lane.b32.xlu0 %v2382, 24
    %v2566 = vpop.permute.xlu0 %2565
    %2567 = vrot.lane.b32.xlu0 %v2383, 24
    %v2568 = vpop.permute.xlu0 %2567
    %2569 = vrot.lane.b32.xlu0 %v2384, 24
    %v2570 = vpop.permute.xlu0 %2569
    %2571 = vrot.lane.b32.xlu0 %v2385, 24
    %v2572 = vpop.permute.xlu0 %2571
    %2573 = vrot.lane.b32.xlu0 %v2386, 24
    %v2574 = vpop.permute.xlu0 %2573
    %2575 = vrot.lane.b32.xlu0 %v2387, 24
    %v2576 = vpop.permute.xlu0 %2575
    %2577 = vrot.lane.b32.xlu0 %v2388, 24
    %v2578 = vpop.permute.xlu0 %2577
    %2579 = vrot.lane.b32.xlu0 %v2389, 24
    %v2580 = vpop.permute.xlu0 %2579
    %2581 = vrot.lane.b32.xlu0 %v2390, 24
    %v2582 = vpop.permute.xlu0 %2581
    %vm2647 = vcmask 228544
    %2648 = vst.msk [vmem:[#allocation3] sm:$0xff] %vm2647, %v2456
    %2649 = vst.msk [vmem:[#allocation3 + $0x8] sm:$0xff] %vm2647, %v2458
    %2650 = vst.msk [vmem:[#allocation3 + $0x10] sm:$0xff] %vm2647, %v2460
    %2651 = vst.msk [vmem:[#allocation3 + $0x18] sm:$0xff] %vm2647, %v2462
    %2652 = vst.msk [vmem:[#allocation3 + $0x20] sm:$0xff] %vm2647, %v2464
    %2653 = vst.msk [vmem:[#allocation3 + $0x28] sm:$0xff] %vm2647, %v2466
    %2654 = vst.msk [vmem:[#allocation3 + $0x30] sm:$0xff] %vm2647, %v2468
    %2655 = vst.msk [vmem:[#allocation3 + $0x38] sm:$0xff] %vm2647, %v2470
    %2656 = vst.msk [vmem:[#allocation3 + $0x40] sm:$0xff] %vm2647, %v2472
    %2657 = vst.msk [vmem:[#allocation3 + $0x48] sm:$0xff] %vm2647, %v2474
    %2658 = vst.msk [vmem:[#allocation3 + $0x50] sm:$0xff] %vm2647, %v2476
    %2659 = vst.msk [vmem:[#allocation3 + $0x58] sm:$0xff] %vm2647, %v2478
    %2660 = vst.msk [vmem:[#allocation3 + $0x60] sm:$0xff] %vm2647, %v2480
    %2661 = vst.msk [vmem:[#allocation3 + $0x68] sm:$0xff] %vm2647, %v2482
    %2662 = vst.msk [vmem:[#allocation3 + $0x70] sm:$0xff] %vm2647, %v2484
    %2663 = vst.msk [vmem:[#allocation3 + $0x78] sm:$0xff] %vm2647, %v2486
    %2664 = vst.msk [vmem:[#allocation3 + $0x80] sm:$0xff] %vm2647, %v2488
    %2665 = vst.msk [vmem:[#allocation3 + $0x88] sm:$0xff] %vm2647, %v2490
    %2666 = vst.msk [vmem:[#allocation3 + $0x90] sm:$0xff] %vm2647, %v2492
    %2667 = vst.msk [vmem:[#allocation3 + $0x98] sm:$0xff] %vm2647, %v2494
    %2668 = vst.msk [vmem:[#allocation3 + $0xa0] sm:$0xff] %vm2647, %v2496
    %2669 = vst.msk [vmem:[#allocation3 + $0xa8] sm:$0xff] %vm2647, %v2498
    %2670 = vst.msk [vmem:[#allocation3 + $0xb0] sm:$0xff] %vm2647, %v2500
    %2671 = vst.msk [vmem:[#allocation3 + $0xb8] sm:$0xff] %vm2647, %v2502
    %2672 = vst.msk [vmem:[#allocation3 + $0xc0] sm:$0xff] %vm2647, %v2504
    %2673 = vst.msk [vmem:[#allocation3 + $0xc8] sm:$0xff] %vm2647, %v2506
    %2674 = vst.msk [vmem:[#allocation3 + $0xd0] sm:$0xff] %vm2647, %v2508
    %2675 = vst.msk [vmem:[#allocation3 + $0xd8] sm:$0xff] %vm2647, %v2510
    %2676 = vst.msk [vmem:[#allocation3 + $0xe0] sm:$0xff] %vm2647, %v2512
    %2677 = vst.msk [vmem:[#allocation3 + $0xe8] sm:$0xff] %vm2647, %v2514
    %2678 = vst.msk [vmem:[#allocation3 + $0xf0] sm:$0xff] %vm2647, %v2516
    %2679 = vst.msk [vmem:[#allocation3 + $0xf8] sm:$0xff] %vm2647, %v2518
    %2680 = vst.msk [vmem:[#allocation3 + $0x100] sm:$0xff] %vm2647, %v2520
    %2681 = vst.msk [vmem:[#allocation3 + $0x108] sm:$0xff] %vm2647, %v2522
    %2682 = vst.msk [vmem:[#allocation3 + $0x110] sm:$0xff] %vm2647, %v2524
    %2683 = vst.msk [vmem:[#allocation3 + $0x118] sm:$0xff] %vm2647, %v2526
    %2684 = vst.msk [vmem:[#allocation3 + $0x120] sm:$0xff] %vm2647, %v2528
    %2685 = vst.msk [vmem:[#allocation3 + $0x128] sm:$0xff] %vm2647, %v2530
    %2686 = vst.msk [vmem:[#allocation3 + $0x130] sm:$0xff] %vm2647, %v2532
    %2687 = vst.msk [vmem:[#allocation3 + $0x138] sm:$0xff] %vm2647, %v2534
    %2688 = vst.msk [vmem:[#allocation3 + $0x140] sm:$0xff] %vm2647, %v2536
    %2689 = vst.msk [vmem:[#allocation3 + $0x148] sm:$0xff] %vm2647, %v2538
    %2690 = vst.msk [vmem:[#allocation3 + $0x150] sm:$0xff] %vm2647, %v2540
    %2691 = vst.msk [vmem:[#allocation3 + $0x158] sm:$0xff] %vm2647, %v2542
    %2692 = vst.msk [vmem:[#allocation3 + $0x160] sm:$0xff] %vm2647, %v2544
    %2693 = vst.msk [vmem:[#allocation3 + $0x168] sm:$0xff] %vm2647, %v2546
    %2694 = vst.msk [vmem:[#allocation3 + $0x170] sm:$0xff] %vm2647, %v2548
    %2695 = vst.msk [vmem:[#allocation3 + $0x178] sm:$0xff] %vm2647, %v2550
    %2696 = vst.msk [vmem:[#allocation3 + $0x180] sm:$0xff] %vm2647, %v2552
    %2697 = vst.msk [vmem:[#allocation3 + $0x188] sm:$0xff] %vm2647, %v2554
    %2698 = vst.msk [vmem:[#allocation3 + $0x190] sm:$0xff] %vm2647, %v2556
    %2699 = vst.msk [vmem:[#allocation3 + $0x198] sm:$0xff] %vm2647, %v2558
    %2700 = vst.msk [vmem:[#allocation3 + $0x1a0] sm:$0xff] %vm2647, %v2560
    %2701 = vst.msk [vmem:[#allocation3 + $0x1a8] sm:$0xff] %vm2647, %v2562
    %2702 = vst.msk [vmem:[#allocation3 + $0x1b0] sm:$0xff] %vm2647, %v2564
    %2703 = vst.msk [vmem:[#allocation3 + $0x1b8] sm:$0xff] %vm2647, %v2566
    %2704 = vst.msk [vmem:[#allocation3 + $0x1c0] sm:$0xff] %vm2647, %v2568
    %2705 = vst.msk [vmem:[#allocation3 + $0x1c8] sm:$0xff] %vm2647, %v2570
    %2706 = vst.msk [vmem:[#allocation3 + $0x1d0] sm:$0xff] %vm2647, %v2572
    %2707 = vst.msk [vmem:[#allocation3 + $0x1d8] sm:$0xff] %vm2647, %v2574
    %2708 = vst.msk [vmem:[#allocation3 + $0x1e0] sm:$0xff] %vm2647, %v2576
    %2709 = vst.msk [vmem:[#allocation3 + $0x1e8] sm:$0xff] %vm2647, %v2578
    %2710 = vst.msk [vmem:[#allocation3 + $0x1f0] sm:$0xff] %vm2647, %v2580
    %2711 = vst.msk [vmem:[#allocation3 + $0x1f8] sm:$0xff] %vm2647, %v2582
    %v2712 = vld [vmem:[%s2326 + $0x1] sm:$0xff]
    %v2713 = vld [vmem:[%s2326 + $0x9] sm:$0xff]
    %v2714 = vld [vmem:[%s2326 + $0x19] sm:$0xff]
    %v2715 = vld [vmem:[%s2326 + $0x21] sm:$0xff]
    %v2716 = vld [vmem:[%s2326 + $0x31] sm:$0xff]
    %v2717 = vld [vmem:[%s2326 + $0x39] sm:$0xff]
    %v2718 = vld [vmem:[%s2326 + $0x49] sm:$0xff]
    %v2719 = vld [vmem:[%s2326 + $0x51] sm:$0xff]
    %v2720 = vld [vmem:[%s2326 + $0x61] sm:$0xff]
    %v2721 = vld [vmem:[%s2326 + $0x69] sm:$0xff]
    %v2722 = vld [vmem:[%s2326 + $0x79] sm:$0xff]
    %v2723 = vld [vmem:[%s2326 + $0x81] sm:$0xff]
    %v2724 = vld [vmem:[%s2326 + $0x91] sm:$0xff]
    %v2725 = vld [vmem:[%s2326 + $0x99] sm:$0xff]
    %v2726 = vld [vmem:[%s2326 + $0xa9] sm:$0xff]
    %v2727 = vld [vmem:[%s2326 + $0xb1] sm:$0xff]
    %v2728 = vld [vmem:[%s2326 + $0xc1] sm:$0xff]
    %v2729 = vld [vmem:[%s2326 + $0xc9] sm:$0xff]
    %v2730 = vld [vmem:[%s2326 + $0xd9] sm:$0xff]
    %v2731 = vld [vmem:[%s2326 + $0xe1] sm:$0xff]
    %v2732 = vld [vmem:[%s2326 + $0xf1] sm:$0xff]
    %v2733 = vld [vmem:[%s2326 + $0xf9] sm:$0xff]
    %v2734 = vld [vmem:[%s2326 + $0x109] sm:$0xff]
    %v2735 = vld [vmem:[%s2326 + $0x111] sm:$0xff]
    %v2736 = vld [vmem:[%s2326 + $0x121] sm:$0xff]
    %v2737 = vld [vmem:[%s2326 + $0x129] sm:$0xff]
    %v2738 = vld [vmem:[%s2326 + $0x139] sm:$0xff]
    %v2739 = vld [vmem:[%s2326 + $0x141] sm:$0xff]
    %v2740 = vld [vmem:[%s2326 + $0x151] sm:$0xff]
    %v2741 = vld [vmem:[%s2326 + $0x159] sm:$0xff]
    %v2742 = vld [vmem:[%s2326 + $0x169] sm:$0xff]
    %v2743 = vld [vmem:[%s2326 + $0x171] sm:$0xff]
    %v2744 = vld [vmem:[%s2326 + $0x1b1] sm:$0xff]
    %v2745 = vld [vmem:[%s2326 + $0x1b9] sm:$0xff]
    %v2746 = vld [vmem:[%s2326 + $0x1c9] sm:$0xff]
    %v2747 = vld [vmem:[%s2326 + $0x1d1] sm:$0xff]
    %v2748 = vld [vmem:[%s2326 + $0x1e1] sm:$0xff]
    %v2749 = vld [vmem:[%s2326 + $0x1e9] sm:$0xff]
    %v2750 = vld [vmem:[%s2326 + $0x1f9] sm:$0xff]
    %v2751 = vld [vmem:[%s2326 + $0x201] sm:$0xff]
    %v2752 = vld [vmem:[%s2326 + $0x211] sm:$0xff]
    %v2753 = vld [vmem:[%s2326 + $0x219] sm:$0xff]
    %v2754 = vld [vmem:[%s2326 + $0x229] sm:$0xff]
    %v2755 = vld [vmem:[%s2326 + $0x231] sm:$0xff]
    %v2756 = vld [vmem:[%s2326 + $0x241] sm:$0xff]
    %v2757 = vld [vmem:[%s2326 + $0x249] sm:$0xff]
    %v2758 = vld [vmem:[%s2326 + $0x259] sm:$0xff]
    %v2759 = vld [vmem:[%s2326 + $0x261] sm:$0xff]
    %v2760 = vld [vmem:[%s2326 + $0x271] sm:$0xff]
    %v2761 = vld [vmem:[%s2326 + $0x279] sm:$0xff]
    %v2762 = vld [vmem:[%s2326 + $0x289] sm:$0xff]
    %v2763 = vld [vmem:[%s2326 + $0x291] sm:$0xff]
    %v2764 = vld [vmem:[%s2326 + $0x2a1] sm:$0xff]
    %v2765 = vld [vmem:[%s2326 + $0x2a9] sm:$0xff]
    %v2766 = vld [vmem:[%s2326 + $0x2b9] sm:$0xff]
    %v2767 = vld [vmem:[%s2326 + $0x2c1] sm:$0xff]
    %v2768 = vld [vmem:[%s2326 + $0x2d1] sm:$0xff]
    %v2769 = vld [vmem:[%s2326 + $0x2d9] sm:$0xff]
    %v2770 = vld [vmem:[%s2326 + $0x2e9] sm:$0xff]
    %v2771 = vld [vmem:[%s2326 + $0x2f1] sm:$0xff]
    %v2772 = vld [vmem:[%s2326 + $0x301] sm:$0xff]
    %v2773 = vld [vmem:[%s2326 + $0x309] sm:$0xff]
    %v2774 = vld [vmem:[%s2326 + $0x319] sm:$0xff]
    %v2775 = vld [vmem:[%s2326 + $0x321] sm:$0xff]
    %2840 = vrot.lane.b32.xlu0 %v2712, 28
    %v2841 = vpop.permute.xlu0 %2840
    %2842 = vrot.lane.b32.xlu0 %v2713, 28
    %v2843 = vpop.permute.xlu0 %2842
    %2844 = vrot.lane.b32.xlu0 %v2714, 28
    %v2845 = vpop.permute.xlu0 %2844
    %2846 = vrot.lane.b32.xlu0 %v2715, 28
    %v2847 = vpop.permute.xlu0 %2846
    %2848 = vrot.lane.b32.xlu0 %v2716, 28
    %v2849 = vpop.permute.xlu0 %2848
    %2850 = vrot.lane.b32.xlu0 %v2717, 28
    %v2851 = vpop.permute.xlu0 %2850
    %2852 = vrot.lane.b32.xlu0 %v2718, 28
    %v2853 = vpop.permute.xlu0 %2852
    %2854 = vrot.lane.b32.xlu0 %v2719, 28
    %v2855 = vpop.permute.xlu0 %2854
    %2856 = vrot.lane.b32.xlu0 %v2720, 28
    %v2857 = vpop.permute.xlu0 %2856
    %2858 = vrot.lane.b32.xlu0 %v2721, 28
    %v2859 = vpop.permute.xlu0 %2858
    %2860 = vrot.lane.b32.xlu0 %v2722, 28
    %v2861 = vpop.permute.xlu0 %2860
    %2862 = vrot.lane.b32.xlu0 %v2723, 28
    %v2863 = vpop.permute.xlu0 %2862
    %2864 = vrot.lane.b32.xlu0 %v2724, 28
    %v2865 = vpop.permute.xlu0 %2864
    %2866 = vrot.lane.b32.xlu0 %v2725, 28
    %v2867 = vpop.permute.xlu0 %2866
    %2868 = vrot.lane.b32.xlu0 %v2726, 28
    %v2869 = vpop.permute.xlu0 %2868
    %2870 = vrot.lane.b32.xlu0 %v2727, 28
    %v2871 = vpop.permute.xlu0 %2870
    %2872 = vrot.lane.b32.xlu0 %v2728, 28
    %v2873 = vpop.permute.xlu0 %2872
    %2874 = vrot.lane.b32.xlu0 %v2729, 28
    %v2875 = vpop.permute.xlu0 %2874
    %2876 = vrot.lane.b32.xlu0 %v2730, 28
    %v2877 = vpop.permute.xlu0 %2876
    %2878 = vrot.lane.b32.xlu0 %v2731, 28
    %v2879 = vpop.permute.xlu0 %2878
    %2880 = vrot.lane.b32.xlu0 %v2732, 28
    %v2881 = vpop.permute.xlu0 %2880
    %2882 = vrot.lane.b32.xlu0 %v2733, 28
    %v2883 = vpop.permute.xlu0 %2882
    %2884 = vrot.lane.b32.xlu0 %v2734, 28
    %v2885 = vpop.permute.xlu0 %2884
    %2886 = vrot.lane.b32.xlu0 %v2735, 28
    %v2887 = vpop.permute.xlu0 %2886
    %2888 = vrot.lane.b32.xlu0 %v2736, 28
    %v2889 = vpop.permute.xlu0 %2888
    %2890 = vrot.lane.b32.xlu0 %v2737, 28
    %v2891 = vpop.permute.xlu0 %2890
    %2892 = vrot.lane.b32.xlu0 %v2738, 28
    %v2893 = vpop.permute.xlu0 %2892
    %2894 = vrot.lane.b32.xlu0 %v2739, 28
    %v2895 = vpop.permute.xlu0 %2894
    %2896 = vrot.lane.b32.xlu0 %v2740, 28
    %v2897 = vpop.permute.xlu0 %2896
    %2898 = vrot.lane.b32.xlu0 %v2741, 28
    %v2899 = vpop.permute.xlu0 %2898
    %2900 = vrot.lane.b32.xlu0 %v2742, 28
    %v2901 = vpop.permute.xlu0 %2900
    %2902 = vrot.lane.b32.xlu0 %v2743, 28
    %v2903 = vpop.permute.xlu0 %2902
    %2904 = vrot.lane.b32.xlu0 %v2744, 28
    %v2905 = vpop.permute.xlu0 %2904
    %2906 = vrot.lane.b32.xlu0 %v2745, 28
    %v2907 = vpop.permute.xlu0 %2906
    %2908 = vrot.lane.b32.xlu0 %v2746, 28
    %v2909 = vpop.permute.xlu0 %2908
    %2910 = vrot.lane.b32.xlu0 %v2747, 28
    %v2911 = vpop.permute.xlu0 %2910
    %2912 = vrot.lane.b32.xlu0 %v2748, 28
    %v2913 = vpop.permute.xlu0 %2912
    %2914 = vrot.lane.b32.xlu0 %v2749, 28
    %v2915 = vpop.permute.xlu0 %2914
    %2916 = vrot.lane.b32.xlu0 %v2750, 28
    %v2917 = vpop.permute.xlu0 %2916
    %2918 = vrot.lane.b32.xlu0 %v2751, 28
    %v2919 = vpop.permute.xlu0 %2918
    %2920 = vrot.lane.b32.xlu0 %v2752, 28
    %v2921 = vpop.permute.xlu0 %2920
    %2922 = vrot.lane.b32.xlu0 %v2753, 28
    %v2923 = vpop.permute.xlu0 %2922
    %2924 = vrot.lane.b32.xlu0 %v2754, 28
    %v2925 = vpop.permute.xlu0 %2924
    %2926 = vrot.lane.b32.xlu0 %v2755, 28
    %v2927 = vpop.permute.xlu0 %2926
    %2928 = vrot.lane.b32.xlu0 %v2756, 28
    %v2929 = vpop.permute.xlu0 %2928
    %2930 = vrot.lane.b32.xlu0 %v2757, 28
    %v2931 = vpop.permute.xlu0 %2930
    %2932 = vrot.lane.b32.xlu0 %v2758, 28
    %v2933 = vpop.permute.xlu0 %2932
    %2934 = vrot.lane.b32.xlu0 %v2759, 28
    %v2935 = vpop.permute.xlu0 %2934
    %2936 = vrot.lane.b32.xlu0 %v2760, 28
    %v2937 = vpop.permute.xlu0 %2936
    %2938 = vrot.lane.b32.xlu0 %v2761, 28
    %v2939 = vpop.permute.xlu0 %2938
    %2940 = vrot.lane.b32.xlu0 %v2762, 28
    %v2941 = vpop.permute.xlu0 %2940
    %2942 = vrot.lane.b32.xlu0 %v2763, 28
    %v2943 = vpop.permute.xlu0 %2942
    %2944 = vrot.lane.b32.xlu0 %v2764, 28
    %v2945 = vpop.permute.xlu0 %2944
    %2946 = vrot.lane.b32.xlu0 %v2765, 28
    %v2947 = vpop.permute.xlu0 %2946
    %2948 = vrot.lane.b32.xlu0 %v2766, 28
    %v2949 = vpop.permute.xlu0 %2948
    %2950 = vrot.lane.b32.xlu0 %v2767, 28
    %v2951 = vpop.permute.xlu0 %2950
    %2952 = vrot.lane.b32.xlu0 %v2768, 28
    %v2953 = vpop.permute.xlu0 %2952
    %2954 = vrot.lane.b32.xlu0 %v2769, 28
    %v2955 = vpop.permute.xlu0 %2954
    %2956 = vrot.lane.b32.xlu0 %v2770, 28
    %v2957 = vpop.permute.xlu0 %2956
    %2958 = vrot.lane.b32.xlu0 %v2771, 28
    %v2959 = vpop.permute.xlu0 %2958
    %2960 = vrot.lane.b32.xlu0 %v2772, 28
    %v2961 = vpop.permute.xlu0 %2960
    %2962 = vrot.lane.b32.xlu0 %v2773, 28
    %v2963 = vpop.permute.xlu0 %2962
    %2964 = vrot.lane.b32.xlu0 %v2774, 28
    %v2965 = vpop.permute.xlu0 %2964
    %2966 = vrot.lane.b32.xlu0 %v2775, 28
    %v2967 = vpop.permute.xlu0 %2966
    %vm3032 = vcmask 261344
    %3033 = vst.msk [vmem:[#allocation3] sm:$0xff] %vm3032, %v2841
    %3034 = vst.msk [vmem:[#allocation3 + $0x8] sm:$0xff] %vm3032, %v2843
    %3035 = vst.msk [vmem:[#allocation3 + $0x10] sm:$0xff] %vm3032, %v2845
    %3036 = vst.msk [vmem:[#allocation3 + $0x18] sm:$0xff] %vm3032, %v2847
    %3037 = vst.msk [vmem:[#allocation3 + $0x20] sm:$0xff] %vm3032, %v2849
    %3038 = vst.msk [vmem:[#allocation3 + $0x28] sm:$0xff] %vm3032, %v2851
    %3039 = vst.msk [vmem:[#allocation3 + $0x30] sm:$0xff] %vm3032, %v2853
    %3040 = vst.msk [vmem:[#allocation3 + $0x38] sm:$0xff] %vm3032, %v2855
    %3041 = vst.msk [vmem:[#allocation3 + $0x40] sm:$0xff] %vm3032, %v2857
    %3042 = vst.msk [vmem:[#allocation3 + $0x48] sm:$0xff] %vm3032, %v2859
    %3043 = vst.msk [vmem:[#allocation3 + $0x50] sm:$0xff] %vm3032, %v2861
    %3044 = vst.msk [vmem:[#allocation3 + $0x58] sm:$0xff] %vm3032, %v2863
    %3045 = vst.msk [vmem:[#allocation3 + $0x60] sm:$0xff] %vm3032, %v2865
    %3046 = vst.msk [vmem:[#allocation3 + $0x68] sm:$0xff] %vm3032, %v2867
    %3047 = vst.msk [vmem:[#allocation3 + $0x70] sm:$0xff] %vm3032, %v2869
    %3048 = vst.msk [vmem:[#allocation3 + $0x78] sm:$0xff] %vm3032, %v2871
    %3049 = vst.msk [vmem:[#allocation3 + $0x80] sm:$0xff] %vm3032, %v2873
    %3050 = vst.msk [vmem:[#allocation3 + $0x88] sm:$0xff] %vm3032, %v2875
    %3051 = vst.msk [vmem:[#allocation3 + $0x90] sm:$0xff] %vm3032, %v2877
    %3052 = vst.msk [vmem:[#allocation3 + $0x98] sm:$0xff] %vm3032, %v2879
    %3053 = vst.msk [vmem:[#allocation3 + $0xa0] sm:$0xff] %vm3032, %v2881
    %3054 = vst.msk [vmem:[#allocation3 + $0xa8] sm:$0xff] %vm3032, %v2883
    %3055 = vst.msk [vmem:[#allocation3 + $0xb0] sm:$0xff] %vm3032, %v2885
    %3056 = vst.msk [vmem:[#allocation3 + $0xb8] sm:$0xff] %vm3032, %v2887
    %3057 = vst.msk [vmem:[#allocation3 + $0xc0] sm:$0xff] %vm3032, %v2889
    %3058 = vst.msk [vmem:[#allocation3 + $0xc8] sm:$0xff] %vm3032, %v2891
    %3059 = vst.msk [vmem:[#allocation3 + $0xd0] sm:$0xff] %vm3032, %v2893
    %3060 = vst.msk [vmem:[#allocation3 + $0xd8] sm:$0xff] %vm3032, %v2895
    %3061 = vst.msk [vmem:[#allocation3 + $0xe0] sm:$0xff] %vm3032, %v2897
    %3062 = vst.msk [vmem:[#allocation3 + $0xe8] sm:$0xff] %vm3032, %v2899
    %3063 = vst.msk [vmem:[#allocation3 + $0xf0] sm:$0xff] %vm3032, %v2901
    %3064 = vst.msk [vmem:[#allocation3 + $0xf8] sm:$0xff] %vm3032, %v2903
    %3065 = vst.msk [vmem:[#allocation3 + $0x100] sm:$0xff] %vm3032, %v2905
    %3066 = vst.msk [vmem:[#allocation3 + $0x108] sm:$0xff] %vm3032, %v2907
    %3067 = vst.msk [vmem:[#allocation3 + $0x110] sm:$0xff] %vm3032, %v2909
    %3068 = vst.msk [vmem:[#allocation3 + $0x118] sm:$0xff] %vm3032, %v2911
    %3069 = vst.msk [vmem:[#allocation3 + $0x120] sm:$0xff] %vm3032, %v2913
    %3070 = vst.msk [vmem:[#allocation3 + $0x128] sm:$0xff] %vm3032, %v2915
    %3071 = vst.msk [vmem:[#allocation3 + $0x130] sm:$0xff] %vm3032, %v2917
    %3072 = vst.msk [vmem:[#allocation3 + $0x138] sm:$0xff] %vm3032, %v2919
    %3073 = vst.msk [vmem:[#allocation3 + $0x140] sm:$0xff] %vm3032, %v2921
    %3074 = vst.msk [vmem:[#allocation3 + $0x148] sm:$0xff] %vm3032, %v2923
    %3075 = vst.msk [vmem:[#allocation3 + $0x150] sm:$0xff] %vm3032, %v2925
    %3076 = vst.msk [vmem:[#allocation3 + $0x158] sm:$0xff] %vm3032, %v2927
    %3077 = vst.msk [vmem:[#allocation3 + $0x160] sm:$0xff] %vm3032, %v2929
    %3078 = vst.msk [vmem:[#allocation3 + $0x168] sm:$0xff] %vm3032, %v2931
    %3079 = vst.msk [vmem:[#allocation3 + $0x170] sm:$0xff] %vm3032, %v2933
    %3080 = vst.msk [vmem:[#allocation3 + $0x178] sm:$0xff] %vm3032, %v2935
    %3081 = vst.msk [vmem:[#allocation3 + $0x180] sm:$0xff] %vm3032, %v2937
    %3082 = vst.msk [vmem:[#allocation3 + $0x188] sm:$0xff] %vm3032, %v2939
    %3083 = vst.msk [vmem:[#allocation3 + $0x190] sm:$0xff] %vm3032, %v2941
    %3084 = vst.msk [vmem:[#allocation3 + $0x198] sm:$0xff] %vm3032, %v2943
    %3085 = vst.msk [vmem:[#allocation3 + $0x1a0] sm:$0xff] %vm3032, %v2945
    %3086 = vst.msk [vmem:[#allocation3 + $0x1a8] sm:$0xff] %vm3032, %v2947
    %3087 = vst.msk [vmem:[#allocation3 + $0x1b0] sm:$0xff] %vm3032, %v2949
    %3088 = vst.msk [vmem:[#allocation3 + $0x1b8] sm:$0xff] %vm3032, %v2951
    %3089 = vst.msk [vmem:[#allocation3 + $0x1c0] sm:$0xff] %vm3032, %v2953
    %3090 = vst.msk [vmem:[#allocation3 + $0x1c8] sm:$0xff] %vm3032, %v2955
    %3091 = vst.msk [vmem:[#allocation3 + $0x1d0] sm:$0xff] %vm3032, %v2957
    %3092 = vst.msk [vmem:[#allocation3 + $0x1d8] sm:$0xff] %vm3032, %v2959
    %3093 = vst.msk [vmem:[#allocation3 + $0x1e0] sm:$0xff] %vm3032, %v2961
    %3094 = vst.msk [vmem:[#allocation3 + $0x1e8] sm:$0xff] %vm3032, %v2963
    %3095 = vst.msk [vmem:[#allocation3 + $0x1f0] sm:$0xff] %vm3032, %v2965
    %3096 = vst.msk [vmem:[#allocation3 + $0x1f8] sm:$0xff] %vm3032, %v2967
    %v3097 = vld [vmem:[%s2326 + $0x2] sm:$0xff]
    %v3098 = vld [vmem:[%s2326 + $0xa] sm:$0xff]
    %v3099 = vld [vmem:[%s2326 + $0x1a] sm:$0xff]
    %v3100 = vld [vmem:[%s2326 + $0x22] sm:$0xff]
    %v3101 = vld [vmem:[%s2326 + $0x32] sm:$0xff]
    %v3102 = vld [vmem:[%s2326 + $0x3a] sm:$0xff]
    %v3103 = vld [vmem:[%s2326 + $0x4a] sm:$0xff]
    %v3104 = vld [vmem:[%s2326 + $0x52] sm:$0xff]
    %v3105 = vld [vmem:[%s2326 + $0x62] sm:$0xff]
    %v3106 = vld [vmem:[%s2326 + $0x6a] sm:$0xff]
    %v3107 = vld [vmem:[%s2326 + $0x7a] sm:$0xff]
    %v3108 = vld [vmem:[%s2326 + $0x82] sm:$0xff]
    %v3109 = vld [vmem:[%s2326 + $0x92] sm:$0xff]
    %v3110 = vld [vmem:[%s2326 + $0x9a] sm:$0xff]
    %v3111 = vld [vmem:[%s2326 + $0xaa] sm:$0xff]
    %v3112 = vld [vmem:[%s2326 + $0xb2] sm:$0xff]
    %v3113 = vld [vmem:[%s2326 + $0xc2] sm:$0xff]
    %v3114 = vld [vmem:[%s2326 + $0xca] sm:$0xff]
    %v3115 = vld [vmem:[%s2326 + $0xda] sm:$0xff]
    %v3116 = vld [vmem:[%s2326 + $0xe2] sm:$0xff]
    %v3117 = vld [vmem:[%s2326 + $0xf2] sm:$0xff]
    %v3118 = vld [vmem:[%s2326 + $0xfa] sm:$0xff]
    %v3119 = vld [vmem:[%s2326 + $0x10a] sm:$0xff]
    %v3120 = vld [vmem:[%s2326 + $0x112] sm:$0xff]
    %v3121 = vld [vmem:[%s2326 + $0x122] sm:$0xff]
    %v3122 = vld [vmem:[%s2326 + $0x12a] sm:$0xff]
    %v3123 = vld [vmem:[%s2326 + $0x13a] sm:$0xff]
    %v3124 = vld [vmem:[%s2326 + $0x142] sm:$0xff]
    %v3125 = vld [vmem:[%s2326 + $0x152] sm:$0xff]
    %v3126 = vld [vmem:[%s2326 + $0x15a] sm:$0xff]
    %v3127 = vld [vmem:[%s2326 + $0x16a] sm:$0xff]
    %v3128 = vld [vmem:[%s2326 + $0x172] sm:$0xff]
    %v3129 = vld [vmem:[%s2326 + $0x1b2] sm:$0xff]
    %v3130 = vld [vmem:[%s2326 + $0x1ba] sm:$0xff]
    %v3131 = vld [vmem:[%s2326 + $0x1ca] sm:$0xff]
    %v3132 = vld [vmem:[%s2326 + $0x1d2] sm:$0xff]
    %v3133 = vld [vmem:[%s2326 + $0x1e2] sm:$0xff]
    %v3134 = vld [vmem:[%s2326 + $0x1ea] sm:$0xff]
    %v3135 = vld [vmem:[%s2326 + $0x1fa] sm:$0xff]
    %v3136 = vld [vmem:[%s2326 + $0x202] sm:$0xff]
    %v3137 = vld [vmem:[%s2326 + $0x212] sm:$0xff]
    %v3138 = vld [vmem:[%s2326 + $0x21a] sm:$0xff]
    %v3139 = vld [vmem:[%s2326 + $0x22a] sm:$0xff]
    %v3140 = vld [vmem:[%s2326 + $0x232] sm:$0xff]
    %v3141 = vld [vmem:[%s2326 + $0x242] sm:$0xff]
    %v3142 = vld [vmem:[%s2326 + $0x24a] sm:$0xff]
    %v3143 = vld [vmem:[%s2326 + $0x25a] sm:$0xff]
    %v3144 = vld [vmem:[%s2326 + $0x262] sm:$0xff]
    %v3145 = vld [vmem:[%s2326 + $0x272] sm:$0xff]
    %v3146 = vld [vmem:[%s2326 + $0x27a] sm:$0xff]
    %v3147 = vld [vmem:[%s2326 + $0x28a] sm:$0xff]
    %v3148 = vld [vmem:[%s2326 + $0x292] sm:$0xff]
    %v3149 = vld [vmem:[%s2326 + $0x2a2] sm:$0xff]
    %v3150 = vld [vmem:[%s2326 + $0x2aa] sm:$0xff]
    %v3151 = vld [vmem:[%s2326 + $0x2ba] sm:$0xff]
    %v3152 = vld [vmem:[%s2326 + $0x2c2] sm:$0xff]
    %v3153 = vld [vmem:[%s2326 + $0x2d2] sm:$0xff]
    %v3154 = vld [vmem:[%s2326 + $0x2da] sm:$0xff]
    %v3155 = vld [vmem:[%s2326 + $0x2ea] sm:$0xff]
    %v3156 = vld [vmem:[%s2326 + $0x2f2] sm:$0xff]
    %v3157 = vld [vmem:[%s2326 + $0x302] sm:$0xff]
    %v3158 = vld [vmem:[%s2326 + $0x30a] sm:$0xff]
    %v3159 = vld [vmem:[%s2326 + $0x31a] sm:$0xff]
    %v3160 = vld [vmem:[%s2326 + $0x322] sm:$0xff]
    %3225 = vrot.lane.b32.xlu0 %v3097, 32
    %v3226 = vpop.permute.xlu0 %3225
    %3227 = vrot.lane.b32.xlu0 %v3098, 32
    %v3228 = vpop.permute.xlu0 %3227
    %3229 = vrot.lane.b32.xlu0 %v3099, 32
    %v3230 = vpop.permute.xlu0 %3229
    %3231 = vrot.lane.b32.xlu0 %v3100, 32
    %v3232 = vpop.permute.xlu0 %3231
    %3233 = vrot.lane.b32.xlu0 %v3101, 32
    %v3234 = vpop.permute.xlu0 %3233
    %3235 = vrot.lane.b32.xlu0 %v3102, 32
    %v3236 = vpop.permute.xlu0 %3235
    %3237 = vrot.lane.b32.xlu0 %v3103, 32
    %v3238 = vpop.permute.xlu0 %3237
    %3239 = vrot.lane.b32.xlu0 %v3104, 32
    %v3240 = vpop.permute.xlu0 %3239
    %3241 = vrot.lane.b32.xlu0 %v3105, 32
    %v3242 = vpop.permute.xlu0 %3241
    %3243 = vrot.lane.b32.xlu0 %v3106, 32
    %v3244 = vpop.permute.xlu0 %3243
    %3245 = vrot.lane.b32.xlu0 %v3107, 32
    %v3246 = vpop.permute.xlu0 %3245
    %3247 = vrot.lane.b32.xlu0 %v3108, 32
    %v3248 = vpop.permute.xlu0 %3247
    %3249 = vrot.lane.b32.xlu0 %v3109, 32
    %v3250 = vpop.permute.xlu0 %3249
    %3251 = vrot.lane.b32.xlu0 %v3110, 32
    %v3252 = vpop.permute.xlu0 %3251
    %3253 = vrot.lane.b32.xlu0 %v3111, 32
    %v3254 = vpop.permute.xlu0 %3253
    %3255 = vrot.lane.b32.xlu0 %v3112, 32
    %v3256 = vpop.permute.xlu0 %3255
    %3257 = vrot.lane.b32.xlu0 %v3113, 32
    %v3258 = vpop.permute.xlu0 %3257
    %3259 = vrot.lane.b32.xlu0 %v3114, 32
    %v3260 = vpop.permute.xlu0 %3259
    %3261 = vrot.lane.b32.xlu0 %v3115, 32
    %v3262 = vpop.permute.xlu0 %3261
    %3263 = vrot.lane.b32.xlu0 %v3116, 32
    %v3264 = vpop.permute.xlu0 %3263
    %3265 = vrot.lane.b32.xlu0 %v3117, 32
    %v3266 = vpop.permute.xlu0 %3265
    %3267 = vrot.lane.b32.xlu0 %v3118, 32
    %v3268 = vpop.permute.xlu0 %3267
    %3269 = vrot.lane.b32.xlu0 %v3119, 32
    %v3270 = vpop.permute.xlu0 %3269
    %3271 = vrot.lane.b32.xlu0 %v3120, 32
    %v3272 = vpop.permute.xlu0 %3271
    %3273 = vrot.lane.b32.xlu0 %v3121, 32
    %v3274 = vpop.permute.xlu0 %3273
    %3275 = vrot.lane.b32.xlu0 %v3122, 32
    %v3276 = vpop.permute.xlu0 %3275
    %3277 = vrot.lane.b32.xlu0 %v3123, 32
    %v3278 = vpop.permute.xlu0 %3277
    %3279 = vrot.lane.b32.xlu0 %v3124, 32
    %v3280 = vpop.permute.xlu0 %3279
    %3281 = vrot.lane.b32.xlu0 %v3125, 32
    %v3282 = vpop.permute.xlu0 %3281
    %3283 = vrot.lane.b32.xlu0 %v3126, 32
    %v3284 = vpop.permute.xlu0 %3283
    %3285 = vrot.lane.b32.xlu0 %v3127, 32
    %v3286 = vpop.permute.xlu0 %3285
    %3287 = vrot.lane.b32.xlu0 %v3128, 32
    %v3288 = vpop.permute.xlu0 %3287
    %3289 = vrot.lane.b32.xlu0 %v3129, 32
    %v3290 = vpop.permute.xlu0 %3289
    %3291 = vrot.lane.b32.xlu0 %v3130, 32
    %v3292 = vpop.permute.xlu0 %3291
    %3293 = vrot.lane.b32.xlu0 %v3131, 32
    %v3294 = vpop.permute.xlu0 %3293
    %3295 = vrot.lane.b32.xlu0 %v3132, 32
    %v3296 = vpop.permute.xlu0 %3295
    %3297 = vrot.lane.b32.xlu0 %v3133, 32
    %v3298 = vpop.permute.xlu0 %3297
    %3299 = vrot.lane.b32.xlu0 %v3134, 32
    %v3300 = vpop.permute.xlu0 %3299
    %3301 = vrot.lane.b32.xlu0 %v3135, 32
    %v3302 = vpop.permute.xlu0 %3301
    %3303 = vrot.lane.b32.xlu0 %v3136, 32
    %v3304 = vpop.permute.xlu0 %3303
    %3305 = vrot.lane.b32.xlu0 %v3137, 32
    %v3306 = vpop.permute.xlu0 %3305
    %3307 = vrot.lane.b32.xlu0 %v3138, 32
    %v3308 = vpop.permute.xlu0 %3307
    %3309 = vrot.lane.b32.xlu0 %v3139, 32
    %v3310 = vpop.permute.xlu0 %3309
    %3311 = vrot.lane.b32.xlu0 %v3140, 32
    %v3312 = vpop.permute.xlu0 %3311
    %3313 = vrot.lane.b32.xlu0 %v3141, 32
    %v3314 = vpop.permute.xlu0 %3313
    %3315 = vrot.lane.b32.xlu0 %v3142, 32
    %v3316 = vpop.permute.xlu0 %3315
    %3317 = vrot.lane.b32.xlu0 %v3143, 32
    %v3318 = vpop.permute.xlu0 %3317
    %3319 = vrot.lane.b32.xlu0 %v3144, 32
    %v3320 = vpop.permute.xlu0 %3319
    %3321 = vrot.lane.b32.xlu0 %v3145, 32
    %v3322 = vpop.permute.xlu0 %3321
    %3323 = vrot.lane.b32.xlu0 %v3146, 32
    %v3324 = vpop.permute.xlu0 %3323
    %3325 = vrot.lane.b32.xlu0 %v3147, 32
    %v3326 = vpop.permute.xlu0 %3325
    %3327 = vrot.lane.b32.xlu0 %v3148, 32
    %v3328 = vpop.permute.xlu0 %3327
    %3329 = vrot.lane.b32.xlu0 %v3149, 32
    %v3330 = vpop.permute.xlu0 %3329
    %3331 = vrot.lane.b32.xlu0 %v3150, 32
    %v3332 = vpop.permute.xlu0 %3331
    %3333 = vrot.lane.b32.xlu0 %v3151, 32
    %v3334 = vpop.permute.xlu0 %3333
    %3335 = vrot.lane.b32.xlu0 %v3152, 32
    %v3336 = vpop.permute.xlu0 %3335
    %3337 = vrot.lane.b32.xlu0 %v3153, 32
    %v3338 = vpop.permute.xlu0 %3337
    %3339 = vrot.lane.b32.xlu0 %v3154, 32
    %v3340 = vpop.permute.xlu0 %3339
    %3341 = vrot.lane.b32.xlu0 %v3155, 32
    %v3342 = vpop.permute.xlu0 %3341
    %3343 = vrot.lane.b32.xlu0 %v3156, 32
    %v3344 = vpop.permute.xlu0 %3343
    %3345 = vrot.lane.b32.xlu0 %v3157, 32
    %v3346 = vpop.permute.xlu0 %3345
    %3347 = vrot.lane.b32.xlu0 %v3158, 32
    %v3348 = vpop.permute.xlu0 %3347
    %3349 = vrot.lane.b32.xlu0 %v3159, 32
    %v3350 = vpop.permute.xlu0 %3349
    %3351 = vrot.lane.b32.xlu0 %v3160, 32
    %v3352 = vpop.permute.xlu0 %3351
    %vm3417 = vcmask 294144
    %3418 = vst.msk [vmem:[#allocation3] sm:$0xff] %vm3417, %v3226
    %3419 = vst.msk [vmem:[#allocation3 + $0x8] sm:$0xff] %vm3417, %v3228
    %3420 = vst.msk [vmem:[#allocation3 + $0x10] sm:$0xff] %vm3417, %v3230
    %3421 = vst.msk [vmem:[#allocation3 + $0x18] sm:$0xff] %vm3417, %v3232
    %3422 = vst.msk [vmem:[#allocation3 + $0x20] sm:$0xff] %vm3417, %v3234
    %3423 = vst.msk [vmem:[#allocation3 + $0x28] sm:$0xff] %vm3417, %v3236
    %3424 = vst.msk [vmem:[#allocation3 + $0x30] sm:$0xff] %vm3417, %v3238
    %3425 = vst.msk [vmem:[#allocation3 + $0x38] sm:$0xff] %vm3417, %v3240
    %3426 = vst.msk [vmem:[#allocation3 + $0x40] sm:$0xff] %vm3417, %v3242
    %3427 = vst.msk [vmem:[#allocation3 + $0x48] sm:$0xff] %vm3417, %v3244
    %3428 = vst.msk [vmem:[#allocation3 + $0x50] sm:$0xff] %vm3417, %v3246
    %3429 = vst.msk [vmem:[#allocation3 + $0x58] sm:$0xff] %vm3417, %v3248
    %3430 = vst.msk [vmem:[#allocation3 + $0x60] sm:$0xff] %vm3417, %v3250
    %3431 = vst.msk [vmem:[#allocation3 + $0x68] sm:$0xff] %vm3417, %v3252
    %3432 = vst.msk [vmem:[#allocation3 + $0x70] sm:$0xff] %vm3417, %v3254
    %3433 = vst.msk [vmem:[#allocation3 + $0x78] sm:$0xff] %vm3417, %v3256
    %3434 = vst.msk [vmem:[#allocation3 + $0x80] sm:$0xff] %vm3417, %v3258
    %3435 = vst.msk [vmem:[#allocation3 + $0x88] sm:$0xff] %vm3417, %v3260
    %3436 = vst.msk [vmem:[#allocation3 + $0x90] sm:$0xff] %vm3417, %v3262
    %3437 = vst.msk [vmem:[#allocation3 + $0x98] sm:$0xff] %vm3417, %v3264
    %3438 = vst.msk [vmem:[#allocation3 + $0xa0] sm:$0xff] %vm3417, %v3266
    %3439 = vst.msk [vmem:[#allocation3 + $0xa8] sm:$0xff] %vm3417, %v3268
    %3440 = vst.msk [vmem:[#allocation3 + $0xb0] sm:$0xff] %vm3417, %v3270
    %3441 = vst.msk [vmem:[#allocation3 + $0xb8] sm:$0xff] %vm3417, %v3272
    %3442 = vst.msk [vmem:[#allocation3 + $0xc0] sm:$0xff] %vm3417, %v3274
    %3443 = vst.msk [vmem:[#allocation3 + $0xc8] sm:$0xff] %vm3417, %v3276
    %3444 = vst.msk [vmem:[#allocation3 + $0xd0] sm:$0xff] %vm3417, %v3278
    %3445 = vst.msk [vmem:[#allocation3 + $0xd8] sm:$0xff] %vm3417, %v3280
    %3446 = vst.msk [vmem:[#allocation3 + $0xe0] sm:$0xff] %vm3417, %v3282
    %3447 = vst.msk [vmem:[#allocation3 + $0xe8] sm:$0xff] %vm3417, %v3284
    %3448 = vst.msk [vmem:[#allocation3 + $0xf0] sm:$0xff] %vm3417, %v3286
    %3449 = vst.msk [vmem:[#allocation3 + $0xf8] sm:$0xff] %vm3417, %v3288
    %3450 = vst.msk [vmem:[#allocation3 + $0x100] sm:$0xff] %vm3417, %v3290
    %3451 = vst.msk [vmem:[#allocation3 + $0x108] sm:$0xff] %vm3417, %v3292
    %3452 = vst.msk [vmem:[#allocation3 + $0x110] sm:$0xff] %vm3417, %v3294
    %3453 = vst.msk [vmem:[#allocation3 + $0x118] sm:$0xff] %vm3417, %v3296
    %3454 = vst.msk [vmem:[#allocation3 + $0x120] sm:$0xff] %vm3417, %v3298
    %3455 = vst.msk [vmem:[#allocation3 + $0x128] sm:$0xff] %vm3417, %v3300
    %3456 = vst.msk [vmem:[#allocation3 + $0x130] sm:$0xff] %vm3417, %v3302
    %3457 = vst.msk [vmem:[#allocation3 + $0x138] sm:$0xff] %vm3417, %v3304
    %3458 = vst.msk [vmem:[#allocation3 + $0x140] sm:$0xff] %vm3417, %v3306
    %3459 = vst.msk [vmem:[#allocation3 + $0x148] sm:$0xff] %vm3417, %v3308
    %3460 = vst.msk [vmem:[#allocation3 + $0x150] sm:$0xff] %vm3417, %v3310
    %3461 = vst.msk [vmem:[#allocation3 + $0x158] sm:$0xff] %vm3417, %v3312
    %3462 = vst.msk [vmem:[#allocation3 + $0x160] sm:$0xff] %vm3417, %v3314
    %3463 = vst.msk [vmem:[#allocation3 + $0x168] sm:$0xff] %vm3417, %v3316
    %3464 = vst.msk [vmem:[#allocation3 + $0x170] sm:$0xff] %vm3417, %v3318
    %3465 = vst.msk [vmem:[#allocation3 + $0x178] sm:$0xff] %vm3417, %v3320
    %3466 = vst.msk [vmem:[#allocation3 + $0x180] sm:$0xff] %vm3417, %v3322
    %3467 = vst.msk [vmem:[#allocation3 + $0x188] sm:$0xff] %vm3417, %v3324
    %3468 = vst.msk [vmem:[#allocation3 + $0x190] sm:$0xff] %vm3417, %v3326
    %3469 = vst.msk [vmem:[#allocation3 + $0x198] sm:$0xff] %vm3417, %v3328
    %3470 = vst.msk [vmem:[#allocation3 + $0x1a0] sm:$0xff] %vm3417, %v3330
    %3471 = vst.msk [vmem:[#allocation3 + $0x1a8] sm:$0xff] %vm3417, %v3332
    %3472 = vst.msk [vmem:[#allocation3 + $0x1b0] sm:$0xff] %vm3417, %v3334
    %3473 = vst.msk [vmem:[#allocation3 + $0x1b8] sm:$0xff] %vm3417, %v3336
    %3474 = vst.msk [vmem:[#allocation3 + $0x1c0] sm:$0xff] %vm3417, %v3338
    %3475 = vst.msk [vmem:[#allocation3 + $0x1c8] sm:$0xff] %vm3417, %v3340
    %3476 = vst.msk [vmem:[#allocation3 + $0x1d0] sm:$0xff] %vm3417, %v3342
    %3477 = vst.msk [vmem:[#allocation3 + $0x1d8] sm:$0xff] %vm3417, %v3344
    %3478 = vst.msk [vmem:[#allocation3 + $0x1e0] sm:$0xff] %vm3417, %v3346
    %3479 = vst.msk [vmem:[#allocation3 + $0x1e8] sm:$0xff] %vm3417, %v3348
    %3480 = vst.msk [vmem:[#allocation3 + $0x1f0] sm:$0xff] %vm3417, %v3350
    %3481 = vst.msk [vmem:[#allocation3 + $0x1f8] sm:$0xff] %vm3417, %v3352
    %v3482 = vld [vmem:[#allocation3] sm:$0xff]
    %v3483 = vld [vmem:[#allocation3 + $0x8] sm:$0xff]
    %v3484 = vld [vmem:[#allocation3 + $0x10] sm:$0xff]
    %v3485 = vld [vmem:[#allocation3 + $0x18] sm:$0xff]
    %v3486 = vld [vmem:[#allocation3 + $0x20] sm:$0xff]
    %v3487 = vld [vmem:[#allocation3 + $0x28] sm:$0xff]
    %v3488 = vld [vmem:[#allocation3 + $0x30] sm:$0xff]
    %v3489 = vld [vmem:[#allocation3 + $0x38] sm:$0xff]
    %v3490 = vld [vmem:[#allocation3 + $0x40] sm:$0xff]
    %v3491 = vld [vmem:[#allocation3 + $0x48] sm:$0xff]
    %v3492 = vld [vmem:[#allocation3 + $0x50] sm:$0xff]
    %v3493 = vld [vmem:[#allocation3 + $0x58] sm:$0xff]
    %v3494 = vld [vmem:[#allocation3 + $0x60] sm:$0xff]
    %v3495 = vld [vmem:[#allocation3 + $0x68] sm:$0xff]
    %v3496 = vld [vmem:[#allocation3 + $0x70] sm:$0xff]
    %v3497 = vld [vmem:[#allocation3 + $0x78] sm:$0xff]
    %v3498 = vld [vmem:[#allocation3 + $0x80] sm:$0xff]
    %v3499 = vld [vmem:[#allocation3 + $0x88] sm:$0xff]
    %v3500 = vld [vmem:[#allocation3 + $0x90] sm:$0xff]
    %v3501 = vld [vmem:[#allocation3 + $0x98] sm:$0xff]
    %v3502 = vld [vmem:[#allocation3 + $0xa0] sm:$0xff]
    %v3503 = vld [vmem:[#allocation3 + $0xa8] sm:$0xff]
    %v3504 = vld [vmem:[#allocation3 + $0xb0] sm:$0xff]
    %v3505 = vld [vmem:[#allocation3 + $0xb8] sm:$0xff]
    %v3506 = vld [vmem:[#allocation3 + $0xc0] sm:$0xff]
    %v3507 = vld [vmem:[#allocation3 + $0xc8] sm:$0xff]
    %v3508 = vld [vmem:[#allocation3 + $0xd0] sm:$0xff]
    %v3509 = vld [vmem:[#allocation3 + $0xd8] sm:$0xff]
    %v3510 = vld [vmem:[#allocation3 + $0xe0] sm:$0xff]
    %v3511 = vld [vmem:[#allocation3 + $0xe8] sm:$0xff]
    %v3512 = vld [vmem:[#allocation3 + $0xf0] sm:$0xff]
    %v3513 = vld [vmem:[#allocation3 + $0xf8] sm:$0xff]
    %v3514 = vld [vmem:[#allocation3 + $0x100] sm:$0xff]
    %v3515 = vld [vmem:[#allocation3 + $0x108] sm:$0xff]
    %v3516 = vld [vmem:[#allocation3 + $0x110] sm:$0xff]
    %v3517 = vld [vmem:[#allocation3 + $0x118] sm:$0xff]
    %v3518 = vld [vmem:[#allocation3 + $0x120] sm:$0xff]
    %v3519 = vld [vmem:[#allocation3 + $0x128] sm:$0xff]
    %v3520 = vld [vmem:[#allocation3 + $0x130] sm:$0xff]
    %v3521 = vld [vmem:[#allocation3 + $0x138] sm:$0xff]
    %v3522 = vld [vmem:[#allocation3 + $0x140] sm:$0xff]
    %v3523 = vld [vmem:[#allocation3 + $0x148] sm:$0xff]
    %v3524 = vld [vmem:[#allocation3 + $0x150] sm:$0xff]
    %v3525 = vld [vmem:[#allocation3 + $0x158] sm:$0xff]
    %v3526 = vld [vmem:[#allocation3 + $0x160] sm:$0xff]
    %v3527 = vld [vmem:[#allocation3 + $0x168] sm:$0xff]
    %v3528 = vld [vmem:[#allocation3 + $0x170] sm:$0xff]
    %v3529 = vld [vmem:[#allocation3 + $0x178] sm:$0xff]
    %v3530 = vld [vmem:[#allocation3 + $0x180] sm:$0xff]
    %v3531 = vld [vmem:[#allocation3 + $0x188] sm:$0xff]
    %v3532 = vld [vmem:[#allocation3 + $0x190] sm:$0xff]
    %v3533 = vld [vmem:[#allocation3 + $0x198] sm:$0xff]
    %v3534 = vld [vmem:[#allocation3 + $0x1a0] sm:$0xff]
    %v3535 = vld [vmem:[#allocation3 + $0x1a8] sm:$0xff]
    %v3536 = vld [vmem:[#allocation3 + $0x1b0] sm:$0xff]
    %v3537 = vld [vmem:[#allocation3 + $0x1b8] sm:$0xff]
    %v3538 = vld [vmem:[#allocation3 + $0x1c0] sm:$0xff]
    %v3539 = vld [vmem:[#allocation3 + $0x1c8] sm:$0xff]
    %v3540 = vld [vmem:[#allocation3 + $0x1d0] sm:$0xff]
    %v3541 = vld [vmem:[#allocation3 + $0x1d8] sm:$0xff]
    %v3542 = vld [vmem:[#allocation3 + $0x1e0] sm:$0xff]
    %v3543 = vld [vmem:[#allocation3 + $0x1e8] sm:$0xff]
    %v3544 = vld [vmem:[#allocation3 + $0x1f0] sm:$0xff]
    %v3545 = vld [vmem:[#allocation3 + $0x1f8] sm:$0xff]
    %v3546 = vld [vmem:[%s1] sm:$0xff]
    %v3547 = vld [vmem:[%s1 + $0x8] sm:$0xff]
    %v3548 = vld [vmem:[%s1 + $0x10] sm:$0xff]
    %v3549 = vld [vmem:[%s1 + $0x18] sm:$0xff]
    %v3550 = vld [vmem:[%s1 + $0x20] sm:$0xf]
    %v3551 = vld [vmem:[%s2] sm:$0x1]
    %v3553 = vlaneseq
    %v3554 = vshrl.u32 %v3553, 7
    %v3555 = vsub.s32 0, %v3554
    %v3556 = vrot.slane %v3551, %v3555
    %vm3558 = vcmask 293888
    %v3560 = vsel %vm3558, %v3482, 0
    %v3563 = vsel %vm3558, %v3483, 0
    %v3566 = vsel %vm3558, %v3484, 0
    %v3569 = vsel %vm3558, %v3485, 0
    %v3572 = vsel %vm3558, %v3486, 0
    %v3575 = vsel %vm3558, %v3487, 0
    %v3578 = vsel %vm3558, %v3488, 0
    %v3581 = vsel %vm3558, %v3489, 0
    %v3584 = vsel %vm3558, %v3490, 0
    %v3587 = vsel %vm3558, %v3491, 0
    %v3590 = vsel %vm3558, %v3492, 0
    %v3593 = vsel %vm3558, %v3493, 0
    %v3596 = vsel %vm3558, %v3494, 0
    %v3599 = vsel %vm3558, %v3495, 0
    %v3602 = vsel %vm3558, %v3496, 0
    %v3605 = vsel %vm3558, %v3497, 0
    %v3608 = vsel %vm3558, %v3498, 0
    %v3611 = vsel %vm3558, %v3499, 0
    %v3614 = vsel %vm3558, %v3500, 0
    %v3617 = vsel %vm3558, %v3501, 0
    %v3620 = vsel %vm3558, %v3502, 0
    %v3623 = vsel %vm3558, %v3503, 0
    %v3626 = vsel %vm3558, %v3504, 0
    %v3629 = vsel %vm3558, %v3505, 0
    %v3632 = vsel %vm3558, %v3506, 0
    %v3635 = vsel %vm3558, %v3507, 0
    %v3638 = vsel %vm3558, %v3508, 0
    %v3641 = vsel %vm3558, %v3509, 0
    %v3644 = vsel %vm3558, %v3510, 0
    %v3647 = vsel %vm3558, %v3511, 0
    %v3650 = vsel %vm3558, %v3512, 0
    %v3653 = vsel %vm3558, %v3513, 0
    %v3656 = vsel %vm3558, %v3514, 0
    %v3659 = vsel %vm3558, %v3515, 0
    %v3662 = vsel %vm3558, %v3516, 0
    %v3665 = vsel %vm3558, %v3517, 0
    %v3668 = vsel %vm3558, %v3518, 0
    %v3671 = vsel %vm3558, %v3519, 0
    %v3674 = vsel %vm3558, %v3520, 0
    %v3677 = vsel %vm3558, %v3521, 0
    %v3680 = vsel %vm3558, %v3522, 0
    %v3683 = vsel %vm3558, %v3523, 0
    %v3686 = vsel %vm3558, %v3524, 0
    %v3689 = vsel %vm3558, %v3525, 0
    %v3692 = vsel %vm3558, %v3526, 0
    %v3695 = vsel %vm3558, %v3527, 0
    %v3698 = vsel %vm3558, %v3528, 0
    %v3701 = vsel %vm3558, %v3529, 0
    %v3704 = vsel %vm3558, %v3530, 0
    %v3707 = vsel %vm3558, %v3531, 0
    %v3710 = vsel %vm3558, %v3532, 0
    %v3713 = vsel %vm3558, %v3533, 0
    %v3716 = vsel %vm3558, %v3534, 0
    %v3719 = vsel %vm3558, %v3535, 0
    %v3722 = vsel %vm3558, %v3536, 0
    %v3725 = vsel %vm3558, %v3537, 0
    %v3728 = vsel %vm3558, %v3538, 0
    %v3731 = vsel %vm3558, %v3539, 0
    %v3734 = vsel %vm3558, %v3540, 0
    %v3737 = vsel %vm3558, %v3541, 0
    %v3740 = vsel %vm3558, %v3542, 0
    %v3743 = vsel %vm3558, %v3543, 0
    %v3746 = vsel %vm3558, %v3544, 0
    %v3749 = vsel %vm3558, %v3545, 0
    %vm3751 = vcmask 1043456
    %v3753 = vsel %vm3751, %v3550, 0
    %3755 = vmatprep.subr.mxu0 0.0
    %3756 = vmatpush1.msra.mxu0 %v3546
    %3757 = vmatprep.subr.mxu0 0.0
    %3758 = vmatpush1.msra.mxu0 %v3547
    %3759 = vmatprep.subr.mxu0 0.0
    %3760 = vmatpush1.msra.mxu0 %v3548
    %3761 = vmatprep.subr.mxu0 0.0
    %3762 = vmatpush1.msra.mxu0 %v3549
    %3763 = vmatprep.subr.mxu0 0.0
    %3764 = vmatpush1.msra.mxu0 %v3753
    %3765 = vmatprep.subr.mxu0 0.0
    %3766 = vmatpush1.msra.mxu0 0.0
    %3767 = vmatprep.subr.mxu0 0.0
    %3768 = vmatpush1.msra.mxu0 0.0
    %3769 = vmatprep.subr.mxu0 0.0
    %3770 = vmatpush1.msra.mxu0 0.0
    %3771 = vmatprep.subr.mxu0 0.0
    %3772 = vmatpush1.msra.mxu0 0.0
    %3773 = vmatprep.subr.mxu0 0.0
    %3774 = vmatpush1.msra.mxu0 0.0
    %3775 = vmatprep.subr.mxu0 0.0
    %3776 = vmatpush1.msra.mxu0 0.0
    %3777 = vmatprep.subr.mxu0 0.0
    %3778 = vmatpush1.msra.mxu0 0.0
    %3779 = vmatprep.subr.mxu0 0.0
    %3780 = vmatpush1.msra.mxu0 0.0
    %3781 = vmatprep.subr.mxu0 0.0
    %3782 = vmatpush1.msra.mxu0 0.0
    %3783 = vmatprep.subr.mxu0 0.0
    %3784 = vmatpush1.msra.mxu0 0.0
    %3785 = vmatprep.subr.mxu0 0.0
    %3786 = vmatpush1.msra.mxu0 0.0
    %3787 = vmatprep.subr.mxu0 0.0
    %3788 = vmatpush1.msra.mxu0 0.0
    %3789 = vmatprep.subr.mxu0 0.0
    %3790 = vmatpush1.msra.mxu0 0.0
    %3791 = vmatprep.subr.mxu0 0.0
    %3792 = vmatpush1.msra.mxu0 0.0
    %3793 = vmatprep.subr.mxu0 0.0
    %3794 = vmatpush1.msra.mxu0 0.0
    %3795 = vmatprep.subr.mxu0 0.0
    %3796 = vmatpush1.msra.mxu0 0.0
    %3797 = vmatprep.subr.mxu0 0.0
    %3798 = vmatpush1.msra.mxu0 0.0
    %3799 = vmatprep.subr.mxu0 0.0
    %3800 = vmatpush1.msra.mxu0 0.0
    %3801 = vmatprep.subr.mxu0 0.0
    %3802 = vmatpush1.msra.mxu0 0.0
    %3803 = vmatprep.subr.mxu0 0.0
    %3804 = vmatpush1.msra.mxu0 0.0
    %3805 = vmatprep.subr.mxu0 0.0
    %3806 = vmatpush1.msra.mxu0 0.0
    %3807 = vmatprep.subr.mxu0 0.0
    %3808 = vmatpush1.msra.mxu0 0.0
    %3809 = vmatprep.subr.mxu0 0.0
    %3810 = vmatpush1.msra.mxu0 0.0
    %3811 = vmatprep.subr.mxu0 0.0
    %3812 = vmatpush1.msra.mxu0 0.0
    %3813 = vmatprep.subr.mxu0 0.0
    %3814 = vmatpush1.msra.mxu0 0.0
    %3815 = vmatprep.subr.mxu0 0.0
    %3816 = vmatpush1.msra.mxu0 0.0
    %3817 = vmatprep.subr.mxu0 0.0
    %3818 = vmatpush1.msra.mxu0 0.0
    %3819 = vmatprep.mubr.f32.mxu0 0.0
    %3820 = vmatmul.mubr.f32.gmra.mrb[0].mxu0 %v3560
    %v3821 = vpop.f32.mrb[0].mxu0
    %v3822 = vadd.f32 %v3556, %v3821
    %v3823 = vpop.f32.mrb[0].mxu0
    %3824 = vmatprep.mubr.f32.mxu0 0.0
    %3825 = vmatmul.mubr.f32.gmra.mrb[0].mxu0 %v3563
    %v3826 = vpop.f32.mrb[0].mxu0
    %v3827 = vadd.f32 %v3556, %v3826
    %v3828 = vpop.f32.mrb[0].mxu0
    %3829 = vmatprep.mubr.f32.mxu0 0.0
    %3830 = vmatmul.mubr.f32.gmra.mrb[0].mxu0 %v3566
    %v3831 = vpop.f32.mrb[0].mxu0
    %v3832 = vadd.f32 %v3556, %v3831
    %v3833 = vpop.f32.mrb[0].mxu0
    %3834 = vmatprep.mubr.f32.mxu0 0.0
    %3835 = vmatmul.mubr.f32.gmra.mrb[0].mxu0 %v3569
    %v3836 = vpop.f32.mrb[0].mxu0
    %v3837 = vadd.f32 %v3556, %v3836
    %v3838 = vpop.f32.mrb[0].mxu0
    %3839 = vmatprep.mubr.f32.mxu0 0.0
    %3840 = vmatmul.mubr.f32.gmra.mrb[0].mxu0 %v3572
    %v3841 = vpop.f32.mrb[0].mxu0
    %v3842 = vadd.f32 %v3556, %v3841
    %v3843 = vpop.f32.mrb[0].mxu0
    %3844 = vmatprep.mubr.f32.mxu0 0.0
    %3845 = vmatmul.mubr.f32.gmra.mrb[0].mxu0 %v3575
    %v3846 = vpop.f32.mrb[0].mxu0
    %v3847 = vadd.f32 %v3556, %v3846
    %v3848 = vpop.f32.mrb[0].mxu0
    %3849 = vmatprep.mubr.f32.mxu0 0.0
    %3850 = vmatmul.mubr.f32.gmra.mrb[0].mxu0 %v3578
    %v3851 = vpop.f32.mrb[0].mxu0
    %v3852 = vadd.f32 %v3556, %v3851
    %v3853 = vpop.f32.mrb[0].mxu0
    %3854 = vmatprep.mubr.f32.mxu0 0.0
    %3855 = vmatmul.mubr.f32.gmra.mrb[0].mxu0 %v3581
    %v3856 = vpop.f32.mrb[0].mxu0
    %v3857 = vadd.f32 %v3556, %v3856
    %v3858 = vpop.f32.mrb[0].mxu0
    %3859 = vmatprep.mubr.f32.mxu0 0.0
    %3860 = vmatmul.mubr.f32.gmra.mrb[0].mxu0 %v3584
    %v3861 = vpop.f32.mrb[0].mxu0
    %v3862 = vadd.f32 %v3556, %v3861
    %v3863 = vpop.f32.mrb[0].mxu0
    %3864 = vmatprep.mubr.f32.mxu0 0.0
    %3865 = vmatmul.mubr.f32.gmra.mrb[0].mxu0 %v3587
    %v3866 = vpop.f32.mrb[0].mxu0
    %v3867 = vadd.f32 %v3556, %v3866
    %v3868 = vpop.f32.mrb[0].mxu0
    %3869 = vmatprep.mubr.f32.mxu0 0.0
    %3870 = vmatmul.mubr.f32.gmra.mrb[0].mxu0 %v3590
    %v3871 = vpop.f32.mrb[0].mxu0
    %v3872 = vadd.f32 %v3556, %v3871
    %v3873 = vpop.f32.mrb[0].mxu0
    %3874 = vmatprep.mubr.f32.mxu0 0.0
    %3875 = vmatmul.mubr.f32.gmra.mrb[0].mxu0 %v3593
    %v3876 = vpop.f32.mrb[0].mxu0
    %v3877 = vadd.f32 %v3556, %v3876
    %v3878 = vpop.f32.mrb[0].mxu0
    %3879 = vmatprep.mubr.f32.mxu0 0.0
    %3880 = vmatmul.mubr.f32.gmra.mrb[0].mxu0 %v3596
    %v3881 = vpop.f32.mrb[0].mxu0
    %v3882 = vadd.f32 %v3556, %v3881
    %v3883 = vpop.f32.mrb[0].mxu0
    %3884 = vmatprep.mubr.f32.mxu0 0.0
    %3885 = vmatmul.mubr.f32.gmra.mrb[0].mxu0 %v3599
    %v3886 = vpop.f32.mrb[0].mxu0
    %v3887 = vadd.f32 %v3556, %v3886
    %v3888 = vpop.f32.mrb[0].mxu0
    %3889 = vmatprep.mubr.f32.mxu0 0.0
    %3890 = vmatmul.mubr.f32.gmra.mrb[0].mxu0 %v3602
    %v3891 = vpop.f32.mrb[0].mxu0
    %v3892 = vadd.f32 %v3556, %v3891
    %v3893 = vpop.f32.mrb[0].mxu0
    %3894 = vmatprep.mubr.f32.mxu0 0.0
    %3895 = vmatmul.mubr.f32.gmra.mrb[0].mxu0 %v3605
    %v3896 = vpop.f32.mrb[0].mxu0
    %v3897 = vadd.f32 %v3556, %v3896
    %v3898 = vpop.f32.mrb[0].mxu0
    %3899 = vmatprep.mubr.f32.mxu0 0.0
    %3900 = vmatmul.mubr.f32.gmra.mrb[0].mxu0 %v3608
    %v3901 = vpop.f32.mrb[0].mxu0
    %v3902 = vadd.f32 %v3556, %v3901
    %v3903 = vpop.f32.mrb[0].mxu0
    %3904 = vmatprep.mubr.f32.mxu0 0.0
    %3905 = vmatmul.mubr.f32.gmra.mrb[0].mxu0 %v3611
    %v3906 = vpop.f32.mrb[0].mxu0
    %v3907 = vadd.f32 %v3556, %v3906
    %v3908 = vpop.f32.mrb[0].mxu0
    %3909 = vmatprep.mubr.f32.mxu0 0.0
    %3910 = vmatmul.mubr.f32.gmra.mrb[0].mxu0 %v3614
    %v3911 = vpop.f32.mrb[0].mxu0
    %v3912 = vadd.f32 %v3556, %v3911
    %v3913 = vpop.f32.mrb[0].mxu0
    %3914 = vmatprep.mubr.f32.mxu0 0.0
    %3915 = vmatmul.mubr.f32.gmra.mrb[0].mxu0 %v3617
    %v3916 = vpop.f32.mrb[0].mxu0
    %v3917 = vadd.f32 %v3556, %v3916
    %v3918 = vpop.f32.mrb[0].mxu0
    %3919 = vmatprep.mubr.f32.mxu0 0.0
    %3920 = vmatmul.mubr.f32.gmra.mrb[0].mxu0 %v3620
    %v3921 = vpop.f32.mrb[0].mxu0
    %v3922 = vadd.f32 %v3556, %v3921
    %v3923 = vpop.f32.mrb[0].mxu0
    %3924 = vmatprep.mubr.f32.mxu0 0.0
    %3925 = vmatmul.mubr.f32.gmra.mrb[0].mxu0 %v3623
    %v3926 = vpop.f32.mrb[0].mxu0
    %v3927 = vadd.f32 %v3556, %v3926
    %v3928 = vpop.f32.mrb[0].mxu0
    %3929 = vmatprep.mubr.f32.mxu0 0.0
    %3930 = vmatmul.mubr.f32.gmra.mrb[0].mxu0 %v3626
    %v3931 = vpop.f32.mrb[0].mxu0
    %v3932 = vadd.f32 %v3556, %v3931
    %v3933 = vpop.f32.mrb[0].mxu0
    %3934 = vmatprep.mubr.f32.mxu0 0.0
    %3935 = vmatmul.mubr.f32.gmra.mrb[0].mxu0 %v3629
    %v3936 = vpop.f32.mrb[0].mxu0
    %v3937 = vadd.f32 %v3556, %v3936
    %v3938 = vpop.f32.mrb[0].mxu0
    %3939 = vmatprep.mubr.f32.mxu0 0.0
    %3940 = vmatmul.mubr.f32.gmra.mrb[0].mxu0 %v3632
    %v3941 = vpop.f32.mrb[0].mxu0
    %v3942 = vadd.f32 %v3556, %v3941
    %v3943 = vpop.f32.mrb[0].mxu0
    %3944 = vmatprep.mubr.f32.mxu0 0.0
    %3945 = vmatmul.mubr.f32.gmra.mrb[0].mxu0 %v3635
    %v3946 = vpop.f32.mrb[0].mxu0
    %v3947 = vadd.f32 %v3556, %v3946
    %v3948 = vpop.f32.mrb[0].mxu0
    %3949 = vmatprep.mubr.f32.mxu0 0.0
    %3950 = vmatmul.mubr.f32.gmra.mrb[0].mxu0 %v3638
    %v3951 = vpop.f32.mrb[0].mxu0
    %v3952 = vadd.f32 %v3556, %v3951
    %v3953 = vpop.f32.mrb[0].mxu0
    %3954 = vmatprep.mubr.f32.mxu0 0.0
    %3955 = vmatmul.mubr.f32.gmra.mrb[0].mxu0 %v3641
    %v3956 = vpop.f32.mrb[0].mxu0
    %v3957 = vadd.f32 %v3556, %v3956
    %v3958 = vpop.f32.mrb[0].mxu0
    %3959 = vmatprep.mubr.f32.mxu0 0.0
    %3960 = vmatmul.mubr.f32.gmra.mrb[0].mxu0 %v3644
    %v3961 = vpop.f32.mrb[0].mxu0
    %v3962 = vadd.f32 %v3556, %v3961
    %v3963 = vpop.f32.mrb[0].mxu0
    %3964 = vmatprep.mubr.f32.mxu0 0.0
    %3965 = vmatmul.mubr.f32.gmra.mrb[0].mxu0 %v3647
    %v3966 = vpop.f32.mrb[0].mxu0
    %v3967 = vadd.f32 %v3556, %v3966
    %v3968 = vpop.f32.mrb[0].mxu0
    %3969 = vmatprep.mubr.f32.mxu0 0.0
    %3970 = vmatmul.mubr.f32.gmra.mrb[0].mxu0 %v3650
    %v3971 = vpop.f32.mrb[0].mxu0
    %v3972 = vadd.f32 %v3556, %v3971
    %v3973 = vpop.f32.mrb[0].mxu0
    %3974 = vmatprep.mubr.f32.mxu0 0.0
    %3975 = vmatmul.mubr.f32.gmra.mrb[0].mxu0 %v3653
    %v3976 = vpop.f32.mrb[0].mxu0
    %v3977 = vadd.f32 %v3556, %v3976
    %v3978 = vpop.f32.mrb[0].mxu0
    %3979 = vmatprep.mubr.f32.mxu0 0.0
    %3980 = vmatmul.mubr.f32.gmra.mrb[0].mxu0 %v3656
    %v3981 = vpop.f32.mrb[0].mxu0
    %v3982 = vadd.f32 %v3556, %v3981
    %v3983 = vpop.f32.mrb[0].mxu0
    %3984 = vmatprep.mubr.f32.mxu0 0.0
    %3985 = vmatmul.mubr.f32.gmra.mrb[0].mxu0 %v3659
    %v3986 = vpop.f32.mrb[0].mxu0
    %v3987 = vadd.f32 %v3556, %v3986
    %v3988 = vpop.f32.mrb[0].mxu0
    %3989 = vmatprep.mubr.f32.mxu0 0.0
    %3990 = vmatmul.mubr.f32.gmra.mrb[0].mxu0 %v3662
    %v3991 = vpop.f32.mrb[0].mxu0
    %v3992 = vadd.f32 %v3556, %v3991
    %v3993 = vpop.f32.mrb[0].mxu0
    %3994 = vmatprep.mubr.f32.mxu0 0.0
    %3995 = vmatmul.mubr.f32.gmra.mrb[0].mxu0 %v3665
    %v3996 = vpop.f32.mrb[0].mxu0
    %v3997 = vadd.f32 %v3556, %v3996
    %v3998 = vpop.f32.mrb[0].mxu0
    %3999 = vmatprep.mubr.f32.mxu0 0.0
    %4000 = vmatmul.mubr.f32.gmra.mrb[0].mxu0 %v3668
    %v4001 = vpop.f32.mrb[0].mxu0
    %v4002 = vadd.f32 %v3556, %v4001
    %v4003 = vpop.f32.mrb[0].mxu0
    %4004 = vmatprep.mubr.f32.mxu0 0.0
    %4005 = vmatmul.mubr.f32.gmra.mrb[0].mxu0 %v3671
    %v4006 = vpop.f32.mrb[0].mxu0
    %v4007 = vadd.f32 %v3556, %v4006
    %v4008 = vpop.f32.mrb[0].mxu0
    %4009 = vmatprep.mubr.f32.mxu0 0.0
    %4010 = vmatmul.mubr.f32.gmra.mrb[0].mxu0 %v3674
    %v4011 = vpop.f32.mrb[0].mxu0
    %v4012 = vadd.f32 %v3556, %v4011
    %v4013 = vpop.f32.mrb[0].mxu0
    %4014 = vmatprep.mubr.f32.mxu0 0.0
    %4015 = vmatmul.mubr.f32.gmra.mrb[0].mxu0 %v3677
    %v4016 = vpop.f32.mrb[0].mxu0
    %v4017 = vadd.f32 %v3556, %v4016
    %v4018 = vpop.f32.mrb[0].mxu0
    %4019 = vmatprep.mubr.f32.mxu0 0.0
    %4020 = vmatmul.mubr.f32.gmra.mrb[0].mxu0 %v3680
    %v4021 = vpop.f32.mrb[0].mxu0
    %v4022 = vadd.f32 %v3556, %v4021
    %v4023 = vpop.f32.mrb[0].mxu0
    %4024 = vmatprep.mubr.f32.mxu0 0.0
    %4025 = vmatmul.mubr.f32.gmra.mrb[0].mxu0 %v3683
    %v4026 = vpop.f32.mrb[0].mxu0
    %v4027 = vadd.f32 %v3556, %v4026
    %v4028 = vpop.f32.mrb[0].mxu0
    %4029 = vmatprep.mubr.f32.mxu0 0.0
    %4030 = vmatmul.mubr.f32.gmra.mrb[0].mxu0 %v3686
    %v4031 = vpop.f32.mrb[0].mxu0
    %v4032 = vadd.f32 %v3556, %v4031
    %v4033 = vpop.f32.mrb[0].mxu0
    %4034 = vmatprep.mubr.f32.mxu0 0.0
    %4035 = vmatmul.mubr.f32.gmra.mrb[0].mxu0 %v3689
    %v4036 = vpop.f32.mrb[0].mxu0
    %v4037 = vadd.f32 %v3556, %v4036
    %v4038 = vpop.f32.mrb[0].mxu0
    %4039 = vmatprep.mubr.f32.mxu0 0.0
    %4040 = vmatmul.mubr.f32.gmra.mrb[0].mxu0 %v3692
    %v4041 = vpop.f32.mrb[0].mxu0
    %v4042 = vadd.f32 %v3556, %v4041
    %v4043 = vpop.f32.mrb[0].mxu0
    %4044 = vmatprep.mubr.f32.mxu0 0.0
    %4045 = vmatmul.mubr.f32.gmra.mrb[0].mxu0 %v3695
    %v4046 = vpop.f32.mrb[0].mxu0
    %v4047 = vadd.f32 %v3556, %v4046
    %v4048 = vpop.f32.mrb[0].mxu0
    %4049 = vmatprep.mubr.f32.mxu0 0.0
    %4050 = vmatmul.mubr.f32.gmra.mrb[0].mxu0 %v3698
    %v4051 = vpop.f32.mrb[0].mxu0
    %v4052 = vadd.f32 %v3556, %v4051
    %v4053 = vpop.f32.mrb[0].mxu0
    %4054 = vmatprep.mubr.f32.mxu0 0.0
    %4055 = vmatmul.mubr.f32.gmra.mrb[0].mxu0 %v3701
    %v4056 = vpop.f32.mrb[0].mxu0
    %v4057 = vadd.f32 %v3556, %v4056
    %v4058 = vpop.f32.mrb[0].mxu0
    %4059 = vmatprep.mubr.f32.mxu0 0.0
    %4060 = vmatmul.mubr.f32.gmra.mrb[0].mxu0 %v3704
    %v4061 = vpop.f32.mrb[0].mxu0
    %v4062 = vadd.f32 %v3556, %v4061
    %v4063 = vpop.f32.mrb[0].mxu0
    %4064 = vmatprep.mubr.f32.mxu0 0.0
    %4065 = vmatmul.mubr.f32.gmra.mrb[0].mxu0 %v3707
    %v4066 = vpop.f32.mrb[0].mxu0
    %v4067 = vadd.f32 %v3556, %v4066
    %v4068 = vpop.f32.mrb[0].mxu0
    %4069 = vmatprep.mubr.f32.mxu0 0.0
    %4070 = vmatmul.mubr.f32.gmra.mrb[0].mxu0 %v3710
    %v4071 = vpop.f32.mrb[0].mxu0
    %v4072 = vadd.f32 %v3556, %v4071
    %v4073 = vpop.f32.mrb[0].mxu0
    %4074 = vmatprep.mubr.f32.mxu0 0.0
    %4075 = vmatmul.mubr.f32.gmra.mrb[0].mxu0 %v3713
    %v4076 = vpop.f32.mrb[0].mxu0
    %v4077 = vadd.f32 %v3556, %v4076
    %v4078 = vpop.f32.mrb[0].mxu0
    %4079 = vmatprep.mubr.f32.mxu0 0.0
    %4080 = vmatmul.mubr.f32.gmra.mrb[0].mxu0 %v3716
    %v4081 = vpop.f32.mrb[0].mxu0
    %v4082 = vadd.f32 %v3556, %v4081
    %v4083 = vpop.f32.mrb[0].mxu0
    %4084 = vmatprep.mubr.f32.mxu0 0.0
    %4085 = vmatmul.mubr.f32.gmra.mrb[0].mxu0 %v3719
    %v4086 = vpop.f32.mrb[0].mxu0
    %v4087 = vadd.f32 %v3556, %v4086
    %v4088 = vpop.f32.mrb[0].mxu0
    %4089 = vmatprep.mubr.f32.mxu0 0.0
    %4090 = vmatmul.mubr.f32.gmra.mrb[0].mxu0 %v3722
    %v4091 = vpop.f32.mrb[0].mxu0
    %v4092 = vadd.f32 %v3556, %v4091
    %v4093 = vpop.f32.mrb[0].mxu0
    %4094 = vmatprep.mubr.f32.mxu0 0.0
    %4095 = vmatmul.mubr.f32.gmra.mrb[0].mxu0 %v3725
    %v4096 = vpop.f32.mrb[0].mxu0
    %v4097 = vadd.f32 %v3556, %v4096
    %v4098 = vpop.f32.mrb[0].mxu0
    %4099 = vmatprep.mubr.f32.mxu0 0.0
    %4100 = vmatmul.mubr.f32.gmra.mrb[0].mxu0 %v3728
    %v4101 = vpop.f32.mrb[0].mxu0
    %v4102 = vadd.f32 %v3556, %v4101
    %v4103 = vpop.f32.mrb[0].mxu0
    %4104 = vmatprep.mubr.f32.mxu0 0.0
    %4105 = vmatmul.mubr.f32.gmra.mrb[0].mxu0 %v3731
    %v4106 = vpop.f32.mrb[0].mxu0
    %v4107 = vadd.f32 %v3556, %v4106
    %v4108 = vpop.f32.mrb[0].mxu0
    %4109 = vmatprep.mubr.f32.mxu0 0.0
    %4110 = vmatmul.mubr.f32.gmra.mrb[0].mxu0 %v3734
    %v4111 = vpop.f32.mrb[0].mxu0
    %v4112 = vadd.f32 %v3556, %v4111
    %v4113 = vpop.f32.mrb[0].mxu0
    %4114 = vmatprep.mubr.f32.mxu0 0.0
    %4115 = vmatmul.mubr.f32.gmra.mrb[0].mxu0 %v3737
    %v4116 = vpop.f32.mrb[0].mxu0
    %v4117 = vadd.f32 %v3556, %v4116
    %v4118 = vpop.f32.mrb[0].mxu0
    %4119 = vmatprep.mubr.f32.mxu0 0.0
    %4120 = vmatmul.mubr.f32.gmra.mrb[0].mxu0 %v3740
    %v4121 = vpop.f32.mrb[0].mxu0
    %v4122 = vadd.f32 %v3556, %v4121
    %v4123 = vpop.f32.mrb[0].mxu0
    %4124 = vmatprep.mubr.f32.mxu0 0.0
    %4125 = vmatmul.mubr.f32.gmra.mrb[0].mxu0 %v3743
    %v4126 = vpop.f32.mrb[0].mxu0
    %v4127 = vadd.f32 %v3556, %v4126
    %v4128 = vpop.f32.mrb[0].mxu0
    %4129 = vmatprep.mubr.f32.mxu0 0.0
    %4130 = vmatmul.mubr.f32.gmra.mrb[0].mxu0 %v3746
    %v4131 = vpop.f32.mrb[0].mxu0
    %v4132 = vadd.f32 %v3556, %v4131
    %v4133 = vpop.f32.mrb[0].mxu0
    %4134 = vmatprep.mubr.f32.mxu0 0.0
    %4135 = vmatmul.mubr.f32.gmra.mrb[0].mxu0 %v3749
    %v4136 = vpop.f32.mrb[0].mxu0
    %v4137 = vadd.f32 %v3556, %v4136
    %v4138 = vpop.f32.mrb[0].mxu0
    %4139 = vdwg.mxu0
    %v4140 = vmax.f32 %v3822, 0.0
    %v4141 = vmax.f32 %v3827, 0.0
    %v4142 = vmax.f32 %v3832, 0.0
    %v4143 = vmax.f32 %v3837, 0.0
    %v4144 = vmax.f32 %v3842, 0.0
    %v4145 = vmax.f32 %v3847, 0.0
    %v4146 = vmax.f32 %v3852, 0.0
    %v4147 = vmax.f32 %v3857, 0.0
    %v4148 = vmax.f32 %v3862, 0.0
    %v4149 = vmax.f32 %v3867, 0.0
    %v4150 = vmax.f32 %v3872, 0.0
    %v4151 = vmax.f32 %v3877, 0.0
    %v4152 = vmax.f32 %v3882, 0.0
    %v4153 = vmax.f32 %v3887, 0.0
    %v4154 = vmax.f32 %v3892, 0.0
    %v4155 = vmax.f32 %v3897, 0.0
    %v4156 = vmax.f32 %v3902, 0.0
    %v4157 = vmax.f32 %v3907, 0.0
    %v4158 = vmax.f32 %v3912, 0.0
    %v4159 = vmax.f32 %v3917, 0.0
    %v4160 = vmax.f32 %v3922, 0.0
    %v4161 = vmax.f32 %v3927, 0.0
    %v4162 = vmax.f32 %v3932, 0.0
    %v4163 = vmax.f32 %v3937, 0.0
    %v4164 = vmax.f32 %v3942, 0.0
    %v4165 = vmax.f32 %v3947, 0.0
    %v4166 = vmax.f32 %v3952, 0.0
    %v4167 = vmax.f32 %v3957, 0.0
    %v4168 = vmax.f32 %v3962, 0.0
    %v4169 = vmax.f32 %v3967, 0.0
    %v4170 = vmax.f32 %v3972, 0.0
    %v4171 = vmax.f32 %v3977, 0.0
    %v4172 = vmax.f32 %v3982, 0.0
    %v4173 = vmax.f32 %v3987, 0.0
    %v4174 = vmax.f32 %v3992, 0.0
    %v4175 = vmax.f32 %v3997, 0.0
    %v4176 = vmax.f32 %v4002, 0.0
    %v4177 = vmax.f32 %v4007, 0.0
    %v4178 = vmax.f32 %v4012, 0.0
    %v4179 = vmax.f32 %v4017, 0.0
    %v4180 = vmax.f32 %v4022, 0.0
    %v4181 = vmax.f32 %v4027, 0.0
    %v4182 = vmax.f32 %v4032, 0.0
    %v4183 = vmax.f32 %v4037, 0.0
    %v4184 = vmax.f32 %v4042, 0.0
    %v4185 = vmax.f32 %v4047, 0.0
    %v4186 = vmax.f32 %v4052, 0.0
    %v4187 = vmax.f32 %v4057, 0.0
    %v4188 = vmax.f32 %v4062, 0.0
    %v4189 = vmax.f32 %v4067, 0.0
    %v4190 = vmax.f32 %v4072, 0.0
    %v4191 = vmax.f32 %v4077, 0.0
    %v4192 = vmax.f32 %v4082, 0.0
    %v4193 = vmax.f32 %v4087, 0.0
    %v4194 = vmax.f32 %v4092, 0.0
    %v4195 = vmax.f32 %v4097, 0.0
    %v4196 = vmax.f32 %v4102, 0.0
    %v4197 = vmax.f32 %v4107, 0.0
    %v4198 = vmax.f32 %v4112, 0.0
    %v4199 = vmax.f32 %v4117, 0.0
    %v4200 = vmax.f32 %v4122, 0.0
    %v4201 = vmax.f32 %v4127, 0.0
    %v4202 = vmax.f32 %v4132, 0.0
    %v4203 = vmax.f32 %v4137, 0.0
    %vm4204 = vcmask 64512
    %v4205 = vsel %vm4204, %v4140, -inf
    %v4206 = vsel %vm4204, %v4142, -inf
    %v4207 = vmax.f32 %v4205, %v4206
    %v4208 = vsel %vm4204, %v4141, -inf
    %v4209 = vsel %vm4204, %v4143, -inf
    %v4210 = vmax.f32 %v4208, %v4209
    %v4211 = vsel %vm4204, %v4144, -inf
    %v4212 = vsel %vm4204, %v4146, -inf
    %v4213 = vmax.f32 %v4211, %v4212
    %v4214 = vsel %vm4204, %v4145, -inf
    %v4215 = vsel %vm4204, %v4147, -inf
    %v4216 = vmax.f32 %v4214, %v4215
    %v4217 = vsel %vm4204, %v4148, -inf
    %v4218 = vsel %vm4204, %v4150, -inf
    %v4219 = vmax.f32 %v4217, %v4218
    %v4220 = vsel %vm4204, %v4149, -inf
    %v4221 = vsel %vm4204, %v4151, -inf
    %v4222 = vmax.f32 %v4220, %v4221
    %v4223 = vsel %vm4204, %v4152, -inf
    %v4224 = vsel %vm4204, %v4154, -inf
    %v4225 = vmax.f32 %v4223, %v4224
    %v4226 = vsel %vm4204, %v4153, -inf
    %v4227 = vsel %vm4204, %v4155, -inf
    %v4228 = vmax.f32 %v4226, %v4227
    %v4229 = vsel %vm4204, %v4156, -inf
    %v4230 = vsel %vm4204, %v4158, -inf
    %v4231 = vmax.f32 %v4229, %v4230
    %v4232 = vsel %vm4204, %v4157, -inf
    %v4233 = vsel %vm4204, %v4159, -inf
    %v4234 = vmax.f32 %v4232, %v4233
    %v4235 = vsel %vm4204, %v4160, -inf
    %v4236 = vsel %vm4204, %v4162, -inf
    %v4237 = vmax.f32 %v4235, %v4236
    %v4238 = vsel %vm4204, %v4161, -inf
    %v4239 = vsel %vm4204, %v4163, -inf
    %v4240 = vmax.f32 %v4238, %v4239
    %v4241 = vsel %vm4204, %v4164, -inf
    %v4242 = vsel %vm4204, %v4166, -inf
    %v4243 = vmax.f32 %v4241, %v4242
    %v4244 = vsel %vm4204, %v4165, -inf
    %v4245 = vsel %vm4204, %v4167, -inf
    %v4246 = vmax.f32 %v4244, %v4245
    %v4247 = vsel %vm4204, %v4168, -inf
    %v4248 = vsel %vm4204, %v4170, -inf
    %v4249 = vmax.f32 %v4247, %v4248
    %v4250 = vsel %vm4204, %v4169, -inf
    %v4251 = vsel %vm4204, %v4171, -inf
    %v4252 = vmax.f32 %v4250, %v4251
    %v4253 = vsel %vm4204, %v4172, -inf
    %v4254 = vsel %vm4204, %v4174, -inf
    %v4255 = vmax.f32 %v4253, %v4254
    %v4256 = vsel %vm4204, %v4173, -inf
    %v4257 = vsel %vm4204, %v4175, -inf
    %v4258 = vmax.f32 %v4256, %v4257
    %v4259 = vsel %vm4204, %v4176, -inf
    %v4260 = vsel %vm4204, %v4178, -inf
    %v4261 = vmax.f32 %v4259, %v4260
    %v4262 = vsel %vm4204, %v4177, -inf
    %v4263 = vsel %vm4204, %v4179, -inf
    %v4264 = vmax.f32 %v4262, %v4263
    %v4265 = vsel %vm4204, %v4180, -inf
    %v4266 = vsel %vm4204, %v4182, -inf
    %v4267 = vmax.f32 %v4265, %v4266
    %v4268 = vsel %vm4204, %v4181, -inf
    %v4269 = vsel %vm4204, %v4183, -inf
    %v4270 = vmax.f32 %v4268, %v4269
    %v4271 = vsel %vm4204, %v4184, -inf
    %v4272 = vsel %vm4204, %v4186, -inf
    %v4273 = vmax.f32 %v4271, %v4272
    %v4274 = vsel %vm4204, %v4185, -inf
    %v4275 = vsel %vm4204, %v4187, -inf
    %v4276 = vmax.f32 %v4274, %v4275
    %v4277 = vsel %vm4204, %v4188, -inf
    %v4278 = vsel %vm4204, %v4190, -inf
    %v4279 = vmax.f32 %v4277, %v4278
    %v4280 = vsel %vm4204, %v4189, -inf
    %v4281 = vsel %vm4204, %v4191, -inf
    %v4282 = vmax.f32 %v4280, %v4281
    %v4283 = vsel %vm4204, %v4192, -inf
    %v4284 = vsel %vm4204, %v4194, -inf
    %v4285 = vmax.f32 %v4283, %v4284
    %v4286 = vsel %vm4204, %v4193, -inf
    %v4287 = vsel %vm4204, %v4195, -inf
    %v4288 = vmax.f32 %v4286, %v4287
    %v4289 = vsel %vm4204, %v4196, -inf
    %v4290 = vsel %vm4204, %v4198, -inf
    %v4291 = vmax.f32 %v4289, %v4290
    %v4292 = vsel %vm4204, %v4197, -inf
    %v4293 = vsel %vm4204, %v4199, -inf
    %v4294 = vmax.f32 %v4292, %v4293
    %v4295 = vsel %vm4204, %v4200, -inf
    %v4296 = vsel %vm4204, %v4202, -inf
    %v4297 = vmax.f32 %v4295, %v4296
    %v4298 = vsel %vm4204, %v4201, -inf
    %v4299 = vsel %vm4204, %v4203, -inf
    %v4300 = vmax.f32 %v4298, %v4299
    %v4333 = vcombine.high %v4207, %v4207
    %v4335 = vunpack.c.l.s4 1983009808
    %v4336 = vunpack.c.0.s8 %v4335
    %v4337 = vlaneseq
    %v4338 = vshrl.u32 %v4337, 7
    %v4339 = vsub.s32 %v4336, %v4338
    %v4340 = vrot.slane %v4207, %v4339
    %v4342 = vunpack.c.l.s4 1983009808
    %v4343 = vunpack.c.0.s8 %v4342
    %v4344 = vlaneseq
    %v4345 = vshrl.u32 %v4344, 7
    %v4346 = vsub.s32 %v4343, %v4345
    %v4347 = vrot.slane %v4333, %v4346
    %v4348 = vcombine.high %v4340, %v4340
    %v4349 = vcombine.high %v4347, %v4347
    %v4350 = vcombine.high %v4210, %v4210
    %v4352 = vunpack.c.l.s4 1983009808
    %v4353 = vunpack.c.0.s8 %v4352
    %v4354 = vlaneseq
    %v4355 = vshrl.u32 %v4354, 7
    %v4356 = vsub.s32 %v4353, %v4355
    %v4357 = vrot.slane %v4210, %v4356
    %v4359 = vunpack.c.l.s4 1983009808
    %v4360 = vunpack.c.0.s8 %v4359
    %v4361 = vlaneseq
    %v4362 = vshrl.u32 %v4361, 7
    %v4363 = vsub.s32 %v4360, %v4362
    %v4364 = vrot.slane %v4350, %v4363
    %v4365 = vcombine.high %v4357, %v4357
    %v4366 = vcombine.high %v4364, %v4364
    %v4367 = vcombine.high %v4213, %v4213
    %v4369 = vunpack.c.l.s4 1983009808
    %v4370 = vunpack.c.0.s8 %v4369
    %v4371 = vlaneseq
    %v4372 = vshrl.u32 %v4371, 7
    %v4373 = vsub.s32 %v4370, %v4372
    %v4374 = vrot.slane %v4213, %v4373
    %v4376 = vunpack.c.l.s4 1983009808
    %v4377 = vunpack.c.0.s8 %v4376
    %v4378 = vlaneseq
    %v4379 = vshrl.u32 %v4378, 7
    %v4380 = vsub.s32 %v4377, %v4379
    %v4381 = vrot.slane %v4367, %v4380
    %v4382 = vcombine.high %v4374, %v4374
    %v4383 = vcombine.high %v4381, %v4381
    %v4384 = vcombine.high %v4216, %v4216
    %v4386 = vunpack.c.l.s4 1983009808
    %v4387 = vunpack.c.0.s8 %v4386
    %v4388 = vlaneseq
    %v4389 = vshrl.u32 %v4388, 7
    %v4390 = vsub.s32 %v4387, %v4389
    %v4391 = vrot.slane %v4216, %v4390
    %v4393 = vunpack.c.l.s4 1983009808
    %v4394 = vunpack.c.0.s8 %v4393
    %v4395 = vlaneseq
    %v4396 = vshrl.u32 %v4395, 7
    %v4397 = vsub.s32 %v4394, %v4396
    %v4398 = vrot.slane %v4384, %v4397
    %v4399 = vcombine.high %v4391, %v4391
    %v4400 = vcombine.high %v4398, %v4398
    %v4401 = vcombine.high %v4219, %v4219
    %v4403 = vunpack.c.l.s4 1983009808
    %v4404 = vunpack.c.0.s8 %v4403
    %v4405 = vlaneseq
    %v4406 = vshrl.u32 %v4405, 7
    %v4407 = vsub.s32 %v4404, %v4406
    %v4408 = vrot.slane %v4219, %v4407
    %v4410 = vunpack.c.l.s4 1983009808
    %v4411 = vunpack.c.0.s8 %v4410
    %v4412 = vlaneseq
    %v4413 = vshrl.u32 %v4412, 7
    %v4414 = vsub.s32 %v4411, %v4413
    %v4415 = vrot.slane %v4401, %v4414
    %v4416 = vcombine.high %v4408, %v4408
    %v4417 = vcombine.high %v4415, %v4415
    %v4418 = vcombine.high %v4222, %v4222
    %v4420 = vunpack.c.l.s4 1983009808
    %v4421 = vunpack.c.0.s8 %v4420
    %v4422 = vlaneseq
    %v4423 = vshrl.u32 %v4422, 7
    %v4424 = vsub.s32 %v4421, %v4423
    %v4425 = vrot.slane %v4222, %v4424
    %v4427 = vunpack.c.l.s4 1983009808
    %v4428 = vunpack.c.0.s8 %v4427
    %v4429 = vlaneseq
    %v4430 = vshrl.u32 %v4429, 7
    %v4431 = vsub.s32 %v4428, %v4430
    %v4432 = vrot.slane %v4418, %v4431
    %v4433 = vcombine.high %v4425, %v4425
    %v4434 = vcombine.high %v4432, %v4432
    %v4435 = vcombine.high %v4225, %v4225
    %v4437 = vunpack.c.l.s4 1983009808
    %v4438 = vunpack.c.0.s8 %v4437
    %v4439 = vlaneseq
    %v4440 = vshrl.u32 %v4439, 7
    %v4441 = vsub.s32 %v4438, %v4440
    %v4442 = vrot.slane %v4225, %v4441
    %v4444 = vunpack.c.l.s4 1983009808
    %v4445 = vunpack.c.0.s8 %v4444
    %v4446 = vlaneseq
    %v4447 = vshrl.u32 %v4446, 7
    %v4448 = vsub.s32 %v4445, %v4447
    %v4449 = vrot.slane %v4435, %v4448
    %v4450 = vcombine.high %v4442, %v4442
    %v4451 = vcombine.high %v4449, %v4449
    %v4452 = vcombine.high %v4228, %v4228
    %v4454 = vunpack.c.l.s4 1983009808
    %v4455 = vunpack.c.0.s8 %v4454
    %v4456 = vlaneseq
    %v4457 = vshrl.u32 %v4456, 7
    %v4458 = vsub.s32 %v4455, %v4457
    %v4459 = vrot.slane %v4228, %v4458
    %v4461 = vunpack.c.l.s4 1983009808
    %v4462 = vunpack.c.0.s8 %v4461
    %v4463 = vlaneseq
    %v4464 = vshrl.u32 %v4463, 7
    %v4465 = vsub.s32 %v4462, %v4464
    %v4466 = vrot.slane %v4452, %v4465
    %v4467 = vcombine.high %v4459, %v4459
    %v4468 = vcombine.high %v4466, %v4466
    %v4469 = vcombine.high %v4231, %v4231
    %v4471 = vunpack.c.l.s4 1983009808
    %v4472 = vunpack.c.0.s8 %v4471
    %v4473 = vlaneseq
    %v4474 = vshrl.u32 %v4473, 7
    %v4475 = vsub.s32 %v4472, %v4474
    %v4476 = vrot.slane %v4231, %v4475
    %v4478 = vunpack.c.l.s4 1983009808
    %v4479 = vunpack.c.0.s8 %v4478
    %v4480 = vlaneseq
    %v4481 = vshrl.u32 %v4480, 7
    %v4482 = vsub.s32 %v4479, %v4481
    %v4483 = vrot.slane %v4469, %v4482
    %v4484 = vcombine.high %v4476, %v4476
    %v4485 = vcombine.high %v4483, %v4483
    %v4486 = vcombine.high %v4234, %v4234
    %v4488 = vunpack.c.l.s4 1983009808
    %v4489 = vunpack.c.0.s8 %v4488
    %v4490 = vlaneseq
    %v4491 = vshrl.u32 %v4490, 7
    %v4492 = vsub.s32 %v4489, %v4491
    %v4493 = vrot.slane %v4234, %v4492
    %v4495 = vunpack.c.l.s4 1983009808
    %v4496 = vunpack.c.0.s8 %v4495
    %v4497 = vlaneseq
    %v4498 = vshrl.u32 %v4497, 7
    %v4499 = vsub.s32 %v4496, %v4498
    %v4500 = vrot.slane %v4486, %v4499
    %v4501 = vcombine.high %v4493, %v4493
    %v4502 = vcombine.high %v4500, %v4500
    %v4503 = vcombine.high %v4237, %v4237
    %v4505 = vunpack.c.l.s4 1983009808
    %v4506 = vunpack.c.0.s8 %v4505
    %v4507 = vlaneseq
    %v4508 = vshrl.u32 %v4507, 7
    %v4509 = vsub.s32 %v4506, %v4508
    %v4510 = vrot.slane %v4237, %v4509
    %v4512 = vunpack.c.l.s4 1983009808
    %v4513 = vunpack.c.0.s8 %v4512
    %v4514 = vlaneseq
    %v4515 = vshrl.u32 %v4514, 7
    %v4516 = vsub.s32 %v4513, %v4515
    %v4517 = vrot.slane %v4503, %v4516
    %v4518 = vcombine.high %v4510, %v4510
    %v4519 = vcombine.high %v4517, %v4517
    %v4520 = vcombine.high %v4240, %v4240
    %v4522 = vunpack.c.l.s4 1983009808
    %v4523 = vunpack.c.0.s8 %v4522
    %v4524 = vlaneseq
    %v4525 = vshrl.u32 %v4524, 7
    %v4526 = vsub.s32 %v4523, %v4525
    %v4527 = vrot.slane %v4240, %v4526
    %v4529 = vunpack.c.l.s4 1983009808
    %v4530 = vunpack.c.0.s8 %v4529
    %v4531 = vlaneseq
    %v4532 = vshrl.u32 %v4531, 7
    %v4533 = vsub.s32 %v4530, %v4532
    %v4534 = vrot.slane %v4520, %v4533
    %v4535 = vcombine.high %v4527, %v4527
    %v4536 = vcombine.high %v4534, %v4534
    %v4537 = vcombine.high %v4243, %v4243
    %v4539 = vunpack.c.l.s4 1983009808
    %v4540 = vunpack.c.0.s8 %v4539
    %v4541 = vlaneseq
    %v4542 = vshrl.u32 %v4541, 7
    %v4543 = vsub.s32 %v4540, %v4542
    %v4544 = vrot.slane %v4243, %v4543
    %v4546 = vunpack.c.l.s4 1983009808
    %v4547 = vunpack.c.0.s8 %v4546
    %v4548 = vlaneseq
    %v4549 = vshrl.u32 %v4548, 7
    %v4550 = vsub.s32 %v4547, %v4549
    %v4551 = vrot.slane %v4537, %v4550
    %v4552 = vcombine.high %v4544, %v4544
    %v4553 = vcombine.high %v4551, %v4551
    %v4554 = vcombine.high %v4246, %v4246
    %v4556 = vunpack.c.l.s4 1983009808
    %v4557 = vunpack.c.0.s8 %v4556
    %v4558 = vlaneseq
    %v4559 = vshrl.u32 %v4558, 7
    %v4560 = vsub.s32 %v4557, %v4559
    %v4561 = vrot.slane %v4246, %v4560
    %v4563 = vunpack.c.l.s4 1983009808
    %v4564 = vunpack.c.0.s8 %v4563
    %v4565 = vlaneseq
    %v4566 = vshrl.u32 %v4565, 7
    %v4567 = vsub.s32 %v4564, %v4566
    %v4568 = vrot.slane %v4554, %v4567
    %v4569 = vcombine.high %v4561, %v4561
    %v4570 = vcombine.high %v4568, %v4568
    %v4571 = vcombine.high %v4249, %v4249
    %v4573 = vunpack.c.l.s4 1983009808
    %v4574 = vunpack.c.0.s8 %v4573
    %v4575 = vlaneseq
    %v4576 = vshrl.u32 %v4575, 7
    %v4577 = vsub.s32 %v4574, %v4576
    %v4578 = vrot.slane %v4249, %v4577
    %v4580 = vunpack.c.l.s4 1983009808
    %v4581 = vunpack.c.0.s8 %v4580
    %v4582 = vlaneseq
    %v4583 = vshrl.u32 %v4582, 7
    %v4584 = vsub.s32 %v4581, %v4583
    %v4585 = vrot.slane %v4571, %v4584
    %v4586 = vcombine.high %v4578, %v4578
    %v4587 = vcombine.high %v4585, %v4585
    %v4588 = vcombine.high %v4252, %v4252
    %v4590 = vunpack.c.l.s4 1983009808
    %v4591 = vunpack.c.0.s8 %v4590
    %v4592 = vlaneseq
    %v4593 = vshrl.u32 %v4592, 7
    %v4594 = vsub.s32 %v4591, %v4593
    %v4595 = vrot.slane %v4252, %v4594
    %v4597 = vunpack.c.l.s4 1983009808
    %v4598 = vunpack.c.0.s8 %v4597
    %v4599 = vlaneseq
    %v4600 = vshrl.u32 %v4599, 7
    %v4601 = vsub.s32 %v4598, %v4600
    %v4602 = vrot.slane %v4588, %v4601
    %v4603 = vcombine.high %v4595, %v4595
    %v4604 = vcombine.high %v4602, %v4602
    %v4605 = vcombine.high %v4255, %v4255
    %v4607 = vunpack.c.l.s4 1983009808
    %v4608 = vunpack.c.0.s8 %v4607
    %v4609 = vlaneseq
    %v4610 = vshrl.u32 %v4609, 7
    %v4611 = vsub.s32 %v4608, %v4610
    %v4612 = vrot.slane %v4255, %v4611
    %v4614 = vunpack.c.l.s4 1983009808
    %v4615 = vunpack.c.0.s8 %v4614
    %v4616 = vlaneseq
    %v4617 = vshrl.u32 %v4616, 7
    %v4618 = vsub.s32 %v4615, %v4617
    %v4619 = vrot.slane %v4605, %v4618
    %v4620 = vcombine.high %v4612, %v4612
    %v4621 = vcombine.high %v4619, %v4619
    %v4622 = vcombine.high %v4258, %v4258
    %v4624 = vunpack.c.l.s4 1983009808
    %v4625 = vunpack.c.0.s8 %v4624
    %v4626 = vlaneseq
    %v4627 = vshrl.u32 %v4626, 7
    %v4628 = vsub.s32 %v4625, %v4627
    %v4629 = vrot.slane %v4258, %v4628
    %v4631 = vunpack.c.l.s4 1983009808
    %v4632 = vunpack.c.0.s8 %v4631
    %v4633 = vlaneseq
    %v4634 = vshrl.u32 %v4633, 7
    %v4635 = vsub.s32 %v4632, %v4634
    %v4636 = vrot.slane %v4622, %v4635
    %v4637 = vcombine.high %v4629, %v4629
    %v4638 = vcombine.high %v4636, %v4636
    %v4639 = vcombine.high %v4261, %v4261
    %v4641 = vunpack.c.l.s4 1983009808
    %v4642 = vunpack.c.0.s8 %v4641
    %v4643 = vlaneseq
    %v4644 = vshrl.u32 %v4643, 7
    %v4645 = vsub.s32 %v4642, %v4644
    %v4646 = vrot.slane %v4261, %v4645
    %v4648 = vunpack.c.l.s4 1983009808
    %v4649 = vunpack.c.0.s8 %v4648
    %v4650 = vlaneseq
    %v4651 = vshrl.u32 %v4650, 7
    %v4652 = vsub.s32 %v4649, %v4651
    %v4653 = vrot.slane %v4639, %v4652
    %v4654 = vcombine.high %v4646, %v4646
    %v4655 = vcombine.high %v4653, %v4653
    %v4656 = vcombine.high %v4264, %v4264
    %v4658 = vunpack.c.l.s4 1983009808
    %v4659 = vunpack.c.0.s8 %v4658
    %v4660 = vlaneseq
    %v4661 = vshrl.u32 %v4660, 7
    %v4662 = vsub.s32 %v4659, %v4661
    %v4663 = vrot.slane %v4264, %v4662
    %v4665 = vunpack.c.l.s4 1983009808
    %v4666 = vunpack.c.0.s8 %v4665
    %v4667 = vlaneseq
    %v4668 = vshrl.u32 %v4667, 7
    %v4669 = vsub.s32 %v4666, %v4668
    %v4670 = vrot.slane %v4656, %v4669
    %v4671 = vcombine.high %v4663, %v4663
    %v4672 = vcombine.high %v4670, %v4670
    %v4673 = vcombine.high %v4267, %v4267
    %v4675 = vunpack.c.l.s4 1983009808
    %v4676 = vunpack.c.0.s8 %v4675
    %v4677 = vlaneseq
    %v4678 = vshrl.u32 %v4677, 7
    %v4679 = vsub.s32 %v4676, %v4678
    %v4680 = vrot.slane %v4267, %v4679
    %v4682 = vunpack.c.l.s4 1983009808
    %v4683 = vunpack.c.0.s8 %v4682
    %v4684 = vlaneseq
    %v4685 = vshrl.u32 %v4684, 7
    %v4686 = vsub.s32 %v4683, %v4685
    %v4687 = vrot.slane %v4673, %v4686
    %v4688 = vcombine.high %v4680, %v4680
    %v4689 = vcombine.high %v4687, %v4687
    %v4690 = vcombine.high %v4270, %v4270
    %v4692 = vunpack.c.l.s4 1983009808
    %v4693 = vunpack.c.0.s8 %v4692
    %v4694 = vlaneseq
    %v4695 = vshrl.u32 %v4694, 7
    %v4696 = vsub.s32 %v4693, %v4695
    %v4697 = vrot.slane %v4270, %v4696
    %v4699 = vunpack.c.l.s4 1983009808
    %v4700 = vunpack.c.0.s8 %v4699
    %v4701 = vlaneseq
    %v4702 = vshrl.u32 %v4701, 7
    %v4703 = vsub.s32 %v4700, %v4702
    %v4704 = vrot.slane %v4690, %v4703
    %v4705 = vcombine.high %v4697, %v4697
    %v4706 = vcombine.high %v4704, %v4704
    %v4707 = vcombine.high %v4273, %v4273
    %v4709 = vunpack.c.l.s4 1983009808
    %v4710 = vunpack.c.0.s8 %v4709
    %v4711 = vlaneseq
    %v4712 = vshrl.u32 %v4711, 7
    %v4713 = vsub.s32 %v4710, %v4712
    %v4714 = vrot.slane %v4273, %v4713
    %v4716 = vunpack.c.l.s4 1983009808
    %v4717 = vunpack.c.0.s8 %v4716
    %v4718 = vlaneseq
    %v4719 = vshrl.u32 %v4718, 7
    %v4720 = vsub.s32 %v4717, %v4719
    %v4721 = vrot.slane %v4707, %v4720
    %v4722 = vcombine.high %v4714, %v4714
    %v4723 = vcombine.high %v4721, %v4721
    %v4724 = vcombine.high %v4276, %v4276
    %v4726 = vunpack.c.l.s4 1983009808
    %v4727 = vunpack.c.0.s8 %v4726
    %v4728 = vlaneseq
    %v4729 = vshrl.u32 %v4728, 7
    %v4730 = vsub.s32 %v4727, %v4729
    %v4731 = vrot.slane %v4276, %v4730
    %v4733 = vunpack.c.l.s4 1983009808
    %v4734 = vunpack.c.0.s8 %v4733
    %v4735 = vlaneseq
    %v4736 = vshrl.u32 %v4735, 7
    %v4737 = vsub.s32 %v4734, %v4736
    %v4738 = vrot.slane %v4724, %v4737
    %v4739 = vcombine.high %v4731, %v4731
    %v4740 = vcombine.high %v4738, %v4738
    %v4741 = vcombine.high %v4279, %v4279
    %v4743 = vunpack.c.l.s4 1983009808
    %v4744 = vunpack.c.0.s8 %v4743
    %v4745 = vlaneseq
    %v4746 = vshrl.u32 %v4745, 7
    %v4747 = vsub.s32 %v4744, %v4746
    %v4748 = vrot.slane %v4279, %v4747
    %v4750 = vunpack.c.l.s4 1983009808
    %v4751 = vunpack.c.0.s8 %v4750
    %v4752 = vlaneseq
    %v4753 = vshrl.u32 %v4752, 7
    %v4754 = vsub.s32 %v4751, %v4753
    %v4755 = vrot.slane %v4741, %v4754
    %v4756 = vcombine.high %v4748, %v4748
    %v4757 = vcombine.high %v4755, %v4755
    %v4758 = vcombine.high %v4282, %v4282
    %v4760 = vunpack.c.l.s4 1983009808
    %v4761 = vunpack.c.0.s8 %v4760
    %v4762 = vlaneseq
    %v4763 = vshrl.u32 %v4762, 7
    %v4764 = vsub.s32 %v4761, %v4763
    %v4765 = vrot.slane %v4282, %v4764
    %v4767 = vunpack.c.l.s4 1983009808
    %v4768 = vunpack.c.0.s8 %v4767
    %v4769 = vlaneseq
    %v4770 = vshrl.u32 %v4769, 7
    %v4771 = vsub.s32 %v4768, %v4770
    %v4772 = vrot.slane %v4758, %v4771
    %v4773 = vcombine.high %v4765, %v4765
    %v4774 = vcombine.high %v4772, %v4772
    %v4775 = vcombine.high %v4285, %v4285
    %v4777 = vunpack.c.l.s4 1983009808
    %v4778 = vunpack.c.0.s8 %v4777
    %v4779 = vlaneseq
    %v4780 = vshrl.u32 %v4779, 7
    %v4781 = vsub.s32 %v4778, %v4780
    %v4782 = vrot.slane %v4285, %v4781
    %v4784 = vunpack.c.l.s4 1983009808
    %v4785 = vunpack.c.0.s8 %v4784
    %v4786 = vlaneseq
    %v4787 = vshrl.u32 %v4786, 7
    %v4788 = vsub.s32 %v4785, %v4787
    %v4789 = vrot.slane %v4775, %v4788
    %v4790 = vcombine.high %v4782, %v4782
    %v4791 = vcombine.high %v4789, %v4789
    %v4792 = vcombine.high %v4288, %v4288
    %v4794 = vunpack.c.l.s4 1983009808
    %v4795 = vunpack.c.0.s8 %v4794
    %v4796 = vlaneseq
    %v4797 = vshrl.u32 %v4796, 7
    %v4798 = vsub.s32 %v4795, %v4797
    %v4799 = vrot.slane %v4288, %v4798
    %v4801 = vunpack.c.l.s4 1983009808
    %v4802 = vunpack.c.0.s8 %v4801
    %v4803 = vlaneseq
    %v4804 = vshrl.u32 %v4803, 7
    %v4805 = vsub.s32 %v4802, %v4804
    %v4806 = vrot.slane %v4792, %v4805
    %v4807 = vcombine.high %v4799, %v4799
    %v4808 = vcombine.high %v4806, %v4806
    %v4809 = vcombine.high %v4291, %v4291
    %v4811 = vunpack.c.l.s4 1983009808
    %v4812 = vunpack.c.0.s8 %v4811
    %v4813 = vlaneseq
    %v4814 = vshrl.u32 %v4813, 7
    %v4815 = vsub.s32 %v4812, %v4814
    %v4816 = vrot.slane %v4291, %v4815
    %v4818 = vunpack.c.l.s4 1983009808
    %v4819 = vunpack.c.0.s8 %v4818
    %v4820 = vlaneseq
    %v4821 = vshrl.u32 %v4820, 7
    %v4822 = vsub.s32 %v4819, %v4821
    %v4823 = vrot.slane %v4809, %v4822
    %v4824 = vcombine.high %v4816, %v4816
    %v4825 = vcombine.high %v4823, %v4823
    %v4826 = vcombine.high %v4294, %v4294
    %v4828 = vunpack.c.l.s4 1983009808
    %v4829 = vunpack.c.0.s8 %v4828
    %v4830 = vlaneseq
    %v4831 = vshrl.u32 %v4830, 7
    %v4832 = vsub.s32 %v4829, %v4831
    %v4833 = vrot.slane %v4294, %v4832
    %v4835 = vunpack.c.l.s4 1983009808
    %v4836 = vunpack.c.0.s8 %v4835
    %v4837 = vlaneseq
    %v4838 = vshrl.u32 %v4837, 7
    %v4839 = vsub.s32 %v4836, %v4838
    %v4840 = vrot.slane %v4826, %v4839
    %v4841 = vcombine.high %v4833, %v4833
    %v4842 = vcombine.high %v4840, %v4840
    %v4843 = vcombine.high %v4297, %v4297
    %v4845 = vunpack.c.l.s4 1983009808
    %v4846 = vunpack.c.0.s8 %v4845
    %v4847 = vlaneseq
    %v4848 = vshrl.u32 %v4847, 7
    %v4849 = vsub.s32 %v4846, %v4848
    %v4850 = vrot.slane %v4297, %v4849
    %v4852 = vunpack.c.l.s4 1983009808
    %v4853 = vunpack.c.0.s8 %v4852
    %v4854 = vlaneseq
    %v4855 = vshrl.u32 %v4854, 7
    %v4856 = vsub.s32 %v4853, %v4855
    %v4857 = vrot.slane %v4843, %v4856
    %v4858 = vcombine.high %v4850, %v4850
    %v4859 = vcombine.high %v4857, %v4857
    %v4860 = vcombine.high %v4300, %v4300
    %v4862 = vunpack.c.l.s4 1983009808
    %v4863 = vunpack.c.0.s8 %v4862
    %v4864 = vlaneseq
    %v4865 = vshrl.u32 %v4864, 7
    %v4866 = vsub.s32 %v4863, %v4865
    %v4867 = vrot.slane %v4300, %v4866
    %v4869 = vunpack.c.l.s4 1983009808
    %v4870 = vunpack.c.0.s8 %v4869
    %v4871 = vlaneseq
    %v4872 = vshrl.u32 %v4871, 7
    %v4873 = vsub.s32 %v4870, %v4872
    %v4874 = vrot.slane %v4860, %v4873
    %v4875 = vcombine.high %v4867, %v4867
    %v4876 = vcombine.high %v4874, %v4874
    %vm5005 = vcmask 58368
    %v5006 = vsel %vm5005, %v4340, -inf
    %v5007 = vrot.slane %v5006, 4
    %v5008 = vmax.f32 %v5006, %v5007
    %v5009 = vrot.slane %v5008, 2
    %v5010 = vmax.f32 %v5008, %v5009
    %v5011 = vrot.slane %v5010, 1
    %v5012 = vmax.f32 %v5010, %v5011
    %v5013 = vsel %vm5005, %v4348, -inf
    %v5014 = vrot.slane %v5013, 4
    %v5015 = vmax.f32 %v5013, %v5014
    %v5016 = vrot.slane %v5015, 2
    %v5017 = vmax.f32 %v5015, %v5016
    %v5018 = vrot.slane %v5017, 1
    %v5019 = vmax.f32 %v5017, %v5018
    %v5020 = vsel %vm5005, %v4347, -inf
    %v5021 = vrot.slane %v5020, 4
    %v5022 = vmax.f32 %v5020, %v5021
    %v5023 = vrot.slane %v5022, 2
    %v5024 = vmax.f32 %v5022, %v5023
    %v5025 = vrot.slane %v5024, 1
    %v5026 = vmax.f32 %v5024, %v5025
    %v5027 = vsel %vm5005, %v4349, -inf
    %v5028 = vrot.slane %v5027, 4
    %v5029 = vmax.f32 %v5027, %v5028
    %v5030 = vrot.slane %v5029, 2
    %v5031 = vmax.f32 %v5029, %v5030
    %v5032 = vrot.slane %v5031, 1
    %v5033 = vmax.f32 %v5031, %v5032
    %v5034 = vsel %vm5005, %v4357, -inf
    %v5035 = vrot.slane %v5034, 4
    %v5036 = vmax.f32 %v5034, %v5035
    %v5037 = vrot.slane %v5036, 2
    %v5038 = vmax.f32 %v5036, %v5037
    %v5039 = vrot.slane %v5038, 1
    %v5040 = vmax.f32 %v5038, %v5039
    %v5041 = vsel %vm5005, %v4365, -inf
    %v5042 = vrot.slane %v5041, 4
    %v5043 = vmax.f32 %v5041, %v5042
    %v5044 = vrot.slane %v5043, 2
    %v5045 = vmax.f32 %v5043, %v5044
    %v5046 = vrot.slane %v5045, 1
    %v5047 = vmax.f32 %v5045, %v5046
    %v5048 = vsel %vm5005, %v4364, -inf
    %v5049 = vrot.slane %v5048, 4
    %v5050 = vmax.f32 %v5048, %v5049
    %v5051 = vrot.slane %v5050, 2
    %v5052 = vmax.f32 %v5050, %v5051
    %v5053 = vrot.slane %v5052, 1
    %v5054 = vmax.f32 %v5052, %v5053
    %v5055 = vsel %vm5005, %v4366, -inf
    %v5056 = vrot.slane %v5055, 4
    %v5057 = vmax.f32 %v5055, %v5056
    %v5058 = vrot.slane %v5057, 2
    %v5059 = vmax.f32 %v5057, %v5058
    %v5060 = vrot.slane %v5059, 1
    %v5061 = vmax.f32 %v5059, %v5060
    %v5062 = vsel %vm5005, %v4374, -inf
    %v5063 = vrot.slane %v5062, 4
    %v5064 = vmax.f32 %v5062, %v5063
    %v5065 = vrot.slane %v5064, 2
    %v5066 = vmax.f32 %v5064, %v5065
    %v5067 = vrot.slane %v5066, 1
    %v5068 = vmax.f32 %v5066, %v5067
    %v5069 = vsel %vm5005, %v4382, -inf
    %v5070 = vrot.slane %v5069, 4
    %v5071 = vmax.f32 %v5069, %v5070
    %v5072 = vrot.slane %v5071, 2
    %v5073 = vmax.f32 %v5071, %v5072
    %v5074 = vrot.slane %v5073, 1
    %v5075 = vmax.f32 %v5073, %v5074
    %v5076 = vsel %vm5005, %v4381, -inf
    %v5077 = vrot.slane %v5076, 4
    %v5078 = vmax.f32 %v5076, %v5077
    %v5079 = vrot.slane %v5078, 2
    %v5080 = vmax.f32 %v5078, %v5079
    %v5081 = vrot.slane %v5080, 1
    %v5082 = vmax.f32 %v5080, %v5081
    %v5083 = vsel %vm5005, %v4383, -inf
    %v5084 = vrot.slane %v5083, 4
    %v5085 = vmax.f32 %v5083, %v5084
    %v5086 = vrot.slane %v5085, 2
    %v5087 = vmax.f32 %v5085, %v5086
    %v5088 = vrot.slane %v5087, 1
    %v5089 = vmax.f32 %v5087, %v5088
    %v5090 = vsel %vm5005, %v4391, -inf
    %v5091 = vrot.slane %v5090, 4
    %v5092 = vmax.f32 %v5090, %v5091
    %v5093 = vrot.slane %v5092, 2
    %v5094 = vmax.f32 %v5092, %v5093
    %v5095 = vrot.slane %v5094, 1
    %v5096 = vmax.f32 %v5094, %v5095
    %v5097 = vsel %vm5005, %v4399, -inf
    %v5098 = vrot.slane %v5097, 4
    %v5099 = vmax.f32 %v5097, %v5098
    %v5100 = vrot.slane %v5099, 2
    %v5101 = vmax.f32 %v5099, %v5100
    %v5102 = vrot.slane %v5101, 1
    %v5103 = vmax.f32 %v5101, %v5102
    %v5104 = vsel %vm5005, %v4398, -inf
    %v5105 = vrot.slane %v5104, 4
    %v5106 = vmax.f32 %v5104, %v5105
    %v5107 = vrot.slane %v5106, 2
    %v5108 = vmax.f32 %v5106, %v5107
    %v5109 = vrot.slane %v5108, 1
    %v5110 = vmax.f32 %v5108, %v5109
    %v5111 = vsel %vm5005, %v4400, -inf
    %v5112 = vrot.slane %v5111, 4
    %v5113 = vmax.f32 %v5111, %v5112
    %v5114 = vrot.slane %v5113, 2
    %v5115 = vmax.f32 %v5113, %v5114
    %v5116 = vrot.slane %v5115, 1
    %v5117 = vmax.f32 %v5115, %v5116
    %v5118 = vsel %vm5005, %v4408, -inf
    %v5119 = vrot.slane %v5118, 4
    %v5120 = vmax.f32 %v5118, %v5119
    %v5121 = vrot.slane %v5120, 2
    %v5122 = vmax.f32 %v5120, %v5121
    %v5123 = vrot.slane %v5122, 1
    %v5124 = vmax.f32 %v5122, %v5123
    %v5125 = vsel %vm5005, %v4416, -inf
    %v5126 = vrot.slane %v5125, 4
    %v5127 = vmax.f32 %v5125, %v5126
    %v5128 = vrot.slane %v5127, 2
    %v5129 = vmax.f32 %v5127, %v5128
    %v5130 = vrot.slane %v5129, 1
    %v5131 = vmax.f32 %v5129, %v5130
    %v5132 = vsel %vm5005, %v4415, -inf
    %v5133 = vrot.slane %v5132, 4
    %v5134 = vmax.f32 %v5132, %v5133
    %v5135 = vrot.slane %v5134, 2
    %v5136 = vmax.f32 %v5134, %v5135
    %v5137 = vrot.slane %v5136, 1
    %v5138 = vmax.f32 %v5136, %v5137
    %v5139 = vsel %vm5005, %v4417, -inf
    %v5140 = vrot.slane %v5139, 4
    %v5141 = vmax.f32 %v5139, %v5140
    %v5142 = vrot.slane %v5141, 2
    %v5143 = vmax.f32 %v5141, %v5142
    %v5144 = vrot.slane %v5143, 1
    %v5145 = vmax.f32 %v5143, %v5144
    %v5146 = vsel %vm5005, %v4425, -inf
    %v5147 = vrot.slane %v5146, 4
    %v5148 = vmax.f32 %v5146, %v5147
    %v5149 = vrot.slane %v5148, 2
    %v5150 = vmax.f32 %v5148, %v5149
    %v5151 = vrot.slane %v5150, 1
    %v5152 = vmax.f32 %v5150, %v5151
    %v5153 = vsel %vm5005, %v4433, -inf
    %v5154 = vrot.slane %v5153, 4
    %v5155 = vmax.f32 %v5153, %v5154
    %v5156 = vrot.slane %v5155, 2
    %v5157 = vmax.f32 %v5155, %v5156
    %v5158 = vrot.slane %v5157, 1
    %v5159 = vmax.f32 %v5157, %v5158
    %v5160 = vsel %vm5005, %v4432, -inf
    %v5161 = vrot.slane %v5160, 4
    %v5162 = vmax.f32 %v5160, %v5161
    %v5163 = vrot.slane %v5162, 2
    %v5164 = vmax.f32 %v5162, %v5163
    %v5165 = vrot.slane %v5164, 1
    %v5166 = vmax.f32 %v5164, %v5165
    %v5167 = vsel %vm5005, %v4434, -inf
    %v5168 = vrot.slane %v5167, 4
    %v5169 = vmax.f32 %v5167, %v5168
    %v5170 = vrot.slane %v5169, 2
    %v5171 = vmax.f32 %v5169, %v5170
    %v5172 = vrot.slane %v5171, 1
    %v5173 = vmax.f32 %v5171, %v5172
    %v5174 = vsel %vm5005, %v4442, -inf
    %v5175 = vrot.slane %v5174, 4
    %v5176 = vmax.f32 %v5174, %v5175
    %v5177 = vrot.slane %v5176, 2
    %v5178 = vmax.f32 %v5176, %v5177
    %v5179 = vrot.slane %v5178, 1
    %v5180 = vmax.f32 %v5178, %v5179
    %v5181 = vsel %vm5005, %v4450, -inf
    %v5182 = vrot.slane %v5181, 4
    %v5183 = vmax.f32 %v5181, %v5182
    %v5184 = vrot.slane %v5183, 2
    %v5185 = vmax.f32 %v5183, %v5184
    %v5186 = vrot.slane %v5185, 1
    %v5187 = vmax.f32 %v5185, %v5186
    %v5188 = vsel %vm5005, %v4449, -inf
    %v5189 = vrot.slane %v5188, 4
    %v5190 = vmax.f32 %v5188, %v5189
    %v5191 = vrot.slane %v5190, 2
    %v5192 = vmax.f32 %v5190, %v5191
    %v5193 = vrot.slane %v5192, 1
    %v5194 = vmax.f32 %v5192, %v5193
    %v5195 = vsel %vm5005, %v4451, -inf
    %v5196 = vrot.slane %v5195, 4
    %v5197 = vmax.f32 %v5195, %v5196
    %v5198 = vrot.slane %v5197, 2
    %v5199 = vmax.f32 %v5197, %v5198
    %v5200 = vrot.slane %v5199, 1
    %v5201 = vmax.f32 %v5199, %v5200
    %v5202 = vsel %vm5005, %v4459, -inf
    %v5203 = vrot.slane %v5202, 4
    %v5204 = vmax.f32 %v5202, %v5203
    %v5205 = vrot.slane %v5204, 2
    %v5206 = vmax.f32 %v5204, %v5205
    %v5207 = vrot.slane %v5206, 1
    %v5208 = vmax.f32 %v5206, %v5207
    %v5209 = vsel %vm5005, %v4467, -inf
    %v5210 = vrot.slane %v5209, 4
    %v5211 = vmax.f32 %v5209, %v5210
    %v5212 = vrot.slane %v5211, 2
    %v5213 = vmax.f32 %v5211, %v5212
    %v5214 = vrot.slane %v5213, 1
    %v5215 = vmax.f32 %v5213, %v5214
    %v5216 = vsel %vm5005, %v4466, -inf
    %v5217 = vrot.slane %v5216, 4
    %v5218 = vmax.f32 %v5216, %v5217
    %v5219 = vrot.slane %v5218, 2
    %v5220 = vmax.f32 %v5218, %v5219
    %v5221 = vrot.slane %v5220, 1
    %v5222 = vmax.f32 %v5220, %v5221
    %v5223 = vsel %vm5005, %v4468, -inf
    %v5224 = vrot.slane %v5223, 4
    %v5225 = vmax.f32 %v5223, %v5224
    %v5226 = vrot.slane %v5225, 2
    %v5227 = vmax.f32 %v5225, %v5226
    %v5228 = vrot.slane %v5227, 1
    %v5229 = vmax.f32 %v5227, %v5228
    %v5230 = vsel %vm5005, %v4476, -inf
    %v5231 = vrot.slane %v5230, 4
    %v5232 = vmax.f32 %v5230, %v5231
    %v5233 = vrot.slane %v5232, 2
    %v5234 = vmax.f32 %v5232, %v5233
    %v5235 = vrot.slane %v5234, 1
    %v5236 = vmax.f32 %v5234, %v5235
    %v5237 = vsel %vm5005, %v4484, -inf
    %v5238 = vrot.slane %v5237, 4
    %v5239 = vmax.f32 %v5237, %v5238
    %v5240 = vrot.slane %v5239, 2
    %v5241 = vmax.f32 %v5239, %v5240
    %v5242 = vrot.slane %v5241, 1
    %v5243 = vmax.f32 %v5241, %v5242
    %v5244 = vsel %vm5005, %v4483, -inf
    %v5245 = vrot.slane %v5244, 4
    %v5246 = vmax.f32 %v5244, %v5245
    %v5247 = vrot.slane %v5246, 2
    %v5248 = vmax.f32 %v5246, %v5247
    %v5249 = vrot.slane %v5248, 1
    %v5250 = vmax.f32 %v5248, %v5249
    %v5251 = vsel %vm5005, %v4485, -inf
    %v5252 = vrot.slane %v5251, 4
    %v5253 = vmax.f32 %v5251, %v5252
    %v5254 = vrot.slane %v5253, 2
    %v5255 = vmax.f32 %v5253, %v5254
    %v5256 = vrot.slane %v5255, 1
    %v5257 = vmax.f32 %v5255, %v5256
    %v5258 = vsel %vm5005, %v4493, -inf
    %v5259 = vrot.slane %v5258, 4
    %v5260 = vmax.f32 %v5258, %v5259
    %v5261 = vrot.slane %v5260, 2
    %v5262 = vmax.f32 %v5260, %v5261
    %v5263 = vrot.slane %v5262, 1
    %v5264 = vmax.f32 %v5262, %v5263
    %v5265 = vsel %vm5005, %v4501, -inf
    %v5266 = vrot.slane %v5265, 4
    %v5267 = vmax.f32 %v5265, %v5266
    %v5268 = vrot.slane %v5267, 2
    %v5269 = vmax.f32 %v5267, %v5268
    %v5270 = vrot.slane %v5269, 1
    %v5271 = vmax.f32 %v5269, %v5270
    %v5272 = vsel %vm5005, %v4500, -inf
    %v5273 = vrot.slane %v5272, 4
    %v5274 = vmax.f32 %v5272, %v5273
    %v5275 = vrot.slane %v5274, 2
    %v5276 = vmax.f32 %v5274, %v5275
    %v5277 = vrot.slane %v5276, 1
    %v5278 = vmax.f32 %v5276, %v5277
    %v5279 = vsel %vm5005, %v4502, -inf
    %v5280 = vrot.slane %v5279, 4
    %v5281 = vmax.f32 %v5279, %v5280
    %v5282 = vrot.slane %v5281, 2
    %v5283 = vmax.f32 %v5281, %v5282
    %v5284 = vrot.slane %v5283, 1
    %v5285 = vmax.f32 %v5283, %v5284
    %v5286 = vsel %vm5005, %v4510, -inf
    %v5287 = vrot.slane %v5286, 4
    %v5288 = vmax.f32 %v5286, %v5287
    %v5289 = vrot.slane %v5288, 2
    %v5290 = vmax.f32 %v5288, %v5289
    %v5291 = vrot.slane %v5290, 1
    %v5292 = vmax.f32 %v5290, %v5291
    %v5293 = vsel %vm5005, %v4518, -inf
    %v5294 = vrot.slane %v5293, 4
    %v5295 = vmax.f32 %v5293, %v5294
    %v5296 = vrot.slane %v5295, 2
    %v5297 = vmax.f32 %v5295, %v5296
    %v5298 = vrot.slane %v5297, 1
    %v5299 = vmax.f32 %v5297, %v5298
    %v5300 = vsel %vm5005, %v4517, -inf
    %v5301 = vrot.slane %v5300, 4
    %v5302 = vmax.f32 %v5300, %v5301
    %v5303 = vrot.slane %v5302, 2
    %v5304 = vmax.f32 %v5302, %v5303
    %v5305 = vrot.slane %v5304, 1
    %v5306 = vmax.f32 %v5304, %v5305
    %v5307 = vsel %vm5005, %v4519, -inf
    %v5308 = vrot.slane %v5307, 4
    %v5309 = vmax.f32 %v5307, %v5308
    %v5310 = vrot.slane %v5309, 2
    %v5311 = vmax.f32 %v5309, %v5310
    %v5312 = vrot.slane %v5311, 1
    %v5313 = vmax.f32 %v5311, %v5312
    %v5314 = vsel %vm5005, %v4527, -inf
    %v5315 = vrot.slane %v5314, 4
    %v5316 = vmax.f32 %v5314, %v5315
    %v5317 = vrot.slane %v5316, 2
    %v5318 = vmax.f32 %v5316, %v5317
    %v5319 = vrot.slane %v5318, 1
    %v5320 = vmax.f32 %v5318, %v5319
    %v5321 = vsel %vm5005, %v4535, -inf
    %v5322 = vrot.slane %v5321, 4
    %v5323 = vmax.f32 %v5321, %v5322
    %v5324 = vrot.slane %v5323, 2
    %v5325 = vmax.f32 %v5323, %v5324
    %v5326 = vrot.slane %v5325, 1
    %v5327 = vmax.f32 %v5325, %v5326
    %v5328 = vsel %vm5005, %v4534, -inf
    %v5329 = vrot.slane %v5328, 4
    %v5330 = vmax.f32 %v5328, %v5329
    %v5331 = vrot.slane %v5330, 2
    %v5332 = vmax.f32 %v5330, %v5331
    %v5333 = vrot.slane %v5332, 1
    %v5334 = vmax.f32 %v5332, %v5333
    %v5335 = vsel %vm5005, %v4536, -inf
    %v5336 = vrot.slane %v5335, 4
    %v5337 = vmax.f32 %v5335, %v5336
    %v5338 = vrot.slane %v5337, 2
    %v5339 = vmax.f32 %v5337, %v5338
    %v5340 = vrot.slane %v5339, 1
    %v5341 = vmax.f32 %v5339, %v5340
    %v5342 = vsel %vm5005, %v4544, -inf
    %v5343 = vrot.slane %v5342, 4
    %v5344 = vmax.f32 %v5342, %v5343
    %v5345 = vrot.slane %v5344, 2
    %v5346 = vmax.f32 %v5344, %v5345
    %v5347 = vrot.slane %v5346, 1
    %v5348 = vmax.f32 %v5346, %v5347
    %v5349 = vsel %vm5005, %v4552, -inf
    %v5350 = vrot.slane %v5349, 4
    %v5351 = vmax.f32 %v5349, %v5350
    %v5352 = vrot.slane %v5351, 2
    %v5353 = vmax.f32 %v5351, %v5352
    %v5354 = vrot.slane %v5353, 1
    %v5355 = vmax.f32 %v5353, %v5354
    %v5356 = vsel %vm5005, %v4551, -inf
    %v5357 = vrot.slane %v5356, 4
    %v5358 = vmax.f32 %v5356, %v5357
    %v5359 = vrot.slane %v5358, 2
    %v5360 = vmax.f32 %v5358, %v5359
    %v5361 = vrot.slane %v5360, 1
    %v5362 = vmax.f32 %v5360, %v5361
    %v5363 = vsel %vm5005, %v4553, -inf
    %v5364 = vrot.slane %v5363, 4
    %v5365 = vmax.f32 %v5363, %v5364
    %v5366 = vrot.slane %v5365, 2
    %v5367 = vmax.f32 %v5365, %v5366
    %v5368 = vrot.slane %v5367, 1
    %v5369 = vmax.f32 %v5367, %v5368
    %v5370 = vsel %vm5005, %v4561, -inf
    %v5371 = vrot.slane %v5370, 4
    %v5372 = vmax.f32 %v5370, %v5371
    %v5373 = vrot.slane %v5372, 2
    %v5374 = vmax.f32 %v5372, %v5373
    %v5375 = vrot.slane %v5374, 1
    %v5376 = vmax.f32 %v5374, %v5375
    %v5377 = vsel %vm5005, %v4569, -inf
    %v5378 = vrot.slane %v5377, 4
    %v5379 = vmax.f32 %v5377, %v5378
    %v5380 = vrot.slane %v5379, 2
    %v5381 = vmax.f32 %v5379, %v5380
    %v5382 = vrot.slane %v5381, 1
    %v5383 = vmax.f32 %v5381, %v5382
    %v5384 = vsel %vm5005, %v4568, -inf
    %v5385 = vrot.slane %v5384, 4
    %v5386 = vmax.f32 %v5384, %v5385
    %v5387 = vrot.slane %v5386, 2
    %v5388 = vmax.f32 %v5386, %v5387
    %v5389 = vrot.slane %v5388, 1
    %v5390 = vmax.f32 %v5388, %v5389
    %v5391 = vsel %vm5005, %v4570, -inf
    %v5392 = vrot.slane %v5391, 4
    %v5393 = vmax.f32 %v5391, %v5392
    %v5394 = vrot.slane %v5393, 2
    %v5395 = vmax.f32 %v5393, %v5394
    %v5396 = vrot.slane %v5395, 1
    %v5397 = vmax.f32 %v5395, %v5396
    %v5398 = vsel %vm5005, %v4578, -inf
    %v5399 = vrot.slane %v5398, 4
    %v5400 = vmax.f32 %v5398, %v5399
    %v5401 = vrot.slane %v5400, 2
    %v5402 = vmax.f32 %v5400, %v5401
    %v5403 = vrot.slane %v5402, 1
    %v5404 = vmax.f32 %v5402, %v5403
    %v5405 = vsel %vm5005, %v4586, -inf
    %v5406 = vrot.slane %v5405, 4
    %v5407 = vmax.f32 %v5405, %v5406
    %v5408 = vrot.slane %v5407, 2
    %v5409 = vmax.f32 %v5407, %v5408
    %v5410 = vrot.slane %v5409, 1
    %v5411 = vmax.f32 %v5409, %v5410
    %v5412 = vsel %vm5005, %v4585, -inf
    %v5413 = vrot.slane %v5412, 4
    %v5414 = vmax.f32 %v5412, %v5413
    %v5415 = vrot.slane %v5414, 2
    %v5416 = vmax.f32 %v5414, %v5415
    %v5417 = vrot.slane %v5416, 1
    %v5418 = vmax.f32 %v5416, %v5417
    %v5419 = vsel %vm5005, %v4587, -inf
    %v5420 = vrot.slane %v5419, 4
    %v5421 = vmax.f32 %v5419, %v5420
    %v5422 = vrot.slane %v5421, 2
    %v5423 = vmax.f32 %v5421, %v5422
    %v5424 = vrot.slane %v5423, 1
    %v5425 = vmax.f32 %v5423, %v5424
    %v5426 = vsel %vm5005, %v4595, -inf
    %v5427 = vrot.slane %v5426, 4
    %v5428 = vmax.f32 %v5426, %v5427
    %v5429 = vrot.slane %v5428, 2
    %v5430 = vmax.f32 %v5428, %v5429
    %v5431 = vrot.slane %v5430, 1
    %v5432 = vmax.f32 %v5430, %v5431
    %v5433 = vsel %vm5005, %v4603, -inf
    %v5434 = vrot.slane %v5433, 4
    %v5435 = vmax.f32 %v5433, %v5434
    %v5436 = vrot.slane %v5435, 2
    %v5437 = vmax.f32 %v5435, %v5436
    %v5438 = vrot.slane %v5437, 1
    %v5439 = vmax.f32 %v5437, %v5438
    %v5440 = vsel %vm5005, %v4602, -inf
    %v5441 = vrot.slane %v5440, 4
    %v5442 = vmax.f32 %v5440, %v5441
    %v5443 = vrot.slane %v5442, 2
    %v5444 = vmax.f32 %v5442, %v5443
    %v5445 = vrot.slane %v5444, 1
    %v5446 = vmax.f32 %v5444, %v5445
    %v5447 = vsel %vm5005, %v4604, -inf
    %v5448 = vrot.slane %v5447, 4
    %v5449 = vmax.f32 %v5447, %v5448
    %v5450 = vrot.slane %v5449, 2
    %v5451 = vmax.f32 %v5449, %v5450
    %v5452 = vrot.slane %v5451, 1
    %v5453 = vmax.f32 %v5451, %v5452
    %v5454 = vsel %vm5005, %v4612, -inf
    %v5455 = vrot.slane %v5454, 4
    %v5456 = vmax.f32 %v5454, %v5455
    %v5457 = vrot.slane %v5456, 2
    %v5458 = vmax.f32 %v5456, %v5457
    %v5459 = vrot.slane %v5458, 1
    %v5460 = vmax.f32 %v5458, %v5459
    %v5461 = vsel %vm5005, %v4620, -inf
    %v5462 = vrot.slane %v5461, 4
    %v5463 = vmax.f32 %v5461, %v5462
    %v5464 = vrot.slane %v5463, 2
    %v5465 = vmax.f32 %v5463, %v5464
    %v5466 = vrot.slane %v5465, 1
    %v5467 = vmax.f32 %v5465, %v5466
    %v5468 = vsel %vm5005, %v4619, -inf
    %v5469 = vrot.slane %v5468, 4
    %v5470 = vmax.f32 %v5468, %v5469
    %v5471 = vrot.slane %v5470, 2
    %v5472 = vmax.f32 %v5470, %v5471
    %v5473 = vrot.slane %v5472, 1
    %v5474 = vmax.f32 %v5472, %v5473
    %v5475 = vsel %vm5005, %v4621, -inf
    %v5476 = vrot.slane %v5475, 4
    %v5477 = vmax.f32 %v5475, %v5476
    %v5478 = vrot.slane %v5477, 2
    %v5479 = vmax.f32 %v5477, %v5478
    %v5480 = vrot.slane %v5479, 1
    %v5481 = vmax.f32 %v5479, %v5480
    %v5482 = vsel %vm5005, %v4629, -inf
    %v5483 = vrot.slane %v5482, 4
    %v5484 = vmax.f32 %v5482, %v5483
    %v5485 = vrot.slane %v5484, 2
    %v5486 = vmax.f32 %v5484, %v5485
    %v5487 = vrot.slane %v5486, 1
    %v5488 = vmax.f32 %v5486, %v5487
    %v5489 = vsel %vm5005, %v4637, -inf
    %v5490 = vrot.slane %v5489, 4
    %v5491 = vmax.f32 %v5489, %v5490
    %v5492 = vrot.slane %v5491, 2
    %v5493 = vmax.f32 %v5491, %v5492
    %v5494 = vrot.slane %v5493, 1
    %v5495 = vmax.f32 %v5493, %v5494
    %v5496 = vsel %vm5005, %v4636, -inf
    %v5497 = vrot.slane %v5496, 4
    %v5498 = vmax.f32 %v5496, %v5497
    %v5499 = vrot.slane %v5498, 2
    %v5500 = vmax.f32 %v5498, %v5499
    %v5501 = vrot.slane %v5500, 1
    %v5502 = vmax.f32 %v5500, %v5501
    %v5503 = vsel %vm5005, %v4638, -inf
    %v5504 = vrot.slane %v5503, 4
    %v5505 = vmax.f32 %v5503, %v5504
    %v5506 = vrot.slane %v5505, 2
    %v5507 = vmax.f32 %v5505, %v5506
    %v5508 = vrot.slane %v5507, 1
    %v5509 = vmax.f32 %v5507, %v5508
    %v5510 = vsel %vm5005, %v4646, -inf
    %v5511 = vrot.slane %v5510, 4
    %v5512 = vmax.f32 %v5510, %v5511
    %v5513 = vrot.slane %v5512, 2
    %v5514 = vmax.f32 %v5512, %v5513
    %v5515 = vrot.slane %v5514, 1
    %v5516 = vmax.f32 %v5514, %v5515
    %v5517 = vsel %vm5005, %v4654, -inf
    %v5518 = vrot.slane %v5517, 4
    %v5519 = vmax.f32 %v5517, %v5518
    %v5520 = vrot.slane %v5519, 2
    %v5521 = vmax.f32 %v5519, %v5520
    %v5522 = vrot.slane %v5521, 1
    %v5523 = vmax.f32 %v5521, %v5522
    %v5524 = vsel %vm5005, %v4653, -inf
    %v5525 = vrot.slane %v5524, 4
    %v5526 = vmax.f32 %v5524, %v5525
    %v5527 = vrot.slane %v5526, 2
    %v5528 = vmax.f32 %v5526, %v5527
    %v5529 = vrot.slane %v5528, 1
    %v5530 = vmax.f32 %v5528, %v5529
    %v5531 = vsel %vm5005, %v4655, -inf
    %v5532 = vrot.slane %v5531, 4
    %v5533 = vmax.f32 %v5531, %v5532
    %v5534 = vrot.slane %v5533, 2
    %v5535 = vmax.f32 %v5533, %v5534
    %v5536 = vrot.slane %v5535, 1
    %v5537 = vmax.f32 %v5535, %v5536
    %v5538 = vsel %vm5005, %v4663, -inf
    %v5539 = vrot.slane %v5538, 4
    %v5540 = vmax.f32 %v5538, %v5539
    %v5541 = vrot.slane %v5540, 2
    %v5542 = vmax.f32 %v5540, %v5541
    %v5543 = vrot.slane %v5542, 1
    %v5544 = vmax.f32 %v5542, %v5543
    %v5545 = vsel %vm5005, %v4671, -inf
    %v5546 = vrot.slane %v5545, 4
    %v5547 = vmax.f32 %v5545, %v5546
    %v5548 = vrot.slane %v5547, 2
    %v5549 = vmax.f32 %v5547, %v5548
    %v5550 = vrot.slane %v5549, 1
    %v5551 = vmax.f32 %v5549, %v5550
    %v5552 = vsel %vm5005, %v4670, -inf
    %v5553 = vrot.slane %v5552, 4
    %v5554 = vmax.f32 %v5552, %v5553
    %v5555 = vrot.slane %v5554, 2
    %v5556 = vmax.f32 %v5554, %v5555
    %v5557 = vrot.slane %v5556, 1
    %v5558 = vmax.f32 %v5556, %v5557
    %v5559 = vsel %vm5005, %v4672, -inf
    %v5560 = vrot.slane %v5559, 4
    %v5561 = vmax.f32 %v5559, %v5560
    %v5562 = vrot.slane %v5561, 2
    %v5563 = vmax.f32 %v5561, %v5562
    %v5564 = vrot.slane %v5563, 1
    %v5565 = vmax.f32 %v5563, %v5564
    %v5566 = vsel %vm5005, %v4680, -inf
    %v5567 = vrot.slane %v5566, 4
    %v5568 = vmax.f32 %v5566, %v5567
    %v5569 = vrot.slane %v5568, 2
    %v5570 = vmax.f32 %v5568, %v5569
    %v5571 = vrot.slane %v5570, 1
    %v5572 = vmax.f32 %v5570, %v5571
    %v5573 = vsel %vm5005, %v4688, -inf
    %v5574 = vrot.slane %v5573, 4
    %v5575 = vmax.f32 %v5573, %v5574
    %v5576 = vrot.slane %v5575, 2
    %v5577 = vmax.f32 %v5575, %v5576
    %v5578 = vrot.slane %v5577, 1
    %v5579 = vmax.f32 %v5577, %v5578
    %v5580 = vsel %vm5005, %v4687, -inf
    %v5581 = vrot.slane %v5580, 4
    %v5582 = vmax.f32 %v5580, %v5581
    %v5583 = vrot.slane %v5582, 2
    %v5584 = vmax.f32 %v5582, %v5583
    %v5585 = vrot.slane %v5584, 1
    %v5586 = vmax.f32 %v5584, %v5585
    %v5587 = vsel %vm5005, %v4689, -inf
    %v5588 = vrot.slane %v5587, 4
    %v5589 = vmax.f32 %v5587, %v5588
    %v5590 = vrot.slane %v5589, 2
    %v5591 = vmax.f32 %v5589, %v5590
    %v5592 = vrot.slane %v5591, 1
    %v5593 = vmax.f32 %v5591, %v5592
    %v5594 = vsel %vm5005, %v4697, -inf
    %v5595 = vrot.slane %v5594, 4
    %v5596 = vmax.f32 %v5594, %v5595
    %v5597 = vrot.slane %v5596, 2
    %v5598 = vmax.f32 %v5596, %v5597
    %v5599 = vrot.slane %v5598, 1
    %v5600 = vmax.f32 %v5598, %v5599
    %v5601 = vsel %vm5005, %v4705, -inf
    %v5602 = vrot.slane %v5601, 4
    %v5603 = vmax.f32 %v5601, %v5602
    %v5604 = vrot.slane %v5603, 2
    %v5605 = vmax.f32 %v5603, %v5604
    %v5606 = vrot.slane %v5605, 1
    %v5607 = vmax.f32 %v5605, %v5606
    %v5608 = vsel %vm5005, %v4704, -inf
    %v5609 = vrot.slane %v5608, 4
    %v5610 = vmax.f32 %v5608, %v5609
    %v5611 = vrot.slane %v5610, 2
    %v5612 = vmax.f32 %v5610, %v5611
    %v5613 = vrot.slane %v5612, 1
    %v5614 = vmax.f32 %v5612, %v5613
    %v5615 = vsel %vm5005, %v4706, -inf
    %v5616 = vrot.slane %v5615, 4
    %v5617 = vmax.f32 %v5615, %v5616
    %v5618 = vrot.slane %v5617, 2
    %v5619 = vmax.f32 %v5617, %v5618
    %v5620 = vrot.slane %v5619, 1
    %v5621 = vmax.f32 %v5619, %v5620
    %v5622 = vsel %vm5005, %v4714, -inf
    %v5623 = vrot.slane %v5622, 4
    %v5624 = vmax.f32 %v5622, %v5623
    %v5625 = vrot.slane %v5624, 2
    %v5626 = vmax.f32 %v5624, %v5625
    %v5627 = vrot.slane %v5626, 1
    %v5628 = vmax.f32 %v5626, %v5627
    %v5629 = vsel %vm5005, %v4722, -inf
    %v5630 = vrot.slane %v5629, 4
    %v5631 = vmax.f32 %v5629, %v5630
    %v5632 = vrot.slane %v5631, 2
    %v5633 = vmax.f32 %v5631, %v5632
    %v5634 = vrot.slane %v5633, 1
    %v5635 = vmax.f32 %v5633, %v5634
    %v5636 = vsel %vm5005, %v4721, -inf
    %v5637 = vrot.slane %v5636, 4
    %v5638 = vmax.f32 %v5636, %v5637
    %v5639 = vrot.slane %v5638, 2
    %v5640 = vmax.f32 %v5638, %v5639
    %v5641 = vrot.slane %v5640, 1
    %v5642 = vmax.f32 %v5640, %v5641
    %v5643 = vsel %vm5005, %v4723, -inf
    %v5644 = vrot.slane %v5643, 4
    %v5645 = vmax.f32 %v5643, %v5644
    %v5646 = vrot.slane %v5645, 2
    %v5647 = vmax.f32 %v5645, %v5646
    %v5648 = vrot.slane %v5647, 1
    %v5649 = vmax.f32 %v5647, %v5648
    %v5650 = vsel %vm5005, %v4731, -inf
    %v5651 = vrot.slane %v5650, 4
    %v5652 = vmax.f32 %v5650, %v5651
    %v5653 = vrot.slane %v5652, 2
    %v5654 = vmax.f32 %v5652, %v5653
    %v5655 = vrot.slane %v5654, 1
    %v5656 = vmax.f32 %v5654, %v5655
    %v5657 = vsel %vm5005, %v4739, -inf
    %v5658 = vrot.slane %v5657, 4
    %v5659 = vmax.f32 %v5657, %v5658
    %v5660 = vrot.slane %v5659, 2
    %v5661 = vmax.f32 %v5659, %v5660
    %v5662 = vrot.slane %v5661, 1
    %v5663 = vmax.f32 %v5661, %v5662
    %v5664 = vsel %vm5005, %v4738, -inf
    %v5665 = vrot.slane %v5664, 4
    %v5666 = vmax.f32 %v5664, %v5665
    %v5667 = vrot.slane %v5666, 2
    %v5668 = vmax.f32 %v5666, %v5667
    %v5669 = vrot.slane %v5668, 1
    %v5670 = vmax.f32 %v5668, %v5669
    %v5671 = vsel %vm5005, %v4740, -inf
    %v5672 = vrot.slane %v5671, 4
    %v5673 = vmax.f32 %v5671, %v5672
    %v5674 = vrot.slane %v5673, 2
    %v5675 = vmax.f32 %v5673, %v5674
    %v5676 = vrot.slane %v5675, 1
    %v5677 = vmax.f32 %v5675, %v5676
    %v5678 = vsel %vm5005, %v4748, -inf
    %v5679 = vrot.slane %v5678, 4
    %v5680 = vmax.f32 %v5678, %v5679
    %v5681 = vrot.slane %v5680, 2
    %v5682 = vmax.f32 %v5680, %v5681
    %v5683 = vrot.slane %v5682, 1
    %v5684 = vmax.f32 %v5682, %v5683
    %v5685 = vsel %vm5005, %v4756, -inf
    %v5686 = vrot.slane %v5685, 4
    %v5687 = vmax.f32 %v5685, %v5686
    %v5688 = vrot.slane %v5687, 2
    %v5689 = vmax.f32 %v5687, %v5688
    %v5690 = vrot.slane %v5689, 1
    %v5691 = vmax.f32 %v5689, %v5690
    %v5692 = vsel %vm5005, %v4755, -inf
    %v5693 = vrot.slane %v5692, 4
    %v5694 = vmax.f32 %v5692, %v5693
    %v5695 = vrot.slane %v5694, 2
    %v5696 = vmax.f32 %v5694, %v5695
    %v5697 = vrot.slane %v5696, 1
    %v5698 = vmax.f32 %v5696, %v5697
    %v5699 = vsel %vm5005, %v4757, -inf
    %v5700 = vrot.slane %v5699, 4
    %v5701 = vmax.f32 %v5699, %v5700
    %v5702 = vrot.slane %v5701, 2
    %v5703 = vmax.f32 %v5701, %v5702
    %v5704 = vrot.slane %v5703, 1
    %v5705 = vmax.f32 %v5703, %v5704
    %v5706 = vsel %vm5005, %v4765, -inf
    %v5707 = vrot.slane %v5706, 4
    %v5708 = vmax.f32 %v5706, %v5707
    %v5709 = vrot.slane %v5708, 2
    %v5710 = vmax.f32 %v5708, %v5709
    %v5711 = vrot.slane %v5710, 1
    %v5712 = vmax.f32 %v5710, %v5711
    %v5713 = vsel %vm5005, %v4773, -inf
    %v5714 = vrot.slane %v5713, 4
    %v5715 = vmax.f32 %v5713, %v5714
    %v5716 = vrot.slane %v5715, 2
    %v5717 = vmax.f32 %v5715, %v5716
    %v5718 = vrot.slane %v5717, 1
    %v5719 = vmax.f32 %v5717, %v5718
    %v5720 = vsel %vm5005, %v4772, -inf
    %v5721 = vrot.slane %v5720, 4
    %v5722 = vmax.f32 %v5720, %v5721
    %v5723 = vrot.slane %v5722, 2
    %v5724 = vmax.f32 %v5722, %v5723
    %v5725 = vrot.slane %v5724, 1
    %v5726 = vmax.f32 %v5724, %v5725
    %v5727 = vsel %vm5005, %v4774, -inf
    %v5728 = vrot.slane %v5727, 4
    %v5729 = vmax.f32 %v5727, %v5728
    %v5730 = vrot.slane %v5729, 2
    %v5731 = vmax.f32 %v5729, %v5730
    %v5732 = vrot.slane %v5731, 1
    %v5733 = vmax.f32 %v5731, %v5732
    %v5734 = vsel %vm5005, %v4782, -inf
    %v5735 = vrot.slane %v5734, 4
    %v5736 = vmax.f32 %v5734, %v5735
    %v5737 = vrot.slane %v5736, 2
    %v5738 = vmax.f32 %v5736, %v5737
    %v5739 = vrot.slane %v5738, 1
    %v5740 = vmax.f32 %v5738, %v5739
    %v5741 = vsel %vm5005, %v4790, -inf
    %v5742 = vrot.slane %v5741, 4
    %v5743 = vmax.f32 %v5741, %v5742
    %v5744 = vrot.slane %v5743, 2
    %v5745 = vmax.f32 %v5743, %v5744
    %v5746 = vrot.slane %v5745, 1
    %v5747 = vmax.f32 %v5745, %v5746
    %v5748 = vsel %vm5005, %v4789, -inf
    %v5749 = vrot.slane %v5748, 4
    %v5750 = vmax.f32 %v5748, %v5749
    %v5751 = vrot.slane %v5750, 2
    %v5752 = vmax.f32 %v5750, %v5751
    %v5753 = vrot.slane %v5752, 1
    %v5754 = vmax.f32 %v5752, %v5753
    %v5755 = vsel %vm5005, %v4791, -inf
    %v5756 = vrot.slane %v5755, 4
    %v5757 = vmax.f32 %v5755, %v5756
    %v5758 = vrot.slane %v5757, 2
    %v5759 = vmax.f32 %v5757, %v5758
    %v5760 = vrot.slane %v5759, 1
    %v5761 = vmax.f32 %v5759, %v5760
    %v5762 = vsel %vm5005, %v4799, -inf
    %v5763 = vrot.slane %v5762, 4
    %v5764 = vmax.f32 %v5762, %v5763
    %v5765 = vrot.slane %v5764, 2
    %v5766 = vmax.f32 %v5764, %v5765
    %v5767 = vrot.slane %v5766, 1
    %v5768 = vmax.f32 %v5766, %v5767
    %v5769 = vsel %vm5005, %v4807, -inf
    %v5770 = vrot.slane %v5769, 4
    %v5771 = vmax.f32 %v5769, %v5770
    %v5772 = vrot.slane %v5771, 2
    %v5773 = vmax.f32 %v5771, %v5772
    %v5774 = vrot.slane %v5773, 1
    %v5775 = vmax.f32 %v5773, %v5774
    %v5776 = vsel %vm5005, %v4806, -inf
    %v5777 = vrot.slane %v5776, 4
    %v5778 = vmax.f32 %v5776, %v5777
    %v5779 = vrot.slane %v5778, 2
    %v5780 = vmax.f32 %v5778, %v5779
    %v5781 = vrot.slane %v5780, 1
    %v5782 = vmax.f32 %v5780, %v5781
    %v5783 = vsel %vm5005, %v4808, -inf
    %v5784 = vrot.slane %v5783, 4
    %v5785 = vmax.f32 %v5783, %v5784
    %v5786 = vrot.slane %v5785, 2
    %v5787 = vmax.f32 %v5785, %v5786
    %v5788 = vrot.slane %v5787, 1
    %v5789 = vmax.f32 %v5787, %v5788
    %v5790 = vsel %vm5005, %v4816, -inf
    %v5791 = vrot.slane %v5790, 4
    %v5792 = vmax.f32 %v5790, %v5791
    %v5793 = vrot.slane %v5792, 2
    %v5794 = vmax.f32 %v5792, %v5793
    %v5795 = vrot.slane %v5794, 1
    %v5796 = vmax.f32 %v5794, %v5795
    %v5797 = vsel %vm5005, %v4824, -inf
    %v5798 = vrot.slane %v5797, 4
    %v5799 = vmax.f32 %v5797, %v5798
    %v5800 = vrot.slane %v5799, 2
    %v5801 = vmax.f32 %v5799, %v5800
    %v5802 = vrot.slane %v5801, 1
    %v5803 = vmax.f32 %v5801, %v5802
    %v5804 = vsel %vm5005, %v4823, -inf
    %v5805 = vrot.slane %v5804, 4
    %v5806 = vmax.f32 %v5804, %v5805
    %v5807 = vrot.slane %v5806, 2
    %v5808 = vmax.f32 %v5806, %v5807
    %v5809 = vrot.slane %v5808, 1
    %v5810 = vmax.f32 %v5808, %v5809
    %v5811 = vsel %vm5005, %v4825, -inf
    %v5812 = vrot.slane %v5811, 4
    %v5813 = vmax.f32 %v5811, %v5812
    %v5814 = vrot.slane %v5813, 2
    %v5815 = vmax.f32 %v5813, %v5814
    %v5816 = vrot.slane %v5815, 1
    %v5817 = vmax.f32 %v5815, %v5816
    %v5818 = vsel %vm5005, %v4833, -inf
    %v5819 = vrot.slane %v5818, 4
    %v5820 = vmax.f32 %v5818, %v5819
    %v5821 = vrot.slane %v5820, 2
    %v5822 = vmax.f32 %v5820, %v5821
    %v5823 = vrot.slane %v5822, 1
    %v5824 = vmax.f32 %v5822, %v5823
    %v5825 = vsel %vm5005, %v4841, -inf
    %v5826 = vrot.slane %v5825, 4
    %v5827 = vmax.f32 %v5825, %v5826
    %v5828 = vrot.slane %v5827, 2
    %v5829 = vmax.f32 %v5827, %v5828
    %v5830 = vrot.slane %v5829, 1
    %v5831 = vmax.f32 %v5829, %v5830
    %v5832 = vsel %vm5005, %v4840, -inf
    %v5833 = vrot.slane %v5832, 4
    %v5834 = vmax.f32 %v5832, %v5833
    %v5835 = vrot.slane %v5834, 2
    %v5836 = vmax.f32 %v5834, %v5835
    %v5837 = vrot.slane %v5836, 1
    %v5838 = vmax.f32 %v5836, %v5837
    %v5839 = vsel %vm5005, %v4842, -inf
    %v5840 = vrot.slane %v5839, 4
    %v5841 = vmax.f32 %v5839, %v5840
    %v5842 = vrot.slane %v5841, 2
    %v5843 = vmax.f32 %v5841, %v5842
    %v5844 = vrot.slane %v5843, 1
    %v5845 = vmax.f32 %v5843, %v5844
    %v5846 = vsel %vm5005, %v4850, -inf
    %v5847 = vrot.slane %v5846, 4
    %v5848 = vmax.f32 %v5846, %v5847
    %v5849 = vrot.slane %v5848, 2
    %v5850 = vmax.f32 %v5848, %v5849
    %v5851 = vrot.slane %v5850, 1
    %v5852 = vmax.f32 %v5850, %v5851
    %v5853 = vsel %vm5005, %v4858, -inf
    %v5854 = vrot.slane %v5853, 4
    %v5855 = vmax.f32 %v5853, %v5854
    %v5856 = vrot.slane %v5855, 2
    %v5857 = vmax.f32 %v5855, %v5856
    %v5858 = vrot.slane %v5857, 1
    %v5859 = vmax.f32 %v5857, %v5858
    %v5860 = vsel %vm5005, %v4857, -inf
    %v5861 = vrot.slane %v5860, 4
    %v5862 = vmax.f32 %v5860, %v5861
    %v5863 = vrot.slane %v5862, 2
    %v5864 = vmax.f32 %v5862, %v5863
    %v5865 = vrot.slane %v5864, 1
    %v5866 = vmax.f32 %v5864, %v5865
    %v5867 = vsel %vm5005, %v4859, -inf
    %v5868 = vrot.slane %v5867, 4
    %v5869 = vmax.f32 %v5867, %v5868
    %v5870 = vrot.slane %v5869, 2
    %v5871 = vmax.f32 %v5869, %v5870
    %v5872 = vrot.slane %v5871, 1
    %v5873 = vmax.f32 %v5871, %v5872
    %v5874 = vsel %vm5005, %v4867, -inf
    %v5875 = vrot.slane %v5874, 4
    %v5876 = vmax.f32 %v5874, %v5875
    %v5877 = vrot.slane %v5876, 2
    %v5878 = vmax.f32 %v5876, %v5877
    %v5879 = vrot.slane %v5878, 1
    %v5880 = vmax.f32 %v5878, %v5879
    %v5881 = vsel %vm5005, %v4875, -inf
    %v5882 = vrot.slane %v5881, 4
    %v5883 = vmax.f32 %v5881, %v5882
    %v5884 = vrot.slane %v5883, 2
    %v5885 = vmax.f32 %v5883, %v5884
    %v5886 = vrot.slane %v5885, 1
    %v5887 = vmax.f32 %v5885, %v5886
    %v5888 = vsel %vm5005, %v4874, -inf
    %v5889 = vrot.slane %v5888, 4
    %v5890 = vmax.f32 %v5888, %v5889
    %v5891 = vrot.slane %v5890, 2
    %v5892 = vmax.f32 %v5890, %v5891
    %v5893 = vrot.slane %v5892, 1
    %v5894 = vmax.f32 %v5892, %v5893
    %v5895 = vsel %vm5005, %v4876, -inf
    %v5896 = vrot.slane %v5895, 4
    %v5897 = vmax.f32 %v5895, %v5896
    %v5898 = vrot.slane %v5897, 2
    %v5899 = vmax.f32 %v5897, %v5898
    %v5900 = vrot.slane %v5899, 1
    %v5901 = vmax.f32 %v5899, %v5900
    %5902 = vst.msk [vmem:[#allocation4] sm:$0xff] %vm4204, 0.0
    %5903 = vst.msk [vmem:[#allocation4 + $0x8] sm:$0x3] %vm5005, 0.0
    %5904 = vst.msk [vmem:[#allocation4 + $0x10] sm:$0xff] %vm4204, 0.0
    %5905 = vst.msk [vmem:[#allocation4 + $0x18] sm:$0x3] %vm5005, 0.0
    %5906 = vst.msk [vmem:[#allocation4 + $0x20] sm:$0xff] %vm4204, 0.0
    %5907 = vst.msk [vmem:[#allocation4 + $0x28] sm:$0x3] %vm5005, 0.0
    %5908 = vst.msk [vmem:[#allocation4 + $0x30] sm:$0xff] %vm4204, 0.0
    %5909 = vst.msk [vmem:[#allocation4 + $0x38] sm:$0x3] %vm5005, 0.0
    %5910 = vst.msk [vmem:[#allocation4 + $0x40] sm:$0xff] %vm4204, 0.0
    %5911 = vst.msk [vmem:[#allocation4 + $0x48] sm:$0x3] %vm5005, 0.0
    %5912 = vst.msk [vmem:[#allocation4 + $0x50] sm:$0xff] %vm4204, 0.0
    %5913 = vst.msk [vmem:[#allocation4 + $0x58] sm:$0x3] %vm5005, 0.0
    %5914 = vst.msk [vmem:[#allocation4 + $0x60] sm:$0xff] %vm4204, 0.0
    %5915 = vst.msk [vmem:[#allocation4 + $0x68] sm:$0x3] %vm5005, 0.0
    %5916 = vst.msk [vmem:[#allocation4 + $0x70] sm:$0xff] %vm4204, 0.0
    %5917 = vst.msk [vmem:[#allocation4 + $0x78] sm:$0x3] %vm5005, 0.0
    %5918 = vst.msk [vmem:[#allocation4 + $0x80] sm:$0xff] %vm4204, 0.0
    %5919 = vst.msk [vmem:[#allocation4 + $0x88] sm:$0x3] %vm5005, 0.0
    %5920 = vst.msk [vmem:[#allocation4 + $0x90] sm:$0xff] %vm4204, 0.0
    %5921 = vst.msk [vmem:[#allocation4 + $0x98] sm:$0x3] %vm5005, 0.0
    %5922 = vst.msk [vmem:[#allocation4 + $0xa0] sm:$0xff] %vm4204, 0.0
    %5923 = vst.msk [vmem:[#allocation4 + $0xa8] sm:$0x3] %vm5005, 0.0
    %5924 = vst.msk [vmem:[#allocation4 + $0xb0] sm:$0xff] %vm4204, 0.0
    %5925 = vst.msk [vmem:[#allocation4 + $0xb8] sm:$0x3] %vm5005, 0.0
    %5926 = vst.msk [vmem:[#allocation4 + $0xc0] sm:$0xff] %vm4204, 0.0
    %5927 = vst.msk [vmem:[#allocation4 + $0xc8] sm:$0x3] %vm5005, 0.0
    %5928 = vst.msk [vmem:[#allocation4 + $0xd0] sm:$0xff] %vm4204, 0.0
    %5929 = vst.msk [vmem:[#allocation4 + $0xd8] sm:$0x3] %vm5005, 0.0
    %5930 = vst.msk [vmem:[#allocation4 + $0xe0] sm:$0xff] %vm4204, 0.0
    %5931 = vst.msk [vmem:[#allocation4 + $0xe8] sm:$0x3] %vm5005, 0.0
    %5932 = vst.msk [vmem:[#allocation4 + $0xf0] sm:$0xff] %vm4204, 0.0
    %5933 = vst.msk [vmem:[#allocation4 + $0xf8] sm:$0x3] %vm5005, 0.0
    %5934 = vst.msk [vmem:[#allocation4 + $0x100] sm:$0xff] %vm4204, 0.0
    %5935 = vst.msk [vmem:[#allocation4 + $0x108] sm:$0x3] %vm5005, 0.0
    %5936 = vst.msk [vmem:[#allocation4 + $0x110] sm:$0xff] %vm4204, 0.0
    %5937 = vst.msk [vmem:[#allocation4 + $0x118] sm:$0x3] %vm5005, 0.0
    %5938 = vst.msk [vmem:[#allocation4 + $0x120] sm:$0xff] %vm4204, 0.0
    %5939 = vst.msk [vmem:[#allocation4 + $0x128] sm:$0x3] %vm5005, 0.0
    %5940 = vst.msk [vmem:[#allocation4 + $0x130] sm:$0xff] %vm4204, 0.0
    %5941 = vst.msk [vmem:[#allocation4 + $0x138] sm:$0x3] %vm5005, 0.0
    %vm6070 = vcmask 1041409
    %v6071 = vsel %vm6070, %v5019, %v5012
    %vm6072 = vcmask 1042434
    %v6073 = vsel %vm6072, %v5026, %v6071
    %vm6074 = vcmask 1043459
    %v6075 = vsel %vm6074, %v5033, %v6073
    %vm6076 = vcmask 1044484
    %v6077 = vsel %vm6076, %v5040, %v6075
    %vm6078 = vcmask 1045509
    %v6079 = vsel %vm6078, %v5047, %v6077
    %vm6080 = vcmask 1046534
    %v6081 = vsel %vm6080, %v5054, %v6079
    %vm6082 = vcmask 1047559
    %v6083 = vsel %vm6082, %v5061, %v6081
    %v6084 = vsel %vm6070, %v5075, %v5068
    %v6085 = vsel %vm6072, %v5082, %v6084
    %v6086 = vsel %vm6074, %v5089, %v6085
    %v6087 = vsel %vm6076, %v5096, %v6086
    %v6088 = vsel %vm6078, %v5103, %v6087
    %v6089 = vsel %vm6080, %v5110, %v6088
    %v6090 = vsel %vm6082, %v5117, %v6089
    %v6091 = vsel %vm6070, %v5131, %v5124
    %v6092 = vsel %vm6072, %v5138, %v6091
    %v6093 = vsel %vm6074, %v5145, %v6092
    %v6094 = vsel %vm6076, %v5152, %v6093
    %v6095 = vsel %vm6078, %v5159, %v6094
    %v6096 = vsel %vm6080, %v5166, %v6095
    %v6097 = vsel %vm6082, %v5173, %v6096
    %v6098 = vsel %vm6070, %v5187, %v5180
    %v6099 = vsel %vm6072, %v5194, %v6098
    %v6100 = vsel %vm6074, %v5201, %v6099
    %v6101 = vsel %vm6076, %v5208, %v6100
    %v6102 = vsel %vm6078, %v5215, %v6101
    %v6103 = vsel %vm6080, %v5222, %v6102
    %v6104 = vsel %vm6082, %v5229, %v6103
    %v6105 = vsel %vm6070, %v5243, %v5236
    %v6106 = vsel %vm6072, %v5250, %v6105
    %v6107 = vsel %vm6074, %v5257, %v6106
    %v6108 = vsel %vm6076, %v5264, %v6107
    %v6109 = vsel %vm6078, %v5271, %v6108
    %v6110 = vsel %vm6080, %v5278, %v6109
    %v6111 = vsel %vm6082, %v5285, %v6110
    %v6112 = vsel %vm6070, %v5299, %v5292
    %v6113 = vsel %vm6072, %v5306, %v6112
    %v6114 = vsel %vm6074, %v5313, %v6113
    %v6115 = vsel %vm6076, %v5320, %v6114
    %v6116 = vsel %vm6078, %v5327, %v6115
    %v6117 = vsel %vm6080, %v5334, %v6116
    %v6118 = vsel %vm6082, %v5341, %v6117
    %v6119 = vsel %vm6070, %v5355, %v5348
    %v6120 = vsel %vm6072, %v5362, %v6119
    %v6121 = vsel %vm6074, %v5369, %v6120
    %v6122 = vsel %vm6076, %v5376, %v6121
    %v6123 = vsel %vm6078, %v5383, %v6122
    %v6124 = vsel %vm6080, %v5390, %v6123
    %v6125 = vsel %vm6082, %v5397, %v6124
    %v6126 = vsel %vm6070, %v5411, %v5404
    %v6127 = vsel %vm6072, %v5418, %v6126
    %v6128 = vsel %vm6074, %v5425, %v6127
    %v6129 = vsel %vm6076, %v5432, %v6128
    %v6130 = vsel %vm6078, %v5439, %v6129
    %v6131 = vsel %vm6080, %v5446, %v6130
    %v6132 = vsel %vm6082, %v5453, %v6131
    %v6133 = vsel %vm6070, %v5467, %v5460
    %v6134 = vsel %vm6072, %v5474, %v6133
    %v6135 = vsel %vm6074, %v5481, %v6134
    %v6136 = vsel %vm6076, %v5488, %v6135
    %v6137 = vsel %vm6078, %v5495, %v6136
    %v6138 = vsel %vm6080, %v5502, %v6137
    %v6139 = vsel %vm6082, %v5509, %v6138
    %v6140 = vsel %vm6070, %v5523, %v5516
    %v6141 = vsel %vm6072, %v5530, %v6140
    %v6142 = vsel %vm6074, %v5537, %v6141
    %v6143 = vsel %vm6076, %v5544, %v6142
    %v6144 = vsel %vm6078, %v5551, %v6143
    %v6145 = vsel %vm6080, %v5558, %v6144
    %v6146 = vsel %vm6082, %v5565, %v6145
    %v6147 = vsel %vm6070, %v5579, %v5572
    %v6148 = vsel %vm6072, %v5586, %v6147
    %v6149 = vsel %vm6074, %v5593, %v6148
    %v6150 = vsel %vm6076, %v5600, %v6149
    %v6151 = vsel %vm6078, %v5607, %v6150
    %v6152 = vsel %vm6080, %v5614, %v6151
    %v6153 = vsel %vm6082, %v5621, %v6152
    %v6154 = vsel %vm6070, %v5635, %v5628
    %v6155 = vsel %vm6072, %v5642, %v6154
    %v6156 = vsel %vm6074, %v5649, %v6155
    %v6157 = vsel %vm6076, %v5656, %v6156
    %v6158 = vsel %vm6078, %v5663, %v6157
    %v6159 = vsel %vm6080, %v5670, %v6158
    %v6160 = vsel %vm6082, %v5677, %v6159
    %v6161 = vsel %vm6070, %v5691, %v5684
    %v6162 = vsel %vm6072, %v5698, %v6161
    %v6163 = vsel %vm6074, %v5705, %v6162
    %v6164 = vsel %vm6076, %v5712, %v6163
    %v6165 = vsel %vm6078, %v5719, %v6164
    %v6166 = vsel %vm6080, %v5726, %v6165
    %v6167 = vsel %vm6082, %v5733, %v6166
    %v6168 = vsel %vm6070, %v5747, %v5740
    %v6169 = vsel %vm6072, %v5754, %v6168
    %v6170 = vsel %vm6074, %v5761, %v6169
    %v6171 = vsel %vm6076, %v5768, %v6170
    %v6172 = vsel %vm6078, %v5775, %v6171
    %v6173 = vsel %vm6080, %v5782, %v6172
    %v6174 = vsel %vm6082, %v5789, %v6173
    %v6175 = vsel %vm6070, %v5803, %v5796
    %v6176 = vsel %vm6072, %v5810, %v6175
    %v6177 = vsel %vm6074, %v5817, %v6176
    %v6178 = vsel %vm6076, %v5824, %v6177
    %v6179 = vsel %vm6078, %v5831, %v6178
    %v6180 = vsel %vm6080, %v5838, %v6179
    %v6181 = vsel %vm6082, %v5845, %v6180
    %v6182 = vsel %vm6070, %v5859, %v5852
    %v6183 = vsel %vm6072, %v5866, %v6182
    %v6184 = vsel %vm6074, %v5873, %v6183
    %v6185 = vsel %vm6076, %v5880, %v6184
    %v6186 = vsel %vm6078, %v5887, %v6185
    %v6187 = vsel %vm6080, %v5894, %v6186
    %v6188 = vsel %vm6082, %v5901, %v6187
    %s6205 = scalar_lea.vmem [#allocation4], 16
    %6206 = vst.msk [vmem:[%s6205 + $0x1] sm:$0xff] %vm4204, %v6083
    %6207 = vst.msk [vmem:[%s6205 + $0x11] sm:$0xff] %vm4204, %v6090
    %6208 = vst.msk [vmem:[%s6205 + $0x21] sm:$0xff] %vm4204, %v6097
    %6209 = vst.msk [vmem:[%s6205 + $0x31] sm:$0xff] %vm4204, %v6104
    %6210 = vst.msk [vmem:[%s6205 + $0x41] sm:$0xff] %vm4204, %v6111
    %6211 = vst.msk [vmem:[%s6205 + $0x51] sm:$0xff] %vm4204, %v6118
    %6212 = vst.msk [vmem:[%s6205 + $0x61] sm:$0xff] %vm4204, %v6125
    %6213 = vst.msk [vmem:[%s6205 + $0x71] sm:$0xff] %vm4204, %v6132
    %6214 = vst.msk [vmem:[%s6205 + $0xa1] sm:$0xff] %vm4204, %v6139
    %6215 = vst.msk [vmem:[%s6205 + $0xb1] sm:$0xff] %vm4204, %v6146
    %6216 = vst.msk [vmem:[%s6205 + $0xc1] sm:$0xff] %vm4204, %v6153
    %6217 = vst.msk [vmem:[%s6205 + $0xd1] sm:$0xff] %vm4204, %v6160
    %6218 = vst.msk [vmem:[%s6205 + $0xe1] sm:$0xff] %vm4204, %v6167
    %6219 = vst.msk [vmem:[%s6205 + $0xf1] sm:$0xff] %vm4204, %v6174
    %6220 = vst.msk [vmem:[%s6205 + $0x101] sm:$0xff] %vm4204, %v6181
    %6221 = vst.msk [vmem:[%s6205 + $0x111] sm:$0xff] %vm4204, %v6188
    %v6222 = vld [vmem:[#allocation4] sm:$0xff]
    %v6223 = vld [vmem:[#allocation4 + $0x10] sm:$0xff]
    %v6224 = vld [vmem:[#allocation4 + $0x20] sm:$0xff]
    %v6225 = vld [vmem:[#allocation4 + $0x30] sm:$0xff]
    %v6226 = vld [vmem:[#allocation4 + $0x40] sm:$0xff]
    %v6227 = vld [vmem:[#allocation4 + $0x50] sm:$0xff]
    %v6228 = vld [vmem:[#allocation4 + $0x60] sm:$0xff]
    %v6229 = vld [vmem:[#allocation4 + $0x70] sm:$0xff]
    %v6230 = vld [vmem:[#allocation4 + $0xa0] sm:$0xff]
    %v6231 = vld [vmem:[#allocation4 + $0xb0] sm:$0xff]
    %v6232 = vld [vmem:[#allocation4 + $0xc0] sm:$0xff]
    %v6233 = vld [vmem:[#allocation4 + $0xd0] sm:$0xff]
    %v6234 = vld [vmem:[#allocation4 + $0xe0] sm:$0xff]
    %v6235 = vld [vmem:[#allocation4 + $0xf0] sm:$0xff]
    %v6236 = vld [vmem:[#allocation4 + $0x100] sm:$0xff]
    %v6237 = vld [vmem:[#allocation4 + $0x110] sm:$0xff]
    %6238 = vst.msk [vmem:[#allocation5] sm:$0xff] %vm4204, %v6222
    %6239 = vst.msk [vmem:[#allocation5 + $0x8] sm:$0xff] %vm4204, %v6223
    %6240 = vst.msk [vmem:[#allocation5 + $0x10] sm:$0xff] %vm4204, %v6224
    %6241 = vst.msk [vmem:[#allocation5 + $0x18] sm:$0xff] %vm4204, %v6225
    %6242 = vst.msk [vmem:[#allocation5 + $0x20] sm:$0xff] %vm4204, %v6226
    %6243 = vst.msk [vmem:[#allocation5 + $0x28] sm:$0xff] %vm4204, %v6227
    %6244 = vst.msk [vmem:[#allocation5 + $0x30] sm:$0xff] %vm4204, %v6228
    %6245 = vst.msk [vmem:[#allocation5 + $0x38] sm:$0xff] %vm4204, %v6229
    %6246 = vst.msk [vmem:[#allocation5 + $0x40] sm:$0xff] %vm4204, %v6230
    %6247 = vst.msk [vmem:[#allocation5 + $0x48] sm:$0xff] %vm4204, %v6231
    %6248 = vst.msk [vmem:[#allocation5 + $0x50] sm:$0xff] %vm4204, %v6232
    %6249 = vst.msk [vmem:[#allocation5 + $0x58] sm:$0xff] %vm4204, %v6233
    %6250 = vst.msk [vmem:[#allocation5 + $0x60] sm:$0xff] %vm4204, %v6234
    %6251 = vst.msk [vmem:[#allocation5 + $0x68] sm:$0xff] %vm4204, %v6235
    %6252 = vst.msk [vmem:[#allocation5 + $0x70] sm:$0xff] %vm4204, %v6236
    %6253 = vst.msk [vmem:[#allocation5 + $0x78] sm:$0xff] %vm4204, %v6237
    %v6254 = vld [vmem:[#allocation4 + $0x1] sm:$0xff]
    %v6255 = vld [vmem:[#allocation4 + $0x11] sm:$0xff]
    %v6256 = vld [vmem:[#allocation4 + $0x21] sm:$0xff]
    %v6257 = vld [vmem:[#allocation4 + $0x31] sm:$0xff]
    %v6258 = vld [vmem:[#allocation4 + $0x41] sm:$0xff]
    %v6259 = vld [vmem:[#allocation4 + $0x51] sm:$0xff]
    %v6260 = vld [vmem:[#allocation4 + $0x61] sm:$0xff]
    %v6261 = vld [vmem:[#allocation4 + $0x71] sm:$0xff]
    %v6262 = vld [vmem:[#allocation4 + $0xa1] sm:$0xff]
    %v6263 = vld [vmem:[#allocation4 + $0xb1] sm:$0xff]
    %v6264 = vld [vmem:[#allocation4 + $0xc1] sm:$0xff]
    %v6265 = vld [vmem:[#allocation4 + $0xd1] sm:$0xff]
    %v6266 = vld [vmem:[#allocation4 + $0xe1] sm:$0xff]
    %v6267 = vld [vmem:[#allocation4 + $0xf1] sm:$0xff]
    %v6268 = vld [vmem:[#allocation4 + $0x101] sm:$0xff]
    %v6269 = vld [vmem:[#allocation4 + $0x111] sm:$0xff]
    %6286 = vrot.lane.b32.xlu0 %v6254, 8
    %v6287 = vpop.permute.xlu0 %6286
    %6288 = vrot.lane.b32.xlu0 %v6255, 8
    %v6289 = vpop.permute.xlu0 %6288
    %6290 = vrot.lane.b32.xlu0 %v6256, 8
    %v6291 = vpop.permute.xlu0 %6290
    %6292 = vrot.lane.b32.xlu0 %v6257, 8
    %v6293 = vpop.permute.xlu0 %6292
    %6294 = vrot.lane.b32.xlu0 %v6258, 8
    %v6295 = vpop.permute.xlu0 %6294
    %6296 = vrot.lane.b32.xlu0 %v6259, 8
    %v6297 = vpop.permute.xlu0 %6296
    %6298 = vrot.lane.b32.xlu0 %v6260, 8
    %v6299 = vpop.permute.xlu0 %6298
    %6300 = vrot.lane.b32.xlu0 %v6261, 8
    %v6301 = vpop.permute.xlu0 %6300
    %6302 = vrot.lane.b32.xlu0 %v6262, 8
    %v6303 = vpop.permute.xlu0 %6302
    %6304 = vrot.lane.b32.xlu0 %v6263, 8
    %v6305 = vpop.permute.xlu0 %6304
    %6306 = vrot.lane.b32.xlu0 %v6264, 8
    %v6307 = vpop.permute.xlu0 %6306
    %6308 = vrot.lane.b32.xlu0 %v6265, 8
    %v6309 = vpop.permute.xlu0 %6308
    %6310 = vrot.lane.b32.xlu0 %v6266, 8
    %v6311 = vpop.permute.xlu0 %6310
    %6312 = vrot.lane.b32.xlu0 %v6267, 8
    %v6313 = vpop.permute.xlu0 %6312
    %6314 = vrot.lane.b32.xlu0 %v6268, 8
    %v6315 = vpop.permute.xlu0 %6314
    %6316 = vrot.lane.b32.xlu0 %v6269, 8
    %v6317 = vpop.permute.xlu0 %6316
    %vm6334 = vcmask 130112
    %6335 = vst.msk [vmem:[#allocation5] sm:$0xff] %vm6334, %v6287
    %6336 = vst.msk [vmem:[#allocation5 + $0x8] sm:$0xff] %vm6334, %v6289
    %6337 = vst.msk [vmem:[#allocation5 + $0x10] sm:$0xff] %vm6334, %v6291
    %6338 = vst.msk [vmem:[#allocation5 + $0x18] sm:$0xff] %vm6334, %v6293
    %6339 = vst.msk [vmem:[#allocation5 + $0x20] sm:$0xff] %vm6334, %v6295
    %6340 = vst.msk [vmem:[#allocation5 + $0x28] sm:$0xff] %vm6334, %v6297
    %6341 = vst.msk [vmem:[#allocation5 + $0x30] sm:$0xff] %vm6334, %v6299
    %6342 = vst.msk [vmem:[#allocation5 + $0x38] sm:$0xff] %vm6334, %v6301
    %6343 = vst.msk [vmem:[#allocation5 + $0x40] sm:$0xff] %vm6334, %v6303
    %6344 = vst.msk [vmem:[#allocation5 + $0x48] sm:$0xff] %vm6334, %v6305
    %6345 = vst.msk [vmem:[#allocation5 + $0x50] sm:$0xff] %vm6334, %v6307
    %6346 = vst.msk [vmem:[#allocation5 + $0x58] sm:$0xff] %vm6334, %v6309
    %6347 = vst.msk [vmem:[#allocation5 + $0x60] sm:$0xff] %vm6334, %v6311
    %6348 = vst.msk [vmem:[#allocation5 + $0x68] sm:$0xff] %vm6334, %v6313
    %6349 = vst.msk [vmem:[#allocation5 + $0x70] sm:$0xff] %vm6334, %v6315
    %6350 = vst.msk [vmem:[#allocation5 + $0x78] sm:$0xff] %vm6334, %v6317
    %v6351 = vld [vmem:[#allocation4 + $0x2] sm:$0xff]
    %v6352 = vld [vmem:[#allocation4 + $0x12] sm:$0xff]
    %v6353 = vld [vmem:[#allocation4 + $0x22] sm:$0xff]
    %v6354 = vld [vmem:[#allocation4 + $0x32] sm:$0xff]
    %v6355 = vld [vmem:[#allocation4 + $0x42] sm:$0xff]
    %v6356 = vld [vmem:[#allocation4 + $0x52] sm:$0xff]
    %v6357 = vld [vmem:[#allocation4 + $0x62] sm:$0xff]
    %v6358 = vld [vmem:[#allocation4 + $0x72] sm:$0xff]
    %v6359 = vld [vmem:[#allocation4 + $0xa2] sm:$0xff]
    %v6360 = vld [vmem:[#allocation4 + $0xb2] sm:$0xff]
    %v6361 = vld [vmem:[#allocation4 + $0xc2] sm:$0xff]
    %v6362 = vld [vmem:[#allocation4 + $0xd2] sm:$0xff]
    %v6363 = vld [vmem:[#allocation4 + $0xe2] sm:$0xff]
    %v6364 = vld [vmem:[#allocation4 + $0xf2] sm:$0xff]
    %v6365 = vld [vmem:[#allocation4 + $0x102] sm:$0xff]
    %v6366 = vld [vmem:[#allocation4 + $0x112] sm:$0xff]
    %6383 = vrot.lane.b32.xlu0 %v6351, 16
    %v6384 = vpop.permute.xlu0 %6383
    %6385 = vrot.lane.b32.xlu0 %v6352, 16
    %v6386 = vpop.permute.xlu0 %6385
    %6387 = vrot.lane.b32.xlu0 %v6353, 16
    %v6388 = vpop.permute.xlu0 %6387
    %6389 = vrot.lane.b32.xlu0 %v6354, 16
    %v6390 = vpop.permute.xlu0 %6389
    %6391 = vrot.lane.b32.xlu0 %v6355, 16
    %v6392 = vpop.permute.xlu0 %6391
    %6393 = vrot.lane.b32.xlu0 %v6356, 16
    %v6394 = vpop.permute.xlu0 %6393
    %6395 = vrot.lane.b32.xlu0 %v6357, 16
    %v6396 = vpop.permute.xlu0 %6395
    %6397 = vrot.lane.b32.xlu0 %v6358, 16
    %v6398 = vpop.permute.xlu0 %6397
    %6399 = vrot.lane.b32.xlu0 %v6359, 16
    %v6400 = vpop.permute.xlu0 %6399
    %6401 = vrot.lane.b32.xlu0 %v6360, 16
    %v6402 = vpop.permute.xlu0 %6401
    %6403 = vrot.lane.b32.xlu0 %v6361, 16
    %v6404 = vpop.permute.xlu0 %6403
    %6405 = vrot.lane.b32.xlu0 %v6362, 16
    %v6406 = vpop.permute.xlu0 %6405
    %6407 = vrot.lane.b32.xlu0 %v6363, 16
    %v6408 = vpop.permute.xlu0 %6407
    %6409 = vrot.lane.b32.xlu0 %v6364, 16
    %v6410 = vpop.permute.xlu0 %6409
    %6411 = vrot.lane.b32.xlu0 %v6365, 16
    %v6412 = vpop.permute.xlu0 %6411
    %6413 = vrot.lane.b32.xlu0 %v6366, 16
    %v6414 = vpop.permute.xlu0 %6413
    %vm6431 = vcmask 195712
    %6432 = vst.msk [vmem:[#allocation5] sm:$0xff] %vm6431, %v6384
    %6433 = vst.msk [vmem:[#allocation5 + $0x8] sm:$0xff] %vm6431, %v6386
    %6434 = vst.msk [vmem:[#allocation5 + $0x10] sm:$0xff] %vm6431, %v6388
    %6435 = vst.msk [vmem:[#allocation5 + $0x18] sm:$0xff] %vm6431, %v6390
    %6436 = vst.msk [vmem:[#allocation5 + $0x20] sm:$0xff] %vm6431, %v6392
    %6437 = vst.msk [vmem:[#allocation5 + $0x28] sm:$0xff] %vm6431, %v6394
    %6438 = vst.msk [vmem:[#allocation5 + $0x30] sm:$0xff] %vm6431, %v6396
    %6439 = vst.msk [vmem:[#allocation5 + $0x38] sm:$0xff] %vm6431, %v6398
    %6440 = vst.msk [vmem:[#allocation5 + $0x40] sm:$0xff] %vm6431, %v6400
    %6441 = vst.msk [vmem:[#allocation5 + $0x48] sm:$0xff] %vm6431, %v6402
    %6442 = vst.msk [vmem:[#allocation5 + $0x50] sm:$0xff] %vm6431, %v6404
    %6443 = vst.msk [vmem:[#allocation5 + $0x58] sm:$0xff] %vm6431, %v6406
    %6444 = vst.msk [vmem:[#allocation5 + $0x60] sm:$0xff] %vm6431, %v6408
    %6445 = vst.msk [vmem:[#allocation5 + $0x68] sm:$0xff] %vm6431, %v6410
    %6446 = vst.msk [vmem:[#allocation5 + $0x70] sm:$0xff] %vm6431, %v6412
    %6447 = vst.msk [vmem:[#allocation5 + $0x78] sm:$0xff] %vm6431, %v6414
    %v6448 = vld [vmem:[%s6205] sm:$0xff]
    %v6449 = vld [vmem:[%s6205 + $0x10] sm:$0xff]
    %v6450 = vld [vmem:[%s6205 + $0x20] sm:$0xff]
    %v6451 = vld [vmem:[%s6205 + $0x30] sm:$0xff]
    %v6452 = vld [vmem:[%s6205 + $0x40] sm:$0xff]
    %v6453 = vld [vmem:[%s6205 + $0x50] sm:$0xff]
    %v6454 = vld [vmem:[%s6205 + $0x60] sm:$0xff]
    %v6455 = vld [vmem:[%s6205 + $0x70] sm:$0xff]
    %v6456 = vld [vmem:[%s6205 + $0xa0] sm:$0xff]
    %v6457 = vld [vmem:[%s6205 + $0xb0] sm:$0xff]
    %v6458 = vld [vmem:[%s6205 + $0xc0] sm:$0xff]
    %v6459 = vld [vmem:[%s6205 + $0xd0] sm:$0xff]
    %v6460 = vld [vmem:[%s6205 + $0xe0] sm:$0xff]
    %v6461 = vld [vmem:[%s6205 + $0xf0] sm:$0xff]
    %v6462 = vld [vmem:[%s6205 + $0x100] sm:$0xff]
    %v6463 = vld [vmem:[%s6205 + $0x110] sm:$0xff]
    %6480 = vrot.lane.b32.xlu0 %v6448, 24
    %v6481 = vpop.permute.xlu0 %6480
    %6482 = vrot.lane.b32.xlu0 %v6449, 24
    %v6483 = vpop.permute.xlu0 %6482
    %6484 = vrot.lane.b32.xlu0 %v6450, 24
    %v6485 = vpop.permute.xlu0 %6484
    %6486 = vrot.lane.b32.xlu0 %v6451, 24
    %v6487 = vpop.permute.xlu0 %6486
    %6488 = vrot.lane.b32.xlu0 %v6452, 24
    %v6489 = vpop.permute.xlu0 %6488
    %6490 = vrot.lane.b32.xlu0 %v6453, 24
    %v6491 = vpop.permute.xlu0 %6490
    %6492 = vrot.lane.b32.xlu0 %v6454, 24
    %v6493 = vpop.permute.xlu0 %6492
    %6494 = vrot.lane.b32.xlu0 %v6455, 24
    %v6495 = vpop.permute.xlu0 %6494
    %6496 = vrot.lane.b32.xlu0 %v6456, 24
    %v6497 = vpop.permute.xlu0 %6496
    %6498 = vrot.lane.b32.xlu0 %v6457, 24
    %v6499 = vpop.permute.xlu0 %6498
    %6500 = vrot.lane.b32.xlu0 %v6458, 24
    %v6501 = vpop.permute.xlu0 %6500
    %6502 = vrot.lane.b32.xlu0 %v6459, 24
    %v6503 = vpop.permute.xlu0 %6502
    %6504 = vrot.lane.b32.xlu0 %v6460, 24
    %v6505 = vpop.permute.xlu0 %6504
    %6506 = vrot.lane.b32.xlu0 %v6461, 24
    %v6507 = vpop.permute.xlu0 %6506
    %6508 = vrot.lane.b32.xlu0 %v6462, 24
    %v6509 = vpop.permute.xlu0 %6508
    %6510 = vrot.lane.b32.xlu0 %v6463, 24
    %v6511 = vpop.permute.xlu0 %6510
    %vm6528 = vcmask 261312
    %6529 = vst.msk [vmem:[#allocation5] sm:$0xff] %vm6528, %v6481
    %6530 = vst.msk [vmem:[#allocation5 + $0x8] sm:$0xff] %vm6528, %v6483
    %6531 = vst.msk [vmem:[#allocation5 + $0x10] sm:$0xff] %vm6528, %v6485
    %6532 = vst.msk [vmem:[#allocation5 + $0x18] sm:$0xff] %vm6528, %v6487
    %6533 = vst.msk [vmem:[#allocation5 + $0x20] sm:$0xff] %vm6528, %v6489
    %6534 = vst.msk [vmem:[#allocation5 + $0x28] sm:$0xff] %vm6528, %v6491
    %6535 = vst.msk [vmem:[#allocation5 + $0x30] sm:$0xff] %vm6528, %v6493
    %6536 = vst.msk [vmem:[#allocation5 + $0x38] sm:$0xff] %vm6528, %v6495
    %6537 = vst.msk [vmem:[#allocation5 + $0x40] sm:$0xff] %vm6528, %v6497
    %6538 = vst.msk [vmem:[#allocation5 + $0x48] sm:$0xff] %vm6528, %v6499
    %6539 = vst.msk [vmem:[#allocation5 + $0x50] sm:$0xff] %vm6528, %v6501
    %6540 = vst.msk [vmem:[#allocation5 + $0x58] sm:$0xff] %vm6528, %v6503
    %6541 = vst.msk [vmem:[#allocation5 + $0x60] sm:$0xff] %vm6528, %v6505
    %6542 = vst.msk [vmem:[#allocation5 + $0x68] sm:$0xff] %vm6528, %v6507
    %6543 = vst.msk [vmem:[#allocation5 + $0x70] sm:$0xff] %vm6528, %v6509
    %6544 = vst.msk [vmem:[#allocation5 + $0x78] sm:$0xff] %vm6528, %v6511
    %v6545 = vld [vmem:[%s6205 + $0x1] sm:$0xff]
    %v6546 = vld [vmem:[%s6205 + $0x11] sm:$0xff]
    %v6547 = vld [vmem:[%s6205 + $0x21] sm:$0xff]
    %v6548 = vld [vmem:[%s6205 + $0x31] sm:$0xff]
    %v6549 = vld [vmem:[%s6205 + $0x41] sm:$0xff]
    %v6550 = vld [vmem:[%s6205 + $0x51] sm:$0xff]
    %v6551 = vld [vmem:[%s6205 + $0x61] sm:$0xff]
    %v6552 = vld [vmem:[%s6205 + $0x71] sm:$0xff]
    %v6553 = vld [vmem:[%s6205 + $0xa1] sm:$0xff]
    %v6554 = vld [vmem:[%s6205 + $0xb1] sm:$0xff]
    %v6555 = vld [vmem:[%s6205 + $0xc1] sm:$0xff]
    %v6556 = vld [vmem:[%s6205 + $0xd1] sm:$0xff]
    %v6557 = vld [vmem:[%s6205 + $0xe1] sm:$0xff]
    %v6558 = vld [vmem:[%s6205 + $0xf1] sm:$0xff]
    %v6559 = vld [vmem:[%s6205 + $0x101] sm:$0xff]
    %v6560 = vld [vmem:[%s6205 + $0x111] sm:$0xff]
    %6577 = vrot.lane.b32.xlu0 %v6545, 32
    %v6578 = vpop.permute.xlu0 %6577
    %6579 = vrot.lane.b32.xlu0 %v6546, 32
    %v6580 = vpop.permute.xlu0 %6579
    %6581 = vrot.lane.b32.xlu0 %v6547, 32
    %v6582 = vpop.permute.xlu0 %6581
    %6583 = vrot.lane.b32.xlu0 %v6548, 32
    %v6584 = vpop.permute.xlu0 %6583
    %6585 = vrot.lane.b32.xlu0 %v6549, 32
    %v6586 = vpop.permute.xlu0 %6585
    %6587 = vrot.lane.b32.xlu0 %v6550, 32
    %v6588 = vpop.permute.xlu0 %6587
    %6589 = vrot.lane.b32.xlu0 %v6551, 32
    %v6590 = vpop.permute.xlu0 %6589
    %6591 = vrot.lane.b32.xlu0 %v6552, 32
    %v6592 = vpop.permute.xlu0 %6591
    %6593 = vrot.lane.b32.xlu0 %v6553, 32
    %v6594 = vpop.permute.xlu0 %6593
    %6595 = vrot.lane.b32.xlu0 %v6554, 32
    %v6596 = vpop.permute.xlu0 %6595
    %6597 = vrot.lane.b32.xlu0 %v6555, 32
    %v6598 = vpop.permute.xlu0 %6597
    %6599 = vrot.lane.b32.xlu0 %v6556, 32
    %v6600 = vpop.permute.xlu0 %6599
    %6601 = vrot.lane.b32.xlu0 %v6557, 32
    %v6602 = vpop.permute.xlu0 %6601
    %6603 = vrot.lane.b32.xlu0 %v6558, 32
    %v6604 = vpop.permute.xlu0 %6603
    %6605 = vrot.lane.b32.xlu0 %v6559, 32
    %v6606 = vpop.permute.xlu0 %6605
    %6607 = vrot.lane.b32.xlu0 %v6560, 32
    %v6608 = vpop.permute.xlu0 %6607
    %vm6625 = vcmask 326912
    %6626 = vst.msk [vmem:[#allocation5] sm:$0xff] %vm6625, %v6578
    %6627 = vst.msk [vmem:[#allocation5 + $0x8] sm:$0xff] %vm6625, %v6580
    %6628 = vst.msk [vmem:[#allocation5 + $0x10] sm:$0xff] %vm6625, %v6582
    %6629 = vst.msk [vmem:[#allocation5 + $0x18] sm:$0xff] %vm6625, %v6584
    %6630 = vst.msk [vmem:[#allocation5 + $0x20] sm:$0xff] %vm6625, %v6586
    %6631 = vst.msk [vmem:[#allocation5 + $0x28] sm:$0xff] %vm6625, %v6588
    %6632 = vst.msk [vmem:[#allocation5 + $0x30] sm:$0xff] %vm6625, %v6590
    %6633 = vst.msk [vmem:[#allocation5 + $0x38] sm:$0xff] %vm6625, %v6592
    %6634 = vst.msk [vmem:[#allocation5 + $0x40] sm:$0xff] %vm6625, %v6594
    %6635 = vst.msk [vmem:[#allocation5 + $0x48] sm:$0xff] %vm6625, %v6596
    %6636 = vst.msk [vmem:[#allocation5 + $0x50] sm:$0xff] %vm6625, %v6598
    %6637 = vst.msk [vmem:[#allocation5 + $0x58] sm:$0xff] %vm6625, %v6600
    %6638 = vst.msk [vmem:[#allocation5 + $0x60] sm:$0xff] %vm6625, %v6602
    %6639 = vst.msk [vmem:[#allocation5 + $0x68] sm:$0xff] %vm6625, %v6604
    %6640 = vst.msk [vmem:[#allocation5 + $0x70] sm:$0xff] %vm6625, %v6606
    %6641 = vst.msk [vmem:[#allocation5 + $0x78] sm:$0xff] %vm6625, %v6608
    %v6642 = vld [vmem:[%s6205 + $0x2] sm:$0xff]
    %v6643 = vld [vmem:[%s6205 + $0x12] sm:$0xff]
    %v6644 = vld [vmem:[%s6205 + $0x22] sm:$0xff]
    %v6645 = vld [vmem:[%s6205 + $0x32] sm:$0xff]
    %v6646 = vld [vmem:[%s6205 + $0x42] sm:$0xff]
    %v6647 = vld [vmem:[%s6205 + $0x52] sm:$0xff]
    %v6648 = vld [vmem:[%s6205 + $0x62] sm:$0xff]
    %v6649 = vld [vmem:[%s6205 + $0x72] sm:$0xff]
    %v6650 = vld [vmem:[%s6205 + $0xa2] sm:$0xff]
    %v6651 = vld [vmem:[%s6205 + $0xb2] sm:$0xff]
    %v6652 = vld [vmem:[%s6205 + $0xc2] sm:$0xff]
    %v6653 = vld [vmem:[%s6205 + $0xd2] sm:$0xff]
    %v6654 = vld [vmem:[%s6205 + $0xe2] sm:$0xff]
    %v6655 = vld [vmem:[%s6205 + $0xf2] sm:$0xff]
    %v6656 = vld [vmem:[%s6205 + $0x102] sm:$0xff]
    %v6657 = vld [vmem:[%s6205 + $0x112] sm:$0xff]
    %6674 = vrot.lane.b32.xlu0 %v6642, 40
    %v6675 = vpop.permute.xlu0 %6674
    %6676 = vrot.lane.b32.xlu0 %v6643, 40
    %v6677 = vpop.permute.xlu0 %6676
    %6678 = vrot.lane.b32.xlu0 %v6644, 40
    %v6679 = vpop.permute.xlu0 %6678
    %6680 = vrot.lane.b32.xlu0 %v6645, 40
    %v6681 = vpop.permute.xlu0 %6680
    %6682 = vrot.lane.b32.xlu0 %v6646, 40
    %v6683 = vpop.permute.xlu0 %6682
    %6684 = vrot.lane.b32.xlu0 %v6647, 40
    %v6685 = vpop.permute.xlu0 %6684
    %6686 = vrot.lane.b32.xlu0 %v6648, 40
    %v6687 = vpop.permute.xlu0 %6686
    %6688 = vrot.lane.b32.xlu0 %v6649, 40
    %v6689 = vpop.permute.xlu0 %6688
    %6690 = vrot.lane.b32.xlu0 %v6650, 40
    %v6691 = vpop.permute.xlu0 %6690
    %6692 = vrot.lane.b32.xlu0 %v6651, 40
    %v6693 = vpop.permute.xlu0 %6692
    %6694 = vrot.lane.b32.xlu0 %v6652, 40
    %v6695 = vpop.permute.xlu0 %6694
    %6696 = vrot.lane.b32.xlu0 %v6653, 40
    %v6697 = vpop.permute.xlu0 %6696
    %6698 = vrot.lane.b32.xlu0 %v6654, 40
    %v6699 = vpop.permute.xlu0 %6698
    %6700 = vrot.lane.b32.xlu0 %v6655, 40
    %v6701 = vpop.permute.xlu0 %6700
    %6702 = vrot.lane.b32.xlu0 %v6656, 40
    %v6703 = vpop.permute.xlu0 %6702
    %6704 = vrot.lane.b32.xlu0 %v6657, 40
    %v6705 = vpop.permute.xlu0 %6704
    %vm6722 = vcmask 392512
    %6723 = vst.msk [vmem:[#allocation5] sm:$0xff] %vm6722, %v6675
    %6724 = vst.msk [vmem:[#allocation5 + $0x8] sm:$0xff] %vm6722, %v6677
    %6725 = vst.msk [vmem:[#allocation5 + $0x10] sm:$0xff] %vm6722, %v6679
    %6726 = vst.msk [vmem:[#allocation5 + $0x18] sm:$0xff] %vm6722, %v6681
    %6727 = vst.msk [vmem:[#allocation5 + $0x20] sm:$0xff] %vm6722, %v6683
    %6728 = vst.msk [vmem:[#allocation5 + $0x28] sm:$0xff] %vm6722, %v6685
    %6729 = vst.msk [vmem:[#allocation5 + $0x30] sm:$0xff] %vm6722, %v6687
    %6730 = vst.msk [vmem:[#allocation5 + $0x38] sm:$0xff] %vm6722, %v6689
    %6731 = vst.msk [vmem:[#allocation5 + $0x40] sm:$0xff] %vm6722, %v6691
    %6732 = vst.msk [vmem:[#allocation5 + $0x48] sm:$0xff] %vm6722, %v6693
    %6733 = vst.msk [vmem:[#allocation5 + $0x50] sm:$0xff] %vm6722, %v6695
    %6734 = vst.msk [vmem:[#allocation5 + $0x58] sm:$0xff] %vm6722, %v6697
    %6735 = vst.msk [vmem:[#allocation5 + $0x60] sm:$0xff] %vm6722, %v6699
    %6736 = vst.msk [vmem:[#allocation5 + $0x68] sm:$0xff] %vm6722, %v6701
    %6737 = vst.msk [vmem:[#allocation5 + $0x70] sm:$0xff] %vm6722, %v6703
    %6738 = vst.msk [vmem:[#allocation5 + $0x78] sm:$0xff] %vm6722, %v6705
    %s6739 = scalar_lea.vmem [#allocation4], 32
    %v6740 = vld [vmem:[%s6739] sm:$0xff]
    %v6741 = vld [vmem:[%s6739 + $0x10] sm:$0xff]
    %v6742 = vld [vmem:[%s6739 + $0x20] sm:$0xff]
    %v6743 = vld [vmem:[%s6739 + $0x30] sm:$0xff]
    %v6744 = vld [vmem:[%s6739 + $0x40] sm:$0xff]
    %v6745 = vld [vmem:[%s6739 + $0x50] sm:$0xff]
    %v6746 = vld [vmem:[%s6739 + $0x60] sm:$0xff]
    %v6747 = vld [vmem:[%s6739 + $0x70] sm:$0xff]
    %v6748 = vld [vmem:[%s6739 + $0xa0] sm:$0xff]
    %v6749 = vld [vmem:[%s6739 + $0xb0] sm:$0xff]
    %v6750 = vld [vmem:[%s6739 + $0xc0] sm:$0xff]
    %v6751 = vld [vmem:[%s6739 + $0xd0] sm:$0xff]
    %v6752 = vld [vmem:[%s6739 + $0xe0] sm:$0xff]
    %v6753 = vld [vmem:[%s6739 + $0xf0] sm:$0xff]
    %v6754 = vld [vmem:[%s6739 + $0x100] sm:$0xff]
    %v6755 = vld [vmem:[%s6739 + $0x110] sm:$0xff]
    %6772 = vrot.lane.b32.xlu0 %v6740, 48
    %v6773 = vpop.permute.xlu0 %6772
    %6774 = vrot.lane.b32.xlu0 %v6741, 48
    %v6775 = vpop.permute.xlu0 %6774
    %6776 = vrot.lane.b32.xlu0 %v6742, 48
    %v6777 = vpop.permute.xlu0 %6776
    %6778 = vrot.lane.b32.xlu0 %v6743, 48
    %v6779 = vpop.permute.xlu0 %6778
    %6780 = vrot.lane.b32.xlu0 %v6744, 48
    %v6781 = vpop.permute.xlu0 %6780
    %6782 = vrot.lane.b32.xlu0 %v6745, 48
    %v6783 = vpop.permute.xlu0 %6782
    %6784 = vrot.lane.b32.xlu0 %v6746, 48
    %v6785 = vpop.permute.xlu0 %6784
    %6786 = vrot.lane.b32.xlu0 %v6747, 48
    %v6787 = vpop.permute.xlu0 %6786
    %6788 = vrot.lane.b32.xlu0 %v6748, 48
    %v6789 = vpop.permute.xlu0 %6788
    %6790 = vrot.lane.b32.xlu0 %v6749, 48
    %v6791 = vpop.permute.xlu0 %6790
    %6792 = vrot.lane.b32.xlu0 %v6750, 48
    %v6793 = vpop.permute.xlu0 %6792
    %6794 = vrot.lane.b32.xlu0 %v6751, 48
    %v6795 = vpop.permute.xlu0 %6794
    %6796 = vrot.lane.b32.xlu0 %v6752, 48
    %v6797 = vpop.permute.xlu0 %6796
    %6798 = vrot.lane.b32.xlu0 %v6753, 48
    %v6799 = vpop.permute.xlu0 %6798
    %6800 = vrot.lane.b32.xlu0 %v6754, 48
    %v6801 = vpop.permute.xlu0 %6800
    %6802 = vrot.lane.b32.xlu0 %v6755, 48
    %v6803 = vpop.permute.xlu0 %6802
    %vm6820 = vcmask 458112
    %6821 = vst.msk [vmem:[#allocation5] sm:$0xff] %vm6820, %v6773
    %6822 = vst.msk [vmem:[#allocation5 + $0x8] sm:$0xff] %vm6820, %v6775
    %6823 = vst.msk [vmem:[#allocation5 + $0x10] sm:$0xff] %vm6820, %v6777
    %6824 = vst.msk [vmem:[#allocation5 + $0x18] sm:$0xff] %vm6820, %v6779
    %6825 = vst.msk [vmem:[#allocation5 + $0x20] sm:$0xff] %vm6820, %v6781
    %6826 = vst.msk [vmem:[#allocation5 + $0x28] sm:$0xff] %vm6820, %v6783
    %6827 = vst.msk [vmem:[#allocation5 + $0x30] sm:$0xff] %vm6820, %v6785
    %6828 = vst.msk [vmem:[#allocation5 + $0x38] sm:$0xff] %vm6820, %v6787
    %6829 = vst.msk [vmem:[#allocation5 + $0x40] sm:$0xff] %vm6820, %v6789
    %6830 = vst.msk [vmem:[#allocation5 + $0x48] sm:$0xff] %vm6820, %v6791
    %6831 = vst.msk [vmem:[#allocation5 + $0x50] sm:$0xff] %vm6820, %v6793
    %6832 = vst.msk [vmem:[#allocation5 + $0x58] sm:$0xff] %vm6820, %v6795
    %6833 = vst.msk [vmem:[#allocation5 + $0x60] sm:$0xff] %vm6820, %v6797
    %6834 = vst.msk [vmem:[#allocation5 + $0x68] sm:$0xff] %vm6820, %v6799
    %6835 = vst.msk [vmem:[#allocation5 + $0x70] sm:$0xff] %vm6820, %v6801
    %6836 = vst.msk [vmem:[#allocation5 + $0x78] sm:$0xff] %vm6820, %v6803
    %v6837 = vld [vmem:[%s6739 + $0x1] sm:$0xff]
    %v6838 = vld [vmem:[%s6739 + $0x11] sm:$0xff]
    %v6839 = vld [vmem:[%s6739 + $0x21] sm:$0xff]
    %v6840 = vld [vmem:[%s6739 + $0x31] sm:$0xff]
    %v6841 = vld [vmem:[%s6739 + $0x41] sm:$0xff]
    %v6842 = vld [vmem:[%s6739 + $0x51] sm:$0xff]
    %v6843 = vld [vmem:[%s6739 + $0x61] sm:$0xff]
    %v6844 = vld [vmem:[%s6739 + $0x71] sm:$0xff]
    %v6845 = vld [vmem:[%s6739 + $0xa1] sm:$0xff]
    %v6846 = vld [vmem:[%s6739 + $0xb1] sm:$0xff]
    %v6847 = vld [vmem:[%s6739 + $0xc1] sm:$0xff]
    %v6848 = vld [vmem:[%s6739 + $0xd1] sm:$0xff]
    %v6849 = vld [vmem:[%s6739 + $0xe1] sm:$0xff]
    %v6850 = vld [vmem:[%s6739 + $0xf1] sm:$0xff]
    %v6851 = vld [vmem:[%s6739 + $0x101] sm:$0xff]
    %v6852 = vld [vmem:[%s6739 + $0x111] sm:$0xff]
    %6869 = vrot.lane.b32.xlu0 %v6837, 56
    %v6870 = vpop.permute.xlu0 %6869
    %6871 = vrot.lane.b32.xlu0 %v6838, 56
    %v6872 = vpop.permute.xlu0 %6871
    %6873 = vrot.lane.b32.xlu0 %v6839, 56
    %v6874 = vpop.permute.xlu0 %6873
    %6875 = vrot.lane.b32.xlu0 %v6840, 56
    %v6876 = vpop.permute.xlu0 %6875
    %6877 = vrot.lane.b32.xlu0 %v6841, 56
    %v6878 = vpop.permute.xlu0 %6877
    %6879 = vrot.lane.b32.xlu0 %v6842, 56
    %v6880 = vpop.permute.xlu0 %6879
    %6881 = vrot.lane.b32.xlu0 %v6843, 56
    %v6882 = vpop.permute.xlu0 %6881
    %6883 = vrot.lane.b32.xlu0 %v6844, 56
    %v6884 = vpop.permute.xlu0 %6883
    %6885 = vrot.lane.b32.xlu0 %v6845, 56
    %v6886 = vpop.permute.xlu0 %6885
    %6887 = vrot.lane.b32.xlu0 %v6846, 56
    %v6888 = vpop.permute.xlu0 %6887
    %6889 = vrot.lane.b32.xlu0 %v6847, 56
    %v6890 = vpop.permute.xlu0 %6889
    %6891 = vrot.lane.b32.xlu0 %v6848, 56
    %v6892 = vpop.permute.xlu0 %6891
    %6893 = vrot.lane.b32.xlu0 %v6849, 56
    %v6894 = vpop.permute.xlu0 %6893
    %6895 = vrot.lane.b32.xlu0 %v6850, 56
    %v6896 = vpop.permute.xlu0 %6895
    %6897 = vrot.lane.b32.xlu0 %v6851, 56
    %v6898 = vpop.permute.xlu0 %6897
    %6899 = vrot.lane.b32.xlu0 %v6852, 56
    %v6900 = vpop.permute.xlu0 %6899
    %vm6917 = vcmask 523712
    %6918 = vst.msk [vmem:[#allocation5] sm:$0xff] %vm6917, %v6870
    %6919 = vst.msk [vmem:[#allocation5 + $0x8] sm:$0xff] %vm6917, %v6872
    %6920 = vst.msk [vmem:[#allocation5 + $0x10] sm:$0xff] %vm6917, %v6874
    %6921 = vst.msk [vmem:[#allocation5 + $0x18] sm:$0xff] %vm6917, %v6876
    %6922 = vst.msk [vmem:[#allocation5 + $0x20] sm:$0xff] %vm6917, %v6878
    %6923 = vst.msk [vmem:[#allocation5 + $0x28] sm:$0xff] %vm6917, %v6880
    %6924 = vst.msk [vmem:[#allocation5 + $0x30] sm:$0xff] %vm6917, %v6882
    %6925 = vst.msk [vmem:[#allocation5 + $0x38] sm:$0xff] %vm6917, %v6884
    %6926 = vst.msk [vmem:[#allocation5 + $0x40] sm:$0xff] %vm6917, %v6886
    %6927 = vst.msk [vmem:[#allocation5 + $0x48] sm:$0xff] %vm6917, %v6888
    %6928 = vst.msk [vmem:[#allocation5 + $0x50] sm:$0xff] %vm6917, %v6890
    %6929 = vst.msk [vmem:[#allocation5 + $0x58] sm:$0xff] %vm6917, %v6892
    %6930 = vst.msk [vmem:[#allocation5 + $0x60] sm:$0xff] %vm6917, %v6894
    %6931 = vst.msk [vmem:[#allocation5 + $0x68] sm:$0xff] %vm6917, %v6896
    %6932 = vst.msk [vmem:[#allocation5 + $0x70] sm:$0xff] %vm6917, %v6898
    %6933 = vst.msk [vmem:[#allocation5 + $0x78] sm:$0xff] %vm6917, %v6900
    %v6934 = vld [vmem:[%s6739 + $0x2] sm:$0xff]
    %v6935 = vld [vmem:[%s6739 + $0x12] sm:$0xff]
    %v6936 = vld [vmem:[%s6739 + $0x22] sm:$0xff]
    %v6937 = vld [vmem:[%s6739 + $0x32] sm:$0xff]
    %v6938 = vld [vmem:[%s6739 + $0x42] sm:$0xff]
    %v6939 = vld [vmem:[%s6739 + $0x52] sm:$0xff]
    %v6940 = vld [vmem:[%s6739 + $0x62] sm:$0xff]
    %v6941 = vld [vmem:[%s6739 + $0x72] sm:$0xff]
    %v6942 = vld [vmem:[%s6739 + $0xa2] sm:$0xff]
    %v6943 = vld [vmem:[%s6739 + $0xb2] sm:$0xff]
    %v6944 = vld [vmem:[%s6739 + $0xc2] sm:$0xff]
    %v6945 = vld [vmem:[%s6739 + $0xd2] sm:$0xff]
    %v6946 = vld [vmem:[%s6739 + $0xe2] sm:$0xff]
    %v6947 = vld [vmem:[%s6739 + $0xf2] sm:$0xff]
    %v6948 = vld [vmem:[%s6739 + $0x102] sm:$0xff]
    %v6949 = vld [vmem:[%s6739 + $0x112] sm:$0xff]
    %6966 = vrot.lane.b32.xlu0 %v6934, 64
    %v6967 = vpop.permute.xlu0 %6966
    %6968 = vrot.lane.b32.xlu0 %v6935, 64
    %v6969 = vpop.permute.xlu0 %6968
    %6970 = vrot.lane.b32.xlu0 %v6936, 64
    %v6971 = vpop.permute.xlu0 %6970
    %6972 = vrot.lane.b32.xlu0 %v6937, 64
    %v6973 = vpop.permute.xlu0 %6972
    %6974 = vrot.lane.b32.xlu0 %v6938, 64
    %v6975 = vpop.permute.xlu0 %6974
    %6976 = vrot.lane.b32.xlu0 %v6939, 64
    %v6977 = vpop.permute.xlu0 %6976
    %6978 = vrot.lane.b32.xlu0 %v6940, 64
    %v6979 = vpop.permute.xlu0 %6978
    %6980 = vrot.lane.b32.xlu0 %v6941, 64
    %v6981 = vpop.permute.xlu0 %6980
    %6982 = vrot.lane.b32.xlu0 %v6942, 64
    %v6983 = vpop.permute.xlu0 %6982
    %6984 = vrot.lane.b32.xlu0 %v6943, 64
    %v6985 = vpop.permute.xlu0 %6984
    %6986 = vrot.lane.b32.xlu0 %v6944, 64
    %v6987 = vpop.permute.xlu0 %6986
    %6988 = vrot.lane.b32.xlu0 %v6945, 64
    %v6989 = vpop.permute.xlu0 %6988
    %6990 = vrot.lane.b32.xlu0 %v6946, 64
    %v6991 = vpop.permute.xlu0 %6990
    %6992 = vrot.lane.b32.xlu0 %v6947, 64
    %v6993 = vpop.permute.xlu0 %6992
    %6994 = vrot.lane.b32.xlu0 %v6948, 64
    %v6995 = vpop.permute.xlu0 %6994
    %6996 = vrot.lane.b32.xlu0 %v6949, 64
    %v6997 = vpop.permute.xlu0 %6996
    %vm7014 = vcmask 589312
    %7015 = vst.msk [vmem:[#allocation5] sm:$0xff] %vm7014, %v6967
    %7016 = vst.msk [vmem:[#allocation5 + $0x8] sm:$0xff] %vm7014, %v6969
    %7017 = vst.msk [vmem:[#allocation5 + $0x10] sm:$0xff] %vm7014, %v6971
    %7018 = vst.msk [vmem:[#allocation5 + $0x18] sm:$0xff] %vm7014, %v6973
    %7019 = vst.msk [vmem:[#allocation5 + $0x20] sm:$0xff] %vm7014, %v6975
    %7020 = vst.msk [vmem:[#allocation5 + $0x28] sm:$0xff] %vm7014, %v6977
    %7021 = vst.msk [vmem:[#allocation5 + $0x30] sm:$0xff] %vm7014, %v6979
    %7022 = vst.msk [vmem:[#allocation5 + $0x38] sm:$0xff] %vm7014, %v6981
    %7023 = vst.msk [vmem:[#allocation5 + $0x40] sm:$0xff] %vm7014, %v6983
    %7024 = vst.msk [vmem:[#allocation5 + $0x48] sm:$0xff] %vm7014, %v6985
    %7025 = vst.msk [vmem:[#allocation5 + $0x50] sm:$0xff] %vm7014, %v6987
    %7026 = vst.msk [vmem:[#allocation5 + $0x58] sm:$0xff] %vm7014, %v6989
    %7027 = vst.msk [vmem:[#allocation5 + $0x60] sm:$0xff] %vm7014, %v6991
    %7028 = vst.msk [vmem:[#allocation5 + $0x68] sm:$0xff] %vm7014, %v6993
    %7029 = vst.msk [vmem:[#allocation5 + $0x70] sm:$0xff] %vm7014, %v6995
    %7030 = vst.msk [vmem:[#allocation5 + $0x78] sm:$0xff] %vm7014, %v6997
    %v7031 = vld [vmem:[#allocation5] sm:$0xff]
    %v7032 = vld [vmem:[#allocation5 + $0x8] sm:$0xff]
    %v7033 = vld [vmem:[#allocation5 + $0x10] sm:$0xff]
    %v7034 = vld [vmem:[#allocation5 + $0x18] sm:$0xff]
    %v7035 = vld [vmem:[#allocation5 + $0x20] sm:$0xff]
    %v7036 = vld [vmem:[#allocation5 + $0x28] sm:$0xff]
    %v7037 = vld [vmem:[#allocation5 + $0x30] sm:$0xff]
    %v7038 = vld [vmem:[#allocation5 + $0x38] sm:$0xff]
    %v7039 = vld [vmem:[#allocation5 + $0x40] sm:$0xff]
    %v7040 = vld [vmem:[#allocation5 + $0x48] sm:$0xff]
    %v7041 = vld [vmem:[#allocation5 + $0x50] sm:$0xff]
    %v7042 = vld [vmem:[#allocation5 + $0x58] sm:$0xff]
    %v7043 = vld [vmem:[#allocation5 + $0x60] sm:$0xff]
    %v7044 = vld [vmem:[#allocation5 + $0x68] sm:$0xff]
    %v7045 = vld [vmem:[#allocation5 + $0x70] sm:$0xff]
    %v7046 = vld [vmem:[#allocation5 + $0x78] sm:$0xff]
    %v7047 = vld [vmem:[%s3] sm:$0xff]
    %v7048 = vld [vmem:[%s3 + $0x8] sm:$0xff]
    %v7049 = vld [vmem:[%s3 + $0x10] sm:$0xff]
    %v7050 = vld [vmem:[%s3 + $0x18] sm:$0xff]
    %v7051 = vld [vmem:[%s3 + $0x20] sm:$0xff]
    %v7052 = vld [vmem:[%s3 + $0x28] sm:$0xff]
    %v7053 = vld [vmem:[%s3 + $0x30] sm:$0xff]
    %v7054 = vld [vmem:[%s3 + $0x38] sm:$0xff]
    %v7055 = vld [vmem:[%s3 + $0x40] sm:$0xff]
    %v7056 = vld [vmem:[%s4] sm:$0x1]
    %v7058 = vlaneseq
    %v7059 = vshrl.u32 %v7058, 7
    %v7060 = vsub.s32 0, %v7059
    %v7061 = vrot.slane %v7056, %v7060
    %vm7063 = vcmask 588800
    %v7065 = vsel %vm7063, %v7031, 0
    %v7068 = vsel %vm7063, %v7032, 0
    %v7071 = vsel %vm7063, %v7033, 0
    %v7074 = vsel %vm7063, %v7034, 0
    %v7077 = vsel %vm7063, %v7035, 0
    %v7080 = vsel %vm7063, %v7036, 0
    %v7083 = vsel %vm7063, %v7037, 0
    %v7086 = vsel %vm7063, %v7038, 0
    %v7089 = vsel %vm7063, %v7039, 0
    %v7092 = vsel %vm7063, %v7040, 0
    %v7095 = vsel %vm7063, %v7041, 0
    %v7098 = vsel %vm7063, %v7042, 0
    %v7101 = vsel %vm7063, %v7043, 0
    %v7104 = vsel %vm7063, %v7044, 0
    %v7107 = vsel %vm7063, %v7045, 0
    %v7110 = vsel %vm7063, %v7046, 0
    %7112 = vmatprep.subr.mxu0 0.0
    %7113 = vmatpush1.msra.mxu0 %v7047
    %7114 = vmatprep.subr.mxu0 0.0
    %7115 = vmatpush1.msra.mxu0 %v7048
    %7116 = vmatprep.subr.mxu0 0.0
    %7117 = vmatpush1.msra.mxu0 %v7049
    %7118 = vmatprep.subr.mxu0 0.0
    %7119 = vmatpush1.msra.mxu0 %v7050
    %7120 = vmatprep.subr.mxu0 0.0
    %7121 = vmatpush1.msra.mxu0 %v7051
    %7122 = vmatprep.subr.mxu0 0.0
    %7123 = vmatpush1.msra.mxu0 %v7052
    %7124 = vmatprep.subr.mxu0 0.0
    %7125 = vmatpush1.msra.mxu0 %v7053
    %7126 = vmatprep.subr.mxu0 0.0
    %7127 = vmatpush1.msra.mxu0 %v7054
    %7128 = vmatprep.subr.mxu0 0.0
    %7129 = vmatpush1.msra.mxu0 %v7055
    %7130 = vmatprep.subr.mxu0 0.0
    %7131 = vmatpush1.msra.mxu0 0.0
    %7132 = vmatprep.subr.mxu0 0.0
    %7133 = vmatpush1.msra.mxu0 0.0
    %7134 = vmatprep.subr.mxu0 0.0
    %7135 = vmatpush1.msra.mxu0 0.0
    %7136 = vmatprep.subr.mxu0 0.0
    %7137 = vmatpush1.msra.mxu0 0.0
    %7138 = vmatprep.subr.mxu0 0.0
    %7139 = vmatpush1.msra.mxu0 0.0
    %7140 = vmatprep.subr.mxu0 0.0
    %7141 = vmatpush1.msra.mxu0 0.0
    %7142 = vmatprep.subr.mxu0 0.0
    %7143 = vmatpush1.msra.mxu0 0.0
    %7144 = vmatprep.subr.mxu0 0.0
    %7145 = vmatpush1.msra.mxu0 0.0
    %7146 = vmatprep.subr.mxu0 0.0
    %7147 = vmatpush1.msra.mxu0 0.0
    %7148 = vmatprep.subr.mxu0 0.0
    %7149 = vmatpush1.msra.mxu0 0.0
    %7150 = vmatprep.subr.mxu0 0.0
    %7151 = vmatpush1.msra.mxu0 0.0
    %7152 = vmatprep.subr.mxu0 0.0
    %7153 = vmatpush1.msra.mxu0 0.0
    %7154 = vmatprep.subr.mxu0 0.0
    %7155 = vmatpush1.msra.mxu0 0.0
    %7156 = vmatprep.subr.mxu0 0.0
    %7157 = vmatpush1.msra.mxu0 0.0
    %7158 = vmatprep.subr.mxu0 0.0
    %7159 = vmatpush1.msra.mxu0 0.0
    %7160 = vmatprep.subr.mxu0 0.0
    %7161 = vmatpush1.msra.mxu0 0.0
    %7162 = vmatprep.subr.mxu0 0.0
    %7163 = vmatpush1.msra.mxu0 0.0
    %7164 = vmatprep.subr.mxu0 0.0
    %7165 = vmatpush1.msra.mxu0 0.0
    %7166 = vmatprep.subr.mxu0 0.0
    %7167 = vmatpush1.msra.mxu0 0.0
    %7168 = vmatprep.subr.mxu0 0.0
    %7169 = vmatpush1.msra.mxu0 0.0
    %7170 = vmatprep.subr.mxu0 0.0
    %7171 = vmatpush1.msra.mxu0 0.0
    %7172 = vmatprep.subr.mxu0 0.0
    %7173 = vmatpush1.msra.mxu0 0.0
    %7174 = vmatprep.subr.mxu0 0.0
    %7175 = vmatpush1.msra.mxu0 0.0
    %7176 = vmatprep.mubr.f32.mxu0 0.0
    %7177 = vmatmul.mubr.f32.gmra.mrb[0].mxu0 %v7065
    %v7178 = vpop.f32.mrb[0].mxu0
    %v7179 = vadd.f32 %v7061, %v7178
    %v7180 = vpop.f32.mrb[0].mxu0
    %7181 = vmatprep.mubr.f32.mxu0 0.0
    %7182 = vmatmul.mubr.f32.gmra.mrb[0].mxu0 %v7068
    %v7183 = vpop.f32.mrb[0].mxu0
    %v7184 = vadd.f32 %v7061, %v7183
    %v7185 = vpop.f32.mrb[0].mxu0
    %7186 = vmatprep.mubr.f32.mxu0 0.0
    %7187 = vmatmul.mubr.f32.gmra.mrb[0].mxu0 %v7071
    %v7188 = vpop.f32.mrb[0].mxu0
    %v7189 = vadd.f32 %v7061, %v7188
    %v7190 = vpop.f32.mrb[0].mxu0
    %7191 = vmatprep.mubr.f32.mxu0 0.0
    %7192 = vmatmul.mubr.f32.gmra.mrb[0].mxu0 %v7074
    %v7193 = vpop.f32.mrb[0].mxu0
    %v7194 = vadd.f32 %v7061, %v7193
    %v7195 = vpop.f32.mrb[0].mxu0
    %7196 = vmatprep.mubr.f32.mxu0 0.0
    %7197 = vmatmul.mubr.f32.gmra.mrb[0].mxu0 %v7077
    %v7198 = vpop.f32.mrb[0].mxu0
    %v7199 = vadd.f32 %v7061, %v7198
    %v7200 = vpop.f32.mrb[0].mxu0
    %7201 = vmatprep.mubr.f32.mxu0 0.0
    %7202 = vmatmul.mubr.f32.gmra.mrb[0].mxu0 %v7080
    %v7203 = vpop.f32.mrb[0].mxu0
    %v7204 = vadd.f32 %v7061, %v7203
    %v7205 = vpop.f32.mrb[0].mxu0
    %7206 = vmatprep.mubr.f32.mxu0 0.0
    %7207 = vmatmul.mubr.f32.gmra.mrb[0].mxu0 %v7083
    %v7208 = vpop.f32.mrb[0].mxu0
    %v7209 = vadd.f32 %v7061, %v7208
    %v7210 = vpop.f32.mrb[0].mxu0
    %7211 = vmatprep.mubr.f32.mxu0 0.0
    %7212 = vmatmul.mubr.f32.gmra.mrb[0].mxu0 %v7086
    %v7213 = vpop.f32.mrb[0].mxu0
    %v7214 = vadd.f32 %v7061, %v7213
    %v7215 = vpop.f32.mrb[0].mxu0
    %7216 = vmatprep.mubr.f32.mxu0 0.0
    %7217 = vmatmul.mubr.f32.gmra.mrb[0].mxu0 %v7089
    %v7218 = vpop.f32.mrb[0].mxu0
    %v7219 = vadd.f32 %v7061, %v7218
    %v7220 = vpop.f32.mrb[0].mxu0
    %7221 = vmatprep.mubr.f32.mxu0 0.0
    %7222 = vmatmul.mubr.f32.gmra.mrb[0].mxu0 %v7092
    %v7223 = vpop.f32.mrb[0].mxu0
    %v7224 = vadd.f32 %v7061, %v7223
    %v7225 = vpop.f32.mrb[0].mxu0
    %7226 = vmatprep.mubr.f32.mxu0 0.0
    %7227 = vmatmul.mubr.f32.gmra.mrb[0].mxu0 %v7095
    %v7228 = vpop.f32.mrb[0].mxu0
    %v7229 = vadd.f32 %v7061, %v7228
    %v7230 = vpop.f32.mrb[0].mxu0
    %7231 = vmatprep.mubr.f32.mxu0 0.0
    %7232 = vmatmul.mubr.f32.gmra.mrb[0].mxu0 %v7098
    %v7233 = vpop.f32.mrb[0].mxu0
    %v7234 = vadd.f32 %v7061, %v7233
    %v7235 = vpop.f32.mrb[0].mxu0
    %7236 = vmatprep.mubr.f32.mxu0 0.0
    %7237 = vmatmul.mubr.f32.gmra.mrb[0].mxu0 %v7101
    %v7238 = vpop.f32.mrb[0].mxu0
    %v7239 = vadd.f32 %v7061, %v7238
    %v7240 = vpop.f32.mrb[0].mxu0
    %7241 = vmatprep.mubr.f32.mxu0 0.0
    %7242 = vmatmul.mubr.f32.gmra.mrb[0].mxu0 %v7104
    %v7243 = vpop.f32.mrb[0].mxu0
    %v7244 = vadd.f32 %v7061, %v7243
    %v7245 = vpop.f32.mrb[0].mxu0
    %7246 = vmatprep.mubr.f32.mxu0 0.0
    %7247 = vmatmul.mubr.f32.gmra.mrb[0].mxu0 %v7107
    %v7248 = vpop.f32.mrb[0].mxu0
    %v7249 = vadd.f32 %v7061, %v7248
    %v7250 = vpop.f32.mrb[0].mxu0
    %7251 = vmatprep.mubr.f32.mxu0 0.0
    %7252 = vmatmul.mubr.f32.gmra.mrb[0].mxu0 %v7110
    %v7253 = vpop.f32.mrb[0].mxu0
    %v7254 = vadd.f32 %v7061, %v7253
    %v7255 = vpop.f32.mrb[0].mxu0
    %7256 = vdwg.mxu0
    %v7257 = vmax.f32 %v7179, 0.0
    %v7258 = vmax.f32 %v7184, 0.0
    %v7259 = vmax.f32 %v7189, 0.0
    %v7260 = vmax.f32 %v7194, 0.0
    %v7261 = vmax.f32 %v7199, 0.0
    %v7262 = vmax.f32 %v7204, 0.0
    %v7263 = vmax.f32 %v7209, 0.0
    %v7264 = vmax.f32 %v7214, 0.0
    %v7265 = vmax.f32 %v7219, 0.0
    %v7266 = vmax.f32 %v7224, 0.0
    %v7267 = vmax.f32 %v7229, 0.0
    %v7268 = vmax.f32 %v7234, 0.0
    %v7269 = vmax.f32 %v7239, 0.0
    %v7270 = vmax.f32 %v7244, 0.0
    %v7271 = vmax.f32 %v7249, 0.0
    %v7272 = vmax.f32 %v7254, 0.0
    %vm7273 = vcmask 130048
    %v7274 = vsel %vm7273, %v7257, -inf
    %v7275 = vsel %vm7273, %v7258, -inf
    %v7276 = vmax.f32 %v7274, %v7275
    %v7277 = vsel %vm7273, %v7259, -inf
    %v7278 = vsel %vm7273, %v7260, -inf
    %v7279 = vmax.f32 %v7277, %v7278
    %v7280 = vsel %vm7273, %v7261, -inf
    %v7281 = vsel %vm7273, %v7262, -inf
    %v7282 = vmax.f32 %v7280, %v7281
    %v7283 = vsel %vm7273, %v7263, -inf
    %v7284 = vsel %vm7273, %v7264, -inf
    %v7285 = vmax.f32 %v7283, %v7284
    %v7286 = vsel %vm7273, %v7265, -inf
    %v7287 = vsel %vm7273, %v7266, -inf
    %v7288 = vmax.f32 %v7286, %v7287
    %v7289 = vsel %vm7273, %v7267, -inf
    %v7290 = vsel %vm7273, %v7268, -inf
    %v7291 = vmax.f32 %v7289, %v7290
    %v7292 = vsel %vm7273, %v7269, -inf
    %v7293 = vsel %vm7273, %v7270, -inf
    %v7294 = vmax.f32 %v7292, %v7293
    %v7295 = vsel %vm7273, %v7271, -inf
    %v7296 = vsel %vm7273, %v7272, -inf
    %v7297 = vmax.f32 %v7295, %v7296
    %v7306 = vcombine.high %v7276, %v7276
    %v7308 = vunpack.c.l.s4 1983009808
    %v7309 = vunpack.c.0.s8 %v7308
    %v7310 = vlaneseq
    %v7311 = vshrl.u32 %v7310, 7
    %v7312 = vsub.s32 %v7309, %v7311
    %v7313 = vrot.slane %v7276, %v7312
    %v7315 = vunpack.c.l.s4 1983009808
    %v7316 = vunpack.c.0.s8 %v7315
    %v7317 = vlaneseq
    %v7318 = vshrl.u32 %v7317, 7
    %v7319 = vsub.s32 %v7316, %v7318
    %v7320 = vrot.slane %v7306, %v7319
    %v7321 = vcombine.high %v7313, %v7313
    %v7322 = vcombine.high %v7320, %v7320
    %v7323 = vcombine.high %v7279, %v7279
    %v7325 = vunpack.c.l.s4 1983009808
    %v7326 = vunpack.c.0.s8 %v7325
    %v7327 = vlaneseq
    %v7328 = vshrl.u32 %v7327, 7
    %v7329 = vsub.s32 %v7326, %v7328
    %v7330 = vrot.slane %v7279, %v7329
    %v7332 = vunpack.c.l.s4 1983009808
    %v7333 = vunpack.c.0.s8 %v7332
    %v7334 = vlaneseq
    %v7335 = vshrl.u32 %v7334, 7
    %v7336 = vsub.s32 %v7333, %v7335
    %v7337 = vrot.slane %v7323, %v7336
    %v7338 = vcombine.high %v7330, %v7330
    %v7339 = vcombine.high %v7337, %v7337
    %v7340 = vcombine.high %v7282, %v7282
    %v7342 = vunpack.c.l.s4 1983009808
    %v7343 = vunpack.c.0.s8 %v7342
    %v7344 = vlaneseq
    %v7345 = vshrl.u32 %v7344, 7
    %v7346 = vsub.s32 %v7343, %v7345
    %v7347 = vrot.slane %v7282, %v7346
    %v7349 = vunpack.c.l.s4 1983009808
    %v7350 = vunpack.c.0.s8 %v7349
    %v7351 = vlaneseq
    %v7352 = vshrl.u32 %v7351, 7
    %v7353 = vsub.s32 %v7350, %v7352
    %v7354 = vrot.slane %v7340, %v7353
    %v7355 = vcombine.high %v7347, %v7347
    %v7356 = vcombine.high %v7354, %v7354
    %v7357 = vcombine.high %v7285, %v7285
    %v7359 = vunpack.c.l.s4 1983009808
    %v7360 = vunpack.c.0.s8 %v7359
    %v7361 = vlaneseq
    %v7362 = vshrl.u32 %v7361, 7
    %v7363 = vsub.s32 %v7360, %v7362
    %v7364 = vrot.slane %v7285, %v7363
    %v7366 = vunpack.c.l.s4 1983009808
    %v7367 = vunpack.c.0.s8 %v7366
    %v7368 = vlaneseq
    %v7369 = vshrl.u32 %v7368, 7
    %v7370 = vsub.s32 %v7367, %v7369
    %v7371 = vrot.slane %v7357, %v7370
    %v7372 = vcombine.high %v7364, %v7364
    %v7373 = vcombine.high %v7371, %v7371
    %v7374 = vcombine.high %v7288, %v7288
    %v7376 = vunpack.c.l.s4 1983009808
    %v7377 = vunpack.c.0.s8 %v7376
    %v7378 = vlaneseq
    %v7379 = vshrl.u32 %v7378, 7
    %v7380 = vsub.s32 %v7377, %v7379
    %v7381 = vrot.slane %v7288, %v7380
    %v7383 = vunpack.c.l.s4 1983009808
    %v7384 = vunpack.c.0.s8 %v7383
    %v7385 = vlaneseq
    %v7386 = vshrl.u32 %v7385, 7
    %v7387 = vsub.s32 %v7384, %v7386
    %v7388 = vrot.slane %v7374, %v7387
    %v7389 = vcombine.high %v7381, %v7381
    %v7390 = vcombine.high %v7388, %v7388
    %v7391 = vcombine.high %v7291, %v7291
    %v7393 = vunpack.c.l.s4 1983009808
    %v7394 = vunpack.c.0.s8 %v7393
    %v7395 = vlaneseq
    %v7396 = vshrl.u32 %v7395, 7
    %v7397 = vsub.s32 %v7394, %v7396
    %v7398 = vrot.slane %v7291, %v7397
    %v7400 = vunpack.c.l.s4 1983009808
    %v7401 = vunpack.c.0.s8 %v7400
    %v7402 = vlaneseq
    %v7403 = vshrl.u32 %v7402, 7
    %v7404 = vsub.s32 %v7401, %v7403
    %v7405 = vrot.slane %v7391, %v7404
    %v7406 = vcombine.high %v7398, %v7398
    %v7407 = vcombine.high %v7405, %v7405
    %v7408 = vcombine.high %v7294, %v7294
    %v7410 = vunpack.c.l.s4 1983009808
    %v7411 = vunpack.c.0.s8 %v7410
    %v7412 = vlaneseq
    %v7413 = vshrl.u32 %v7412, 7
    %v7414 = vsub.s32 %v7411, %v7413
    %v7415 = vrot.slane %v7294, %v7414
    %v7417 = vunpack.c.l.s4 1983009808
    %v7418 = vunpack.c.0.s8 %v7417
    %v7419 = vlaneseq
    %v7420 = vshrl.u32 %v7419, 7
    %v7421 = vsub.s32 %v7418, %v7420
    %v7422 = vrot.slane %v7408, %v7421
    %v7423 = vcombine.high %v7415, %v7415
    %v7424 = vcombine.high %v7422, %v7422
    %v7425 = vcombine.high %v7297, %v7297
    %v7427 = vunpack.c.l.s4 1983009808
    %v7428 = vunpack.c.0.s8 %v7427
    %v7429 = vlaneseq
    %v7430 = vshrl.u32 %v7429, 7
    %v7431 = vsub.s32 %v7428, %v7430
    %v7432 = vrot.slane %v7297, %v7431
    %v7434 = vunpack.c.l.s4 1983009808
    %v7435 = vunpack.c.0.s8 %v7434
    %v7436 = vlaneseq
    %v7437 = vshrl.u32 %v7436, 7
    %v7438 = vsub.s32 %v7435, %v7437
    %v7439 = vrot.slane %v7425, %v7438
    %v7440 = vcombine.high %v7432, %v7432
    %v7441 = vcombine.high %v7439, %v7439
    %vm7474 = vcmask 123904
    %v7475 = vsel %vm7474, %v7313, -inf
    %v7476 = vrot.slane %v7475, 4
    %v7477 = vmax.f32 %v7475, %v7476
    %v7478 = vrot.slane %v7477, 2
    %v7479 = vmax.f32 %v7477, %v7478
    %v7480 = vrot.slane %v7479, 1
    %v7481 = vmax.f32 %v7479, %v7480
    %v7482 = vsel %vm7474, %v7321, -inf
    %v7483 = vrot.slane %v7482, 4
    %v7484 = vmax.f32 %v7482, %v7483
    %v7485 = vrot.slane %v7484, 2
    %v7486 = vmax.f32 %v7484, %v7485
    %v7487 = vrot.slane %v7486, 1
    %v7488 = vmax.f32 %v7486, %v7487
    %v7489 = vsel %vm7474, %v7320, -inf
    %v7490 = vrot.slane %v7489, 4
    %v7491 = vmax.f32 %v7489, %v7490
    %v7492 = vrot.slane %v7491, 2
    %v7493 = vmax.f32 %v7491, %v7492
    %v7494 = vrot.slane %v7493, 1
    %v7495 = vmax.f32 %v7493, %v7494
    %v7496 = vsel %vm7474, %v7322, -inf
    %v7497 = vrot.slane %v7496, 4
    %v7498 = vmax.f32 %v7496, %v7497
    %v7499 = vrot.slane %v7498, 2
    %v7500 = vmax.f32 %v7498, %v7499
    %v7501 = vrot.slane %v7500, 1
    %v7502 = vmax.f32 %v7500, %v7501
    %v7503 = vsel %vm7474, %v7330, -inf
    %v7504 = vrot.slane %v7503, 4
    %v7505 = vmax.f32 %v7503, %v7504
    %v7506 = vrot.slane %v7505, 2
    %v7507 = vmax.f32 %v7505, %v7506
    %v7508 = vrot.slane %v7507, 1
    %v7509 = vmax.f32 %v7507, %v7508
    %v7510 = vsel %vm7474, %v7338, -inf
    %v7511 = vrot.slane %v7510, 4
    %v7512 = vmax.f32 %v7510, %v7511
    %v7513 = vrot.slane %v7512, 2
    %v7514 = vmax.f32 %v7512, %v7513
    %v7515 = vrot.slane %v7514, 1
    %v7516 = vmax.f32 %v7514, %v7515
    %v7517 = vsel %vm7474, %v7337, -inf
    %v7518 = vrot.slane %v7517, 4
    %v7519 = vmax.f32 %v7517, %v7518
    %v7520 = vrot.slane %v7519, 2
    %v7521 = vmax.f32 %v7519, %v7520
    %v7522 = vrot.slane %v7521, 1
    %v7523 = vmax.f32 %v7521, %v7522
    %v7524 = vsel %vm7474, %v7339, -inf
    %v7525 = vrot.slane %v7524, 4
    %v7526 = vmax.f32 %v7524, %v7525
    %v7527 = vrot.slane %v7526, 2
    %v7528 = vmax.f32 %v7526, %v7527
    %v7529 = vrot.slane %v7528, 1
    %v7530 = vmax.f32 %v7528, %v7529
    %v7531 = vsel %vm7474, %v7347, -inf
    %v7532 = vrot.slane %v7531, 4
    %v7533 = vmax.f32 %v7531, %v7532
    %v7534 = vrot.slane %v7533, 2
    %v7535 = vmax.f32 %v7533, %v7534
    %v7536 = vrot.slane %v7535, 1
    %v7537 = vmax.f32 %v7535, %v7536
    %v7538 = vsel %vm7474, %v7355, -inf
    %v7539 = vrot.slane %v7538, 4
    %v7540 = vmax.f32 %v7538, %v7539
    %v7541 = vrot.slane %v7540, 2
    %v7542 = vmax.f32 %v7540, %v7541
    %v7543 = vrot.slane %v7542, 1
    %v7544 = vmax.f32 %v7542, %v7543
    %v7545 = vsel %vm7474, %v7354, -inf
    %v7546 = vrot.slane %v7545, 4
    %v7547 = vmax.f32 %v7545, %v7546
    %v7548 = vrot.slane %v7547, 2
    %v7549 = vmax.f32 %v7547, %v7548
    %v7550 = vrot.slane %v7549, 1
    %v7551 = vmax.f32 %v7549, %v7550
    %v7552 = vsel %vm7474, %v7356, -inf
    %v7553 = vrot.slane %v7552, 4
    %v7554 = vmax.f32 %v7552, %v7553
    %v7555 = vrot.slane %v7554, 2
    %v7556 = vmax.f32 %v7554, %v7555
    %v7557 = vrot.slane %v7556, 1
    %v7558 = vmax.f32 %v7556, %v7557
    %v7559 = vsel %vm7474, %v7364, -inf
    %v7560 = vrot.slane %v7559, 4
    %v7561 = vmax.f32 %v7559, %v7560
    %v7562 = vrot.slane %v7561, 2
    %v7563 = vmax.f32 %v7561, %v7562
    %v7564 = vrot.slane %v7563, 1
    %v7565 = vmax.f32 %v7563, %v7564
    %v7566 = vsel %vm7474, %v7372, -inf
    %v7567 = vrot.slane %v7566, 4
    %v7568 = vmax.f32 %v7566, %v7567
    %v7569 = vrot.slane %v7568, 2
    %v7570 = vmax.f32 %v7568, %v7569
    %v7571 = vrot.slane %v7570, 1
    %v7572 = vmax.f32 %v7570, %v7571
    %v7573 = vsel %vm7474, %v7371, -inf
    %v7574 = vrot.slane %v7573, 4
    %v7575 = vmax.f32 %v7573, %v7574
    %v7576 = vrot.slane %v7575, 2
    %v7577 = vmax.f32 %v7575, %v7576
    %v7578 = vrot.slane %v7577, 1
    %v7579 = vmax.f32 %v7577, %v7578
    %v7580 = vsel %vm7474, %v7373, -inf
    %v7581 = vrot.slane %v7580, 4
    %v7582 = vmax.f32 %v7580, %v7581
    %v7583 = vrot.slane %v7582, 2
    %v7584 = vmax.f32 %v7582, %v7583
    %v7585 = vrot.slane %v7584, 1
    %v7586 = vmax.f32 %v7584, %v7585
    %v7587 = vsel %vm7474, %v7381, -inf
    %v7588 = vrot.slane %v7587, 4
    %v7589 = vmax.f32 %v7587, %v7588
    %v7590 = vrot.slane %v7589, 2
    %v7591 = vmax.f32 %v7589, %v7590
    %v7592 = vrot.slane %v7591, 1
    %v7593 = vmax.f32 %v7591, %v7592
    %v7594 = vsel %vm7474, %v7389, -inf
    %v7595 = vrot.slane %v7594, 4
    %v7596 = vmax.f32 %v7594, %v7595
    %v7597 = vrot.slane %v7596, 2
    %v7598 = vmax.f32 %v7596, %v7597
    %v7599 = vrot.slane %v7598, 1
    %v7600 = vmax.f32 %v7598, %v7599
    %v7601 = vsel %vm7474, %v7388, -inf
    %v7602 = vrot.slane %v7601, 4
    %v7603 = vmax.f32 %v7601, %v7602
    %v7604 = vrot.slane %v7603, 2
    %v7605 = vmax.f32 %v7603, %v7604
    %v7606 = vrot.slane %v7605, 1
    %v7607 = vmax.f32 %v7605, %v7606
    %v7608 = vsel %vm7474, %v7390, -inf
    %v7609 = vrot.slane %v7608, 4
    %v7610 = vmax.f32 %v7608, %v7609
    %v7611 = vrot.slane %v7610, 2
    %v7612 = vmax.f32 %v7610, %v7611
    %v7613 = vrot.slane %v7612, 1
    %v7614 = vmax.f32 %v7612, %v7613
    %v7615 = vsel %vm7474, %v7398, -inf
    %v7616 = vrot.slane %v7615, 4
    %v7617 = vmax.f32 %v7615, %v7616
    %v7618 = vrot.slane %v7617, 2
    %v7619 = vmax.f32 %v7617, %v7618
    %v7620 = vrot.slane %v7619, 1
    %v7621 = vmax.f32 %v7619, %v7620
    %v7622 = vsel %vm7474, %v7406, -inf
    %v7623 = vrot.slane %v7622, 4
    %v7624 = vmax.f32 %v7622, %v7623
    %v7625 = vrot.slane %v7624, 2
    %v7626 = vmax.f32 %v7624, %v7625
    %v7627 = vrot.slane %v7626, 1
    %v7628 = vmax.f32 %v7626, %v7627
    %v7629 = vsel %vm7474, %v7405, -inf
    %v7630 = vrot.slane %v7629, 4
    %v7631 = vmax.f32 %v7629, %v7630
    %v7632 = vrot.slane %v7631, 2
    %v7633 = vmax.f32 %v7631, %v7632
    %v7634 = vrot.slane %v7633, 1
    %v7635 = vmax.f32 %v7633, %v7634
    %v7636 = vsel %vm7474, %v7407, -inf
    %v7637 = vrot.slane %v7636, 4
    %v7638 = vmax.f32 %v7636, %v7637
    %v7639 = vrot.slane %v7638, 2
    %v7640 = vmax.f32 %v7638, %v7639
    %v7641 = vrot.slane %v7640, 1
    %v7642 = vmax.f32 %v7640, %v7641
    %v7643 = vsel %vm7474, %v7415, -inf
    %v7644 = vrot.slane %v7643, 4
    %v7645 = vmax.f32 %v7643, %v7644
    %v7646 = vrot.slane %v7645, 2
    %v7647 = vmax.f32 %v7645, %v7646
    %v7648 = vrot.slane %v7647, 1
    %v7649 = vmax.f32 %v7647, %v7648
    %v7650 = vsel %vm7474, %v7423, -inf
    %v7651 = vrot.slane %v7650, 4
    %v7652 = vmax.f32 %v7650, %v7651
    %v7653 = vrot.slane %v7652, 2
    %v7654 = vmax.f32 %v7652, %v7653
    %v7655 = vrot.slane %v7654, 1
    %v7656 = vmax.f32 %v7654, %v7655
    %v7657 = vsel %vm7474, %v7422, -inf
    %v7658 = vrot.slane %v7657, 4
    %v7659 = vmax.f32 %v7657, %v7658
    %v7660 = vrot.slane %v7659, 2
    %v7661 = vmax.f32 %v7659, %v7660
    %v7662 = vrot.slane %v7661, 1
    %v7663 = vmax.f32 %v7661, %v7662
    %v7664 = vsel %vm7474, %v7424, -inf
    %v7665 = vrot.slane %v7664, 4
    %v7666 = vmax.f32 %v7664, %v7665
    %v7667 = vrot.slane %v7666, 2
    %v7668 = vmax.f32 %v7666, %v7667
    %v7669 = vrot.slane %v7668, 1
    %v7670 = vmax.f32 %v7668, %v7669
    %v7671 = vsel %vm7474, %v7432, -inf
    %v7672 = vrot.slane %v7671, 4
    %v7673 = vmax.f32 %v7671, %v7672
    %v7674 = vrot.slane %v7673, 2
    %v7675 = vmax.f32 %v7673, %v7674
    %v7676 = vrot.slane %v7675, 1
    %v7677 = vmax.f32 %v7675, %v7676
    %v7678 = vsel %vm7474, %v7440, -inf
    %v7679 = vrot.slane %v7678, 4
    %v7680 = vmax.f32 %v7678, %v7679
    %v7681 = vrot.slane %v7680, 2
    %v7682 = vmax.f32 %v7680, %v7681
    %v7683 = vrot.slane %v7682, 1
    %v7684 = vmax.f32 %v7682, %v7683
    %v7685 = vsel %vm7474, %v7439, -inf
    %v7686 = vrot.slane %v7685, 4
    %v7687 = vmax.f32 %v7685, %v7686
    %v7688 = vrot.slane %v7687, 2
    %v7689 = vmax.f32 %v7687, %v7688
    %v7690 = vrot.slane %v7689, 1
    %v7691 = vmax.f32 %v7689, %v7690
    %v7692 = vsel %vm7474, %v7441, -inf
    %v7693 = vrot.slane %v7692, 4
    %v7694 = vmax.f32 %v7692, %v7693
    %v7695 = vrot.slane %v7694, 2
    %v7696 = vmax.f32 %v7694, %v7695
    %v7697 = vrot.slane %v7696, 1
    %v7698 = vmax.f32 %v7696, %v7697
    %v7702 = vunpack.c.l.s4 1983009808
    %v7703 = vunpack.c.0.s8 %v7702
    %v7704 = vlaneseq
    %v7705 = vshrl.u32 %v7704, 7
    %v7706 = vsub.s32 %v7703, %v7705
    %v7707 = vrot.slane %v7481, %v7706
    %v7709 = vunpack.c.l.s4 1983009808
    %v7710 = vunpack.c.0.s8 %v7709
    %v7711 = vlaneseq
    %v7712 = vshrl.u32 %v7711, 7
    %v7713 = vsub.s32 %v7710, %v7712
    %v7714 = vrot.slane %v7593, %v7713
    %v7715 = vsel %vm6076, %v7707, %v7707
    %v7716 = vsel %vm6080, %v7707, %v7715
    %v7717 = vrot.slane %v7714, 7
    %v7718 = vsel %vm6070, %v7717, %v7716
    %v7719 = vsel %vm6074, %v7717, %v7718
    %v7720 = vsel %vm6078, %v7717, %v7719
    %v7721 = vsel %vm6082, %v7717, %v7720
    %7723 = vst.msk [vmem:[#allocation6] sm:$0x3] %vm7474, %v7721
    %v7727 = vunpack.c.l.s4 1983009808
    %v7728 = vunpack.c.0.s8 %v7727
    %v7729 = vlaneseq
    %v7730 = vshrl.u32 %v7729, 7
    %v7731 = vsub.s32 %v7728, %v7730
    %v7732 = vrot.slane %v7488, %v7731
    %v7734 = vunpack.c.l.s4 1983009808
    %v7735 = vunpack.c.0.s8 %v7734
    %v7736 = vlaneseq
    %v7737 = vshrl.u32 %v7736, 7
    %v7738 = vsub.s32 %v7735, %v7737
    %v7739 = vrot.slane %v7600, %v7738
    %v7740 = vsel %vm6076, %v7732, %v7732
    %v7741 = vsel %vm6080, %v7732, %v7740
    %v7742 = vrot.slane %v7739, 7
    %v7743 = vsel %vm6070, %v7742, %v7741
    %v7744 = vsel %vm6074, %v7742, %v7743
    %v7745 = vsel %vm6078, %v7742, %v7744
    %v7746 = vsel %vm6082, %v7742, %v7745
    %7747 = vrot.lane.b32.xlu0 %v7746, 16
    %v7748 = vpop.permute.xlu0 %7747
    %vm7750 = vcmask 255104
    %7751 = vst.msk [vmem:[#allocation6] sm:$0x3] %vm7750, %v7748
    %v7755 = vunpack.c.l.s4 1983009808
    %v7756 = vunpack.c.0.s8 %v7755
    %v7757 = vlaneseq
    %v7758 = vshrl.u32 %v7757, 7
    %v7759 = vsub.s32 %v7756, %v7758
    %v7760 = vrot.slane %v7495, %v7759
    %v7762 = vunpack.c.l.s4 1983009808
    %v7763 = vunpack.c.0.s8 %v7762
    %v7764 = vlaneseq
    %v7765 = vshrl.u32 %v7764, 7
    %v7766 = vsub.s32 %v7763, %v7765
    %v7767 = vrot.slane %v7607, %v7766
    %v7768 = vsel %vm6076, %v7760, %v7760
    %v7769 = vsel %vm6080, %v7760, %v7768
    %v7770 = vrot.slane %v7767, 7
    %v7771 = vsel %vm6070, %v7770, %v7769
    %v7772 = vsel %vm6074, %v7770, %v7771
    %v7773 = vsel %vm6078, %v7770, %v7772
    %v7774 = vsel %vm6082, %v7770, %v7773
    %7775 = vrot.lane.b32.xlu0 %v7774, 32
    %v7776 = vpop.permute.xlu0 %7775
    %vm7778 = vcmask 386304
    %7779 = vst.msk [vmem:[#allocation6] sm:$0x3] %vm7778, %v7776
    %v7783 = vunpack.c.l.s4 1983009808
    %v7784 = vunpack.c.0.s8 %v7783
    %v7785 = vlaneseq
    %v7786 = vshrl.u32 %v7785, 7
    %v7787 = vsub.s32 %v7784, %v7786
    %v7788 = vrot.slane %v7502, %v7787
    %v7790 = vunpack.c.l.s4 1983009808
    %v7791 = vunpack.c.0.s8 %v7790
    %v7792 = vlaneseq
    %v7793 = vshrl.u32 %v7792, 7
    %v7794 = vsub.s32 %v7791, %v7793
    %v7795 = vrot.slane %v7614, %v7794
    %v7796 = vsel %vm6076, %v7788, %v7788
    %v7797 = vsel %vm6080, %v7788, %v7796
    %v7798 = vrot.slane %v7795, 7
    %v7799 = vsel %vm6070, %v7798, %v7797
    %v7800 = vsel %vm6074, %v7798, %v7799
    %v7801 = vsel %vm6078, %v7798, %v7800
    %v7802 = vsel %vm6082, %v7798, %v7801
    %7803 = vrot.lane.b32.xlu0 %v7802, 48
    %v7804 = vpop.permute.xlu0 %7803
    %vm7806 = vcmask 517504
    %7807 = vst.msk [vmem:[#allocation6] sm:$0x3] %vm7806, %v7804
    %v7811 = vunpack.c.l.s4 1983009808
    %v7812 = vunpack.c.0.s8 %v7811
    %v7813 = vlaneseq
    %v7814 = vshrl.u32 %v7813, 7
    %v7815 = vsub.s32 %v7812, %v7814
    %v7816 = vrot.slane %v7509, %v7815
    %v7818 = vunpack.c.l.s4 1983009808
    %v7819 = vunpack.c.0.s8 %v7818
    %v7820 = vlaneseq
    %v7821 = vshrl.u32 %v7820, 7
    %v7822 = vsub.s32 %v7819, %v7821
    %v7823 = vrot.slane %v7621, %v7822
    %v7824 = vsel %vm6076, %v7816, %v7816
    %v7825 = vsel %vm6080, %v7816, %v7824
    %v7826 = vrot.slane %v7823, 7
    %v7827 = vsel %vm6070, %v7826, %v7825
    %v7828 = vsel %vm6074, %v7826, %v7827
    %v7829 = vsel %vm6078, %v7826, %v7828
    %v7830 = vsel %vm6082, %v7826, %v7829
    %7831 = vrot.lane.b32.xlu0 %v7830, 64
    %v7832 = vpop.permute.xlu0 %7831
    %vm7834 = vcmask 648704
    %7835 = vst.msk [vmem:[#allocation6] sm:$0x3] %vm7834, %v7832
    %v7839 = vunpack.c.l.s4 1983009808
    %v7840 = vunpack.c.0.s8 %v7839
    %v7841 = vlaneseq
    %v7842 = vshrl.u32 %v7841, 7
    %v7843 = vsub.s32 %v7840, %v7842
    %v7844 = vrot.slane %v7516, %v7843
    %v7846 = vunpack.c.l.s4 1983009808
    %v7847 = vunpack.c.0.s8 %v7846
    %v7848 = vlaneseq
    %v7849 = vshrl.u32 %v7848, 7
    %v7850 = vsub.s32 %v7847, %v7849
    %v7851 = vrot.slane %v7628, %v7850
    %v7852 = vsel %vm6076, %v7844, %v7844
    %v7853 = vsel %vm6080, %v7844, %v7852
    %v7854 = vrot.slane %v7851, 7
    %v7855 = vsel %vm6070, %v7854, %v7853
    %v7856 = vsel %vm6074, %v7854, %v7855
    %v7857 = vsel %vm6078, %v7854, %v7856
    %v7858 = vsel %vm6082, %v7854, %v7857
    %7859 = vrot.lane.b32.xlu0 %v7858, 80
    %v7860 = vpop.permute.xlu0 %7859
    %vm7862 = vcmask 779904
    %7863 = vst.msk [vmem:[#allocation6] sm:$0x3] %vm7862, %v7860
    %v7867 = vunpack.c.l.s4 1983009808
    %v7868 = vunpack.c.0.s8 %v7867
    %v7869 = vlaneseq
    %v7870 = vshrl.u32 %v7869, 7
    %v7871 = vsub.s32 %v7868, %v7870
    %v7872 = vrot.slane %v7523, %v7871
    %v7874 = vunpack.c.l.s4 1983009808
    %v7875 = vunpack.c.0.s8 %v7874
    %v7876 = vlaneseq
    %v7877 = vshrl.u32 %v7876, 7
    %v7878 = vsub.s32 %v7875, %v7877
    %v7879 = vrot.slane %v7635, %v7878
    %v7880 = vsel %vm6076, %v7872, %v7872
    %v7881 = vsel %vm6080, %v7872, %v7880
    %v7882 = vrot.slane %v7879, 7
    %v7883 = vsel %vm6070, %v7882, %v7881
    %v7884 = vsel %vm6074, %v7882, %v7883
    %v7885 = vsel %vm6078, %v7882, %v7884
    %v7886 = vsel %vm6082, %v7882, %v7885
    %7887 = vrot.lane.b32.xlu0 %v7886, 96
    %v7888 = vpop.permute.xlu0 %7887
    %vm7890 = vcmask 911104
    %7891 = vst.msk [vmem:[#allocation6] sm:$0x3] %vm7890, %v7888
    %v7895 = vunpack.c.l.s4 1983009808
    %v7896 = vunpack.c.0.s8 %v7895
    %v7897 = vlaneseq
    %v7898 = vshrl.u32 %v7897, 7
    %v7899 = vsub.s32 %v7896, %v7898
    %v7900 = vrot.slane %v7530, %v7899
    %v7902 = vunpack.c.l.s4 1983009808
    %v7903 = vunpack.c.0.s8 %v7902
    %v7904 = vlaneseq
    %v7905 = vshrl.u32 %v7904, 7
    %v7906 = vsub.s32 %v7903, %v7905
    %v7907 = vrot.slane %v7642, %v7906
    %v7908 = vsel %vm6076, %v7900, %v7900
    %v7909 = vsel %vm6080, %v7900, %v7908
    %v7910 = vrot.slane %v7907, 7
    %v7911 = vsel %vm6070, %v7910, %v7909
    %v7912 = vsel %vm6074, %v7910, %v7911
    %v7913 = vsel %vm6078, %v7910, %v7912
    %v7914 = vsel %vm6082, %v7910, %v7913
    %7915 = vrot.lane.b32.xlu0 %v7914, 112
    %v7916 = vpop.permute.xlu0 %7915
    %vm7918 = vcmask 1042304
    %7919 = vst.msk [vmem:[#allocation6] sm:$0x3] %vm7918, %v7916
    %v7923 = vunpack.c.l.s4 1983009808
    %v7924 = vunpack.c.0.s8 %v7923
    %v7925 = vlaneseq
    %v7926 = vshrl.u32 %v7925, 7
    %v7927 = vsub.s32 %v7924, %v7926
    %v7928 = vrot.slane %v7537, %v7927
    %v7930 = vunpack.c.l.s4 1983009808
    %v7931 = vunpack.c.0.s8 %v7930
    %v7932 = vlaneseq
    %v7933 = vshrl.u32 %v7932, 7
    %v7934 = vsub.s32 %v7931, %v7933
    %v7935 = vrot.slane %v7649, %v7934
    %v7936 = vsel %vm6076, %v7928, %v7928
    %v7937 = vsel %vm6080, %v7928, %v7936
    %v7938 = vrot.slane %v7935, 7
    %v7939 = vsel %vm6070, %v7938, %v7937
    %v7940 = vsel %vm6074, %v7938, %v7939
    %v7941 = vsel %vm6078, %v7938, %v7940
    %v7942 = vsel %vm6082, %v7938, %v7941
    %7944 = vst.msk [vmem:[#allocation6 + $0x2] sm:$0x3] %vm7474, %v7942
    %v7948 = vunpack.c.l.s4 1983009808
    %v7949 = vunpack.c.0.s8 %v7948
    %v7950 = vlaneseq
    %v7951 = vshrl.u32 %v7950, 7
    %v7952 = vsub.s32 %v7949, %v7951
    %v7953 = vrot.slane %v7544, %v7952
    %v7955 = vunpack.c.l.s4 1983009808
    %v7956 = vunpack.c.0.s8 %v7955
    %v7957 = vlaneseq
    %v7958 = vshrl.u32 %v7957, 7
    %v7959 = vsub.s32 %v7956, %v7958
    %v7960 = vrot.slane %v7656, %v7959
    %v7961 = vsel %vm6076, %v7953, %v7953
    %v7962 = vsel %vm6080, %v7953, %v7961
    %v7963 = vrot.slane %v7960, 7
    %v7964 = vsel %vm6070, %v7963, %v7962
    %v7965 = vsel %vm6074, %v7963, %v7964
    %v7966 = vsel %vm6078, %v7963, %v7965
    %v7967 = vsel %vm6082, %v7963, %v7966
    %7968 = vrot.lane.b32.xlu0 %v7967, 16
    %v7969 = vpop.permute.xlu0 %7968
    %7971 = vst.msk [vmem:[#allocation6 + $0x2] sm:$0x3] %vm7750, %v7969
    %v7975 = vunpack.c.l.s4 1983009808
    %v7976 = vunpack.c.0.s8 %v7975
    %v7977 = vlaneseq
    %v7978 = vshrl.u32 %v7977, 7
    %v7979 = vsub.s32 %v7976, %v7978
    %v7980 = vrot.slane %v7551, %v7979
    %v7982 = vunpack.c.l.s4 1983009808
    %v7983 = vunpack.c.0.s8 %v7982
    %v7984 = vlaneseq
    %v7985 = vshrl.u32 %v7984, 7
    %v7986 = vsub.s32 %v7983, %v7985
    %v7987 = vrot.slane %v7663, %v7986
    %v7988 = vsel %vm6076, %v7980, %v7980
    %v7989 = vsel %vm6080, %v7980, %v7988
    %v7990 = vrot.slane %v7987, 7
    %v7991 = vsel %vm6070, %v7990, %v7989
    %v7992 = vsel %vm6074, %v7990, %v7991
    %v7993 = vsel %vm6078, %v7990, %v7992
    %v7994 = vsel %vm6082, %v7990, %v7993
    %7995 = vrot.lane.b32.xlu0 %v7994, 32
    %v7996 = vpop.permute.xlu0 %7995
    %7998 = vst.msk [vmem:[#allocation6 + $0x2] sm:$0x3] %vm7778, %v7996
    %v8002 = vunpack.c.l.s4 1983009808
    %v8003 = vunpack.c.0.s8 %v8002
    %v8004 = vlaneseq
    %v8005 = vshrl.u32 %v8004, 7
    %v8006 = vsub.s32 %v8003, %v8005
    %v8007 = vrot.slane %v7558, %v8006
    %v8009 = vunpack.c.l.s4 1983009808
    %v8010 = vunpack.c.0.s8 %v8009
    %v8011 = vlaneseq
    %v8012 = vshrl.u32 %v8011, 7
    %v8013 = vsub.s32 %v8010, %v8012
    %v8014 = vrot.slane %v7670, %v8013
    %v8015 = vsel %vm6076, %v8007, %v8007
    %v8016 = vsel %vm6080, %v8007, %v8015
    %v8017 = vrot.slane %v8014, 7
    %v8018 = vsel %vm6070, %v8017, %v8016
    %v8019 = vsel %vm6074, %v8017, %v8018
    %v8020 = vsel %vm6078, %v8017, %v8019
    %v8021 = vsel %vm6082, %v8017, %v8020
    %8022 = vrot.lane.b32.xlu0 %v8021, 48
    %v8023 = vpop.permute.xlu0 %8022
    %8025 = vst.msk [vmem:[#allocation6 + $0x2] sm:$0x3] %vm7806, %v8023
    %v8029 = vunpack.c.l.s4 1983009808
    %v8030 = vunpack.c.0.s8 %v8029
    %v8031 = vlaneseq
    %v8032 = vshrl.u32 %v8031, 7
    %v8033 = vsub.s32 %v8030, %v8032
    %v8034 = vrot.slane %v7565, %v8033
    %v8036 = vunpack.c.l.s4 1983009808
    %v8037 = vunpack.c.0.s8 %v8036
    %v8038 = vlaneseq
    %v8039 = vshrl.u32 %v8038, 7
    %v8040 = vsub.s32 %v8037, %v8039
    %v8041 = vrot.slane %v7677, %v8040
    %v8042 = vsel %vm6076, %v8034, %v8034
    %v8043 = vsel %vm6080, %v8034, %v8042
    %v8044 = vrot.slane %v8041, 7
    %v8045 = vsel %vm6070, %v8044, %v8043
    %v8046 = vsel %vm6074, %v8044, %v8045
    %v8047 = vsel %vm6078, %v8044, %v8046
    %v8048 = vsel %vm6082, %v8044, %v8047
    %8049 = vrot.lane.b32.xlu0 %v8048, 64
    %v8050 = vpop.permute.xlu0 %8049
    %8052 = vst.msk [vmem:[#allocation6 + $0x2] sm:$0x3] %vm7834, %v8050
    %v8056 = vunpack.c.l.s4 1983009808
    %v8057 = vunpack.c.0.s8 %v8056
    %v8058 = vlaneseq
    %v8059 = vshrl.u32 %v8058, 7
    %v8060 = vsub.s32 %v8057, %v8059
    %v8061 = vrot.slane %v7572, %v8060
    %v8063 = vunpack.c.l.s4 1983009808
    %v8064 = vunpack.c.0.s8 %v8063
    %v8065 = vlaneseq
    %v8066 = vshrl.u32 %v8065, 7
    %v8067 = vsub.s32 %v8064, %v8066
    %v8068 = vrot.slane %v7684, %v8067
    %v8069 = vsel %vm6076, %v8061, %v8061
    %v8070 = vsel %vm6080, %v8061, %v8069
    %v8071 = vrot.slane %v8068, 7
    %v8072 = vsel %vm6070, %v8071, %v8070
    %v8073 = vsel %vm6074, %v8071, %v8072
    %v8074 = vsel %vm6078, %v8071, %v8073
    %v8075 = vsel %vm6082, %v8071, %v8074
    %8076 = vrot.lane.b32.xlu0 %v8075, 80
    %v8077 = vpop.permute.xlu0 %8076
    %8079 = vst.msk [vmem:[#allocation6 + $0x2] sm:$0x3] %vm7862, %v8077
    %v8083 = vunpack.c.l.s4 1983009808
    %v8084 = vunpack.c.0.s8 %v8083
    %v8085 = vlaneseq
    %v8086 = vshrl.u32 %v8085, 7
    %v8087 = vsub.s32 %v8084, %v8086
    %v8088 = vrot.slane %v7579, %v8087
    %v8090 = vunpack.c.l.s4 1983009808
    %v8091 = vunpack.c.0.s8 %v8090
    %v8092 = vlaneseq
    %v8093 = vshrl.u32 %v8092, 7
    %v8094 = vsub.s32 %v8091, %v8093
    %v8095 = vrot.slane %v7691, %v8094
    %v8096 = vsel %vm6076, %v8088, %v8088
    %v8097 = vsel %vm6080, %v8088, %v8096
    %v8098 = vrot.slane %v8095, 7
    %v8099 = vsel %vm6070, %v8098, %v8097
    %v8100 = vsel %vm6074, %v8098, %v8099
    %v8101 = vsel %vm6078, %v8098, %v8100
    %v8102 = vsel %vm6082, %v8098, %v8101
    %8103 = vrot.lane.b32.xlu0 %v8102, 96
    %v8104 = vpop.permute.xlu0 %8103
    %8106 = vst.msk [vmem:[#allocation6 + $0x2] sm:$0x3] %vm7890, %v8104
    %v8110 = vunpack.c.l.s4 1983009808
    %v8111 = vunpack.c.0.s8 %v8110
    %v8112 = vlaneseq
    %v8113 = vshrl.u32 %v8112, 7
    %v8114 = vsub.s32 %v8111, %v8113
    %v8115 = vrot.slane %v7586, %v8114
    %v8117 = vunpack.c.l.s4 1983009808
    %v8118 = vunpack.c.0.s8 %v8117
    %v8119 = vlaneseq
    %v8120 = vshrl.u32 %v8119, 7
    %v8121 = vsub.s32 %v8118, %v8120
    %v8122 = vrot.slane %v7698, %v8121
    %v8123 = vsel %vm6076, %v8115, %v8115
    %v8124 = vsel %vm6080, %v8115, %v8123
    %v8125 = vrot.slane %v8122, 7
    %v8126 = vsel %vm6070, %v8125, %v8124
    %v8127 = vsel %vm6074, %v8125, %v8126
    %v8128 = vsel %vm6078, %v8125, %v8127
    %v8129 = vsel %vm6082, %v8125, %v8128
    %8130 = vrot.lane.b32.xlu0 %v8129, 112
    %v8131 = vpop.permute.xlu0 %8130
    %8133 = vst.msk [vmem:[#allocation6 + $0x2] sm:$0x3] %vm7918, %v8131
    %v8134 = vld [vmem:[#allocation6] sm:$0xf]
    %v8135 = vld [vmem:[%s5] sm:$0xff]
    %v8136 = vld [vmem:[%s5 + $0x8] sm:$0xff]
    %v8137 = vld [vmem:[%s5 + $0x10] sm:$0xff]
    %v8138 = vld [vmem:[%s5 + $0x18] sm:$0xff]
    %v8139 = vld [vmem:[%s5 + $0x20] sm:$0xff]
    %v8140 = vld [vmem:[%s5 + $0x28] sm:$0xff]
    %v8141 = vld [vmem:[%s5 + $0x30] sm:$0xff]
    %v8142 = vld [vmem:[%s5 + $0x38] sm:$0xff]
    %v8143 = vld [vmem:[%s5 + $0x40] sm:$0xff]
    %v8144 = vld [vmem:[%s5 + $0x48] sm:$0xff]
    %v8145 = vld [vmem:[%s5 + $0x50] sm:$0xff]
    %v8146 = vld [vmem:[%s5 + $0x58] sm:$0xff]
    %v8147 = vld [vmem:[%s5 + $0x60] sm:$0xff]
    %v8148 = vld [vmem:[%s5 + $0x68] sm:$0xff]
    %v8149 = vld [vmem:[%s5 + $0x70] sm:$0xff]
    %v8150 = vld [vmem:[%s5 + $0x78] sm:$0xff]
    %v8151 = vld [vmem:[%s5 + $0x80] sm:$0xff]
    %v8152 = vld [vmem:[%s5 + $0x88] sm:$0xff]
    %v8153 = vld [vmem:[%s5 + $0x90] sm:$0xff]
    %v8154 = vld [vmem:[%s5 + $0x98] sm:$0xff]
    %v8155 = vld [vmem:[%s5 + $0xa0] sm:$0xff]
    %v8156 = vld [vmem:[%s5 + $0xa8] sm:$0xff]
    %v8157 = vld [vmem:[%s5 + $0xb0] sm:$0xff]
    %v8158 = vld [vmem:[%s5 + $0xb8] sm:$0xff]
    %v8159 = vld [vmem:[%s5 + $0xc0] sm:$0xff]
    %v8160 = vld [vmem:[%s5 + $0xc8] sm:$0xff]
    %v8161 = vld [vmem:[%s5 + $0xd0] sm:$0xff]
    %v8162 = vld [vmem:[%s5 + $0xd8] sm:$0xff]
    %v8163 = vld [vmem:[%s5 + $0xe0] sm:$0xff]
    %v8164 = vld [vmem:[%s5 + $0xe8] sm:$0xff]
    %v8165 = vld [vmem:[%s5 + $0xf0] sm:$0xff]
    %v8166 = vld [vmem:[%s5 + $0xf8] sm:$0xff]
    %v8169 = vunpack.c.l.s4 1983009808
    %v8170 = vunpack.c.0.s8 %v8169
    %v8171 = vlaneseq
    %v8172 = vshrl.u32 %v8171, 7
    %v8173 = vsub.s32 %v8170, %v8172
    %v8174 = vrot.slane %v8134, %v8173
    %v8175 = vcombine.high %v8174, %v8174
    %8178 = vmatprep.subr.mxu0 0.0
    %8179 = vmatpush1.msra.mxu0 %v8135
    %8180 = vmatprep.subr.mxu0 0.0
    %8181 = vmatpush1.msra.mxu0 %v8136
    %8182 = vmatprep.subr.mxu0 0.0
    %8183 = vmatpush1.msra.mxu0 %v8137
    %8184 = vmatprep.subr.mxu0 0.0
    %8185 = vmatpush1.msra.mxu0 %v8138
    %8186 = vmatprep.subr.mxu0 0.0
    %8187 = vmatpush1.msra.mxu0 %v8139
    %8188 = vmatprep.subr.mxu0 0.0
    %8189 = vmatpush1.msra.mxu0 %v8140
    %8190 = vmatprep.subr.mxu0 0.0
    %8191 = vmatpush1.msra.mxu0 %v8141
    %8192 = vmatprep.subr.mxu0 0.0
    %8193 = vmatpush1.msra.mxu0 %v8142
    %8194 = vmatprep.subr.mxu0 0.0
    %8195 = vmatpush1.msra.mxu0 %v8143
    %8196 = vmatprep.subr.mxu0 0.0
    %8197 = vmatpush1.msra.mxu0 %v8144
    %8198 = vmatprep.subr.mxu0 0.0
    %8199 = vmatpush1.msra.mxu0 %v8145
    %8200 = vmatprep.subr.mxu0 0.0
    %8201 = vmatpush1.msra.mxu0 %v8146
    %8202 = vmatprep.subr.mxu0 0.0
    %8203 = vmatpush1.msra.mxu0 %v8147
    %8204 = vmatprep.subr.mxu0 0.0
    %8205 = vmatpush1.msra.mxu0 %v8148
    %8206 = vmatprep.subr.mxu0 0.0
    %8207 = vmatpush1.msra.mxu0 %v8149
    %8208 = vmatprep.subr.mxu0 0.0
    %8209 = vmatpush1.msra.mxu0 %v8150
    %8210 = vmatprep.subr.mxu0 0.0
    %8211 = vmatpush1.msra.mxu0 %v8151
    %8212 = vmatprep.subr.mxu0 0.0
    %8213 = vmatpush1.msra.mxu0 %v8152
    %8214 = vmatprep.subr.mxu0 0.0
    %8215 = vmatpush1.msra.mxu0 %v8153
    %8216 = vmatprep.subr.mxu0 0.0
    %8217 = vmatpush1.msra.mxu0 %v8154
    %8218 = vmatprep.subr.mxu0 0.0
    %8219 = vmatpush1.msra.mxu0 %v8155
    %8220 = vmatprep.subr.mxu0 0.0
    %8221 = vmatpush1.msra.mxu0 %v8156
    %8222 = vmatprep.subr.mxu0 0.0
    %8223 = vmatpush1.msra.mxu0 %v8157
    %8224 = vmatprep.subr.mxu0 0.0
    %8225 = vmatpush1.msra.mxu0 %v8158
    %8226 = vmatprep.subr.mxu0 0.0
    %8227 = vmatpush1.msra.mxu0 %v8159
    %8228 = vmatprep.subr.mxu0 0.0
    %8229 = vmatpush1.msra.mxu0 %v8160
    %8230 = vmatprep.subr.mxu0 0.0
    %8231 = vmatpush1.msra.mxu0 %v8161
    %8232 = vmatprep.subr.mxu0 0.0
    %8233 = vmatpush1.msra.mxu0 %v8162
    %8234 = vmatprep.subr.mxu0 0.0
    %8235 = vmatpush1.msra.mxu0 %v8163
    %8236 = vmatprep.subr.mxu0 0.0
    %8237 = vmatpush1.msra.mxu0 %v8164
    %8238 = vmatprep.subr.mxu0 0.0
    %8239 = vmatpush1.msra.mxu0 %v8165
    %8240 = vmatprep.subr.mxu0 0.0
    %8241 = vmatpush1.msra.mxu0 %v8166
    %8242 = vmatprep.mubr.f32.mxu0 %v8175
    %8243 = vmatmul.mubr.f32.gmra.mrb[0].mxu0 %v8174
    %v8244 = vpop.f32.mrb[0].mxu0
    %v8245 = vadd.f32 0.0, %v8244
    %v8246 = vpop.f32.mrb[0].mxu0
    %8247 = vdwg.mxu0
    %vm8248 = vcmask 517120
    %8249 = vst.msk [vmem:[#allocation7] sm:$0x3] %vm8248, %v8245
    %v8250 = vmax.f32 %v8245, 0.0
    %v8251 = vld [vmem:[%s6] sm:$0xff]
    %v8252 = vld [vmem:[%s6 + $0x8] sm:$0xff]
    %v8253 = vld [vmem:[%s6 + $0x10] sm:$0xff]
    %v8254 = vld [vmem:[%s6 + $0x18] sm:$0xff]
    %v8255 = vld [vmem:[%s6 + $0x20] sm:$0xff]
    %v8256 = vld [vmem:[%s6 + $0x28] sm:$0xff]
    %v8257 = vld [vmem:[%s6 + $0x30] sm:$0xff]
    %v8258 = vld [vmem:[%s6 + $0x38] sm:$0xff]
    %vm8259 = vcmask 523264
    %v8261 = vsel %vm8259, %v8250, 0
    %8263 = vmatprep.subr.mxu0 0.0
    %8264 = vmatpush1.msra.mxu0 %v8251
    %8265 = vmatprep.subr.mxu0 0.0
    %8266 = vmatpush1.msra.mxu0 %v8252
    %8267 = vmatprep.subr.mxu0 0.0
    %8268 = vmatpush1.msra.mxu0 %v8253
    %8269 = vmatprep.subr.mxu0 0.0
    %8270 = vmatpush1.msra.mxu0 %v8254
    %8271 = vmatprep.subr.mxu0 0.0
    %8272 = vmatpush1.msra.mxu0 %v8255
    %8273 = vmatprep.subr.mxu0 0.0
    %8274 = vmatpush1.msra.mxu0 %v8256
    %8275 = vmatprep.subr.mxu0 0.0
    %8276 = vmatpush1.msra.mxu0 %v8257
    %8277 = vmatprep.subr.mxu0 0.0
    %8278 = vmatpush1.msra.mxu0 %v8258
    %8279 = vmatprep.subr.mxu0 0.0
    %8280 = vmatpush1.msra.mxu0 0.0
    %8281 = vmatprep.subr.mxu0 0.0
    %8282 = vmatpush1.msra.mxu0 0.0
    %8283 = vmatprep.subr.mxu0 0.0
    %8284 = vmatpush1.msra.mxu0 0.0
    %8285 = vmatprep.subr.mxu0 0.0
    %8286 = vmatpush1.msra.mxu0 0.0
    %8287 = vmatprep.subr.mxu0 0.0
    %8288 = vmatpush1.msra.mxu0 0.0
    %8289 = vmatprep.subr.mxu0 0.0
    %8290 = vmatpush1.msra.mxu0 0.0
    %8291 = vmatprep.subr.mxu0 0.0
    %8292 = vmatpush1.msra.mxu0 0.0
    %8293 = vmatprep.subr.mxu0 0.0
    %8294 = vmatpush1.msra.mxu0 0.0
    %8295 = vmatprep.subr.mxu0 0.0
    %8296 = vmatpush1.msra.mxu0 0.0
    %8297 = vmatprep.subr.mxu0 0.0
    %8298 = vmatpush1.msra.mxu0 0.0
    %8299 = vmatprep.subr.mxu0 0.0
    %8300 = vmatpush1.msra.mxu0 0.0
    %8301 = vmatprep.subr.mxu0 0.0
    %8302 = vmatpush1.msra.mxu0 0.0
    %8303 = vmatprep.subr.mxu0 0.0
    %8304 = vmatpush1.msra.mxu0 0.0
    %8305 = vmatprep.subr.mxu0 0.0
    %8306 = vmatpush1.msra.mxu0 0.0
    %8307 = vmatprep.subr.mxu0 0.0
    %8308 = vmatpush1.msra.mxu0 0.0
    %8309 = vmatprep.subr.mxu0 0.0
    %8310 = vmatpush1.msra.mxu0 0.0
    %8311 = vmatprep.subr.mxu0 0.0
    %8312 = vmatpush1.msra.mxu0 0.0
    %8313 = vmatprep.subr.mxu0 0.0
    %8314 = vmatpush1.msra.mxu0 0.0
    %8315 = vmatprep.subr.mxu0 0.0
    %8316 = vmatpush1.msra.mxu0 0.0
    %8317 = vmatprep.subr.mxu0 0.0
    %8318 = vmatpush1.msra.mxu0 0.0
    %8319 = vmatprep.subr.mxu0 0.0
    %8320 = vmatpush1.msra.mxu0 0.0
    %8321 = vmatprep.subr.mxu0 0.0
    %8322 = vmatpush1.msra.mxu0 0.0
    %8323 = vmatprep.subr.mxu0 0.0
    %8324 = vmatpush1.msra.mxu0 0.0
    %8325 = vmatprep.subr.mxu0 0.0
    %8326 = vmatpush1.msra.mxu0 0.0
    %8327 = vmatprep.mubr.f32.mxu0 0.0
    %8328 = vmatmul.mubr.f32.gmra.mrb[0].mxu0 %v8261
    %v8329 = vpop.f32.mrb[0].mxu0
    %v8330 = vadd.f32 0.0, %v8329
    %v8331 = vpop.f32.mrb[0].mxu0
    %8332 = vdwg.mxu0
    %vm8333 = vcmask 254976
    %8334 = vst.msk [vmem:[#allocation9] sm:$0x3] %vm8333, %v8330
    %v8335 = vmax.f32 %v8330, 0.0
    %v8336 = vld [vmem:[%s7] sm:$0xff]
    %v8337 = vld [vmem:[%s7 + $0x8] sm:$0xff]
    %v8338 = vld [vmem:[%s7 + $0x10] sm:$0xff]
    %v8339 = vld [vmem:[%s7 + $0x18] sm:$0xff]
    %vm8340 = vcmask 261120
    %v8342 = vsel %vm8340, %v8335, 0
    %8344 = vmatprep.subr.mxu0 0.0
    %8345 = vmatpush1.msra.mxu0 %v8336
    %8346 = vmatprep.subr.mxu0 0.0
    %8347 = vmatpush1.msra.mxu0 %v8337
    %8348 = vmatprep.subr.mxu0 0.0
    %8349 = vmatpush1.msra.mxu0 %v8338
    %8350 = vmatprep.subr.mxu0 0.0
    %8351 = vmatpush1.msra.mxu0 %v8339
    %8352 = vmatprep.subr.mxu0 0.0
    %8353 = vmatpush1.msra.mxu0 0.0
    %8354 = vmatprep.subr.mxu0 0.0
    %8355 = vmatpush1.msra.mxu0 0.0
    %8356 = vmatprep.subr.mxu0 0.0
    %8357 = vmatpush1.msra.mxu0 0.0
    %8358 = vmatprep.subr.mxu0 0.0
    %8359 = vmatpush1.msra.mxu0 0.0
    %8360 = vmatprep.subr.mxu0 0.0
    %8361 = vmatpush1.msra.mxu0 0.0
    %8362 = vmatprep.subr.mxu0 0.0
    %8363 = vmatpush1.msra.mxu0 0.0
    %8364 = vmatprep.subr.mxu0 0.0
    %8365 = vmatpush1.msra.mxu0 0.0
    %8366 = vmatprep.subr.mxu0 0.0
    %8367 = vmatpush1.msra.mxu0 0.0
    %8368 = vmatprep.subr.mxu0 0.0
    %8369 = vmatpush1.msra.mxu0 0.0
    %8370 = vmatprep.subr.mxu0 0.0
    %8371 = vmatpush1.msra.mxu0 0.0
    %8372 = vmatprep.subr.mxu0 0.0
    %8373 = vmatpush1.msra.mxu0 0.0
    %8374 = vmatprep.subr.mxu0 0.0
    %8375 = vmatpush1.msra.mxu0 0.0
    %8376 = vmatprep.subr.mxu0 0.0
    %8377 = vmatpush1.msra.mxu0 0.0
    %8378 = vmatprep.subr.mxu0 0.0
    %8379 = vmatpush1.msra.mxu0 0.0
    %8380 = vmatprep.subr.mxu0 0.0
    %8381 = vmatpush1.msra.mxu0 0.0
    %8382 = vmatprep.subr.mxu0 0.0
    %8383 = vmatpush1.msra.mxu0 0.0
    %8384 = vmatprep.subr.mxu0 0.0
    %8385 = vmatpush1.msra.mxu0 0.0
    %8386 = vmatprep.subr.mxu0 0.0
    %8387 = vmatpush1.msra.mxu0 0.0
    %8388 = vmatprep.subr.mxu0 0.0
    %8389 = vmatpush1.msra.mxu0 0.0
    %8390 = vmatprep.subr.mxu0 0.0
    %8391 = vmatpush1.msra.mxu0 0.0
    %8392 = vmatprep.subr.mxu0 0.0
    %8393 = vmatpush1.msra.mxu0 0.0
    %8394 = vmatprep.subr.mxu0 0.0
    %8395 = vmatpush1.msra.mxu0 0.0
    %8396 = vmatprep.subr.mxu0 0.0
    %8397 = vmatpush1.msra.mxu0 0.0
    %8398 = vmatprep.subr.mxu0 0.0
    %8399 = vmatpush1.msra.mxu0 0.0
    %8400 = vmatprep.subr.mxu0 0.0
    %8401 = vmatpush1.msra.mxu0 0.0
    %8402 = vmatprep.subr.mxu0 0.0
    %8403 = vmatpush1.msra.mxu0 0.0
    %8404 = vmatprep.subr.mxu0 0.0
    %8405 = vmatpush1.msra.mxu0 0.0
    %8406 = vmatprep.subr.mxu0 0.0
    %8407 = vmatpush1.msra.mxu0 0.0
    %8408 = vmatprep.mubr.f32.mxu0 0.0
    %8409 = vmatmul.mubr.f32.gmra.mrb[0].mxu0 %v8342
    %v8410 = vpop.f32.mrb[0].mxu0
    %v8411 = vadd.f32 0.0, %v8410
    %v8412 = vpop.f32.mrb[0].mxu0
    %8413 = vdwg.mxu0
    %vm8414 = vcmask 74752
    %8415 = vst.msk [vmem:[#allocation11] sm:$0x3] %vm8414, %v8411
    // Predicated region
    $region34: #{fwd.1} parent=1 // pred_check
      _
    $region35: #{fwd.1} parent=1 // pred_check_branch
      %8417 = sbr.rel (0) target = $region37
    $region36: #{fwd.1} parent=1 // pred_region
      %s8419 = ssub.s32 32, 32
      %8420 = vsyncadd [#allocation8], %s8419
      %s8422 = sshll.u32 [#allocation7], 4
      %s8423 = int_to_ptr.vmem [resolvable:$true] %s8422
      %8425 = dma.vmem_to_hbm [thread:$0]  %s8423, 32, %s8, [#allocation8]
    $region37: #{fwd.1} parent=1 // pred_fallthru
      _
    // Predicated region
    $region38: #{fwd.1} parent=1 // pred_check
      _
    $region39: #{fwd.1} parent=1 // pred_check_branch
      %8427 = sbr.rel (0) target = $region41
    $region40: #{fwd.1} parent=1 // pred_region
      %s8429 = ssub.s32 32, 32
      %8430 = vsyncadd [#allocation10], %s8429
      %s8432 = sshll.u32 [#allocation9], 4
      %s8433 = int_to_ptr.vmem [resolvable:$true] %s8432
      %8435 = dma.vmem_to_hbm [thread:$0]  %s8433, 32, %s9, [#allocation10]
    $region41: #{fwd.1} parent=1 // pred_fallthru
      _
    // Predicated region
    $region42: #{fwd.1} parent=1 // pred_check
      _
    $region43: #{fwd.1} parent=1 // pred_check_branch
      %8437 = sbr.rel (0) target = $region45
    $region44: #{fwd.1} parent=1 // pred_region
      %s8439 = ssub.s32 32, 32
      %8440 = vsyncadd [#allocation10], %s8439
      %s8442 = sshll.u32 [#allocation11], 4
      %s8443 = int_to_ptr.vmem [resolvable:$true] %s8442
      %8445 = dma.vmem_to_hbm [thread:$0]  %s8443, 32, %s10, [#allocation10]
    $region45: #{fwd.1} parent=1 // pred_fallthru
      _
    // Predicated region
    $region46: #{fwd.1} parent=1 // pred_check
      _
    $region47: #{fwd.1} parent=1 // pred_check_branch
      %8447 = sbr.rel (0) target = $region49
    $region48: #{fwd.1} parent=1 // pred_region
      %8448 = dma.done [#allocation8], 32
    $region49: #{fwd.1} parent=1 // pred_fallthru
      _
    // Predicated region
    $region50: #{fwd.1} parent=1 // pred_check
      _
    $region51: #{fwd.1} parent=1 // pred_check_branch
      %8450 = sbr.rel (0) target = $region53
    $region52: #{fwd.1} parent=1 // pred_region
      %8451 = dma.done [#allocation10], 32
    $region53: #{fwd.1} parent=1 // pred_fallthru
      _
    // Predicated region
    $region54: #{fwd.1} parent=1 // pred_check
      _
    $region55: #{fwd.1} parent=1 // pred_check_branch
      %8453 = sbr.rel (0) target = $region57
    $region56: #{fwd.1} parent=1 // pred_region
      %8454 = dma.done [#allocation10], 32
    $region57: #{fwd.1} parent=1 // pred_fallthru
      _
    %8455 = vsyncpa [#allocation8], 1
    %8456 = vsyncpa [#allocation10], 1

</llo_original>
